<compile_context>
chip_gen: v7x
topology: tpu7x:2x2x1
jax: 0.10.0
libtpu: 0.0.40
codegen_flags: <defaults>
</compile_context>

<pallas_src>
import math

import jax
import jax.numpy as jnp
from jax import lax
from jax.experimental import pallas as pl
from jax.experimental.pallas import tpu as pltpu

DILATIONS = (1, 3, 9)        # ResidualUnit dilations inside every DecoderBlock


# ---------------- in-kernel helpers (traced inside the Pallas body) ----------------

def _snake(x, alpha, alpha_inv):
    # snake(x) = x + (alpha + 1e-9)^-1 * sin(alpha*x)^2 ; reciprocal precomputed host-side
    return x + alpha_inv * jnp.square(jnp.sin(alpha * x))


def _conv1d_fused(x, w_fused, b, dilation, pad):
    # x: (Cin, L), w_fused: (Cout, K*Cin) with column index k*Cin + ci, b: (Cout, 1); stride 1
    cin, L = x.shape
    K = w_fused.shape[1] // cin
    if pad > 0:
        z = jnp.zeros((cin, pad), dtype=x.dtype)
        xp = jnp.concatenate([z, x, z], axis=-1)
    else:
        xp = x
    lout = L + 2 * pad - dilation * (K - 1)
    # Stack the K shifted tap views along the channel (sublane) axis -> ONE deep matmul
    taps = [xp[:, k * dilation: k * dilation + lout] for k in range(K)]
    xs = jnp.concatenate(taps, axis=0)                                   # (K*Cin, lout)
    return jnp.dot(w_fused, xs, preferred_element_type=jnp.float32) + b


def _conv_transpose1d(x, wt_ref, b, scat_ref):
    # x: (Cin, L); wt_ref: (K, Cout, Cin) per-tap transposed weights;
    # scat_ref: (K, L, Lout) host-precomputed 0/1 matrices, scat[k,i,t]=1 iff t==i*s+k-pad.
    # The positional "scatter" of the transposed conv is done as matmuls on the MXU.
    K, cout, _ = wt_ref.shape
    lout = scat_ref.shape[-1]
    acc = jnp.zeros((cout, lout), dtype=jnp.float32)
    for k in range(K):                                                   # K = 2*stride, static
        yk = jnp.dot(wt_ref[k], x, preferred_element_type=jnp.float32)   # (Cout, L)
        acc = acc + jnp.dot(yk, scat_ref[k], preferred_element_type=jnp.float32)
    return acc + b


# -------------------------------- Pallas kernel --------------------------------

def make_decoder_kernel(num_blocks):
    def kernel(*refs):
        x_ref, out_ref = refs[0], refs[-1]
        it = iter(refs[1:-1])
        nxt = lambda: next(it)                      # params consumed in pack order

        x = x_ref[0]                                                     # (C_in, L)
        # entry WNConv1d(k=7, pad=3)
        x = _conv1d_fused(x, nxt()[...], nxt()[...], 1, 3)

        for _ in range(num_blocks):                                      # DecoderBlocks
            x = _snake(x, nxt()[...], nxt()[...])                        # Snake1d(input_dim)
            x = _conv_transpose1d(x, nxt(), nxt()[...], nxt())           # WNConvTranspose1d
            ra_ref, rai_ref = nxt(), nxt()                               # (3, 2, C, 1)
            rw1_ref, rb1_ref, rw2_ref, rb2_ref = nxt(), nxt(), nxt(), nxt()
            for i, d in enumerate(DILATIONS):                            # 3 ResidualUnits
                y = _snake(x, ra_ref[i, 0], rai_ref[i, 0])
                y = _conv1d_fused(y, rw1_ref[i], rb1_ref[i], d, 3 * d)   # k=7 dilated conv
                y = _snake(y, ra_ref[i, 1], rai_ref[i, 1])
                y = jnp.dot(rw2_ref[i], y,                               # k=1 conv == matmul
                            preferred_element_type=jnp.float32) + rb2_ref[i]
                x = x + y                                                # lengths match -> no crop

        x = _snake(x, nxt()[...], nxt()[...])                            # final Snake1d
        x = _conv1d_fused(x, nxt()[...], nxt()[...], 1, 3)               # WNConv1d(k=7, pad=3)
        y = jnp.tanh(x)

        # Lane-dense output: write a full multiple-of-128 slab (zero tail), crop in wrapper.
        lpad = out_ref.shape[-1]
        if y.shape[-1] < lpad:
            y = jnp.concatenate(
                [y, jnp.zeros((y.shape[0], lpad - y.shape[-1]), dtype=y.dtype)], axis=-1)
        out_ref[0] = y.astype(out_ref.dtype)

    return kernel


# -------------------- host-side packing (layout work, plain JAX) --------------------

def _pack_inputs(params, rates, L):
    """Flatten params into the kernel consumption order: conv taps fused to (Cout, K*Cin),
    ConvTranspose weights transposed per tap + 0/1 scatter matrices, 1/alpha precomputed."""
    flat, flops, trans = [], 0, 0

    def add(a):
        flat.append(jnp.asarray(a, jnp.float32))

    def fuse_w(w):                        # (Cout, Cin, K) -> (Cout, K*Cin), k-major columns
        co, ci, k = w.shape
        return jnp.transpose(w, (0, 2, 1)).reshape(co, k * ci)

    def add_alpha(a):                     # snake alpha -> (C, 1) plus its reciprocal
        a = a.reshape(-1, 1)
        add(a)
        add(1.0 / (a + 1e-9))

    w, b = params["conv_in"]
    add(fuse_w(w)); add(b.reshape(-1, 1))
    flops += 2 * int(w.size) * L
    l_cur = L

    for blk, s in zip(params["blocks"], rates):
        add_alpha(blk["alpha"])
        trans += int(blk["alpha"].size) * l_cur

        wt = blk["convT_w"]               # effective ConvTranspose1d weight (Cin, Cout, K)
        cin, cout, K = wt.shape
        pad = math.ceil(s / 2)
        l_out = (l_cur - 1) * s + K - 2 * pad
        add(jnp.transpose(wt, (2, 1, 0)))                     # (K, Cout, Cin)
        add(blk["convT_b"].reshape(-1, 1))
        i_idx = jnp.arange(l_cur)[None, :, None]
        t_idx = jnp.arange(l_out)[None, None, :]
        k_idx = jnp.arange(K)[:, None, None]
        add((t_idx == i_idx * s + k_idx - pad).astype(jnp.float32))   # (K, L, Lout)
        flops += 2 * K * (cout * cin * l_cur + cout * l_cur * l_out)
        l_cur = l_out

        ru = blk["res"]
        ru_alpha = jnp.stack([jnp.stack([r["alpha1"], r["alpha2"]]) for r in ru])[..., None]
        add(ru_alpha)                                         # (3, 2, Cout, 1)
        add(1.0 / (ru_alpha + 1e-9))
        add(jnp.stack([fuse_w(r["w1"]) for r in ru]))         # (3, Cout, 7*Cout)
        add(jnp.stack([r["b1"][:, None] for r in ru]))        # (3, Cout, 1)
        add(jnp.stack([r["w2"][:, :, 0] for r in ru]))        # (3, Cout, Cout)
        add(jnp.stack([r["b2"][:, None] for r in ru]))        # (3, Cout, 1)
        flops += 2 * 3 * (7 * cout * cout + cout * cout) * l_cur
        trans += 6 * cout * l_cur

    add_alpha(params["alpha_out"])
    w, b = params["conv_out"]
    add(fuse_w(w)); add(b.reshape(-1, 1))
    flops += 2 * int(w.size) * l_cur
    trans += int(params["alpha_out"].size) * l_cur + int(w.shape[0]) * l_cur
    return flat, l_cur, flops, trans


def decoder_forward(x, params, rates):
    B, cin, L = x.shape
    flat, l_final, flops, trans = _pack_inputs(params, rates, L)
    d_out = params["conv_out"][0].shape[0]
    l_pad = ((l_final + 127) // 128) * 128              # lane-dense output slab

    def full_spec(a):
        nd = a.ndim
        return pl.BlockSpec(a.shape, lambda b, _nd=nd: (0,) * _nd)

    bytes_accessed = 4 * (int(x.size) + B * d_out * l_pad + sum(int(a.size) for a in flat))
    cost = pl.CostEstimate(flops=B * flops, transcendentals=B * trans,
                           bytes_accessed=bytes_accessed)

    # TODO(synk): for production-scale lengths, tile the length axis (halo 3+9+27+3 lanes)
    #             and pack batch onto lanes; at these sizes a full-length block fits VMEM.
    out = pl.pallas_call(
        make_decoder_kernel(len(rates)),
        out_shape=jax.ShapeDtypeStruct((B, d_out, l_pad), jnp.float32),
        grid=(B,),
        in_specs=[pl.BlockSpec((1, cin, L), lambda b: (b, 0, 0))]
                 + [full_spec(a) for a in flat],
        out_specs=pl.BlockSpec((1, d_out, l_pad), lambda b: (b, 0, 0)),
        compiler_params=pltpu.CompilerParams(
            # batch elements are independent -> both v7x TensorCores get work
            dimension_semantics=("parallel",)),
        cost_estimate=cost,
    )(x, *flat)
    return out[:, :, :l_final]


# ---------------------- parameter construction (glue, plain JAX) ----------------------

def weight_norm_eff(v, g):
    # PyTorch weight_norm (dim=0): w = g * v / ||v||, norm over all dims except dim 0
    axes = tuple(range(1, v.ndim))
    n = jnp.sqrt(jnp.sum(v * v, axis=axes, keepdims=True))
    return v * (g.reshape((-1,) + (1,) * (v.ndim - 1)) / n)


def make_params(key, input_channel, channels, rates, d_out=1):
    keys = iter(jax.random.split(key, 256))

    def nrm(shape, scale):
        return scale * jax.random.normal(next(keys), shape, jnp.float32)

    def wn_conv(cout, cin, k):        # effective Conv1d weight (Cout, Cin, K)
        return weight_norm_eff(nrm((cout, cin, k), 0.3), 1.0 + nrm((cout,), 0.1))

    def wn_convT(cin, cout, k):       # effective ConvTranspose1d weight (Cin, Cout, K)
        return weight_norm_eff(nrm((cin, cout, k), 0.3), 1.0 + nrm((cin,), 0.1))

    params = {"conv_in": (wn_conv(channels, input_channel, 7), nrm((channels,), 0.1))}
    blocks = []
    dim = channels
    for i, s in enumerate(rates):
        in_dim = channels // (2 ** i)
        out_dim = channels // (2 ** (i + 1))
        res = [{
            "alpha1": 1.0 + nrm((out_dim,), 0.1),
            "w1": wn_conv(out_dim, out_dim, 7),
            "b1": nrm((out_dim,), 0.1),
            "alpha2": 1.0 + nrm((out_dim,), 0.1),
            "w2": wn_conv(out_dim, out_dim, 1),
            "b2": nrm((out_dim,), 0.1),
        } for _d in DILATIONS]
        blocks.append({
            "alpha": 1.0 + nrm((in_dim,), 0.1),
            "convT_w": wn_convT(in_dim, out_dim, 2 * s),
            "convT_b": nrm((out_dim,), 0.1),
            "res": res,
        })
        dim = out_dim
    params["blocks"] = blocks
    params["alpha_out"] = 1.0 + nrm((dim,), 0.1)
    params["conv_out"] = (wn_conv(d_out, dim, 7), nrm((d_out,), 0.1))
    return params


# ---------------------- pure-JAX reference (validation only) ----------------------

def snake_ref(x, alpha):
    a = alpha[None, :, None]
    return x + (1.0 / (a + 1e-9)) * jnp.sin(a * x) ** 2


def conv1d_ref(x, w, b, pad, dilation=1):
    y = lax.conv_general_dilated(x, w, (1,), [(pad, pad)], rhs_dilation=(dilation,),
                                 dimension_numbers=("NCH", "OIH", "NCH"),
                                 precision=lax.Precision.HIGHEST)
    return y + b[None, :, None]


def conv_transpose1d_ref(x, w, b, stride, pad):
    K = w.shape[-1]
    w_oik = jnp.transpose(jnp.flip(w, axis=-1), (1, 0, 2))     # (Cout, Cin, K), taps flipped
    y = lax.conv_general_dilated(x, w_oik, (1,), [(K - 1 - pad, K - 1 - pad)],
                                 lhs_dilation=(stride,),
                                 dimension_numbers=("NCH", "OIH", "NCH"),
                                 precision=lax.Precision.HIGHEST)
    return y + b[None, :, None]


def decoder_ref(x, params, rates):
    w, b = params["conv_in"]
    x = conv1d_ref(x, w, b, 3)
    for blk, s in zip(params["blocks"], rates):
        x = snake_ref(x, blk["alpha"])
        x = conv_transpose1d_ref(x, blk["convT_w"], blk["convT_b"], s, math.ceil(s / 2))
        for d, ru in zip(DILATIONS, blk["res"]):
            y = snake_ref(x, ru["alpha1"])
            y = conv1d_ref(y, ru["w1"], ru["b1"], 3 * d, d)
            y = snake_ref(y, ru["alpha2"])
            y = conv1d_ref(y, ru["w2"], ru["b2"], 0, 1)
            crop = (x.shape[-1] - y.shape[-1]) // 2
            if crop > 0:
                x = x[..., crop:-crop]
            x = x + y
    x = snake_ref(x, params["alpha_out"])
    w, b = params["conv_out"]
    x = conv1d_ref(x, w, b, 3)
    return jnp.tanh(x)


# -------------------------------- main --------------------------------

if __name__ == "__main__":
    INPUT_CHANNEL, CHANNELS, RATES, D_OUT = 8, 32, (2, 2), 1
    B, L = 2, 16

    root = jax.random.PRNGKey(0)
    kp, kx = jax.random.split(root)
    params = make_params(kp, INPUT_CHANNEL, CHANNELS, RATES, D_OUT)
    x = jax.random.normal(kx, (B, INPUT_CHANNEL, L), dtype=jnp.float32)

    out = decoder_forward(x, params, RATES)
    out = jax.block_until_ready(out)

    ref = decoder_ref(x, params, RATES)
    assert out.shape == ref.shape == (B, D_OUT, L * 4), (out.shape, ref.shape)
    err = float(jnp.max(jnp.abs(out - ref)))
    assert jnp.allclose(out, ref, atol=5e-4, rtol=5e-4), err
    print("KERNEL_OK")
</pallas_src>

<mosaic_0001>
module attributes {stable_mosaic.version = 11 : i64} {
  func.func @kernel(%arg0: i32, %arg1: memref<1x8x16xf32, #tpu.memory_space<vmem>>, %arg2: memref<32x56xf32, #tpu.memory_space<vmem>>, %arg3: memref<32x1xf32, #tpu.memory_space<vmem>>, %arg4: memref<32x1xf32, #tpu.memory_space<vmem>>, %arg5: memref<32x1xf32, #tpu.memory_space<vmem>>, %arg6: memref<4x16x32xf32, #tpu.memory_space<vmem>>, %arg7: memref<16x1xf32, #tpu.memory_space<vmem>>, %arg8: memref<4x16x32xf32, #tpu.memory_space<vmem>>, %arg9: memref<3x2x16x1xf32, #tpu.memory_space<vmem>>, %arg10: memref<3x2x16x1xf32, #tpu.memory_space<vmem>>, %arg11: memref<3x16x112xf32, #tpu.memory_space<vmem>>, %arg12: memref<3x16x1xf32, #tpu.memory_space<vmem>>, %arg13: memref<3x16x16xf32, #tpu.memory_space<vmem>>, %arg14: memref<3x16x1xf32, #tpu.memory_space<vmem>>, %arg15: memref<16x1xf32, #tpu.memory_space<vmem>>, %arg16: memref<16x1xf32, #tpu.memory_space<vmem>>, %arg17: memref<4x8x16xf32, #tpu.memory_space<vmem>>, %arg18: memref<8x1xf32, #tpu.memory_space<vmem>>, %arg19: memref<4x32x64xf32, #tpu.memory_space<vmem>>, %arg20: memref<3x2x8x1xf32, #tpu.memory_space<vmem>>, %arg21: memref<3x2x8x1xf32, #tpu.memory_space<vmem>>, %arg22: memref<3x8x56xf32, #tpu.memory_space<vmem>>, %arg23: memref<3x8x1xf32, #tpu.memory_space<vmem>>, %arg24: memref<3x8x8xf32, #tpu.memory_space<vmem>>, %arg25: memref<3x8x1xf32, #tpu.memory_space<vmem>>, %arg26: memref<8x1xf32, #tpu.memory_space<vmem>>, %arg27: memref<8x1xf32, #tpu.memory_space<vmem>>, %arg28: memref<1x56xf32, #tpu.memory_space<vmem>>, %arg29: memref<1x1xf32, #tpu.memory_space<vmem>>, %arg30: memref<1x1x128xf32, #tpu.memory_space<vmem>>) attributes {dimension_semantics = [#tpu.dimension_semantics<parallel>], iteration_bounds = array<i64: 2>, scalar_prefetch = 0 : i64, scratch_operands = 0 : i64, tpu.core_type = #tpu.core_type<tc>, window_params = [{transform_indices = @transform_0, window_bounds = array<i64: 1, 8, 16>}, {pipeline_mode = #tpu.pipeline_mode<synchronous>, transform_indices = @transform_1, window_bounds = array<i64: 32, 56>}, {pipeline_mode = #tpu.pipeline_mode<synchronous>, transform_indices = @transform_2, window_bounds = array<i64: 32, 1>}, {pipeline_mode = #tpu.pipeline_mode<synchronous>, transform_indices = @transform_3, window_bounds = array<i64: 32, 1>}, {pipeline_mode = #tpu.pipeline_mode<synchronous>, transform_indices = @transform_4, window_bounds = array<i64: 32, 1>}, {pipeline_mode = #tpu.pipeline_mode<synchronous>, transform_indices = @transform_5, window_bounds = array<i64: 4, 16, 32>}, {pipeline_mode = #tpu.pipeline_mode<synchronous>, transform_indices = @transform_6, window_bounds = array<i64: 16, 1>}, {pipeline_mode = #tpu.pipeline_mode<synchronous>, transform_indices = @transform_7, window_bounds = array<i64: 4, 16, 32>}, {pipeline_mode = #tpu.pipeline_mode<synchronous>, transform_indices = @transform_8, window_bounds = array<i64: 3, 2, 16, 1>}, {pipeline_mode = #tpu.pipeline_mode<synchronous>, transform_indices = @transform_9, window_bounds = array<i64: 3, 2, 16, 1>}, {pipeline_mode = #tpu.pipeline_mode<synchronous>, transform_indices = @transform_10, window_bounds = array<i64: 3, 16, 112>}, {pipeline_mode = #tpu.pipeline_mode<synchronous>, transform_indices = @transform_11, window_bounds = array<i64: 3, 16, 1>}, {pipeline_mode = #tpu.pipeline_mode<synchronous>, transform_indices = @transform_12, window_bounds = array<i64: 3, 16, 16>}, {pipeline_mode = #tpu.pipeline_mode<synchronous>, transform_indices = @transform_13, window_bounds = array<i64: 3, 16, 1>}, {pipeline_mode = #tpu.pipeline_mode<synchronous>, transform_indices = @transform_14, window_bounds = array<i64: 16, 1>}, {pipeline_mode = #tpu.pipeline_mode<synchronous>, transform_indices = @transform_15, window_bounds = array<i64: 16, 1>}, {pipeline_mode = #tpu.pipeline_mode<synchronous>, transform_indices = @transform_16, window_bounds = array<i64: 4, 8, 16>}, {pipeline_mode = #tpu.pipeline_mode<synchronous>, transform_indices = @transform_17, window_bounds = array<i64: 8, 1>}, {pipeline_mode = #tpu.pipeline_mode<synchronous>, transform_indices = @transform_18, window_bounds = array<i64: 4, 32, 64>}, {pipeline_mode = #tpu.pipeline_mode<synchronous>, transform_indices = @transform_19, window_bounds = array<i64: 3, 2, 8, 1>}, {pipeline_mode = #tpu.pipeline_mode<synchronous>, transform_indices = @transform_20, window_bounds = array<i64: 3, 2, 8, 1>}, {pipeline_mode = #tpu.pipeline_mode<synchronous>, transform_indices = @transform_21, window_bounds = array<i64: 3, 8, 56>}, {pipeline_mode = #tpu.pipeline_mode<synchronous>, transform_indices = @transform_22, window_bounds = array<i64: 3, 8, 1>}, {pipeline_mode = #tpu.pipeline_mode<synchronous>, transform_indices = @transform_23, window_bounds = array<i64: 3, 8, 8>}, {pipeline_mode = #tpu.pipeline_mode<synchronous>, transform_indices = @transform_24, window_bounds = array<i64: 3, 8, 1>}, {pipeline_mode = #tpu.pipeline_mode<synchronous>, transform_indices = @transform_25, window_bounds = array<i64: 8, 1>}, {pipeline_mode = #tpu.pipeline_mode<synchronous>, transform_indices = @transform_26, window_bounds = array<i64: 8, 1>}, {pipeline_mode = #tpu.pipeline_mode<synchronous>, transform_indices = @transform_27, window_bounds = array<i64: 1, 56>}, {pipeline_mode = #tpu.pipeline_mode<synchronous>, transform_indices = @transform_28, window_bounds = array<i64: 1, 1>}, {transform_indices = @transform_29, window_bounds = array<i64: 1, 1, 128>}]} {
    %c0 = arith.constant 0 : index
    %c0_0 = arith.constant 0 : index
    %c0_1 = arith.constant 0 : index
    %0 = vector.load %arg1[%c0, %c0_0, %c0_1] : memref<1x8x16xf32, #tpu.memory_space<vmem>>, vector<1x8x16xf32>
    %1 = vector.shape_cast %0 : vector<1x8x16xf32> to vector<8x16xf32>
    %c0_2 = arith.constant 0 : index
    %c0_3 = arith.constant 0 : index
    %2 = vector.load %arg2[%c0_2, %c0_3] : memref<32x56xf32, #tpu.memory_space<vmem>>, vector<32x56xf32>
    %c0_4 = arith.constant 0 : index
    %c0_5 = arith.constant 0 : index
    %3 = vector.load %arg3[%c0_4, %c0_5] : memref<32x1xf32, #tpu.memory_space<vmem>>, vector<32x1xf32>
    %cst = arith.constant 0.000000e+00 : f32
    %4 = vector.broadcast %cst : f32 to vector<8x3xf32>
    %5 = tpu.concatenate %4, %1, %4 in 1 : vector<8x3xf32>, vector<8x16xf32>, vector<8x3xf32> -> vector<8x22xf32>
    %6 = vector.extract_strided_slice %5 {offsets = [0, 0], sizes = [8, 16], strides = [1, 1]} : vector<8x22xf32> to vector<8x16xf32>
    %7 = vector.extract_strided_slice %5 {offsets = [0, 1], sizes = [8, 16], strides = [1, 1]} : vector<8x22xf32> to vector<8x16xf32>
    %8 = vector.extract_strided_slice %5 {offsets = [0, 2], sizes = [8, 16], strides = [1, 1]} : vector<8x22xf32> to vector<8x16xf32>
    %9 = vector.extract_strided_slice %5 {offsets = [0, 3], sizes = [8, 16], strides = [1, 1]} : vector<8x22xf32> to vector<8x16xf32>
    %10 = vector.extract_strided_slice %5 {offsets = [0, 4], sizes = [8, 16], strides = [1, 1]} : vector<8x22xf32> to vector<8x16xf32>
    %11 = vector.extract_strided_slice %5 {offsets = [0, 5], sizes = [8, 16], strides = [1, 1]} : vector<8x22xf32> to vector<8x16xf32>
    %12 = vector.extract_strided_slice %5 {offsets = [0, 6], sizes = [8, 16], strides = [1, 1]} : vector<8x22xf32> to vector<8x16xf32>
    %13 = tpu.concatenate %6, %7, %8, %9, %10, %11, %12 in 0 : vector<8x16xf32>, vector<8x16xf32>, vector<8x16xf32>, vector<8x16xf32>, vector<8x16xf32>, vector<8x16xf32>, vector<8x16xf32> -> vector<56x16xf32>
    %cst_6 = arith.constant dense<0.000000e+00> : vector<32x16xf32>
    %14 = tpu.matmul %2, %13, %cst_6 {dimension_numbers = #tpu.dot_dimension_numbers<[1], [0], [0], [1], [0, 0, 1, 1], [], []>} : vector<32x56xf32>, vector<56x16xf32>, vector<32x16xf32> -> vector<32x16xf32>
    %15 = vector.broadcast %3 : vector<32x1xf32> to vector<32x16xf32>
    %16 = arith.addf %14, %15 : vector<32x16xf32>
    %c0_7 = arith.constant 0 : index
    %c0_8 = arith.constant 0 : index
    %17 = vector.load %arg4[%c0_7, %c0_8] : memref<32x1xf32, #tpu.memory_space<vmem>>, vector<32x1xf32>
    %c0_9 = arith.constant 0 : index
    %c0_10 = arith.constant 0 : index
    %18 = vector.load %arg5[%c0_9, %c0_10] : memref<32x1xf32, #tpu.memory_space<vmem>>, vector<32x1xf32>
    %19 = vector.broadcast %17 : vector<32x1xf32> to vector<32x16xf32>
    %20 = arith.mulf %19, %16 : vector<32x16xf32>
    %21 = math.sin %20 : vector<32x16xf32>
    %22 = arith.mulf %21, %21 : vector<32x16xf32>
    %23 = vector.broadcast %18 : vector<32x1xf32> to vector<32x16xf32>
    %24 = arith.mulf %23, %22 : vector<32x16xf32>
    %25 = arith.addf %16, %24 : vector<32x16xf32>
    %c0_11 = arith.constant 0 : index
    %c0_12 = arith.constant 0 : index
    %26 = vector.load %arg7[%c0_11, %c0_12] : memref<16x1xf32, #tpu.memory_space<vmem>>, vector<16x1xf32>
    %cst_13 = arith.constant 0.000000e+00 : f32
    %27 = vector.broadcast %cst_13 : f32 to vector<16x32xf32>
    %c0_14 = arith.constant 0 : index
    %c0_15 = arith.constant 0 : index
    %c0_16 = arith.constant 0 : index
    %28 = vector.load %arg6[%c0_14, %c0_15, %c0_16] : memref<4x16x32xf32, #tpu.memory_space<vmem>>, vector<1x16x32xf32>
    %29 = vector.shape_cast %28 : vector<1x16x32xf32> to vector<16x32xf32>
    %cst_17 = arith.constant dense<0.000000e+00> : vector<16x16xf32>
    %30 = tpu.matmul %29, %25, %cst_17 {dimension_numbers = #tpu.dot_dimension_numbers<[1], [0], [0], [1], [0, 0, 1, 1], [], []>} : vector<16x32xf32>, vector<32x16xf32>, vector<16x16xf32> -> vector<16x16xf32>
    %c0_18 = arith.constant 0 : index
    %c0_19 = arith.constant 0 : index
    %c0_20 = arith.constant 0 : index
    %31 = vector.load %arg8[%c0_18, %c0_19, %c0_20] : memref<4x16x32xf32, #tpu.memory_space<vmem>>, vector<1x16x32xf32>
    %32 = vector.shape_cast %31 : vector<1x16x32xf32> to vector<16x32xf32>
    %cst_21 = arith.constant dense<0.000000e+00> : vector<16x32xf32>
    %33 = tpu.matmul %30, %32, %cst_21 {dimension_numbers = #tpu.dot_dimension_numbers<[1], [0], [0], [1], [0, 0, 1, 1], [], []>} : vector<16x16xf32>, vector<16x32xf32>, vector<16x32xf32> -> vector<16x32xf32>
    %34 = arith.addf %27, %33 : vector<16x32xf32>
    %c1 = arith.constant 1 : index
    %c0_22 = arith.constant 0 : index
    %c0_23 = arith.constant 0 : index
    %35 = vector.load %arg6[%c1, %c0_22, %c0_23] : memref<4x16x32xf32, #tpu.memory_space<vmem>>, vector<1x16x32xf32>
    %36 = vector.shape_cast %35 : vector<1x16x32xf32> to vector<16x32xf32>
    %cst_24 = arith.constant dense<0.000000e+00> : vector<16x16xf32>
    %37 = tpu.matmul %36, %25, %cst_24 {dimension_numbers = #tpu.dot_dimension_numbers<[1], [0], [0], [1], [0, 0, 1, 1], [], []>} : vector<16x32xf32>, vector<32x16xf32>, vector<16x16xf32> -> vector<16x16xf32>
    %c1_25 = arith.constant 1 : index
    %c0_26 = arith.constant 0 : index
    %c0_27 = arith.constant 0 : index
    %38 = vector.load %arg8[%c1_25, %c0_26, %c0_27] : memref<4x16x32xf32, #tpu.memory_space<vmem>>, vector<1x16x32xf32>
    %39 = vector.shape_cast %38 : vector<1x16x32xf32> to vector<16x32xf32>
    %cst_28 = arith.constant dense<0.000000e+00> : vector<16x32xf32>
    %40 = tpu.matmul %37, %39, %cst_28 {dimension_numbers = #tpu.dot_dimension_numbers<[1], [0], [0], [1], [0, 0, 1, 1], [], []>} : vector<16x16xf32>, vector<16x32xf32>, vector<16x32xf32> -> vector<16x32xf32>
    %41 = arith.addf %34, %40 : vector<16x32xf32>
    %c2 = arith.constant 2 : index
    %c0_29 = arith.constant 0 : index
    %c0_30 = arith.constant 0 : index
    %42 = vector.load %arg6[%c2, %c0_29, %c0_30] : memref<4x16x32xf32, #tpu.memory_space<vmem>>, vector<1x16x32xf32>
    %43 = vector.shape_cast %42 : vector<1x16x32xf32> to vector<16x32xf32>
    %cst_31 = arith.constant dense<0.000000e+00> : vector<16x16xf32>
    %44 = tpu.matmul %43, %25, %cst_31 {dimension_numbers = #tpu.dot_dimension_numbers<[1], [0], [0], [1], [0, 0, 1, 1], [], []>} : vector<16x32xf32>, vector<32x16xf32>, vector<16x16xf32> -> vector<16x16xf32>
    %c2_32 = arith.constant 2 : index
    %c0_33 = arith.constant 0 : index
    %c0_34 = arith.constant 0 : index
    %45 = vector.load %arg8[%c2_32, %c0_33, %c0_34] : memref<4x16x32xf32, #tpu.memory_space<vmem>>, vector<1x16x32xf32>
    %46 = vector.shape_cast %45 : vector<1x16x32xf32> to vector<16x32xf32>
    %cst_35 = arith.constant dense<0.000000e+00> : vector<16x32xf32>
    %47 = tpu.matmul %44, %46, %cst_35 {dimension_numbers = #tpu.dot_dimension_numbers<[1], [0], [0], [1], [0, 0, 1, 1], [], []>} : vector<16x16xf32>, vector<16x32xf32>, vector<16x32xf32> -> vector<16x32xf32>
    %48 = arith.addf %41, %47 : vector<16x32xf32>
    %c3 = arith.constant 3 : index
    %c0_36 = arith.constant 0 : index
    %c0_37 = arith.constant 0 : index
    %49 = vector.load %arg6[%c3, %c0_36, %c0_37] : memref<4x16x32xf32, #tpu.memory_space<vmem>>, vector<1x16x32xf32>
    %50 = vector.shape_cast %49 : vector<1x16x32xf32> to vector<16x32xf32>
    %cst_38 = arith.constant dense<0.000000e+00> : vector<16x16xf32>
    %51 = tpu.matmul %50, %25, %cst_38 {dimension_numbers = #tpu.dot_dimension_numbers<[1], [0], [0], [1], [0, 0, 1, 1], [], []>} : vector<16x32xf32>, vector<32x16xf32>, vector<16x16xf32> -> vector<16x16xf32>
    %c3_39 = arith.constant 3 : index
    %c0_40 = arith.constant 0 : index
    %c0_41 = arith.constant 0 : index
    %52 = vector.load %arg8[%c3_39, %c0_40, %c0_41] : memref<4x16x32xf32, #tpu.memory_space<vmem>>, vector<1x16x32xf32>
    %53 = vector.shape_cast %52 : vector<1x16x32xf32> to vector<16x32xf32>
    %cst_42 = arith.constant dense<0.000000e+00> : vector<16x32xf32>
    %54 = tpu.matmul %51, %53, %cst_42 {dimension_numbers = #tpu.dot_dimension_numbers<[1], [0], [0], [1], [0, 0, 1, 1], [], []>} : vector<16x16xf32>, vector<16x32xf32>, vector<16x32xf32> -> vector<16x32xf32>
    %55 = arith.addf %48, %54 : vector<16x32xf32>
    %56 = vector.broadcast %26 : vector<16x1xf32> to vector<16x32xf32>
    %57 = arith.addf %55, %56 : vector<16x32xf32>
    %c0_43 = arith.constant 0 : index
    %c0_44 = arith.constant 0 : index
    %c0_45 = arith.constant 0 : index
    %c0_46 = arith.constant 0 : index
    %58 = vector.load %arg9[%c0_43, %c0_44, %c0_45, %c0_46] : memref<3x2x16x1xf32, #tpu.memory_space<vmem>>, vector<1x1x16x1xf32>
    %59 = vector.shape_cast %58 : vector<1x1x16x1xf32> to vector<16x1xf32>
    %c0_47 = arith.constant 0 : index
    %c0_48 = arith.constant 0 : index
    %c0_49 = arith.constant 0 : index
    %c0_50 = arith.constant 0 : index
    %60 = vector.load %arg10[%c0_47, %c0_48, %c0_49, %c0_50] : memref<3x2x16x1xf32, #tpu.memory_space<vmem>>, vector<1x1x16x1xf32>
    %61 = vector.shape_cast %60 : vector<1x1x16x1xf32> to vector<16x1xf32>
    %62 = vector.broadcast %59 : vector<16x1xf32> to vector<16x32xf32>
    %63 = arith.mulf %62, %57 : vector<16x32xf32>
    %64 = math.sin %63 : vector<16x32xf32>
    %65 = arith.mulf %64, %64 : vector<16x32xf32>
    %66 = vector.broadcast %61 : vector<16x1xf32> to vector<16x32xf32>
    %67 = arith.mulf %66, %65 : vector<16x32xf32>
    %68 = arith.addf %57, %67 : vector<16x32xf32>
    %c0_51 = arith.constant 0 : index
    %c0_52 = arith.constant 0 : index
    %c0_53 = arith.constant 0 : index
    %69 = vector.load %arg11[%c0_51, %c0_52, %c0_53] : memref<3x16x112xf32, #tpu.memory_space<vmem>>, vector<1x16x112xf32>
    %70 = vector.shape_cast %69 : vector<1x16x112xf32> to vector<16x112xf32>
    %c0_54 = arith.constant 0 : index
    %c0_55 = arith.constant 0 : index
    %c0_56 = arith.constant 0 : index
    %71 = vector.load %arg12[%c0_54, %c0_55, %c0_56] : memref<3x16x1xf32, #tpu.memory_space<vmem>>, vector<1x16x1xf32>
    %72 = vector.shape_cast %71 : vector<1x16x1xf32> to vector<16x1xf32>
    %cst_57 = arith.constant 0.000000e+00 : f32
    %73 = vector.broadcast %cst_57 : f32 to vector<16x3xf32>
    %74 = tpu.concatenate %73, %68, %73 in 1 : vector<16x3xf32>, vector<16x32xf32>, vector<16x3xf32> -> vector<16x38xf32>
    %75 = vector.extract_strided_slice %74 {offsets = [0, 0], sizes = [16, 32], strides = [1, 1]} : vector<16x38xf32> to vector<16x32xf32>
    %76 = vector.extract_strided_slice %74 {offsets = [0, 1], sizes = [16, 32], strides = [1, 1]} : vector<16x38xf32> to vector<16x32xf32>
    %77 = vector.extract_strided_slice %74 {offsets = [0, 2], sizes = [16, 32], strides = [1, 1]} : vector<16x38xf32> to vector<16x32xf32>
    %78 = vector.extract_strided_slice %74 {offsets = [0, 3], sizes = [16, 32], strides = [1, 1]} : vector<16x38xf32> to vector<16x32xf32>
    %79 = vector.extract_strided_slice %74 {offsets = [0, 4], sizes = [16, 32], strides = [1, 1]} : vector<16x38xf32> to vector<16x32xf32>
    %80 = vector.extract_strided_slice %74 {offsets = [0, 5], sizes = [16, 32], strides = [1, 1]} : vector<16x38xf32> to vector<16x32xf32>
    %81 = vector.extract_strided_slice %74 {offsets = [0, 6], sizes = [16, 32], strides = [1, 1]} : vector<16x38xf32> to vector<16x32xf32>
    %82 = tpu.concatenate %75, %76, %77, %78, %79, %80, %81 in 0 : vector<16x32xf32>, vector<16x32xf32>, vector<16x32xf32>, vector<16x32xf32>, vector<16x32xf32>, vector<16x32xf32>, vector<16x32xf32> -> vector<112x32xf32>
    %cst_58 = arith.constant dense<0.000000e+00> : vector<16x32xf32>
    %83 = tpu.matmul %70, %82, %cst_58 {dimension_numbers = #tpu.dot_dimension_numbers<[1], [0], [0], [1], [0, 0, 1, 1], [], []>} : vector<16x112xf32>, vector<112x32xf32>, vector<16x32xf32> -> vector<16x32xf32>
    %84 = vector.broadcast %72 : vector<16x1xf32> to vector<16x32xf32>
    %85 = arith.addf %83, %84 : vector<16x32xf32>
    %c0_59 = arith.constant 0 : index
    %c1_60 = arith.constant 1 : index
    %c0_61 = arith.constant 0 : index
    %c0_62 = arith.constant 0 : index
    %86 = vector.load %arg9[%c0_59, %c1_60, %c0_61, %c0_62] : memref<3x2x16x1xf32, #tpu.memory_space<vmem>>, vector<1x1x16x1xf32>
    %87 = vector.shape_cast %86 : vector<1x1x16x1xf32> to vector<16x1xf32>
    %c0_63 = arith.constant 0 : index
    %c1_64 = arith.constant 1 : index
    %c0_65 = arith.constant 0 : index
    %c0_66 = arith.constant 0 : index
    %88 = vector.load %arg10[%c0_63, %c1_64, %c0_65, %c0_66] : memref<3x2x16x1xf32, #tpu.memory_space<vmem>>, vector<1x1x16x1xf32>
    %89 = vector.shape_cast %88 : vector<1x1x16x1xf32> to vector<16x1xf32>
    %90 = vector.broadcast %87 : vector<16x1xf32> to vector<16x32xf32>
    %91 = arith.mulf %90, %85 : vector<16x32xf32>
    %92 = math.sin %91 : vector<16x32xf32>
    %93 = arith.mulf %92, %92 : vector<16x32xf32>
    %94 = vector.broadcast %89 : vector<16x1xf32> to vector<16x32xf32>
    %95 = arith.mulf %94, %93 : vector<16x32xf32>
    %96 = arith.addf %85, %95 : vector<16x32xf32>
    %c0_67 = arith.constant 0 : index
    %c0_68 = arith.constant 0 : index
    %c0_69 = arith.constant 0 : index
    %97 = vector.load %arg13[%c0_67, %c0_68, %c0_69] : memref<3x16x16xf32, #tpu.memory_space<vmem>>, vector<1x16x16xf32>
    %98 = vector.shape_cast %97 : vector<1x16x16xf32> to vector<16x16xf32>
    %cst_70 = arith.constant dense<0.000000e+00> : vector<16x32xf32>
    %99 = tpu.matmul %98, %96, %cst_70 {dimension_numbers = #tpu.dot_dimension_numbers<[1], [0], [0], [1], [0, 0, 1, 1], [], []>} : vector<16x16xf32>, vector<16x32xf32>, vector<16x32xf32> -> vector<16x32xf32>
    %c0_71 = arith.constant 0 : index
    %c0_72 = arith.constant 0 : index
    %c0_73 = arith.constant 0 : index
    %100 = vector.load %arg14[%c0_71, %c0_72, %c0_73] : memref<3x16x1xf32, #tpu.memory_space<vmem>>, vector<1x16x1xf32>
    %101 = vector.shape_cast %100 : vector<1x16x1xf32> to vector<16x1xf32>
    %102 = vector.broadcast %101 : vector<16x1xf32> to vector<16x32xf32>
    %103 = arith.addf %99, %102 : vector<16x32xf32>
    %104 = arith.addf %57, %103 : vector<16x32xf32>
    %c1_74 = arith.constant 1 : index
    %c0_75 = arith.constant 0 : index
    %c0_76 = arith.constant 0 : index
    %c0_77 = arith.constant 0 : index
    %105 = vector.load %arg9[%c1_74, %c0_75, %c0_76, %c0_77] : memref<3x2x16x1xf32, #tpu.memory_space<vmem>>, vector<1x1x16x1xf32>
    %106 = vector.shape_cast %105 : vector<1x1x16x1xf32> to vector<16x1xf32>
    %c1_78 = arith.constant 1 : index
    %c0_79 = arith.constant 0 : index
    %c0_80 = arith.constant 0 : index
    %c0_81 = arith.constant 0 : index
    %107 = vector.load %arg10[%c1_78, %c0_79, %c0_80, %c0_81] : memref<3x2x16x1xf32, #tpu.memory_space<vmem>>, vector<1x1x16x1xf32>
    %108 = vector.shape_cast %107 : vector<1x1x16x1xf32> to vector<16x1xf32>
    %109 = vector.broadcast %106 : vector<16x1xf32> to vector<16x32xf32>
    %110 = arith.mulf %109, %104 : vector<16x32xf32>
    %111 = math.sin %110 : vector<16x32xf32>
    %112 = arith.mulf %111, %111 : vector<16x32xf32>
    %113 = vector.broadcast %108 : vector<16x1xf32> to vector<16x32xf32>
    %114 = arith.mulf %113, %112 : vector<16x32xf32>
    %115 = arith.addf %104, %114 : vector<16x32xf32>
    %c1_82 = arith.constant 1 : index
    %c0_83 = arith.constant 0 : index
    %c0_84 = arith.constant 0 : index
    %116 = vector.load %arg11[%c1_82, %c0_83, %c0_84] : memref<3x16x112xf32, #tpu.memory_space<vmem>>, vector<1x16x112xf32>
    %117 = vector.shape_cast %116 : vector<1x16x112xf32> to vector<16x112xf32>
    %c1_85 = arith.constant 1 : index
    %c0_86 = arith.constant 0 : index
    %c0_87 = arith.constant 0 : index
    %118 = vector.load %arg12[%c1_85, %c0_86, %c0_87] : memref<3x16x1xf32, #tpu.memory_space<vmem>>, vector<1x16x1xf32>
    %119 = vector.shape_cast %118 : vector<1x16x1xf32> to vector<16x1xf32>
    %cst_88 = arith.constant 0.000000e+00 : f32
    %120 = vector.broadcast %cst_88 : f32 to vector<16x9xf32>
    %121 = tpu.concatenate %120, %115, %120 in 1 : vector<16x9xf32>, vector<16x32xf32>, vector<16x9xf32> -> vector<16x50xf32>
    %122 = vector.extract_strided_slice %121 {offsets = [0, 0], sizes = [16, 32], strides = [1, 1]} : vector<16x50xf32> to vector<16x32xf32>
    %123 = vector.extract_strided_slice %121 {offsets = [0, 3], sizes = [16, 32], strides = [1, 1]} : vector<16x50xf32> to vector<16x32xf32>
    %124 = vector.extract_strided_slice %121 {offsets = [0, 6], sizes = [16, 32], strides = [1, 1]} : vector<16x50xf32> to vector<16x32xf32>
    %125 = vector.extract_strided_slice %121 {offsets = [0, 9], sizes = [16, 32], strides = [1, 1]} : vector<16x50xf32> to vector<16x32xf32>
    %126 = vector.extract_strided_slice %121 {offsets = [0, 12], sizes = [16, 32], strides = [1, 1]} : vector<16x50xf32> to vector<16x32xf32>
    %127 = vector.extract_strided_slice %121 {offsets = [0, 15], sizes = [16, 32], strides = [1, 1]} : vector<16x50xf32> to vector<16x32xf32>
    %128 = vector.extract_strided_slice %121 {offsets = [0, 18], sizes = [16, 32], strides = [1, 1]} : vector<16x50xf32> to vector<16x32xf32>
    %129 = tpu.concatenate %122, %123, %124, %125, %126, %127, %128 in 0 : vector<16x32xf32>, vector<16x32xf32>, vector<16x32xf32>, vector<16x32xf32>, vector<16x32xf32>, vector<16x32xf32>, vector<16x32xf32> -> vector<112x32xf32>
    %cst_89 = arith.constant dense<0.000000e+00> : vector<16x32xf32>
    %130 = tpu.matmul %117, %129, %cst_89 {dimension_numbers = #tpu.dot_dimension_numbers<[1], [0], [0], [1], [0, 0, 1, 1], [], []>} : vector<16x112xf32>, vector<112x32xf32>, vector<16x32xf32> -> vector<16x32xf32>
    %131 = vector.broadcast %119 : vector<16x1xf32> to vector<16x32xf32>
    %132 = arith.addf %130, %131 : vector<16x32xf32>
    %c1_90 = arith.constant 1 : index
    %c1_91 = arith.constant 1 : index
    %c0_92 = arith.constant 0 : index
    %c0_93 = arith.constant 0 : index
    %133 = vector.load %arg9[%c1_90, %c1_91, %c0_92, %c0_93] : memref<3x2x16x1xf32, #tpu.memory_space<vmem>>, vector<1x1x16x1xf32>
    %134 = vector.shape_cast %133 : vector<1x1x16x1xf32> to vector<16x1xf32>
    %c1_94 = arith.constant 1 : index
    %c1_95 = arith.constant 1 : index
    %c0_96 = arith.constant 0 : index
    %c0_97 = arith.constant 0 : index
    %135 = vector.load %arg10[%c1_94, %c1_95, %c0_96, %c0_97] : memref<3x2x16x1xf32, #tpu.memory_space<vmem>>, vector<1x1x16x1xf32>
    %136 = vector.shape_cast %135 : vector<1x1x16x1xf32> to vector<16x1xf32>
    %137 = vector.broadcast %134 : vector<16x1xf32> to vector<16x32xf32>
    %138 = arith.mulf %137, %132 : vector<16x32xf32>
    %139 = math.sin %138 : vector<16x32xf32>
    %140 = arith.mulf %139, %139 : vector<16x32xf32>
    %141 = vector.broadcast %136 : vector<16x1xf32> to vector<16x32xf32>
    %142 = arith.mulf %141, %140 : vector<16x32xf32>
    %143 = arith.addf %132, %142 : vector<16x32xf32>
    %c1_98 = arith.constant 1 : index
    %c0_99 = arith.constant 0 : index
    %c0_100 = arith.constant 0 : index
    %144 = vector.load %arg13[%c1_98, %c0_99, %c0_100] : memref<3x16x16xf32, #tpu.memory_space<vmem>>, vector<1x16x16xf32>
    %145 = vector.shape_cast %144 : vector<1x16x16xf32> to vector<16x16xf32>
    %cst_101 = arith.constant dense<0.000000e+00> : vector<16x32xf32>
    %146 = tpu.matmul %145, %143, %cst_101 {dimension_numbers = #tpu.dot_dimension_numbers<[1], [0], [0], [1], [0, 0, 1, 1], [], []>} : vector<16x16xf32>, vector<16x32xf32>, vector<16x32xf32> -> vector<16x32xf32>
    %c1_102 = arith.constant 1 : index
    %c0_103 = arith.constant 0 : index
    %c0_104 = arith.constant 0 : index
    %147 = vector.load %arg14[%c1_102, %c0_103, %c0_104] : memref<3x16x1xf32, #tpu.memory_space<vmem>>, vector<1x16x1xf32>
    %148 = vector.shape_cast %147 : vector<1x16x1xf32> to vector<16x1xf32>
    %149 = vector.broadcast %148 : vector<16x1xf32> to vector<16x32xf32>
    %150 = arith.addf %146, %149 : vector<16x32xf32>
    %151 = arith.addf %104, %150 : vector<16x32xf32>
    %c2_105 = arith.constant 2 : index
    %c0_106 = arith.constant 0 : index
    %c0_107 = arith.constant 0 : index
    %c0_108 = arith.constant 0 : index
    %152 = vector.load %arg9[%c2_105, %c0_106, %c0_107, %c0_108] : memref<3x2x16x1xf32, #tpu.memory_space<vmem>>, vector<1x1x16x1xf32>
    %153 = vector.shape_cast %152 : vector<1x1x16x1xf32> to vector<16x1xf32>
    %c2_109 = arith.constant 2 : index
    %c0_110 = arith.constant 0 : index
    %c0_111 = arith.constant 0 : index
    %c0_112 = arith.constant 0 : index
    %154 = vector.load %arg10[%c2_109, %c0_110, %c0_111, %c0_112] : memref<3x2x16x1xf32, #tpu.memory_space<vmem>>, vector<1x1x16x1xf32>
    %155 = vector.shape_cast %154 : vector<1x1x16x1xf32> to vector<16x1xf32>
    %156 = vector.broadcast %153 : vector<16x1xf32> to vector<16x32xf32>
    %157 = arith.mulf %156, %151 : vector<16x32xf32>
    %158 = math.sin %157 : vector<16x32xf32>
    %159 = arith.mulf %158, %158 : vector<16x32xf32>
    %160 = vector.broadcast %155 : vector<16x1xf32> to vector<16x32xf32>
    %161 = arith.mulf %160, %159 : vector<16x32xf32>
    %162 = arith.addf %151, %161 : vector<16x32xf32>
    %c2_113 = arith.constant 2 : index
    %c0_114 = arith.constant 0 : index
    %c0_115 = arith.constant 0 : index
    %163 = vector.load %arg11[%c2_113, %c0_114, %c0_115] : memref<3x16x112xf32, #tpu.memory_space<vmem>>, vector<1x16x112xf32>
    %164 = vector.shape_cast %163 : vector<1x16x112xf32> to vector<16x112xf32>
    %c2_116 = arith.constant 2 : index
    %c0_117 = arith.constant 0 : index
    %c0_118 = arith.constant 0 : index
    %165 = vector.load %arg12[%c2_116, %c0_117, %c0_118] : memref<3x16x1xf32, #tpu.memory_space<vmem>>, vector<1x16x1xf32>
    %166 = vector.shape_cast %165 : vector<1x16x1xf32> to vector<16x1xf32>
    %cst_119 = arith.constant 0.000000e+00 : f32
    %167 = vector.broadcast %cst_119 : f32 to vector<16x27xf32>
    %168 = tpu.concatenate %167, %162, %167 in 1 : vector<16x27xf32>, vector<16x32xf32>, vector<16x27xf32> -> vector<16x86xf32>
    %169 = vector.extract_strided_slice %168 {offsets = [0, 0], sizes = [16, 32], strides = [1, 1]} : vector<16x86xf32> to vector<16x32xf32>
    %170 = vector.extract_strided_slice %168 {offsets = [0, 9], sizes = [16, 32], strides = [1, 1]} : vector<16x86xf32> to vector<16x32xf32>
    %171 = vector.extract_strided_slice %168 {offsets = [0, 18], sizes = [16, 32], strides = [1, 1]} : vector<16x86xf32> to vector<16x32xf32>
    %172 = vector.extract_strided_slice %168 {offsets = [0, 27], sizes = [16, 32], strides = [1, 1]} : vector<16x86xf32> to vector<16x32xf32>
    %173 = vector.extract_strided_slice %168 {offsets = [0, 36], sizes = [16, 32], strides = [1, 1]} : vector<16x86xf32> to vector<16x32xf32>
    %174 = vector.extract_strided_slice %168 {offsets = [0, 45], sizes = [16, 32], strides = [1, 1]} : vector<16x86xf32> to vector<16x32xf32>
    %175 = vector.extract_strided_slice %168 {offsets = [0, 54], sizes = [16, 32], strides = [1, 1]} : vector<16x86xf32> to vector<16x32xf32>
    %176 = tpu.concatenate %169, %170, %171, %172, %173, %174, %175 in 0 : vector<16x32xf32>, vector<16x32xf32>, vector<16x32xf32>, vector<16x32xf32>, vector<16x32xf32>, vector<16x32xf32>, vector<16x32xf32> -> vector<112x32xf32>
    %cst_120 = arith.constant dense<0.000000e+00> : vector<16x32xf32>
    %177 = tpu.matmul %164, %176, %cst_120 {dimension_numbers = #tpu.dot_dimension_numbers<[1], [0], [0], [1], [0, 0, 1, 1], [], []>} : vector<16x112xf32>, vector<112x32xf32>, vector<16x32xf32> -> vector<16x32xf32>
    %178 = vector.broadcast %166 : vector<16x1xf32> to vector<16x32xf32>
    %179 = arith.addf %177, %178 : vector<16x32xf32>
    %c2_121 = arith.constant 2 : index
    %c1_122 = arith.constant 1 : index
    %c0_123 = arith.constant 0 : index
    %c0_124 = arith.constant 0 : index
    %180 = vector.load %arg9[%c2_121, %c1_122, %c0_123, %c0_124] : memref<3x2x16x1xf32, #tpu.memory_space<vmem>>, vector<1x1x16x1xf32>
    %181 = vector.shape_cast %180 : vector<1x1x16x1xf32> to vector<16x1xf32>
    %c2_125 = arith.constant 2 : index
    %c1_126 = arith.constant 1 : index
    %c0_127 = arith.constant 0 : index
    %c0_128 = arith.constant 0 : index
    %182 = vector.load %arg10[%c2_125, %c1_126, %c0_127, %c0_128] : memref<3x2x16x1xf32, #tpu.memory_space<vmem>>, vector<1x1x16x1xf32>
    %183 = vector.shape_cast %182 : vector<1x1x16x1xf32> to vector<16x1xf32>
    %184 = vector.broadcast %181 : vector<16x1xf32> to vector<16x32xf32>
    %185 = arith.mulf %184, %179 : vector<16x32xf32>
    %186 = math.sin %185 : vector<16x32xf32>
    %187 = arith.mulf %186, %186 : vector<16x32xf32>
    %188 = vector.broadcast %183 : vector<16x1xf32> to vector<16x32xf32>
    %189 = arith.mulf %188, %187 : vector<16x32xf32>
    %190 = arith.addf %179, %189 : vector<16x32xf32>
    %c2_129 = arith.constant 2 : index
    %c0_130 = arith.constant 0 : index
    %c0_131 = arith.constant 0 : index
    %191 = vector.load %arg13[%c2_129, %c0_130, %c0_131] : memref<3x16x16xf32, #tpu.memory_space<vmem>>, vector<1x16x16xf32>
    %192 = vector.shape_cast %191 : vector<1x16x16xf32> to vector<16x16xf32>
    %cst_132 = arith.constant dense<0.000000e+00> : vector<16x32xf32>
    %193 = tpu.matmul %192, %190, %cst_132 {dimension_numbers = #tpu.dot_dimension_numbers<[1], [0], [0], [1], [0, 0, 1, 1], [], []>} : vector<16x16xf32>, vector<16x32xf32>, vector<16x32xf32> -> vector<16x32xf32>
    %c2_133 = arith.constant 2 : index
    %c0_134 = arith.constant 0 : index
    %c0_135 = arith.constant 0 : index
    %194 = vector.load %arg14[%c2_133, %c0_134, %c0_135] : memref<3x16x1xf32, #tpu.memory_space<vmem>>, vector<1x16x1xf32>
    %195 = vector.shape_cast %194 : vector<1x16x1xf32> to vector<16x1xf32>
    %196 = vector.broadcast %195 : vector<16x1xf32> to vector<16x32xf32>
    %197 = arith.addf %193, %196 : vector<16x32xf32>
    %198 = arith.addf %151, %197 : vector<16x32xf32>
    %c0_136 = arith.constant 0 : index
    %c0_137 = arith.constant 0 : index
    %199 = vector.load %arg15[%c0_136, %c0_137] : memref<16x1xf32, #tpu.memory_space<vmem>>, vector<16x1xf32>
    %c0_138 = arith.constant 0 : index
    %c0_139 = arith.constant 0 : index
    %200 = vector.load %arg16[%c0_138, %c0_139] : memref<16x1xf32, #tpu.memory_space<vmem>>, vector<16x1xf32>
    %201 = vector.broadcast %199 : vector<16x1xf32> to vector<16x32xf32>
    %202 = arith.mulf %201, %198 : vector<16x32xf32>
    %203 = math.sin %202 : vector<16x32xf32>
    %204 = arith.mulf %203, %203 : vector<16x32xf32>
    %205 = vector.broadcast %200 : vector<16x1xf32> to vector<16x32xf32>
    %206 = arith.mulf %205, %204 : vector<16x32xf32>
    %207 = arith.addf %198, %206 : vector<16x32xf32>
    %c0_140 = arith.constant 0 : index
    %c0_141 = arith.constant 0 : index
    %208 = vector.load %arg18[%c0_140, %c0_141] : memref<8x1xf32, #tpu.memory_space<vmem>>, vector<8x1xf32>
    %cst_142 = arith.constant 0.000000e+00 : f32
    %209 = vector.broadcast %cst_142 : f32 to vector<8x64xf32>
    %c0_143 = arith.constant 0 : index
    %c0_144 = arith.constant 0 : index
    %c0_145 = arith.constant 0 : index
    %210 = vector.load %arg17[%c0_143, %c0_144, %c0_145] : memref<4x8x16xf32, #tpu.memory_space<vmem>>, vector<1x8x16xf32>
    %211 = vector.shape_cast %210 : vector<1x8x16xf32> to vector<8x16xf32>
    %cst_146 = arith.constant dense<0.000000e+00> : vector<8x32xf32>
    %212 = tpu.matmul %211, %207, %cst_146 {dimension_numbers = #tpu.dot_dimension_numbers<[1], [0], [0], [1], [0, 0, 1, 1], [], []>} : vector<8x16xf32>, vector<16x32xf32>, vector<8x32xf32> -> vector<8x32xf32>
    %c0_147 = arith.constant 0 : index
    %c0_148 = arith.constant 0 : index
    %c0_149 = arith.constant 0 : index
    %213 = vector.load %arg19[%c0_147, %c0_148, %c0_149] : memref<4x32x64xf32, #tpu.memory_space<vmem>>, vector<1x32x64xf32>
    %214 = vector.shape_cast %213 : vector<1x32x64xf32> to vector<32x64xf32>
    %cst_150 = arith.constant dense<0.000000e+00> : vector<8x64xf32>
    %215 = tpu.matmul %212, %214, %cst_150 {dimension_numbers = #tpu.dot_dimension_numbers<[1], [0], [0], [1], [0, 0, 1, 1], [], []>} : vector<8x32xf32>, vector<32x64xf32>, vector<8x64xf32> -> vector<8x64xf32>
    %216 = arith.addf %209, %215 : vector<8x64xf32>
    %c1_151 = arith.constant 1 : index
    %c0_152 = arith.constant 0 : index
    %c0_153 = arith.constant 0 : index
    %217 = vector.load %arg17[%c1_151, %c0_152, %c0_153] : memref<4x8x16xf32, #tpu.memory_space<vmem>>, vector<1x8x16xf32>
    %218 = vector.shape_cast %217 : vector<1x8x16xf32> to vector<8x16xf32>
    %cst_154 = arith.constant dense<0.000000e+00> : vector<8x32xf32>
    %219 = tpu.matmul %218, %207, %cst_154 {dimension_numbers = #tpu.dot_dimension_numbers<[1], [0], [0], [1], [0, 0, 1, 1], [], []>} : vector<8x16xf32>, vector<16x32xf32>, vector<8x32xf32> -> vector<8x32xf32>
    %c1_155 = arith.constant 1 : index
    %c0_156 = arith.constant 0 : index
    %c0_157 = arith.constant 0 : index
    %220 = vector.load %arg19[%c1_155, %c0_156, %c0_157] : memref<4x32x64xf32, #tpu.memory_space<vmem>>, vector<1x32x64xf32>
    %221 = vector.shape_cast %220 : vector<1x32x64xf32> to vector<32x64xf32>
    %cst_158 = arith.constant dense<0.000000e+00> : vector<8x64xf32>
    %222 = tpu.matmul %219, %221, %cst_158 {dimension_numbers = #tpu.dot_dimension_numbers<[1], [0], [0], [1], [0, 0, 1, 1], [], []>} : vector<8x32xf32>, vector<32x64xf32>, vector<8x64xf32> -> vector<8x64xf32>
    %223 = arith.addf %216, %222 : vector<8x64xf32>
    %c2_159 = arith.constant 2 : index
    %c0_160 = arith.constant 0 : index
    %c0_161 = arith.constant 0 : index
    %224 = vector.load %arg17[%c2_159, %c0_160, %c0_161] : memref<4x8x16xf32, #tpu.memory_space<vmem>>, vector<1x8x16xf32>
    %225 = vector.shape_cast %224 : vector<1x8x16xf32> to vector<8x16xf32>
    %cst_162 = arith.constant dense<0.000000e+00> : vector<8x32xf32>
    %226 = tpu.matmul %225, %207, %cst_162 {dimension_numbers = #tpu.dot_dimension_numbers<[1], [0], [0], [1], [0, 0, 1, 1], [], []>} : vector<8x16xf32>, vector<16x32xf32>, vector<8x32xf32> -> vector<8x32xf32>
    %c2_163 = arith.constant 2 : index
    %c0_164 = arith.constant 0 : index
    %c0_165 = arith.constant 0 : index
    %227 = vector.load %arg19[%c2_163, %c0_164, %c0_165] : memref<4x32x64xf32, #tpu.memory_space<vmem>>, vector<1x32x64xf32>
    %228 = vector.shape_cast %227 : vector<1x32x64xf32> to vector<32x64xf32>
    %cst_166 = arith.constant dense<0.000000e+00> : vector<8x64xf32>
    %229 = tpu.matmul %226, %228, %cst_166 {dimension_numbers = #tpu.dot_dimension_numbers<[1], [0], [0], [1], [0, 0, 1, 1], [], []>} : vector<8x32xf32>, vector<32x64xf32>, vector<8x64xf32> -> vector<8x64xf32>
    %230 = arith.addf %223, %229 : vector<8x64xf32>
    %c3_167 = arith.constant 3 : index
    %c0_168 = arith.constant 0 : index
    %c0_169 = arith.constant 0 : index
    %231 = vector.load %arg17[%c3_167, %c0_168, %c0_169] : memref<4x8x16xf32, #tpu.memory_space<vmem>>, vector<1x8x16xf32>
    %232 = vector.shape_cast %231 : vector<1x8x16xf32> to vector<8x16xf32>
    %cst_170 = arith.constant dense<0.000000e+00> : vector<8x32xf32>
    %233 = tpu.matmul %232, %207, %cst_170 {dimension_numbers = #tpu.dot_dimension_numbers<[1], [0], [0], [1], [0, 0, 1, 1], [], []>} : vector<8x16xf32>, vector<16x32xf32>, vector<8x32xf32> -> vector<8x32xf32>
    %c3_171 = arith.constant 3 : index
    %c0_172 = arith.constant 0 : index
    %c0_173 = arith.constant 0 : index
    %234 = vector.load %arg19[%c3_171, %c0_172, %c0_173] : memref<4x32x64xf32, #tpu.memory_space<vmem>>, vector<1x32x64xf32>
    %235 = vector.shape_cast %234 : vector<1x32x64xf32> to vector<32x64xf32>
    %cst_174 = arith.constant dense<0.000000e+00> : vector<8x64xf32>
    %236 = tpu.matmul %233, %235, %cst_174 {dimension_numbers = #tpu.dot_dimension_numbers<[1], [0], [0], [1], [0, 0, 1, 1], [], []>} : vector<8x32xf32>, vector<32x64xf32>, vector<8x64xf32> -> vector<8x64xf32>
    %237 = arith.addf %230, %236 : vector<8x64xf32>
    %238 = vector.broadcast %208 : vector<8x1xf32> to vector<8x64xf32>
    %239 = arith.addf %237, %238 : vector<8x64xf32>
    %c0_175 = arith.constant 0 : index
    %c0_176 = arith.constant 0 : index
    %c0_177 = arith.constant 0 : index
    %c0_178 = arith.constant 0 : index
    %240 = vector.load %arg20[%c0_175, %c0_176, %c0_177, %c0_178] : memref<3x2x8x1xf32, #tpu.memory_space<vmem>>, vector<1x1x8x1xf32>
    %241 = vector.shape_cast %240 : vector<1x1x8x1xf32> to vector<8x1xf32>
    %c0_179 = arith.constant 0 : index
    %c0_180 = arith.constant 0 : index
    %c0_181 = arith.constant 0 : index
    %c0_182 = arith.constant 0 : index
    %242 = vector.load %arg21[%c0_179, %c0_180, %c0_181, %c0_182] : memref<3x2x8x1xf32, #tpu.memory_space<vmem>>, vector<1x1x8x1xf32>
    %243 = vector.shape_cast %242 : vector<1x1x8x1xf32> to vector<8x1xf32>
    %244 = vector.broadcast %241 : vector<8x1xf32> to vector<8x64xf32>
    %245 = arith.mulf %244, %239 : vector<8x64xf32>
    %246 = math.sin %245 : vector<8x64xf32>
    %247 = arith.mulf %246, %246 : vector<8x64xf32>
    %248 = vector.broadcast %243 : vector<8x1xf32> to vector<8x64xf32>
    %249 = arith.mulf %248, %247 : vector<8x64xf32>
    %250 = arith.addf %239, %249 : vector<8x64xf32>
    %c0_183 = arith.constant 0 : index
    %c0_184 = arith.constant 0 : index
    %c0_185 = arith.constant 0 : index
    %251 = vector.load %arg22[%c0_183, %c0_184, %c0_185] : memref<3x8x56xf32, #tpu.memory_space<vmem>>, vector<1x8x56xf32>
    %252 = vector.shape_cast %251 : vector<1x8x56xf32> to vector<8x56xf32>
    %c0_186 = arith.constant 0 : index
    %c0_187 = arith.constant 0 : index
    %c0_188 = arith.constant 0 : index
    %253 = vector.load %arg23[%c0_186, %c0_187, %c0_188] : memref<3x8x1xf32, #tpu.memory_space<vmem>>, vector<1x8x1xf32>
    %254 = vector.shape_cast %253 : vector<1x8x1xf32> to vector<8x1xf32>
    %cst_189 = arith.constant 0.000000e+00 : f32
    %255 = vector.broadcast %cst_189 : f32 to vector<8x3xf32>
    %256 = tpu.concatenate %255, %250, %255 in 1 : vector<8x3xf32>, vector<8x64xf32>, vector<8x3xf32> -> vector<8x70xf32>
    %257 = vector.extract_strided_slice %256 {offsets = [0, 0], sizes = [8, 64], strides = [1, 1]} : vector<8x70xf32> to vector<8x64xf32>
    %258 = vector.extract_strided_slice %256 {offsets = [0, 1], sizes = [8, 64], strides = [1, 1]} : vector<8x70xf32> to vector<8x64xf32>
    %259 = vector.extract_strided_slice %256 {offsets = [0, 2], sizes = [8, 64], strides = [1, 1]} : vector<8x70xf32> to vector<8x64xf32>
    %260 = vector.extract_strided_slice %256 {offsets = [0, 3], sizes = [8, 64], strides = [1, 1]} : vector<8x70xf32> to vector<8x64xf32>
    %261 = vector.extract_strided_slice %256 {offsets = [0, 4], sizes = [8, 64], strides = [1, 1]} : vector<8x70xf32> to vector<8x64xf32>
    %262 = vector.extract_strided_slice %256 {offsets = [0, 5], sizes = [8, 64], strides = [1, 1]} : vector<8x70xf32> to vector<8x64xf32>
    %263 = vector.extract_strided_slice %256 {offsets = [0, 6], sizes = [8, 64], strides = [1, 1]} : vector<8x70xf32> to vector<8x64xf32>
    %264 = tpu.concatenate %257, %258, %259, %260, %261, %262, %263 in 0 : vector<8x64xf32>, vector<8x64xf32>, vector<8x64xf32>, vector<8x64xf32>, vector<8x64xf32>, vector<8x64xf32>, vector<8x64xf32> -> vector<56x64xf32>
    %cst_190 = arith.constant dense<0.000000e+00> : vector<8x64xf32>
    %265 = tpu.matmul %252, %264, %cst_190 {dimension_numbers = #tpu.dot_dimension_numbers<[1], [0], [0], [1], [0, 0, 1, 1], [], []>} : vector<8x56xf32>, vector<56x64xf32>, vector<8x64xf32> -> vector<8x64xf32>
    %266 = vector.broadcast %254 : vector<8x1xf32> to vector<8x64xf32>
    %267 = arith.addf %265, %266 : vector<8x64xf32>
    %c0_191 = arith.constant 0 : index
    %c1_192 = arith.constant 1 : index
    %c0_193 = arith.constant 0 : index
    %c0_194 = arith.constant 0 : index
    %268 = vector.load %arg20[%c0_191, %c1_192, %c0_193, %c0_194] : memref<3x2x8x1xf32, #tpu.memory_space<vmem>>, vector<1x1x8x1xf32>
    %269 = vector.shape_cast %268 : vector<1x1x8x1xf32> to vector<8x1xf32>
    %c0_195 = arith.constant 0 : index
    %c1_196 = arith.constant 1 : index
    %c0_197 = arith.constant 0 : index
    %c0_198 = arith.constant 0 : index
    %270 = vector.load %arg21[%c0_195, %c1_196, %c0_197, %c0_198] : memref<3x2x8x1xf32, #tpu.memory_space<vmem>>, vector<1x1x8x1xf32>
    %271 = vector.shape_cast %270 : vector<1x1x8x1xf32> to vector<8x1xf32>
    %272 = vector.broadcast %269 : vector<8x1xf32> to vector<8x64xf32>
    %273 = arith.mulf %272, %267 : vector<8x64xf32>
    %274 = math.sin %273 : vector<8x64xf32>
    %275 = arith.mulf %274, %274 : vector<8x64xf32>
    %276 = vector.broadcast %271 : vector<8x1xf32> to vector<8x64xf32>
    %277 = arith.mulf %276, %275 : vector<8x64xf32>
    %278 = arith.addf %267, %277 : vector<8x64xf32>
    %c0_199 = arith.constant 0 : index
    %c0_200 = arith.constant 0 : index
    %c0_201 = arith.constant 0 : index
    %279 = vector.load %arg24[%c0_199, %c0_200, %c0_201] : memref<3x8x8xf32, #tpu.memory_space<vmem>>, vector<1x8x8xf32>
    %280 = vector.shape_cast %279 : vector<1x8x8xf32> to vector<8x8xf32>
    %cst_202 = arith.constant dense<0.000000e+00> : vector<8x64xf32>
    %281 = tpu.matmul %280, %278, %cst_202 {dimension_numbers = #tpu.dot_dimension_numbers<[1], [0], [0], [1], [0, 0, 1, 1], [], []>} : vector<8x8xf32>, vector<8x64xf32>, vector<8x64xf32> -> vector<8x64xf32>
    %c0_203 = arith.constant 0 : index
    %c0_204 = arith.constant 0 : index
    %c0_205 = arith.constant 0 : index
    %282 = vector.load %arg25[%c0_203, %c0_204, %c0_205] : memref<3x8x1xf32, #tpu.memory_space<vmem>>, vector<1x8x1xf32>
    %283 = vector.shape_cast %282 : vector<1x8x1xf32> to vector<8x1xf32>
    %284 = vector.broadcast %283 : vector<8x1xf32> to vector<8x64xf32>
    %285 = arith.addf %281, %284 : vector<8x64xf32>
    %286 = arith.addf %239, %285 : vector<8x64xf32>
    %c1_206 = arith.constant 1 : index
    %c0_207 = arith.constant 0 : index
    %c0_208 = arith.constant 0 : index
    %c0_209 = arith.constant 0 : index
    %287 = vector.load %arg20[%c1_206, %c0_207, %c0_208, %c0_209] : memref<3x2x8x1xf32, #tpu.memory_space<vmem>>, vector<1x1x8x1xf32>
    %288 = vector.shape_cast %287 : vector<1x1x8x1xf32> to vector<8x1xf32>
    %c1_210 = arith.constant 1 : index
    %c0_211 = arith.constant 0 : index
    %c0_212 = arith.constant 0 : index
    %c0_213 = arith.constant 0 : index
    %289 = vector.load %arg21[%c1_210, %c0_211, %c0_212, %c0_213] : memref<3x2x8x1xf32, #tpu.memory_space<vmem>>, vector<1x1x8x1xf32>
    %290 = vector.shape_cast %289 : vector<1x1x8x1xf32> to vector<8x1xf32>
    %291 = vector.broadcast %288 : vector<8x1xf32> to vector<8x64xf32>
    %292 = arith.mulf %291, %286 : vector<8x64xf32>
    %293 = math.sin %292 : vector<8x64xf32>
    %294 = arith.mulf %293, %293 : vector<8x64xf32>
    %295 = vector.broadcast %290 : vector<8x1xf32> to vector<8x64xf32>
    %296 = arith.mulf %295, %294 : vector<8x64xf32>
    %297 = arith.addf %286, %296 : vector<8x64xf32>
    %c1_214 = arith.constant 1 : index
    %c0_215 = arith.constant 0 : index
    %c0_216 = arith.constant 0 : index
    %298 = vector.load %arg22[%c1_214, %c0_215, %c0_216] : memref<3x8x56xf32, #tpu.memory_space<vmem>>, vector<1x8x56xf32>
    %299 = vector.shape_cast %298 : vector<1x8x56xf32> to vector<8x56xf32>
    %c1_217 = arith.constant 1 : index
    %c0_218 = arith.constant 0 : index
    %c0_219 = arith.constant 0 : index
    %300 = vector.load %arg23[%c1_217, %c0_218, %c0_219] : memref<3x8x1xf32, #tpu.memory_space<vmem>>, vector<1x8x1xf32>
    %301 = vector.shape_cast %300 : vector<1x8x1xf32> to vector<8x1xf32>
    %cst_220 = arith.constant 0.000000e+00 : f32
    %302 = vector.broadcast %cst_220 : f32 to vector<8x9xf32>
    %303 = tpu.concatenate %302, %297, %302 in 1 : vector<8x9xf32>, vector<8x64xf32>, vector<8x9xf32> -> vector<8x82xf32>
    %304 = vector.extract_strided_slice %303 {offsets = [0, 0], sizes = [8, 64], strides = [1, 1]} : vector<8x82xf32> to vector<8x64xf32>
    %305 = vector.extract_strided_slice %303 {offsets = [0, 3], sizes = [8, 64], strides = [1, 1]} : vector<8x82xf32> to vector<8x64xf32>
    %306 = vector.extract_strided_slice %303 {offsets = [0, 6], sizes = [8, 64], strides = [1, 1]} : vector<8x82xf32> to vector<8x64xf32>
    %307 = vector.extract_strided_slice %303 {offsets = [0, 9], sizes = [8, 64], strides = [1, 1]} : vector<8x82xf32> to vector<8x64xf32>
    %308 = vector.extract_strided_slice %303 {offsets = [0, 12], sizes = [8, 64], strides = [1, 1]} : vector<8x82xf32> to vector<8x64xf32>
    %309 = vector.extract_strided_slice %303 {offsets = [0, 15], sizes = [8, 64], strides = [1, 1]} : vector<8x82xf32> to vector<8x64xf32>
    %310 = vector.extract_strided_slice %303 {offsets = [0, 18], sizes = [8, 64], strides = [1, 1]} : vector<8x82xf32> to vector<8x64xf32>
    %311 = tpu.concatenate %304, %305, %306, %307, %308, %309, %310 in 0 : vector<8x64xf32>, vector<8x64xf32>, vector<8x64xf32>, vector<8x64xf32>, vector<8x64xf32>, vector<8x64xf32>, vector<8x64xf32> -> vector<56x64xf32>
    %cst_221 = arith.constant dense<0.000000e+00> : vector<8x64xf32>
    %312 = tpu.matmul %299, %311, %cst_221 {dimension_numbers = #tpu.dot_dimension_numbers<[1], [0], [0], [1], [0, 0, 1, 1], [], []>} : vector<8x56xf32>, vector<56x64xf32>, vector<8x64xf32> -> vector<8x64xf32>
    %313 = vector.broadcast %301 : vector<8x1xf32> to vector<8x64xf32>
    %314 = arith.addf %312, %313 : vector<8x64xf32>
    %c1_222 = arith.constant 1 : index
    %c1_223 = arith.constant 1 : index
    %c0_224 = arith.constant 0 : index
    %c0_225 = arith.constant 0 : index
    %315 = vector.load %arg20[%c1_222, %c1_223, %c0_224, %c0_225] : memref<3x2x8x1xf32, #tpu.memory_space<vmem>>, vector<1x1x8x1xf32>
    %316 = vector.shape_cast %315 : vector<1x1x8x1xf32> to vector<8x1xf32>
    %c1_226 = arith.constant 1 : index
    %c1_227 = arith.constant 1 : index
    %c0_228 = arith.constant 0 : index
    %c0_229 = arith.constant 0 : index
    %317 = vector.load %arg21[%c1_226, %c1_227, %c0_228, %c0_229] : memref<3x2x8x1xf32, #tpu.memory_space<vmem>>, vector<1x1x8x1xf32>
    %318 = vector.shape_cast %317 : vector<1x1x8x1xf32> to vector<8x1xf32>
    %319 = vector.broadcast %316 : vector<8x1xf32> to vector<8x64xf32>
    %320 = arith.mulf %319, %314 : vector<8x64xf32>
    %321 = math.sin %320 : vector<8x64xf32>
    %322 = arith.mulf %321, %321 : vector<8x64xf32>
    %323 = vector.broadcast %318 : vector<8x1xf32> to vector<8x64xf32>
    %324 = arith.mulf %323, %322 : vector<8x64xf32>
    %325 = arith.addf %314, %324 : vector<8x64xf32>
    %c1_230 = arith.constant 1 : index
    %c0_231 = arith.constant 0 : index
    %c0_232 = arith.constant 0 : index
    %326 = vector.load %arg24[%c1_230, %c0_231, %c0_232] : memref<3x8x8xf32, #tpu.memory_space<vmem>>, vector<1x8x8xf32>
    %327 = vector.shape_cast %326 : vector<1x8x8xf32> to vector<8x8xf32>
    %cst_233 = arith.constant dense<0.000000e+00> : vector<8x64xf32>
    %328 = tpu.matmul %327, %325, %cst_233 {dimension_numbers = #tpu.dot_dimension_numbers<[1], [0], [0], [1], [0, 0, 1, 1], [], []>} : vector<8x8xf32>, vector<8x64xf32>, vector<8x64xf32> -> vector<8x64xf32>
    %c1_234 = arith.constant 1 : index
    %c0_235 = arith.constant 0 : index
    %c0_236 = arith.constant 0 : index
    %329 = vector.load %arg25[%c1_234, %c0_235, %c0_236] : memref<3x8x1xf32, #tpu.memory_space<vmem>>, vector<1x8x1xf32>
    %330 = vector.shape_cast %329 : vector<1x8x1xf32> to vector<8x1xf32>
    %331 = vector.broadcast %330 : vector<8x1xf32> to vector<8x64xf32>
    %332 = arith.addf %328, %331 : vector<8x64xf32>
    %333 = arith.addf %286, %332 : vector<8x64xf32>
    %c2_237 = arith.constant 2 : index
    %c0_238 = arith.constant 0 : index
    %c0_239 = arith.constant 0 : index
    %c0_240 = arith.constant 0 : index
    %334 = vector.load %arg20[%c2_237, %c0_238, %c0_239, %c0_240] : memref<3x2x8x1xf32, #tpu.memory_space<vmem>>, vector<1x1x8x1xf32>
    %335 = vector.shape_cast %334 : vector<1x1x8x1xf32> to vector<8x1xf32>
    %c2_241 = arith.constant 2 : index
    %c0_242 = arith.constant 0 : index
    %c0_243 = arith.constant 0 : index
    %c0_244 = arith.constant 0 : index
    %336 = vector.load %arg21[%c2_241, %c0_242, %c0_243, %c0_244] : memref<3x2x8x1xf32, #tpu.memory_space<vmem>>, vector<1x1x8x1xf32>
    %337 = vector.shape_cast %336 : vector<1x1x8x1xf32> to vector<8x1xf32>
    %338 = vector.broadcast %335 : vector<8x1xf32> to vector<8x64xf32>
    %339 = arith.mulf %338, %333 : vector<8x64xf32>
    %340 = math.sin %339 : vector<8x64xf32>
    %341 = arith.mulf %340, %340 : vector<8x64xf32>
    %342 = vector.broadcast %337 : vector<8x1xf32> to vector<8x64xf32>
    %343 = arith.mulf %342, %341 : vector<8x64xf32>
    %344 = arith.addf %333, %343 : vector<8x64xf32>
    %c2_245 = arith.constant 2 : index
    %c0_246 = arith.constant 0 : index
    %c0_247 = arith.constant 0 : index
    %345 = vector.load %arg22[%c2_245, %c0_246, %c0_247] : memref<3x8x56xf32, #tpu.memory_space<vmem>>, vector<1x8x56xf32>
    %346 = vector.shape_cast %345 : vector<1x8x56xf32> to vector<8x56xf32>
    %c2_248 = arith.constant 2 : index
    %c0_249 = arith.constant 0 : index
    %c0_250 = arith.constant 0 : index
    %347 = vector.load %arg23[%c2_248, %c0_249, %c0_250] : memref<3x8x1xf32, #tpu.memory_space<vmem>>, vector<1x8x1xf32>
    %348 = vector.shape_cast %347 : vector<1x8x1xf32> to vector<8x1xf32>
    %cst_251 = arith.constant 0.000000e+00 : f32
    %349 = vector.broadcast %cst_251 : f32 to vector<8x27xf32>
    %350 = tpu.concatenate %349, %344, %349 in 1 : vector<8x27xf32>, vector<8x64xf32>, vector<8x27xf32> -> vector<8x118xf32>
    %351 = vector.extract_strided_slice %350 {offsets = [0, 0], sizes = [8, 64], strides = [1, 1]} : vector<8x118xf32> to vector<8x64xf32>
    %352 = vector.extract_strided_slice %350 {offsets = [0, 9], sizes = [8, 64], strides = [1, 1]} : vector<8x118xf32> to vector<8x64xf32>
    %353 = vector.extract_strided_slice %350 {offsets = [0, 18], sizes = [8, 64], strides = [1, 1]} : vector<8x118xf32> to vector<8x64xf32>
    %354 = vector.extract_strided_slice %350 {offsets = [0, 27], sizes = [8, 64], strides = [1, 1]} : vector<8x118xf32> to vector<8x64xf32>
    %355 = vector.extract_strided_slice %350 {offsets = [0, 36], sizes = [8, 64], strides = [1, 1]} : vector<8x118xf32> to vector<8x64xf32>
    %356 = vector.extract_strided_slice %350 {offsets = [0, 45], sizes = [8, 64], strides = [1, 1]} : vector<8x118xf32> to vector<8x64xf32>
    %357 = vector.extract_strided_slice %350 {offsets = [0, 54], sizes = [8, 64], strides = [1, 1]} : vector<8x118xf32> to vector<8x64xf32>
    %358 = tpu.concatenate %351, %352, %353, %354, %355, %356, %357 in 0 : vector<8x64xf32>, vector<8x64xf32>, vector<8x64xf32>, vector<8x64xf32>, vector<8x64xf32>, vector<8x64xf32>, vector<8x64xf32> -> vector<56x64xf32>
    %cst_252 = arith.constant dense<0.000000e+00> : vector<8x64xf32>
    %359 = tpu.matmul %346, %358, %cst_252 {dimension_numbers = #tpu.dot_dimension_numbers<[1], [0], [0], [1], [0, 0, 1, 1], [], []>} : vector<8x56xf32>, vector<56x64xf32>, vector<8x64xf32> -> vector<8x64xf32>
    %360 = vector.broadcast %348 : vector<8x1xf32> to vector<8x64xf32>
    %361 = arith.addf %359, %360 : vector<8x64xf32>
    %c2_253 = arith.constant 2 : index
    %c1_254 = arith.constant 1 : index
    %c0_255 = arith.constant 0 : index
    %c0_256 = arith.constant 0 : index
    %362 = vector.load %arg20[%c2_253, %c1_254, %c0_255, %c0_256] : memref<3x2x8x1xf32, #tpu.memory_space<vmem>>, vector<1x1x8x1xf32>
    %363 = vector.shape_cast %362 : vector<1x1x8x1xf32> to vector<8x1xf32>
    %c2_257 = arith.constant 2 : index
    %c1_258 = arith.constant 1 : index
    %c0_259 = arith.constant 0 : index
    %c0_260 = arith.constant 0 : index
    %364 = vector.load %arg21[%c2_257, %c1_258, %c0_259, %c0_260] : memref<3x2x8x1xf32, #tpu.memory_space<vmem>>, vector<1x1x8x1xf32>
    %365 = vector.shape_cast %364 : vector<1x1x8x1xf32> to vector<8x1xf32>
    %366 = vector.broadcast %363 : vector<8x1xf32> to vector<8x64xf32>
    %367 = arith.mulf %366, %361 : vector<8x64xf32>
    %368 = math.sin %367 : vector<8x64xf32>
    %369 = arith.mulf %368, %368 : vector<8x64xf32>
    %370 = vector.broadcast %365 : vector<8x1xf32> to vector<8x64xf32>
    %371 = arith.mulf %370, %369 : vector<8x64xf32>
    %372 = arith.addf %361, %371 : vector<8x64xf32>
    %c2_261 = arith.constant 2 : index
    %c0_262 = arith.constant 0 : index
    %c0_263 = arith.constant 0 : index
    %373 = vector.load %arg24[%c2_261, %c0_262, %c0_263] : memref<3x8x8xf32, #tpu.memory_space<vmem>>, vector<1x8x8xf32>
    %374 = vector.shape_cast %373 : vector<1x8x8xf32> to vector<8x8xf32>
    %cst_264 = arith.constant dense<0.000000e+00> : vector<8x64xf32>
    %375 = tpu.matmul %374, %372, %cst_264 {dimension_numbers = #tpu.dot_dimension_numbers<[1], [0], [0], [1], [0, 0, 1, 1], [], []>} : vector<8x8xf32>, vector<8x64xf32>, vector<8x64xf32> -> vector<8x64xf32>
    %c2_265 = arith.constant 2 : index
    %c0_266 = arith.constant 0 : index
    %c0_267 = arith.constant 0 : index
    %376 = vector.load %arg25[%c2_265, %c0_266, %c0_267] : memref<3x8x1xf32, #tpu.memory_space<vmem>>, vector<1x8x1xf32>
    %377 = vector.shape_cast %376 : vector<1x8x1xf32> to vector<8x1xf32>
    %378 = vector.broadcast %377 : vector<8x1xf32> to vector<8x64xf32>
    %379 = arith.addf %375, %378 : vector<8x64xf32>
    %380 = arith.addf %333, %379 : vector<8x64xf32>
    %c0_268 = arith.constant 0 : index
    %c0_269 = arith.constant 0 : index
    %381 = vector.load %arg26[%c0_268, %c0_269] : memref<8x1xf32, #tpu.memory_space<vmem>>, vector<8x1xf32>
    %c0_270 = arith.constant 0 : index
    %c0_271 = arith.constant 0 : index
    %382 = vector.load %arg27[%c0_270, %c0_271] : memref<8x1xf32, #tpu.memory_space<vmem>>, vector<8x1xf32>
    %383 = vector.broadcast %381 : vector<8x1xf32> to vector<8x64xf32>
    %384 = arith.mulf %383, %380 : vector<8x64xf32>
    %385 = math.sin %384 : vector<8x64xf32>
    %386 = arith.mulf %385, %385 : vector<8x64xf32>
    %387 = vector.broadcast %382 : vector<8x1xf32> to vector<8x64xf32>
    %388 = arith.mulf %387, %386 : vector<8x64xf32>
    %389 = arith.addf %380, %388 : vector<8x64xf32>
    %c0_272 = arith.constant 0 : index
    %c0_273 = arith.constant 0 : index
    %390 = vector.load %arg28[%c0_272, %c0_273] : memref<1x56xf32, #tpu.memory_space<vmem>>, vector<1x56xf32>
    %c0_274 = arith.constant 0 : index
    %c0_275 = arith.constant 0 : index
    %391 = vector.load %arg29[%c0_274, %c0_275] : memref<1x1xf32, #tpu.memory_space<vmem>>, vector<1x1xf32>
    %cst_276 = arith.constant 0.000000e+00 : f32
    %392 = vector.broadcast %cst_276 : f32 to vector<8x3xf32>
    %393 = tpu.concatenate %392, %389, %392 in 1 : vector<8x3xf32>, vector<8x64xf32>, vector<8x3xf32> -> vector<8x70xf32>
    %394 = vector.extract_strided_slice %393 {offsets = [0, 0], sizes = [8, 64], strides = [1, 1]} : vector<8x70xf32> to vector<8x64xf32>
    %395 = vector.extract_strided_slice %393 {offsets = [0, 1], sizes = [8, 64], strides = [1, 1]} : vector<8x70xf32> to vector<8x64xf32>
    %396 = vector.extract_strided_slice %393 {offsets = [0, 2], sizes = [8, 64], strides = [1, 1]} : vector<8x70xf32> to vector<8x64xf32>
    %397 = vector.extract_strided_slice %393 {offsets = [0, 3], sizes = [8, 64], strides = [1, 1]} : vector<8x70xf32> to vector<8x64xf32>
    %398 = vector.extract_strided_slice %393 {offsets = [0, 4], sizes = [8, 64], strides = [1, 1]} : vector<8x70xf32> to vector<8x64xf32>
    %399 = vector.extract_strided_slice %393 {offsets = [0, 5], sizes = [8, 64], strides = [1, 1]} : vector<8x70xf32> to vector<8x64xf32>
    %400 = vector.extract_strided_slice %393 {offsets = [0, 6], sizes = [8, 64], strides = [1, 1]} : vector<8x70xf32> to vector<8x64xf32>
    %401 = tpu.concatenate %394, %395, %396, %397, %398, %399, %400 in 0 : vector<8x64xf32>, vector<8x64xf32>, vector<8x64xf32>, vector<8x64xf32>, vector<8x64xf32>, vector<8x64xf32>, vector<8x64xf32> -> vector<56x64xf32>
    %cst_277 = arith.constant dense<0.000000e+00> : vector<1x64xf32>
    %402 = tpu.matmul %390, %401, %cst_277 {dimension_numbers = #tpu.dot_dimension_numbers<[1], [0], [0], [1], [0, 0, 1, 1], [], []>} : vector<1x56xf32>, vector<56x64xf32>, vector<1x64xf32> -> vector<1x64xf32>
    %403 = vector.broadcast %391 : vector<1x1xf32> to vector<1x64xf32>
    %404 = arith.addf %402, %403 : vector<1x64xf32>
    %405 = math.tanh %404 : vector<1x64xf32>
    %cst_278 = arith.constant 0.000000e+00 : f32
    %406 = vector.broadcast %cst_278 : f32 to vector<1x64xf32>
    %407 = tpu.concatenate %405, %406 in 1 : vector<1x64xf32>, vector<1x64xf32> -> vector<1x128xf32>
    %c0_279 = arith.constant 0 : index
    %c0_280 = arith.constant 0 : index
    %c0_281 = arith.constant 0 : index
    %408 = vector.load %arg30[%c0_279, %c0_280, %c0_281] : memref<1x1x128xf32, #tpu.memory_space<vmem>>, vector<1x1x128xf32>
    %409 = vector.shape_cast %408 : vector<1x1x128xf32> to vector<1x128xf32>
    %410 = vector.shape_cast %407 : vector<1x128xf32> to vector<1x1x128xf32>
    tpu.vector_store %arg30[%c0_279, %c0_280, %c0_281], %410 {strides = array<i32>} : memref<1x1x128xf32, #tpu.memory_space<vmem>>, vector<1x1x128xf32>,
    return
  }
  func.func @transform_0(%arg0: i32) -> (i32, i32, i32) {
    %c0_i32 = arith.constant 0 : i32
    %c0_i32_0 = arith.constant 0 : i32
    %c0_i32_1 = arith.constant 0 : i32
    return %arg0, %c0_i32, %c0_i32_0 : i32, i32, i32
  }
  func.func @transform_1(%arg0: i32) -> (i32, i32) {
    %c0_i32 = arith.constant 0 : i32
    %c0_i32_0 = arith.constant 0 : i32
    %c0_i32_1 = arith.constant 0 : i32
    return %c0_i32, %c0_i32_0 : i32, i32
  }
  func.func @transform_2(%arg0: i32) -> (i32, i32) {
    %c0_i32 = arith.constant 0 : i32
    %c0_i32_0 = arith.constant 0 : i32
    %c0_i32_1 = arith.constant 0 : i32
    return %c0_i32, %c0_i32_0 : i32, i32
  }
  func.func @transform_3(%arg0: i32) -> (i32, i32) {
    %c0_i32 = arith.constant 0 : i32
    %c0_i32_0 = arith.constant 0 : i32
    %c0_i32_1 = arith.constant 0 : i32
    return %c0_i32, %c0_i32_0 : i32, i32
  }
  func.func @transform_4(%arg0: i32) -> (i32, i32) {
    %c0_i32 = arith.constant 0 : i32
    %c0_i32_0 = arith.constant 0 : i32
    %c0_i32_1 = arith.constant 0 : i32
    return %c0_i32, %c0_i32_0 : i32, i32
  }
  func.func @transform_5(%arg0: i32) -> (i32, i32, i32) {
    %c0_i32 = arith.constant 0 : i32
    %c0_i32_0 = arith.constant 0 : i32
    %c0_i32_1 = arith.constant 0 : i32
    %c0_i32_2 = arith.constant 0 : i32
    return %c0_i32, %c0_i32_0, %c0_i32_1 : i32, i32, i32
  }
  func.func @transform_6(%arg0: i32) -> (i32, i32) {
    %c0_i32 = arith.constant 0 : i32
    %c0_i32_0 = arith.constant 0 : i32
    %c0_i32_1 = arith.constant 0 : i32
    return %c0_i32, %c0_i32_0 : i32, i32
  }
  func.func @transform_7(%arg0: i32) -> (i32, i32, i32) {
    %c0_i32 = arith.constant 0 : i32
    %c0_i32_0 = arith.constant 0 : i32
    %c0_i32_1 = arith.constant 0 : i32
    %c0_i32_2 = arith.constant 0 : i32
    return %c0_i32, %c0_i32_0, %c0_i32_1 : i32, i32, i32
  }
  func.func @transform_8(%arg0: i32) -> (i32, i32, i32, i32) {
    %c0_i32 = arith.constant 0 : i32
    %c0_i32_0 = arith.constant 0 : i32
    %c0_i32_1 = arith.constant 0 : i32
    %c0_i32_2 = arith.constant 0 : i32
    %c0_i32_3 = arith.constant 0 : i32
    return %c0_i32, %c0_i32_0, %c0_i32_1, %c0_i32_2 : i32, i32, i32, i32
  }
  func.func @transform_9(%arg0: i32) -> (i32, i32, i32, i32) {
    %c0_i32 = arith.constant 0 : i32
    %c0_i32_0 = arith.constant 0 : i32
    %c0_i32_1 = arith.constant 0 : i32
    %c0_i32_2 = arith.constant 0 : i32
    %c0_i32_3 = arith.constant 0 : i32
    return %c0_i32, %c0_i32_0, %c0_i32_1, %c0_i32_2 : i32, i32, i32, i32
  }
  func.func @transform_10(%arg0: i32) -> (i32, i32, i32) {
    %c0_i32 = arith.constant 0 : i32
    %c0_i32_0 = arith.constant 0 : i32
    %c0_i32_1 = arith.constant 0 : i32
    %c0_i32_2 = arith.constant 0 : i32
    return %c0_i32, %c0_i32_0, %c0_i32_1 : i32, i32, i32
  }
  func.func @transform_11(%arg0: i32) -> (i32, i32, i32) {
    %c0_i32 = arith.constant 0 : i32
    %c0_i32_0 = arith.constant 0 : i32
    %c0_i32_1 = arith.constant 0 : i32
    %c0_i32_2 = arith.constant 0 : i32
    return %c0_i32, %c0_i32_0, %c0_i32_1 : i32, i32, i32
  }
  func.func @transform_12(%arg0: i32) -> (i32, i32, i32) {
    %c0_i32 = arith.constant 0 : i32
    %c0_i32_0 = arith.constant 0 : i32
    %c0_i32_1 = arith.constant 0 : i32
    %c0_i32_2 = arith.constant 0 : i32
    return %c0_i32, %c0_i32_0, %c0_i32_1 : i32, i32, i32
  }
  func.func @transform_13(%arg0: i32) -> (i32, i32, i32) {
    %c0_i32 = arith.constant 0 : i32
    %c0_i32_0 = arith.constant 0 : i32
    %c0_i32_1 = arith.constant 0 : i32
    %c0_i32_2 = arith.constant 0 : i32
    return %c0_i32, %c0_i32_0, %c0_i32_1 : i32, i32, i32
  }
  func.func @transform_14(%arg0: i32) -> (i32, i32) {
    %c0_i32 = arith.constant 0 : i32
    %c0_i32_0 = arith.constant 0 : i32
    %c0_i32_1 = arith.constant 0 : i32
    return %c0_i32, %c0_i32_0 : i32, i32
  }
  func.func @transform_15(%arg0: i32) -> (i32, i32) {
    %c0_i32 = arith.constant 0 : i32
    %c0_i32_0 = arith.constant 0 : i32
    %c0_i32_1 = arith.constant 0 : i32
    return %c0_i32, %c0_i32_0 : i32, i32
  }
  func.func @transform_16(%arg0: i32) -> (i32, i32, i32) {
    %c0_i32 = arith.constant 0 : i32
    %c0_i32_0 = arith.constant 0 : i32
    %c0_i32_1 = arith.constant 0 : i32
    %c0_i32_2 = arith.constant 0 : i32
    return %c0_i32, %c0_i32_0, %c0_i32_1 : i32, i32, i32
  }
  func.func @transform_17(%arg0: i32) -> (i32, i32) {
    %c0_i32 = arith.constant 0 : i32
    %c0_i32_0 = arith.constant 0 : i32
    %c0_i32_1 = arith.constant 0 : i32
    return %c0_i32, %c0_i32_0 : i32, i32
  }
  func.func @transform_18(%arg0: i32) -> (i32, i32, i32) {
    %c0_i32 = arith.constant 0 : i32
    %c0_i32_0 = arith.constant 0 : i32
    %c0_i32_1 = arith.constant 0 : i32
    %c0_i32_2 = arith.constant 0 : i32
    return %c0_i32, %c0_i32_0, %c0_i32_1 : i32, i32, i32
  }
  func.func @transform_19(%arg0: i32) -> (i32, i32, i32, i32) {
    %c0_i32 = arith.constant 0 : i32
    %c0_i32_0 = arith.constant 0 : i32
    %c0_i32_1 = arith.constant 0 : i32
    %c0_i32_2 = arith.constant 0 : i32
    %c0_i32_3 = arith.constant 0 : i32
    return %c0_i32, %c0_i32_0, %c0_i32_1, %c0_i32_2 : i32, i32, i32, i32
  }
  func.func @transform_20(%arg0: i32) -> (i32, i32, i32, i32) {
    %c0_i32 = arith.constant 0 : i32
    %c0_i32_0 = arith.constant 0 : i32
    %c0_i32_1 = arith.constant 0 : i32
    %c0_i32_2 = arith.constant 0 : i32
    %c0_i32_3 = arith.constant 0 : i32
    return %c0_i32, %c0_i32_0, %c0_i32_1, %c0_i32_2 : i32, i32, i32, i32
  }
  func.func @transform_21(%arg0: i32) -> (i32, i32, i32) {
    %c0_i32 = arith.constant 0 : i32
    %c0_i32_0 = arith.constant 0 : i32
    %c0_i32_1 = arith.constant 0 : i32
    %c0_i32_2 = arith.constant 0 : i32
    return %c0_i32, %c0_i32_0, %c0_i32_1 : i32, i32, i32
  }
  func.func @transform_22(%arg0: i32) -> (i32, i32, i32) {
    %c0_i32 = arith.constant 0 : i32
    %c0_i32_0 = arith.constant 0 : i32
    %c0_i32_1 = arith.constant 0 : i32
    %c0_i32_2 = arith.constant 0 : i32
    return %c0_i32, %c0_i32_0, %c0_i32_1 : i32, i32, i32
  }
  func.func @transform_23(%arg0: i32) -> (i32, i32, i32) {
    %c0_i32 = arith.constant 0 : i32
    %c0_i32_0 = arith.constant 0 : i32
    %c0_i32_1 = arith.constant 0 : i32
    %c0_i32_2 = arith.constant 0 : i32
    return %c0_i32, %c0_i32_0, %c0_i32_1 : i32, i32, i32
  }
  func.func @transform_24(%arg0: i32) -> (i32, i32, i32) {
    %c0_i32 = arith.constant 0 : i32
    %c0_i32_0 = arith.constant 0 : i32
    %c0_i32_1 = arith.constant 0 : i32
    %c0_i32_2 = arith.constant 0 : i32
    return %c0_i32, %c0_i32_0, %c0_i32_1 : i32, i32, i32
  }
  func.func @transform_25(%arg0: i32) -> (i32, i32) {
    %c0_i32 = arith.constant 0 : i32
    %c0_i32_0 = arith.constant 0 : i32
    %c0_i32_1 = arith.constant 0 : i32
    return %c0_i32, %c0_i32_0 : i32, i32
  }
  func.func @transform_26(%arg0: i32) -> (i32, i32) {
    %c0_i32 = arith.constant 0 : i32
    %c0_i32_0 = arith.constant 0 : i32
    %c0_i32_1 = arith.constant 0 : i32
    return %c0_i32, %c0_i32_0 : i32, i32
  }
  func.func @transform_27(%arg0: i32) -> (i32, i32) {
    %c0_i32 = arith.constant 0 : i32
    %c0_i32_0 = arith.constant 0 : i32
    %c0_i32_1 = arith.constant 0 : i32
    return %c0_i32, %c0_i32_0 : i32, i32
  }
  func.func @transform_28(%arg0: i32) -> (i32, i32) {
    %c0_i32 = arith.constant 0 : i32
    %c0_i32_0 = arith.constant 0 : i32
    %c0_i32_1 = arith.constant 0 : i32
    return %c0_i32, %c0_i32_0 : i32, i32
  }
  func.func @transform_29(%arg0: i32) -> (i32, i32, i32) {
    %c0_i32 = arith.constant 0 : i32
    %c0_i32_0 = arith.constant 0 : i32
    %c0_i32_1 = arith.constant 0 : i32
    return %arg0, %c0_i32, %c0_i32_0 : i32, i32, i32
  }
}

</mosaic_0001>

<llo_original>
// kernel: tpu_custom_call.1
$region0: #{tpu_custom_call.1}
  #allocation0 [shape = 'u32[]', space=smem, size = 0x4, offset = 0x4, fixed_abs, tag = 'smem constant byte address 0x4 - core index']
  #allocation1 [shape = 'u32[144,128]{1,0:T(1,128)}', space=vmem, size = 0x12000, scoped, tag = 'internal scratch']
  #allocation2 [shape = 'f32[1,1]{1,0:T(1,128)S(1)}', space=vmem, size = 0x200, scoped, tag = 'scoped memory for tpu_custom_call.1']
  %s0 = inlined_call_operand.smem [shape: u32[30], index: -1, kind: input, shape index: {}]
  %s1 = sld [smem:[%s0]]
  %s2 = scalar_lea.smem %s0, 1
  %s3 = sld [smem:[%s2]]
  %s4 = scalar_lea.smem %s0, 2
  %s5 = sld [smem:[%s4]]
  %s6 = scalar_lea.smem %s0, 3
  %s7 = sld [smem:[%s6]]
  %s8 = scalar_lea.smem %s0, 4
  %s9 = sld [smem:[%s8]]
  %s10 = scalar_lea.smem %s0, 5
  %s11 = sld [smem:[%s10]]
  %s12 = scalar_lea.smem %s0, 6
  %s13 = sld [smem:[%s12]]
  %s14 = scalar_lea.smem %s0, 7
  %s15 = sld [smem:[%s14]]
  %s16 = scalar_lea.smem %s0, 8
  %s17 = sld [smem:[%s16]]
  %s18 = scalar_lea.smem %s0, 9
  %s19 = sld [smem:[%s18]]
  %s20 = scalar_lea.smem %s0, 10
  %s21 = sld [smem:[%s20]]
  %s22 = scalar_lea.smem %s0, 11
  %s23 = sld [smem:[%s22]]
  %s24 = scalar_lea.smem %s0, 12
  %s25 = sld [smem:[%s24]]
  %s26 = scalar_lea.smem %s0, 13
  %s27 = sld [smem:[%s26]]
  %s28 = scalar_lea.smem %s0, 14
  %s29 = sld [smem:[%s28]]
  %s30 = scalar_lea.smem %s0, 15
  %s31 = sld [smem:[%s30]]
  %s32 = scalar_lea.smem %s0, 16
  %s33 = sld [smem:[%s32]]
  %s34 = scalar_lea.smem %s0, 17
  %s35 = sld [smem:[%s34]]
  %s36 = scalar_lea.smem %s0, 18
  %s37 = sld [smem:[%s36]]
  %s38 = scalar_lea.smem %s0, 19
  %s39 = sld [smem:[%s38]]
  %s40 = scalar_lea.smem %s0, 20
  %s41 = sld [smem:[%s40]]
  %s42 = scalar_lea.smem %s0, 21
  %s43 = sld [smem:[%s42]]
  %s44 = scalar_lea.smem %s0, 22
  %s45 = sld [smem:[%s44]]
  %s46 = scalar_lea.smem %s0, 23
  %s47 = sld [smem:[%s46]]
  %s48 = scalar_lea.smem %s0, 24
  %s49 = sld [smem:[%s48]]
  %s50 = scalar_lea.smem %s0, 25
  %s51 = sld [smem:[%s50]]
  %s52 = scalar_lea.smem %s0, 26
  %s53 = sld [smem:[%s52]]
  %s54 = scalar_lea.smem %s0, 27
  %s55 = sld [smem:[%s54]]
  %s56 = scalar_lea.smem %s0, 28
  %s57 = sld [smem:[%s56]]
  %s58 = scalar_lea.smem %s0, 29
  %s59 = sld [smem:[%s58]]
  %s60 = sld [smem:[#allocation0]]
  $region149: #{tpu_custom_call.1} parent=0
    _
  %s62 = ssub.s32 1, %s60
  %s63 = scalar_select 0, %s62, %s60
  %v64 = vstv %s57
  %65 = vst [vmem:[#allocation2] sm:$0x1] %v64
  $region1: #{tpu_custom_call.1} parent=0
    #allocation3 [shape = 'u8[1024]{0}', space=vmem, size = 0x400, scoped, tag = 'output window, operand 0']
    #allocation4 [shape = 's32[2]{0}', space=sflag, size = 0x8, scoped, tag = 'scoped memory for tpu_custom_call.1']
    %66 = vsyncpa [#allocation4], 0
    %s67 = scalar_lea.sflag [#allocation4], 1
    %68 = vsyncpa %s67, 0
    loop: start=0, step=1, limit=4
    $region2: #{tpu_custom_call.1} parent=1 // loop_pre_header
      _
    $region3: #{tpu_custom_call.1} parent=1 // loop_header
      %s70 = sphi 0, %s74
      %p71 = scmp.ge.s32.totalorder %s70, 4
      %s80 = sphi 0, %s82
      %s83 = sphi 0, %s80
      %s84 = sphi 0, %s83
      %s100 = sphi 0, %s84
      %s104 = sphi 0, %s104
      %s106 = sphi 0, %s104
      %s107 = sphi 0, %s106
      %s121 = sphi 0, %s107
      %s125 = sphi 0, %s125
      %s127 = sphi 0, %s125
      %s128 = sphi 0, %s127
      %s142 = sphi 0, %s128
      %s146 = sphi 0, %s146
      %s148 = sphi 0, %s146
      %s149 = sphi 0, %s148
      %s163 = sphi 0, %s149
      %s167 = sphi 0, %s167
      %s169 = sphi 0, %s167
      %s170 = sphi 0, %s169
      %s184 = sphi 0, %s170
      %s188 = sphi 0, %s188
      %s190 = sphi 0, %s188
      %s191 = sphi 0, %s190
      %s205 = sphi 0, %s191
      %s209 = sphi 0, %s209
      %s211 = sphi 0, %s209
      %s212 = sphi 0, %s211
      %s226 = sphi 0, %s212
      %s230 = sphi 0, %s230
      %s232 = sphi 0, %s230
      %s233 = sphi 0, %s232
      %s247 = sphi 0, %s233
      %s251 = sphi 0, %s251
      %s253 = sphi 0, %s251
      %s254 = sphi 0, %s253
      %s268 = sphi 0, %s254
      %s272 = sphi 0, %s272
      %s274 = sphi 0, %s272
      %s275 = sphi 0, %s274
      %s289 = sphi 0, %s275
      %s293 = sphi 0, %s293
      %s295 = sphi 0, %s293
      %s296 = sphi 0, %s295
      %s310 = sphi 0, %s296
      %s314 = sphi 0, %s314
      %s316 = sphi 0, %s314
      %s317 = sphi 0, %s316
      %s331 = sphi 0, %s317
      %s335 = sphi 0, %s335
      %s337 = sphi 0, %s335
      %s338 = sphi 0, %s337
      %s352 = sphi 0, %s338
      %s356 = sphi 0, %s356
      %s358 = sphi 0, %s356
      %s359 = sphi 0, %s358
      %s373 = sphi 0, %s359
      %s377 = sphi 0, %s377
      %s379 = sphi 0, %s377
      %s380 = sphi 0, %s379
      %s394 = sphi 0, %s380
      %s398 = sphi 0, %s398
      %s400 = sphi 0, %s398
      %s401 = sphi 0, %s400
      %s415 = sphi 0, %s401
      %s419 = sphi 0, %s419
      %s421 = sphi 0, %s419
      %s422 = sphi 0, %s421
      %s436 = sphi 0, %s422
      %s440 = sphi 0, %s440
      %s442 = sphi 0, %s440
      %s443 = sphi 0, %s442
      %s457 = sphi 0, %s443
      %s461 = sphi 0, %s461
      %s463 = sphi 0, %s461
      %s464 = sphi 0, %s463
      %s478 = sphi 0, %s464
      %s482 = sphi 0, %s482
      %s484 = sphi 0, %s482
      %s485 = sphi 0, %s484
      %s499 = sphi 0, %s485
      %s503 = sphi 0, %s503
      %s505 = sphi 0, %s503
      %s506 = sphi 0, %s505
      %s520 = sphi 0, %s506
      %s524 = sphi 0, %s524
      %s526 = sphi 0, %s524
      %s527 = sphi 0, %s526
      %s541 = sphi 0, %s527
      %s545 = sphi 0, %s545
      %s547 = sphi 0, %s545
      %s548 = sphi 0, %s547
      %s562 = sphi 0, %s548
      %s566 = sphi 0, %s566
      %s568 = sphi 0, %s566
      %s569 = sphi 0, %s568
      %s583 = sphi 0, %s569
      %s587 = sphi 0, %s587
      %s589 = sphi 0, %s587
      %s590 = sphi 0, %s589
      %s604 = sphi 0, %s590
      %s608 = sphi 0, %s608
      %s610 = sphi 0, %s608
      %s611 = sphi 0, %s610
      %s625 = sphi 0, %s611
      %s629 = sphi 0, %s629
      %s631 = sphi 0, %s629
      %s632 = sphi 0, %s631
      %s646 = sphi 0, %s632
      %s650 = sphi 0, %s650
      %s652 = sphi 0, %s650
      %s653 = sphi 0, %s652
      %s667 = sphi 0, %s653
      %s671 = sphi 0, %s671
      %s673 = sphi 0, %s671
      %s674 = sphi 0, %s673
      %s688 = sphi 0, %s674
      %s694 = sphi 0, %s696
      %s697 = sphi 0, %s694
      %s698 = sphi 0, %s697
      %s714 = sphi 0, %s698
    $region4: #{tpu_custom_call.1} parent=1 // loop_header_branch
      %73 = sbr.rel (%p71) target = $region8
    $region5: #{tpu_custom_call.1} parent=1 // loop_body
      %s75 = ssub.s32 %s70, 1
      %s76 = ssub.s32 %s70, 2
      %s77 = sadd.s32 %s70, 1
      %s78 = ssub.s32 %s70, %s77
      %p79 = scmp.eq.s32.totalorder %s78, 0
      %s81 = sadd.s32 %s80, 1
      %s82 = scalar_select %p79, %s80, %s81
      %p85 = pneg %p79
      %p86 = scmp.eq.s32.totalorder %s70, 1
      %p87 = por %p85, %p86
      %p88 = scmp.ne.s32.totalorder %s80, %s83
      %p89 = scmp.eq.s32.totalorder %s70, 0
      %p90 = por %p88, %p89
      %p91 = scmp.ne.s32.totalorder %s80, %s83
      %p92 = scmp.eq.s32.totalorder %s75, 1
      %p93 = por %p91, %p92
      %p94 = scmp.ne.s32.totalorder %s83, %s84
      %p95 = scmp.eq.s32.totalorder %s75, 0
      %p96 = por %p94, %p95
      %p97 = scmp.ne.s32.totalorder %s83, %s84
      %p98 = scmp.eq.s32.totalorder %s76, 1
      %p99 = por %p97, %p98
      %p101 = scmp.ne.s32.totalorder %s84, %s100
      %p102 = scmp.eq.s32.totalorder %s76, 0
      %p103 = por %p101, %p102
      %s105 = sadd.s32 %s104, 1
      %p108 = scmp.eq.s32.totalorder %s70, 1
      %p109 = scmp.ne.s32.totalorder %s104, %s106
      %p110 = scmp.eq.s32.totalorder %s70, 0
      %p111 = por %p109, %p110
      %p112 = scmp.ne.s32.totalorder %s104, %s106
      %p113 = scmp.eq.s32.totalorder %s75, 1
      %p114 = por %p112, %p113
      %p115 = scmp.ne.s32.totalorder %s106, %s107
      %p116 = scmp.eq.s32.totalorder %s75, 0
      %p117 = por %p115, %p116
      %p118 = scmp.ne.s32.totalorder %s106, %s107
      %p119 = scmp.eq.s32.totalorder %s76, 1
      %p120 = por %p118, %p119
      %p122 = scmp.ne.s32.totalorder %s107, %s121
      %p123 = scmp.eq.s32.totalorder %s76, 0
      %p124 = por %p122, %p123
      %s126 = sadd.s32 %s125, 1
      %p129 = scmp.eq.s32.totalorder %s70, 1
      %p130 = scmp.ne.s32.totalorder %s125, %s127
      %p131 = scmp.eq.s32.totalorder %s70, 0
      %p132 = por %p130, %p131
      %p133 = scmp.ne.s32.totalorder %s125, %s127
      %p134 = scmp.eq.s32.totalorder %s75, 1
      %p135 = por %p133, %p134
      %p136 = scmp.ne.s32.totalorder %s127, %s128
      %p137 = scmp.eq.s32.totalorder %s75, 0
      %p138 = por %p136, %p137
      %p139 = scmp.ne.s32.totalorder %s127, %s128
      %p140 = scmp.eq.s32.totalorder %s76, 1
      %p141 = por %p139, %p140
      %p143 = scmp.ne.s32.totalorder %s128, %s142
      %p144 = scmp.eq.s32.totalorder %s76, 0
      %p145 = por %p143, %p144
      %s147 = sadd.s32 %s146, 1
      %p150 = scmp.eq.s32.totalorder %s70, 1
      %p151 = scmp.ne.s32.totalorder %s146, %s148
      %p152 = scmp.eq.s32.totalorder %s70, 0
      %p153 = por %p151, %p152
      %p154 = scmp.ne.s32.totalorder %s146, %s148
      %p155 = scmp.eq.s32.totalorder %s75, 1
      %p156 = por %p154, %p155
      %p157 = scmp.ne.s32.totalorder %s148, %s149
      %p158 = scmp.eq.s32.totalorder %s75, 0
      %p159 = por %p157, %p158
      %p160 = scmp.ne.s32.totalorder %s148, %s149
      %p161 = scmp.eq.s32.totalorder %s76, 1
      %p162 = por %p160, %p161
      %p164 = scmp.ne.s32.totalorder %s149, %s163
      %p165 = scmp.eq.s32.totalorder %s76, 0
      %p166 = por %p164, %p165
      %s168 = sadd.s32 %s167, 1
      %p171 = scmp.eq.s32.totalorder %s70, 1
      %p172 = scmp.ne.s32.totalorder %s167, %s169
      %p173 = scmp.eq.s32.totalorder %s70, 0
      %p174 = por %p172, %p173
      %p175 = scmp.ne.s32.totalorder %s167, %s169
      %p176 = scmp.eq.s32.totalorder %s75, 1
      %p177 = por %p175, %p176
      %p178 = scmp.ne.s32.totalorder %s169, %s170
      %p179 = scmp.eq.s32.totalorder %s75, 0
      %p180 = por %p178, %p179
      %p181 = scmp.ne.s32.totalorder %s169, %s170
      %p182 = scmp.eq.s32.totalorder %s76, 1
      %p183 = por %p181, %p182
      %p185 = scmp.ne.s32.totalorder %s170, %s184
      %p186 = scmp.eq.s32.totalorder %s76, 0
      %p187 = por %p185, %p186
      %s189 = sadd.s32 %s188, 1
      %p192 = scmp.eq.s32.totalorder %s70, 1
      %p193 = scmp.ne.s32.totalorder %s188, %s190
      %p194 = scmp.eq.s32.totalorder %s70, 0
      %p195 = por %p193, %p194
      %p196 = scmp.ne.s32.totalorder %s188, %s190
      %p197 = scmp.eq.s32.totalorder %s75, 1
      %p198 = por %p196, %p197
      %p199 = scmp.ne.s32.totalorder %s190, %s191
      %p200 = scmp.eq.s32.totalorder %s75, 0
      %p201 = por %p199, %p200
      %p202 = scmp.ne.s32.totalorder %s190, %s191
      %p203 = scmp.eq.s32.totalorder %s76, 1
      %p204 = por %p202, %p203
      %p206 = scmp.ne.s32.totalorder %s191, %s205
      %p207 = scmp.eq.s32.totalorder %s76, 0
      %p208 = por %p206, %p207
      %s210 = sadd.s32 %s209, 1
      %p213 = scmp.eq.s32.totalorder %s70, 1
      %p214 = scmp.ne.s32.totalorder %s209, %s211
      %p215 = scmp.eq.s32.totalorder %s70, 0
      %p216 = por %p214, %p215
      %p217 = scmp.ne.s32.totalorder %s209, %s211
      %p218 = scmp.eq.s32.totalorder %s75, 1
      %p219 = por %p217, %p218
      %p220 = scmp.ne.s32.totalorder %s211, %s212
      %p221 = scmp.eq.s32.totalorder %s75, 0
      %p222 = por %p220, %p221
      %p223 = scmp.ne.s32.totalorder %s211, %s212
      %p224 = scmp.eq.s32.totalorder %s76, 1
      %p225 = por %p223, %p224
      %p227 = scmp.ne.s32.totalorder %s212, %s226
      %p228 = scmp.eq.s32.totalorder %s76, 0
      %p229 = por %p227, %p228
      %s231 = sadd.s32 %s230, 1
      %p234 = scmp.eq.s32.totalorder %s70, 1
      %p235 = scmp.ne.s32.totalorder %s230, %s232
      %p236 = scmp.eq.s32.totalorder %s70, 0
      %p237 = por %p235, %p236
      %p238 = scmp.ne.s32.totalorder %s230, %s232
      %p239 = scmp.eq.s32.totalorder %s75, 1
      %p240 = por %p238, %p239
      %p241 = scmp.ne.s32.totalorder %s232, %s233
      %p242 = scmp.eq.s32.totalorder %s75, 0
      %p243 = por %p241, %p242
      %p244 = scmp.ne.s32.totalorder %s232, %s233
      %p245 = scmp.eq.s32.totalorder %s76, 1
      %p246 = por %p244, %p245
      %p248 = scmp.ne.s32.totalorder %s233, %s247
      %p249 = scmp.eq.s32.totalorder %s76, 0
      %p250 = por %p248, %p249
      %s252 = sadd.s32 %s251, 1
      %p255 = scmp.eq.s32.totalorder %s70, 1
      %p256 = scmp.ne.s32.totalorder %s251, %s253
      %p257 = scmp.eq.s32.totalorder %s70, 0
      %p258 = por %p256, %p257
      %p259 = scmp.ne.s32.totalorder %s251, %s253
      %p260 = scmp.eq.s32.totalorder %s75, 1
      %p261 = por %p259, %p260
      %p262 = scmp.ne.s32.totalorder %s253, %s254
      %p263 = scmp.eq.s32.totalorder %s75, 0
      %p264 = por %p262, %p263
      %p265 = scmp.ne.s32.totalorder %s253, %s254
      %p266 = scmp.eq.s32.totalorder %s76, 1
      %p267 = por %p265, %p266
      %p269 = scmp.ne.s32.totalorder %s254, %s268
      %p270 = scmp.eq.s32.totalorder %s76, 0
      %p271 = por %p269, %p270
      %s273 = sadd.s32 %s272, 1
      %p276 = scmp.eq.s32.totalorder %s70, 1
      %p277 = scmp.ne.s32.totalorder %s272, %s274
      %p278 = scmp.eq.s32.totalorder %s70, 0
      %p279 = por %p277, %p278
      %p280 = scmp.ne.s32.totalorder %s272, %s274
      %p281 = scmp.eq.s32.totalorder %s75, 1
      %p282 = por %p280, %p281
      %p283 = scmp.ne.s32.totalorder %s274, %s275
      %p284 = scmp.eq.s32.totalorder %s75, 0
      %p285 = por %p283, %p284
      %p286 = scmp.ne.s32.totalorder %s274, %s275
      %p287 = scmp.eq.s32.totalorder %s76, 1
      %p288 = por %p286, %p287
      %p290 = scmp.ne.s32.totalorder %s275, %s289
      %p291 = scmp.eq.s32.totalorder %s76, 0
      %p292 = por %p290, %p291
      %s294 = sadd.s32 %s293, 1
      %p297 = scmp.eq.s32.totalorder %s70, 1
      %p298 = scmp.ne.s32.totalorder %s293, %s295
      %p299 = scmp.eq.s32.totalorder %s70, 0
      %p300 = por %p298, %p299
      %p301 = scmp.ne.s32.totalorder %s293, %s295
      %p302 = scmp.eq.s32.totalorder %s75, 1
      %p303 = por %p301, %p302
      %p304 = scmp.ne.s32.totalorder %s295, %s296
      %p305 = scmp.eq.s32.totalorder %s75, 0
      %p306 = por %p304, %p305
      %p307 = scmp.ne.s32.totalorder %s295, %s296
      %p308 = scmp.eq.s32.totalorder %s76, 1
      %p309 = por %p307, %p308
      %p311 = scmp.ne.s32.totalorder %s296, %s310
      %p312 = scmp.eq.s32.totalorder %s76, 0
      %p313 = por %p311, %p312
      %s315 = sadd.s32 %s314, 1
      %p318 = scmp.eq.s32.totalorder %s70, 1
      %p319 = scmp.ne.s32.totalorder %s314, %s316
      %p320 = scmp.eq.s32.totalorder %s70, 0
      %p321 = por %p319, %p320
      %p322 = scmp.ne.s32.totalorder %s314, %s316
      %p323 = scmp.eq.s32.totalorder %s75, 1
      %p324 = por %p322, %p323
      %p325 = scmp.ne.s32.totalorder %s316, %s317
      %p326 = scmp.eq.s32.totalorder %s75, 0
      %p327 = por %p325, %p326
      %p328 = scmp.ne.s32.totalorder %s316, %s317
      %p329 = scmp.eq.s32.totalorder %s76, 1
      %p330 = por %p328, %p329
      %p332 = scmp.ne.s32.totalorder %s317, %s331
      %p333 = scmp.eq.s32.totalorder %s76, 0
      %p334 = por %p332, %p333
      %s336 = sadd.s32 %s335, 1
      %p339 = scmp.eq.s32.totalorder %s70, 1
      %p340 = scmp.ne.s32.totalorder %s335, %s337
      %p341 = scmp.eq.s32.totalorder %s70, 0
      %p342 = por %p340, %p341
      %p343 = scmp.ne.s32.totalorder %s335, %s337
      %p344 = scmp.eq.s32.totalorder %s75, 1
      %p345 = por %p343, %p344
      %p346 = scmp.ne.s32.totalorder %s337, %s338
      %p347 = scmp.eq.s32.totalorder %s75, 0
      %p348 = por %p346, %p347
      %p349 = scmp.ne.s32.totalorder %s337, %s338
      %p350 = scmp.eq.s32.totalorder %s76, 1
      %p351 = por %p349, %p350
      %p353 = scmp.ne.s32.totalorder %s338, %s352
      %p354 = scmp.eq.s32.totalorder %s76, 0
      %p355 = por %p353, %p354
      %s357 = sadd.s32 %s356, 1
      %p360 = scmp.eq.s32.totalorder %s70, 1
      %p361 = scmp.ne.s32.totalorder %s356, %s358
      %p362 = scmp.eq.s32.totalorder %s70, 0
      %p363 = por %p361, %p362
      %p364 = scmp.ne.s32.totalorder %s356, %s358
      %p365 = scmp.eq.s32.totalorder %s75, 1
      %p366 = por %p364, %p365
      %p367 = scmp.ne.s32.totalorder %s358, %s359
      %p368 = scmp.eq.s32.totalorder %s75, 0
      %p369 = por %p367, %p368
      %p370 = scmp.ne.s32.totalorder %s358, %s359
      %p371 = scmp.eq.s32.totalorder %s76, 1
      %p372 = por %p370, %p371
      %p374 = scmp.ne.s32.totalorder %s359, %s373
      %p375 = scmp.eq.s32.totalorder %s76, 0
      %p376 = por %p374, %p375
      %s378 = sadd.s32 %s377, 1
      %p381 = scmp.eq.s32.totalorder %s70, 1
      %p382 = scmp.ne.s32.totalorder %s377, %s379
      %p383 = scmp.eq.s32.totalorder %s70, 0
      %p384 = por %p382, %p383
      %p385 = scmp.ne.s32.totalorder %s377, %s379
      %p386 = scmp.eq.s32.totalorder %s75, 1
      %p387 = por %p385, %p386
      %p388 = scmp.ne.s32.totalorder %s379, %s380
      %p389 = scmp.eq.s32.totalorder %s75, 0
      %p390 = por %p388, %p389
      %p391 = scmp.ne.s32.totalorder %s379, %s380
      %p392 = scmp.eq.s32.totalorder %s76, 1
      %p393 = por %p391, %p392
      %p395 = scmp.ne.s32.totalorder %s380, %s394
      %p396 = scmp.eq.s32.totalorder %s76, 0
      %p397 = por %p395, %p396
      %s399 = sadd.s32 %s398, 1
      %p402 = scmp.eq.s32.totalorder %s70, 1
      %p403 = scmp.ne.s32.totalorder %s398, %s400
      %p404 = scmp.eq.s32.totalorder %s70, 0
      %p405 = por %p403, %p404
      %p406 = scmp.ne.s32.totalorder %s398, %s400
      %p407 = scmp.eq.s32.totalorder %s75, 1
      %p408 = por %p406, %p407
      %p409 = scmp.ne.s32.totalorder %s400, %s401
      %p410 = scmp.eq.s32.totalorder %s75, 0
      %p411 = por %p409, %p410
      %p412 = scmp.ne.s32.totalorder %s400, %s401
      %p413 = scmp.eq.s32.totalorder %s76, 1
      %p414 = por %p412, %p413
      %p416 = scmp.ne.s32.totalorder %s401, %s415
      %p417 = scmp.eq.s32.totalorder %s76, 0
      %p418 = por %p416, %p417
      %s420 = sadd.s32 %s419, 1
      %p423 = scmp.eq.s32.totalorder %s70, 1
      %p424 = scmp.ne.s32.totalorder %s419, %s421
      %p425 = scmp.eq.s32.totalorder %s70, 0
      %p426 = por %p424, %p425
      %p427 = scmp.ne.s32.totalorder %s419, %s421
      %p428 = scmp.eq.s32.totalorder %s75, 1
      %p429 = por %p427, %p428
      %p430 = scmp.ne.s32.totalorder %s421, %s422
      %p431 = scmp.eq.s32.totalorder %s75, 0
      %p432 = por %p430, %p431
      %p433 = scmp.ne.s32.totalorder %s421, %s422
      %p434 = scmp.eq.s32.totalorder %s76, 1
      %p435 = por %p433, %p434
      %p437 = scmp.ne.s32.totalorder %s422, %s436
      %p438 = scmp.eq.s32.totalorder %s76, 0
      %p439 = por %p437, %p438
      %s441 = sadd.s32 %s440, 1
      %p444 = scmp.eq.s32.totalorder %s70, 1
      %p445 = scmp.ne.s32.totalorder %s440, %s442
      %p446 = scmp.eq.s32.totalorder %s70, 0
      %p447 = por %p445, %p446
      %p448 = scmp.ne.s32.totalorder %s440, %s442
      %p449 = scmp.eq.s32.totalorder %s75, 1
      %p450 = por %p448, %p449
      %p451 = scmp.ne.s32.totalorder %s442, %s443
      %p452 = scmp.eq.s32.totalorder %s75, 0
      %p453 = por %p451, %p452
      %p454 = scmp.ne.s32.totalorder %s442, %s443
      %p455 = scmp.eq.s32.totalorder %s76, 1
      %p456 = por %p454, %p455
      %p458 = scmp.ne.s32.totalorder %s443, %s457
      %p459 = scmp.eq.s32.totalorder %s76, 0
      %p460 = por %p458, %p459
      %s462 = sadd.s32 %s461, 1
      %p465 = scmp.eq.s32.totalorder %s70, 1
      %p466 = scmp.ne.s32.totalorder %s461, %s463
      %p467 = scmp.eq.s32.totalorder %s70, 0
      %p468 = por %p466, %p467
      %p469 = scmp.ne.s32.totalorder %s461, %s463
      %p470 = scmp.eq.s32.totalorder %s75, 1
      %p471 = por %p469, %p470
      %p472 = scmp.ne.s32.totalorder %s463, %s464
      %p473 = scmp.eq.s32.totalorder %s75, 0
      %p474 = por %p472, %p473
      %p475 = scmp.ne.s32.totalorder %s463, %s464
      %p476 = scmp.eq.s32.totalorder %s76, 1
      %p477 = por %p475, %p476
      %p479 = scmp.ne.s32.totalorder %s464, %s478
      %p480 = scmp.eq.s32.totalorder %s76, 0
      %p481 = por %p479, %p480
      %s483 = sadd.s32 %s482, 1
      %p486 = scmp.eq.s32.totalorder %s70, 1
      %p487 = scmp.ne.s32.totalorder %s482, %s484
      %p488 = scmp.eq.s32.totalorder %s70, 0
      %p489 = por %p487, %p488
      %p490 = scmp.ne.s32.totalorder %s482, %s484
      %p491 = scmp.eq.s32.totalorder %s75, 1
      %p492 = por %p490, %p491
      %p493 = scmp.ne.s32.totalorder %s484, %s485
      %p494 = scmp.eq.s32.totalorder %s75, 0
      %p495 = por %p493, %p494
      %p496 = scmp.ne.s32.totalorder %s484, %s485
      %p497 = scmp.eq.s32.totalorder %s76, 1
      %p498 = por %p496, %p497
      %p500 = scmp.ne.s32.totalorder %s485, %s499
      %p501 = scmp.eq.s32.totalorder %s76, 0
      %p502 = por %p500, %p501
      %s504 = sadd.s32 %s503, 1
      %p507 = scmp.eq.s32.totalorder %s70, 1
      %p508 = scmp.ne.s32.totalorder %s503, %s505
      %p509 = scmp.eq.s32.totalorder %s70, 0
      %p510 = por %p508, %p509
      %p511 = scmp.ne.s32.totalorder %s503, %s505
      %p512 = scmp.eq.s32.totalorder %s75, 1
      %p513 = por %p511, %p512
      %p514 = scmp.ne.s32.totalorder %s505, %s506
      %p515 = scmp.eq.s32.totalorder %s75, 0
      %p516 = por %p514, %p515
      %p517 = scmp.ne.s32.totalorder %s505, %s506
      %p518 = scmp.eq.s32.totalorder %s76, 1
      %p519 = por %p517, %p518
      %p521 = scmp.ne.s32.totalorder %s506, %s520
      %p522 = scmp.eq.s32.totalorder %s76, 0
      %p523 = por %p521, %p522
      %s525 = sadd.s32 %s524, 1
      %p528 = scmp.eq.s32.totalorder %s70, 1
      %p529 = scmp.ne.s32.totalorder %s524, %s526
      %p530 = scmp.eq.s32.totalorder %s70, 0
      %p531 = por %p529, %p530
      %p532 = scmp.ne.s32.totalorder %s524, %s526
      %p533 = scmp.eq.s32.totalorder %s75, 1
      %p534 = por %p532, %p533
      %p535 = scmp.ne.s32.totalorder %s526, %s527
      %p536 = scmp.eq.s32.totalorder %s75, 0
      %p537 = por %p535, %p536
      %p538 = scmp.ne.s32.totalorder %s526, %s527
      %p539 = scmp.eq.s32.totalorder %s76, 1
      %p540 = por %p538, %p539
      %p542 = scmp.ne.s32.totalorder %s527, %s541
      %p543 = scmp.eq.s32.totalorder %s76, 0
      %p544 = por %p542, %p543
      %s546 = sadd.s32 %s545, 1
      %p549 = scmp.eq.s32.totalorder %s70, 1
      %p550 = scmp.ne.s32.totalorder %s545, %s547
      %p551 = scmp.eq.s32.totalorder %s70, 0
      %p552 = por %p550, %p551
      %p553 = scmp.ne.s32.totalorder %s545, %s547
      %p554 = scmp.eq.s32.totalorder %s75, 1
      %p555 = por %p553, %p554
      %p556 = scmp.ne.s32.totalorder %s547, %s548
      %p557 = scmp.eq.s32.totalorder %s75, 0
      %p558 = por %p556, %p557
      %p559 = scmp.ne.s32.totalorder %s547, %s548
      %p560 = scmp.eq.s32.totalorder %s76, 1
      %p561 = por %p559, %p560
      %p563 = scmp.ne.s32.totalorder %s548, %s562
      %p564 = scmp.eq.s32.totalorder %s76, 0
      %p565 = por %p563, %p564
      %s567 = sadd.s32 %s566, 1
      %p570 = scmp.eq.s32.totalorder %s70, 1
      %p571 = scmp.ne.s32.totalorder %s566, %s568
      %p572 = scmp.eq.s32.totalorder %s70, 0
      %p573 = por %p571, %p572
      %p574 = scmp.ne.s32.totalorder %s566, %s568
      %p575 = scmp.eq.s32.totalorder %s75, 1
      %p576 = por %p574, %p575
      %p577 = scmp.ne.s32.totalorder %s568, %s569
      %p578 = scmp.eq.s32.totalorder %s75, 0
      %p579 = por %p577, %p578
      %p580 = scmp.ne.s32.totalorder %s568, %s569
      %p581 = scmp.eq.s32.totalorder %s76, 1
      %p582 = por %p580, %p581
      %p584 = scmp.ne.s32.totalorder %s569, %s583
      %p585 = scmp.eq.s32.totalorder %s76, 0
      %p586 = por %p584, %p585
      %s588 = sadd.s32 %s587, 1
      %p591 = scmp.eq.s32.totalorder %s70, 1
      %p592 = scmp.ne.s32.totalorder %s587, %s589
      %p593 = scmp.eq.s32.totalorder %s70, 0
      %p594 = por %p592, %p593
      %p595 = scmp.ne.s32.totalorder %s587, %s589
      %p596 = scmp.eq.s32.totalorder %s75, 1
      %p597 = por %p595, %p596
      %p598 = scmp.ne.s32.totalorder %s589, %s590
      %p599 = scmp.eq.s32.totalorder %s75, 0
      %p600 = por %p598, %p599
      %p601 = scmp.ne.s32.totalorder %s589, %s590
      %p602 = scmp.eq.s32.totalorder %s76, 1
      %p603 = por %p601, %p602
      %p605 = scmp.ne.s32.totalorder %s590, %s604
      %p606 = scmp.eq.s32.totalorder %s76, 0
      %p607 = por %p605, %p606
      %s609 = sadd.s32 %s608, 1
      %p612 = scmp.eq.s32.totalorder %s70, 1
      %p613 = scmp.ne.s32.totalorder %s608, %s610
      %p614 = scmp.eq.s32.totalorder %s70, 0
      %p615 = por %p613, %p614
      %p616 = scmp.ne.s32.totalorder %s608, %s610
      %p617 = scmp.eq.s32.totalorder %s75, 1
      %p618 = por %p616, %p617
      %p619 = scmp.ne.s32.totalorder %s610, %s611
      %p620 = scmp.eq.s32.totalorder %s75, 0
      %p621 = por %p619, %p620
      %p622 = scmp.ne.s32.totalorder %s610, %s611
      %p623 = scmp.eq.s32.totalorder %s76, 1
      %p624 = por %p622, %p623
      %p626 = scmp.ne.s32.totalorder %s611, %s625
      %p627 = scmp.eq.s32.totalorder %s76, 0
      %p628 = por %p626, %p627
      %s630 = sadd.s32 %s629, 1
      %p633 = scmp.eq.s32.totalorder %s70, 1
      %p634 = scmp.ne.s32.totalorder %s629, %s631
      %p635 = scmp.eq.s32.totalorder %s70, 0
      %p636 = por %p634, %p635
      %p637 = scmp.ne.s32.totalorder %s629, %s631
      %p638 = scmp.eq.s32.totalorder %s75, 1
      %p639 = por %p637, %p638
      %p640 = scmp.ne.s32.totalorder %s631, %s632
      %p641 = scmp.eq.s32.totalorder %s75, 0
      %p642 = por %p640, %p641
      %p643 = scmp.ne.s32.totalorder %s631, %s632
      %p644 = scmp.eq.s32.totalorder %s76, 1
      %p645 = por %p643, %p644
      %p647 = scmp.ne.s32.totalorder %s632, %s646
      %p648 = scmp.eq.s32.totalorder %s76, 0
      %p649 = por %p647, %p648
      %s651 = sadd.s32 %s650, 1
      %p654 = scmp.eq.s32.totalorder %s70, 1
      %p655 = scmp.ne.s32.totalorder %s650, %s652
      %p656 = scmp.eq.s32.totalorder %s70, 0
      %p657 = por %p655, %p656
      %p658 = scmp.ne.s32.totalorder %s650, %s652
      %p659 = scmp.eq.s32.totalorder %s75, 1
      %p660 = por %p658, %p659
      %p661 = scmp.ne.s32.totalorder %s652, %s653
      %p662 = scmp.eq.s32.totalorder %s75, 0
      %p663 = por %p661, %p662
      %p664 = scmp.ne.s32.totalorder %s652, %s653
      %p665 = scmp.eq.s32.totalorder %s76, 1
      %p666 = por %p664, %p665
      %p668 = scmp.ne.s32.totalorder %s653, %s667
      %p669 = scmp.eq.s32.totalorder %s76, 0
      %p670 = por %p668, %p669
      %s672 = sadd.s32 %s671, 1
      %p675 = scmp.eq.s32.totalorder %s70, 1
      %p676 = scmp.ne.s32.totalorder %s671, %s673
      %p677 = scmp.eq.s32.totalorder %s70, 0
      %p678 = por %p676, %p677
      %p679 = scmp.ne.s32.totalorder %s671, %s673
      %p680 = scmp.eq.s32.totalorder %s75, 1
      %p681 = por %p679, %p680
      %p682 = scmp.ne.s32.totalorder %s673, %s674
      %p683 = scmp.eq.s32.totalorder %s75, 0
      %p684 = por %p682, %p683
      %p685 = scmp.ne.s32.totalorder %s673, %s674
      %p686 = scmp.eq.s32.totalorder %s76, 1
      %p687 = por %p685, %p686
      %p689 = scmp.ne.s32.totalorder %s674, %s688
      %p690 = scmp.eq.s32.totalorder %s76, 0
      %p691 = por %p689, %p690
      %s692 = ssub.s32 %s70, %s77
      %p693 = scmp.eq.s32.totalorder %s692, 0
      %s695 = sadd.s32 %s694, 1
      %s696 = scalar_select %p693, %s694, %s695
      %p699 = pneg %p693
      %p700 = scmp.eq.s32.totalorder %s70, 1
      %p701 = por %p699, %p700
      %p702 = scmp.ne.s32.totalorder %s694, %s697
      %p703 = scmp.eq.s32.totalorder %s70, 0
      %p704 = por %p702, %p703
      %p705 = scmp.ne.s32.totalorder %s694, %s697
      %p706 = scmp.eq.s32.totalorder %s75, 1
      %p707 = por %p705, %p706
      %p708 = scmp.ne.s32.totalorder %s697, %s698
      %p709 = scmp.eq.s32.totalorder %s75, 0
      %p710 = por %p708, %p709
      %p711 = scmp.ne.s32.totalorder %s697, %s698
      %p712 = scmp.eq.s32.totalorder %s76, 1
      %p713 = por %p711, %p712
      %p715 = scmp.ne.s32.totalorder %s698, %s714
      %p716 = scmp.eq.s32.totalorder %s76, 0
      %p717 = por %p715, %p716
      %p718 = scmp.le.s32.totalorder 1, %s70
      %p719 = scmp.lt.s32.totalorder %s70, 3
      %p720 = pnand %p718, %p719
      %p721 = pneg %p720
      // Predicated region
      $region9: #{tpu_custom_call.1} parent=5 // pred_check
        _
      $region10: #{tpu_custom_call.1} parent=5 // pred_check_branch
        %723 = sbr.rel (%p720) target = $region12
      $region11: #{tpu_custom_call.1} parent=5 // pred_region
        %s724 = ssub.s32 %s70, 1
        // Predicated region
        $region13: #{tpu_custom_call.1} parent=11 // pred_check
          %p725 = pneg %p117
        $region14: #{tpu_custom_call.1} parent=11 // pred_check_branch
          %727 = sbr.rel (%p725) target = $region16
        $region15: #{tpu_custom_call.1} parent=11 // pred_region
          _
        $region16: #{tpu_custom_call.1} parent=11 // pred_fallthru
          _
        // Predicated region
        $region17: #{tpu_custom_call.1} parent=11 // pred_check
          %p728 = pneg %p138
        $region18: #{tpu_custom_call.1} parent=11 // pred_check_branch
          %730 = sbr.rel (%p728) target = $region20
        $region19: #{tpu_custom_call.1} parent=11 // pred_region
          _
        $region20: #{tpu_custom_call.1} parent=11 // pred_fallthru
          _
        // Predicated region
        $region21: #{tpu_custom_call.1} parent=11 // pred_check
          %p731 = pneg %p159
        $region22: #{tpu_custom_call.1} parent=11 // pred_check_branch
          %733 = sbr.rel (%p731) target = $region24
        $region23: #{tpu_custom_call.1} parent=11 // pred_region
          _
        $region24: #{tpu_custom_call.1} parent=11 // pred_fallthru
          _
        // Predicated region
        $region25: #{tpu_custom_call.1} parent=11 // pred_check
          %p734 = pneg %p180
        $region26: #{tpu_custom_call.1} parent=11 // pred_check_branch
          %736 = sbr.rel (%p734) target = $region28
        $region27: #{tpu_custom_call.1} parent=11 // pred_region
          _
        $region28: #{tpu_custom_call.1} parent=11 // pred_fallthru
          _
        // Predicated region
        $region29: #{tpu_custom_call.1} parent=11 // pred_check
          %p737 = pneg %p201
        $region30: #{tpu_custom_call.1} parent=11 // pred_check_branch
          %739 = sbr.rel (%p737) target = $region32
        $region31: #{tpu_custom_call.1} parent=11 // pred_region
          _
        $region32: #{tpu_custom_call.1} parent=11 // pred_fallthru
          _
        // Predicated region
        $region33: #{tpu_custom_call.1} parent=11 // pred_check
          %p740 = pneg %p222
        $region34: #{tpu_custom_call.1} parent=11 // pred_check_branch
          %742 = sbr.rel (%p740) target = $region36
        $region35: #{tpu_custom_call.1} parent=11 // pred_region
          _
        $region36: #{tpu_custom_call.1} parent=11 // pred_fallthru
          _
        // Predicated region
        $region37: #{tpu_custom_call.1} parent=11 // pred_check
          %p743 = pneg %p243
        $region38: #{tpu_custom_call.1} parent=11 // pred_check_branch
          %745 = sbr.rel (%p743) target = $region40
        $region39: #{tpu_custom_call.1} parent=11 // pred_region
          _
        $region40: #{tpu_custom_call.1} parent=11 // pred_fallthru
          _
        // Predicated region
        $region41: #{tpu_custom_call.1} parent=11 // pred_check
          %p746 = pneg %p264
        $region42: #{tpu_custom_call.1} parent=11 // pred_check_branch
          %748 = sbr.rel (%p746) target = $region44
        $region43: #{tpu_custom_call.1} parent=11 // pred_region
          _
        $region44: #{tpu_custom_call.1} parent=11 // pred_fallthru
          _
        // Predicated region
        $region45: #{tpu_custom_call.1} parent=11 // pred_check
          %p749 = pneg %p285
        $region46: #{tpu_custom_call.1} parent=11 // pred_check_branch
          %751 = sbr.rel (%p749) target = $region48
        $region47: #{tpu_custom_call.1} parent=11 // pred_region
          _
        $region48: #{tpu_custom_call.1} parent=11 // pred_fallthru
          _
        // Predicated region
        $region49: #{tpu_custom_call.1} parent=11 // pred_check
          %p752 = pneg %p306
        $region50: #{tpu_custom_call.1} parent=11 // pred_check_branch
          %754 = sbr.rel (%p752) target = $region52
        $region51: #{tpu_custom_call.1} parent=11 // pred_region
          _
        $region52: #{tpu_custom_call.1} parent=11 // pred_fallthru
          _
        // Predicated region
        $region53: #{tpu_custom_call.1} parent=11 // pred_check
          %p755 = pneg %p327
        $region54: #{tpu_custom_call.1} parent=11 // pred_check_branch
          %757 = sbr.rel (%p755) target = $region56
        $region55: #{tpu_custom_call.1} parent=11 // pred_region
          _
        $region56: #{tpu_custom_call.1} parent=11 // pred_fallthru
          _
        // Predicated region
        $region57: #{tpu_custom_call.1} parent=11 // pred_check
          %p758 = pneg %p348
        $region58: #{tpu_custom_call.1} parent=11 // pred_check_branch
          %760 = sbr.rel (%p758) target = $region60
        $region59: #{tpu_custom_call.1} parent=11 // pred_region
          _
        $region60: #{tpu_custom_call.1} parent=11 // pred_fallthru
          _
        // Predicated region
        $region61: #{tpu_custom_call.1} parent=11 // pred_check
          %p761 = pneg %p369
        $region62: #{tpu_custom_call.1} parent=11 // pred_check_branch
          %763 = sbr.rel (%p761) target = $region64
        $region63: #{tpu_custom_call.1} parent=11 // pred_region
          _
        $region64: #{tpu_custom_call.1} parent=11 // pred_fallthru
          _
        // Predicated region
        $region65: #{tpu_custom_call.1} parent=11 // pred_check
          %p764 = pneg %p390
        $region66: #{tpu_custom_call.1} parent=11 // pred_check_branch
          %766 = sbr.rel (%p764) target = $region68
        $region67: #{tpu_custom_call.1} parent=11 // pred_region
          _
        $region68: #{tpu_custom_call.1} parent=11 // pred_fallthru
          _
        // Predicated region
        $region69: #{tpu_custom_call.1} parent=11 // pred_check
          %p767 = pneg %p411
        $region70: #{tpu_custom_call.1} parent=11 // pred_check_branch
          %769 = sbr.rel (%p767) target = $region72
        $region71: #{tpu_custom_call.1} parent=11 // pred_region
          _
        $region72: #{tpu_custom_call.1} parent=11 // pred_fallthru
          _
        // Predicated region
        $region73: #{tpu_custom_call.1} parent=11 // pred_check
          %p770 = pneg %p432
        $region74: #{tpu_custom_call.1} parent=11 // pred_check_branch
          %772 = sbr.rel (%p770) target = $region76
        $region75: #{tpu_custom_call.1} parent=11 // pred_region
          _
        $region76: #{tpu_custom_call.1} parent=11 // pred_fallthru
          _
        // Predicated region
        $region77: #{tpu_custom_call.1} parent=11 // pred_check
          %p773 = pneg %p453
        $region78: #{tpu_custom_call.1} parent=11 // pred_check_branch
          %775 = sbr.rel (%p773) target = $region80
        $region79: #{tpu_custom_call.1} parent=11 // pred_region
          _
        $region80: #{tpu_custom_call.1} parent=11 // pred_fallthru
          _
        // Predicated region
        $region81: #{tpu_custom_call.1} parent=11 // pred_check
          %p776 = pneg %p474
        $region82: #{tpu_custom_call.1} parent=11 // pred_check_branch
          %778 = sbr.rel (%p776) target = $region84
        $region83: #{tpu_custom_call.1} parent=11 // pred_region
          _
        $region84: #{tpu_custom_call.1} parent=11 // pred_fallthru
          _
        // Predicated region
        $region85: #{tpu_custom_call.1} parent=11 // pred_check
          %p779 = pneg %p495
        $region86: #{tpu_custom_call.1} parent=11 // pred_check_branch
          %781 = sbr.rel (%p779) target = $region88
        $region87: #{tpu_custom_call.1} parent=11 // pred_region
          _
        $region88: #{tpu_custom_call.1} parent=11 // pred_fallthru
          _
        // Predicated region
        $region89: #{tpu_custom_call.1} parent=11 // pred_check
          %p782 = pneg %p516
        $region90: #{tpu_custom_call.1} parent=11 // pred_check_branch
          %784 = sbr.rel (%p782) target = $region92
        $region91: #{tpu_custom_call.1} parent=11 // pred_region
          _
        $region92: #{tpu_custom_call.1} parent=11 // pred_fallthru
          _
        // Predicated region
        $region93: #{tpu_custom_call.1} parent=11 // pred_check
          %p785 = pneg %p537
        $region94: #{tpu_custom_call.1} parent=11 // pred_check_branch
          %787 = sbr.rel (%p785) target = $region96
        $region95: #{tpu_custom_call.1} parent=11 // pred_region
          _
        $region96: #{tpu_custom_call.1} parent=11 // pred_fallthru
          _
        // Predicated region
        $region97: #{tpu_custom_call.1} parent=11 // pred_check
          %p788 = pneg %p558
        $region98: #{tpu_custom_call.1} parent=11 // pred_check_branch
          %790 = sbr.rel (%p788) target = $region100
        $region99: #{tpu_custom_call.1} parent=11 // pred_region
          _
        $region100: #{tpu_custom_call.1} parent=11 // pred_fallthru
          _
        // Predicated region
        $region101: #{tpu_custom_call.1} parent=11 // pred_check
          %p791 = pneg %p579
        $region102: #{tpu_custom_call.1} parent=11 // pred_check_branch
          %793 = sbr.rel (%p791) target = $region104
        $region103: #{tpu_custom_call.1} parent=11 // pred_region
          _
        $region104: #{tpu_custom_call.1} parent=11 // pred_fallthru
          _
        // Predicated region
        $region105: #{tpu_custom_call.1} parent=11 // pred_check
          %p794 = pneg %p600
        $region106: #{tpu_custom_call.1} parent=11 // pred_check_branch
          %796 = sbr.rel (%p794) target = $region108
        $region107: #{tpu_custom_call.1} parent=11 // pred_region
          _
        $region108: #{tpu_custom_call.1} parent=11 // pred_fallthru
          _
        // Predicated region
        $region109: #{tpu_custom_call.1} parent=11 // pred_check
          %p797 = pneg %p621
        $region110: #{tpu_custom_call.1} parent=11 // pred_check_branch
          %799 = sbr.rel (%p797) target = $region112
        $region111: #{tpu_custom_call.1} parent=11 // pred_region
          _
        $region112: #{tpu_custom_call.1} parent=11 // pred_fallthru
          _
        // Predicated region
        $region113: #{tpu_custom_call.1} parent=11 // pred_check
          %p800 = pneg %p642
        $region114: #{tpu_custom_call.1} parent=11 // pred_check_branch
          %802 = sbr.rel (%p800) target = $region116
        $region115: #{tpu_custom_call.1} parent=11 // pred_region
          _
        $region116: #{tpu_custom_call.1} parent=11 // pred_fallthru
          _
        // Predicated region
        $region117: #{tpu_custom_call.1} parent=11 // pred_check
          %p803 = pneg %p663
        $region118: #{tpu_custom_call.1} parent=11 // pred_check_branch
          %805 = sbr.rel (%p803) target = $region120
        $region119: #{tpu_custom_call.1} parent=11 // pred_region
          _
        $region120: #{tpu_custom_call.1} parent=11 // pred_fallthru
          _
        // Predicated region
        $region121: #{tpu_custom_call.1} parent=11 // pred_check
          %p806 = pneg %p684
        $region122: #{tpu_custom_call.1} parent=11 // pred_check_branch
          %808 = sbr.rel (%p806) target = $region124
        $region123: #{tpu_custom_call.1} parent=11 // pred_region
          _
        $region124: #{tpu_custom_call.1} parent=11 // pred_fallthru
          _
      $region12: #{tpu_custom_call.1} parent=5 // pred_fallthru
        _
      %p809 = scmp.lt.s32.totalorder %s70, 2
      // Predicated region
      $region125: #{tpu_custom_call.1} parent=5 // pred_check
        %p810 = pneg %p809
      $region126: #{tpu_custom_call.1} parent=5 // pred_check_branch
        %812 = sbr.rel (%p810) target = $region128
      $region127: #{tpu_custom_call.1} parent=5 // pred_region
        // Predicated region
        $region129: #{tpu_custom_call.1} parent=127 // pred_check
          %p813 = pneg %p90
        $region130: #{tpu_custom_call.1} parent=127 // pred_check_branch
          %815 = sbr.rel (%p813) target = $region132
        $region131: #{tpu_custom_call.1} parent=127 // pred_region
          %p816 = scmp.lt.s32.totalorder %s70, 1
          %s817 = scalar_select %p816, %s70, 1
          %s818 = smul.addr %s817, 8
          %s819 = scalar_lea.vmem %s1, %s818
        $region132: #{tpu_custom_call.1} parent=127 // pred_fallthru
          _
      $region128: #{tpu_custom_call.1} parent=5 // pred_fallthru
        _
      %p820 = scmp.le.s32.totalorder 1, %s70
      %p821 = scmp.lt.s32.totalorder %s70, 3
      %p822 = pnand %p820, %p821
      %p823 = pneg %p822
      // Predicated region
      $region133: #{tpu_custom_call.1} parent=5 // pred_check
        _
      $region134: #{tpu_custom_call.1} parent=5 // pred_check_branch
        %825 = sbr.rel (%p822) target = $region136
      $region135: #{tpu_custom_call.1} parent=5 // pred_region
        %s826 = ssub.s32 %s70, 1
        %p827 = scmp.lt.s32.totalorder %s75, 1
        %s828 = scalar_select %p827, %s75, 1
        %s829 = smul.addr %s828, 8
        %s830 = scalar_lea.vmem %s1, %s829
        %p831 = pneg %p96
        %p832 = pneg %p93
        %p833 = pneg %p117
        %p834 = pneg %p114
        %p835 = pneg %p138
        %p836 = pneg %p135
        %p837 = pneg %p159
        %p838 = pneg %p156
        %p839 = pneg %p180
        %p840 = pneg %p177
        %p841 = pneg %p201
        %p842 = pneg %p198
        %p843 = pneg %p222
        %p844 = pneg %p219
        %p845 = pneg %p243
        %p846 = pneg %p240
        %p847 = pneg %p264
        %p848 = pneg %p261
        %p849 = pneg %p285
        %p850 = pneg %p282
        %p851 = pneg %p306
        %p852 = pneg %p303
        %p853 = pneg %p327
        %p854 = pneg %p324
        %p855 = pneg %p348
        %p856 = pneg %p345
        %p857 = pneg %p369
        %p858 = pneg %p366
        %p859 = pneg %p390
        %p860 = pneg %p387
        %p861 = pneg %p411
        %p862 = pneg %p408
        %p863 = pneg %p432
        %p864 = pneg %p429
        %p865 = pneg %p453
        %p866 = pneg %p450
        %p867 = pneg %p474
        %p868 = pneg %p471
        %p869 = pneg %p495
        %p870 = pneg %p492
        %p871 = pneg %p516
        %p872 = pneg %p513
        %p873 = pneg %p537
        %p874 = pneg %p534
        %p875 = pneg %p558
        %p876 = pneg %p555
        %p877 = pneg %p579
        %p878 = pneg %p576
        %p879 = pneg %p600
        %p880 = pneg %p597
        %p881 = pneg %p621
        %p882 = pneg %p618
        %p883 = pneg %p642
        %p884 = pneg %p639
        %p885 = pneg %p663
        %p886 = pneg %p660
        %p887 = pneg %p684
        %p888 = pneg %p681
        %p889 = pneg %p710
        %p890 = pneg %p707
        %s891 = sand.u32 %s697, 1
        %s892 = scalar_lea.sflag [#allocation4], %s891
        %s893 = sand.u32 %s697, 1
        %s894 = scalar_lea.vmem [#allocation3], %s893
        %p895 = scmp.lt.s32.totalorder %s75, 1
        %s896 = scalar_select %p895, %s75, 1
        %s897 = smul.addr %s896, 8
        %s898 = scalar_lea.vmem %s1, %s897
        %v899 = vld [vmem:[%s898] sm:$0xff]
        %v900 = vld [vmem:[%s3] sm:$0xff]
        %v901 = vld [vmem:[%s3 + $0x8] sm:$0xff]
        %v902 = vld [vmem:[%s3 + $0x10] sm:$0xff]
        %v903 = vld [vmem:[%s3 + $0x18] sm:$0xff]
        %v904 = vld [vmem:[%s5] sm:$0xff]
        %v905 = vld [vmem:[%s5 + $0x8] sm:$0xff]
        %v906 = vld [vmem:[%s5 + $0x10] sm:$0xff]
        %v907 = vld [vmem:[%s5 + $0x18] sm:$0xff]
        %909 = vrot.lane.b32.xlu0 %v899, 3
        %v910 = vpop.permute.xlu0 %909
        %vm912 = vcmask 23552
        %v913 = vsel %vm912, 0.0, %v910
        %vm914 = vcmask 154624
        %v915 = vsel %vm914, %v913, 0.0
        %917 = vrot.lane.b32.xlu0 %v915, 127
        %v918 = vpop.permute.xlu0 %917
        %920 = vrot.lane.b32.xlu0 %v915, 126
        %v921 = vpop.permute.xlu0 %920
        %923 = vrot.lane.b32.xlu0 %v915, 125
        %v924 = vpop.permute.xlu0 %923
        %926 = vrot.lane.b32.xlu0 %v915, 124
        %v927 = vpop.permute.xlu0 %926
        %929 = vrot.lane.b32.xlu0 %v915, 123
        %v930 = vpop.permute.xlu0 %929
        %932 = vrot.lane.b32.xlu0 %v915, 122
        %v933 = vpop.permute.xlu0 %932
        %936 = vset.pattern.permute.xlu0 0
        %937 = vperm.xlu0 %936, %v904
        %v938 = vpop.permute.xlu0 %937
        %941 = vset.pattern.permute.xlu0 0
        %942 = vperm.xlu0 %941, %v905
        %v943 = vpop.permute.xlu0 %942
        %946 = vset.pattern.permute.xlu0 0
        %947 = vperm.xlu0 %946, %v906
        %v948 = vpop.permute.xlu0 %947
        %951 = vset.pattern.permute.xlu0 0
        %952 = vperm.xlu0 %951, %v907
        %v953 = vpop.permute.xlu0 %952
        %vm955 = vcmask 457728
        %v957 = vsel %vm955, %v900, 0
        %v960 = vsel %vm955, %v901, 0
        %v963 = vsel %vm955, %v902, 0
        %v966 = vsel %vm955, %v903, 0
        %968 = vmatprep.subr.mxu0 0.0
        %969 = vmatpush1.msra.mxu0 %v915
        %970 = vmatprep.subr.mxu0 0.0
        %971 = vmatpush1.msra.mxu0 %v918
        %972 = vmatprep.subr.mxu0 0.0
        %973 = vmatpush1.msra.mxu0 %v921
        %974 = vmatprep.subr.mxu0 0.0
        %975 = vmatpush1.msra.mxu0 %v924
        %976 = vmatprep.subr.mxu0 0.0
        %977 = vmatpush1.msra.mxu0 %v927
        %978 = vmatprep.subr.mxu0 0.0
        %979 = vmatpush1.msra.mxu0 %v930
        %980 = vmatprep.subr.mxu0 0.0
        %981 = vmatpush1.msra.mxu0 %v933
        %982 = vmatprep.subr.mxu0 0.0
        %983 = vmatpush1.msra.mxu0 0.0
        %984 = vmatprep.subr.mxu0 0.0
        %985 = vmatpush1.msra.mxu0 0.0
        %986 = vmatprep.subr.mxu0 0.0
        %987 = vmatpush1.msra.mxu0 0.0
        %988 = vmatprep.subr.mxu0 0.0
        %989 = vmatpush1.msra.mxu0 0.0
        %990 = vmatprep.subr.mxu0 0.0
        %991 = vmatpush1.msra.mxu0 0.0
        %992 = vmatprep.subr.mxu0 0.0
        %993 = vmatpush1.msra.mxu0 0.0
        %994 = vmatprep.subr.mxu0 0.0
        %995 = vmatpush1.msra.mxu0 0.0
        %996 = vmatprep.subr.mxu0 0.0
        %997 = vmatpush1.msra.mxu0 0.0
        %998 = vmatprep.subr.mxu0 0.0
        %999 = vmatpush1.msra.mxu0 0.0
        %1000 = vmatprep.subr.mxu0 0.0
        %1001 = vmatpush1.msra.mxu0 0.0
        %1002 = vmatprep.subr.mxu0 0.0
        %1003 = vmatpush1.msra.mxu0 0.0
        %1004 = vmatprep.subr.mxu0 0.0
        %1005 = vmatpush1.msra.mxu0 0.0
        %1006 = vmatprep.subr.mxu0 0.0
        %1007 = vmatpush1.msra.mxu0 0.0
        %1008 = vmatprep.subr.mxu0 0.0
        %1009 = vmatpush1.msra.mxu0 0.0
        %1010 = vmatprep.subr.mxu0 0.0
        %1011 = vmatpush1.msra.mxu0 0.0
        %1012 = vmatprep.subr.mxu0 0.0
        %1013 = vmatpush1.msra.mxu0 0.0
        %1014 = vmatprep.subr.mxu0 0.0
        %1015 = vmatpush1.msra.mxu0 0.0
        %1016 = vmatprep.subr.mxu0 0.0
        %1017 = vmatpush1.msra.mxu0 0.0
        %1018 = vmatprep.subr.mxu0 0.0
        %1019 = vmatpush1.msra.mxu0 0.0
        %1020 = vmatprep.subr.mxu0 0.0
        %1021 = vmatpush1.msra.mxu0 0.0
        %1022 = vmatprep.subr.mxu0 0.0
        %1023 = vmatpush1.msra.mxu0 0.0
        %1024 = vmatprep.subr.mxu0 0.0
        %1025 = vmatpush1.msra.mxu0 0.0
        %1026 = vmatprep.subr.mxu0 0.0
        %1027 = vmatpush1.msra.mxu0 0.0
        %1028 = vmatprep.subr.mxu0 0.0
        %1029 = vmatpush1.msra.mxu0 0.0
        %1030 = vmatprep.subr.mxu0 0.0
        %1031 = vmatpush1.msra.mxu0 0.0
        %1032 = vmatprep.mubr.f32.mxu0 0.0
        %1033 = vmatmul.mubr.f32.gmra.mrb[0].mxu0 %v957
        %v1034 = vpop.f32.mrb[0].mxu0
        %v1035 = vadd.f32 %v938, %v1034
        %v1036 = vpop.f32.mrb[0].mxu0
        %1037 = vmatprep.mubr.f32.mxu0 0.0
        %1038 = vmatmul.mubr.f32.gmra.mrb[0].mxu0 %v960
        %v1039 = vpop.f32.mrb[0].mxu0
        %v1040 = vadd.f32 %v943, %v1039
        %v1041 = vpop.f32.mrb[0].mxu0
        %1042 = vmatprep.mubr.f32.mxu0 0.0
        %1043 = vmatmul.mubr.f32.gmra.mrb[0].mxu0 %v963
        %v1044 = vpop.f32.mrb[0].mxu0
        %v1045 = vadd.f32 %v948, %v1044
        %v1046 = vpop.f32.mrb[0].mxu0
        %1047 = vmatprep.mubr.f32.mxu0 0.0
        %1048 = vmatmul.mubr.f32.gmra.mrb[0].mxu0 %v966
        %v1049 = vpop.f32.mrb[0].mxu0
        %v1050 = vadd.f32 %v953, %v1049
        %v1051 = vpop.f32.mrb[0].mxu0
        %1052 = vdwg.mxu0
        %v1053 = vld [vmem:[%s7] sm:$0xff]
        %v1054 = vld [vmem:[%s7 + $0x8] sm:$0xff]
        %v1055 = vld [vmem:[%s7 + $0x10] sm:$0xff]
        %v1056 = vld [vmem:[%s7 + $0x18] sm:$0xff]
        %v1057 = vld [vmem:[%s9] sm:$0xff]
        %v1058 = vld [vmem:[%s9 + $0x8] sm:$0xff]
        %v1059 = vld [vmem:[%s9 + $0x10] sm:$0xff]
        %v1060 = vld [vmem:[%s9 + $0x18] sm:$0xff]
        %1062 = vset.pattern.permute.xlu0 0
        %1063 = vperm.xlu0 %1062, %v1053
        %v1064 = vpop.permute.xlu0 %1063
        %1067 = vset.pattern.permute.xlu0 0
        %1068 = vperm.xlu0 %1067, %v1054
        %v1069 = vpop.permute.xlu0 %1068
        %1072 = vset.pattern.permute.xlu0 0
        %1073 = vperm.xlu0 %1072, %v1055
        %v1074 = vpop.permute.xlu0 %1073
        %1077 = vset.pattern.permute.xlu0 0
        %1078 = vperm.xlu0 %1077, %v1056
        %v1079 = vpop.permute.xlu0 %1078
        %v1081 = vmul.f32 %v1064, %v1035
        %v1082 = vmul.f32 %v1069, %v1040
        %v1083 = vmul.f32 %v1074, %v1045
        %v1084 = vmul.f32 %v1079, %v1050
        %v1085 = vand.u32 2147483647, %v1081
        %vm1086 = vcmp.le.f32.partialorder %v1085, 0.7853982
        %vm1087 = vcmp.lt.s32.totalorder %v1081, 0
        %v1088 = vand.u32 %v1081, 2139095040
        %v1089 = vshrl.u32 %v1088, 23
        %v1090 = vsub.s32 %v1089, 127
        %v1091 = vand.u32 2147483647, %v1081
        %v1092 = vand.u32 %v1091, 8388607
        %v1093 = vor.u32 %v1092, 8388608
        %v1094 = vsub.s32 0, %v1093
        %v1095 = vadd.s32 %v1090, 1
        %vm1096 = vcmp.gt.s32.totalorder %v1095, 0
        %v1097 = vsel %vm1096, %v1095, 0
        %v1098 = vshrl.u32 %v1097, 5
        %v1099 = vand.u32 %v1097, 31
        %v1100 = vsub.s32 32, %v1099
        %v1101 = vshrl.u32 683565275, %v1100
        %v1102 = vshll.u32 683565275, %v1099
        %v1103 = vshrl.u32 2475754826, %v1100
        %v1104 = vor.u32 %v1102, %v1103
        %v1105 = vshll.u32 2475754826, %v1099
        %v1106 = vshrl.u32 2131351028, %v1100
        %v1107 = vor.u32 %v1105, %v1106
        %v1108 = vshll.u32 2131351028, %v1099
        %v1109 = vshrl.u32 2102212464, %v1100
        %v1110 = vor.u32 %v1108, %v1109
        %v1111 = vshll.u32 2102212464, %v1099
        %v1112 = vshrl.u32 920167782, %v1100
        %v1113 = vor.u32 %v1111, %v1112
        %v1114 = vshll.u32 920167782, %v1099
        %v1115 = vshrl.u32 1326507024, %v1100
        %v1116 = vor.u32 %v1114, %v1115
        %vm1117 = vcmp.lt.s32.totalorder %v1098, 1
        %vm1118 = vcmp.lt.s32.totalorder %v1098, 2
        %vm1119 = vcmp.lt.s32.totalorder %v1098, 3
        %vm1120 = vcmp.lt.s32.totalorder %v1098, 4
        %v1121 = vsel %vm1117, %v1101, %v1104
        %v1122 = vsel %vm1120, %v1110, 2102212464
        %v1123 = vsel %vm1119, %v1107, %v1122
        %v1124 = vsel %vm1118, %v1121, %v1123
        %v1125 = vsel %vm1117, %v1104, %v1107
        %v1126 = vsel %vm1120, %v1113, 920167782
        %v1127 = vsel %vm1119, %v1110, %v1126
        %v1128 = vsel %vm1118, %v1125, %v1127
        %v1129 = vsel %vm1117, %v1107, %v1110
        %v1130 = vsel %vm1120, %v1116, 1326507024
        %v1131 = vsel %vm1119, %v1113, %v1130
        %v1132 = vsel %vm1118, %v1129, %v1131
        %v1133 = vshll.u32 %v1093, 8
        %v1134 = vmul.u32.u64.compose %v1133, %v1132
        %v1135 = vextract.low.u32 %v1134
        %v1136 = vextract.high.u32 %v1134
        %v1137 = vmul.u32.u64.compose %v1133, %v1128
        %v1138 = vextract.low.u32 %v1137
        %v1139 = vextract.high.u32 %v1137
        %v1140 = vmul.u32 %v1133, %v1124
        %v1141 = vadd.s32 %v1136, %v1138
        %vm1142 = vc.u32 %v1136, %v1138
        %v1143 = vadd.s32 %v1139, 1
        %v1144 = vsel %vm1142, %v1143, %v1139
        %v1145 = vadd.s32 %v1140, %v1144
        %v1146 = vadd.s32 %v1145, 536870912
        %v1147 = vshrl.u32 %v1146, 30
        %v1148 = vshll.u32 %v1147, 30
        %v1149 = vsub.s32 %v1145, %v1148
        %vm1150 = vcmp.lt.s32.totalorder %v1149, 0
        %v1151 = vsub.s32 0, %v1149
        %v1152 = vsel %vm1150, %v1151, %v1149
        %v1153 = vclz %v1152
        %v1154 = vsub.s32 %v1153, 2
        %vm1155 = vcmp.gt.s32.totalorder 0, %v1154
        %v1156 = vsel %vm1155, 0, %v1154
        %v1157 = vsub.s32 32, %v1156
        %v1158 = vshll.u32 %v1149, %v1156
        %v1159 = vshrl.u32 %v1141, %v1157
        %v1160 = vor.u32 %v1158, %v1159
        %v1161 = vsub.s32 4294967266, %v1156
        %v1162 = vadd.s32 %v1161, 127
        %v1163 = vshll.u32 %v1162, 23
        %v1164 = vor.u32 4788187, %v1163
        %v1165 = vand.u32 2147483647, %v1164
        %v1167 = vcvt.s32.f32 %v1160
        %v1168 = vmul.f32 %v1167, %v1165
        %v1169 = vxor.u32 %v1168, 2147483648
        %v1170 = vsel %vm1087, %v1169, %v1168
        %v1171 = vsub.s32 4, %v1147
        %v1172 = vsel %vm1087, %v1171, %v1147
        %v1173 = vsel %vm1086, %v1081, %v1170
        %v1174 = vsel %vm1086, 0, %v1172
        %v1175 = vcosq.f32.pop %v1173
        %v1176 = vsinq.f32.pop %v1173
        %vm1177 = vweird.f32 %v1081
        %v1178 = vadd.s32 %v1174, 3
        %v1179 = vand.u32 %v1178, 3
        %vm1180 = vcmp.lt.s32.totalorder %v1179, 2
        %vm1181 = vcmp.eq.s32.totalorder %v1179, 0
        %v1182 = vxor.u32 %v1176, 2147483648
        %v1183 = vsel %vm1181, %v1175, %v1182
        %vm1184 = vcmp.eq.s32.totalorder %v1179, 2
        %v1185 = vxor.u32 %v1175, 2147483648
        %v1186 = vsel %vm1184, %v1185, %v1176
        %v1187 = vsel %vm1180, %v1183, %v1186
        %v1188 = vsel %vm1177, nan, %v1187
        %v1189 = vand.u32 2147483647, %v1082
        %vm1190 = vcmp.le.f32.partialorder %v1189, 0.7853982
        %vm1191 = vcmp.lt.s32.totalorder %v1082, 0
        %v1192 = vand.u32 %v1082, 2139095040
        %v1193 = vshrl.u32 %v1192, 23
        %v1194 = vsub.s32 %v1193, 127
        %v1195 = vand.u32 2147483647, %v1082
        %v1196 = vand.u32 %v1195, 8388607
        %v1197 = vor.u32 %v1196, 8388608
        %v1198 = vsub.s32 0, %v1197
        %v1199 = vadd.s32 %v1194, 1
        %vm1200 = vcmp.gt.s32.totalorder %v1199, 0
        %v1201 = vsel %vm1200, %v1199, 0
        %v1202 = vshrl.u32 %v1201, 5
        %v1203 = vand.u32 %v1201, 31
        %v1204 = vsub.s32 32, %v1203
        %v1205 = vshrl.u32 683565275, %v1204
        %v1206 = vshll.u32 683565275, %v1203
        %v1207 = vshrl.u32 2475754826, %v1204
        %v1208 = vor.u32 %v1206, %v1207
        %v1209 = vshll.u32 2475754826, %v1203
        %v1210 = vshrl.u32 2131351028, %v1204
        %v1211 = vor.u32 %v1209, %v1210
        %v1212 = vshll.u32 2131351028, %v1203
        %v1213 = vshrl.u32 2102212464, %v1204
        %v1214 = vor.u32 %v1212, %v1213
        %v1215 = vshll.u32 2102212464, %v1203
        %v1216 = vshrl.u32 920167782, %v1204
        %v1217 = vor.u32 %v1215, %v1216
        %v1218 = vshll.u32 920167782, %v1203
        %v1219 = vshrl.u32 1326507024, %v1204
        %v1220 = vor.u32 %v1218, %v1219
        %vm1221 = vcmp.lt.s32.totalorder %v1202, 1
        %vm1222 = vcmp.lt.s32.totalorder %v1202, 2
        %vm1223 = vcmp.lt.s32.totalorder %v1202, 3
        %vm1224 = vcmp.lt.s32.totalorder %v1202, 4
        %v1225 = vsel %vm1221, %v1205, %v1208
        %v1226 = vsel %vm1224, %v1214, 2102212464
        %v1227 = vsel %vm1223, %v1211, %v1226
        %v1228 = vsel %vm1222, %v1225, %v1227
        %v1229 = vsel %vm1221, %v1208, %v1211
        %v1230 = vsel %vm1224, %v1217, 920167782
        %v1231 = vsel %vm1223, %v1214, %v1230
        %v1232 = vsel %vm1222, %v1229, %v1231
        %v1233 = vsel %vm1221, %v1211, %v1214
        %v1234 = vsel %vm1224, %v1220, 1326507024
        %v1235 = vsel %vm1223, %v1217, %v1234
        %v1236 = vsel %vm1222, %v1233, %v1235
        %v1237 = vshll.u32 %v1197, 8
        %v1238 = vmul.u32.u64.compose %v1237, %v1236
        %v1239 = vextract.low.u32 %v1238
        %v1240 = vextract.high.u32 %v1238
        %v1241 = vmul.u32.u64.compose %v1237, %v1232
        %v1242 = vextract.low.u32 %v1241
        %v1243 = vextract.high.u32 %v1241
        %v1244 = vmul.u32 %v1237, %v1228
        %v1245 = vadd.s32 %v1240, %v1242
        %vm1246 = vc.u32 %v1240, %v1242
        %v1247 = vadd.s32 %v1243, 1
        %v1248 = vsel %vm1246, %v1247, %v1243
        %v1249 = vadd.s32 %v1244, %v1248
        %v1250 = vadd.s32 %v1249, 536870912
        %v1251 = vshrl.u32 %v1250, 30
        %v1252 = vshll.u32 %v1251, 30
        %v1253 = vsub.s32 %v1249, %v1252
        %vm1254 = vcmp.lt.s32.totalorder %v1253, 0
        %v1255 = vsub.s32 0, %v1253
        %v1256 = vsel %vm1254, %v1255, %v1253
        %v1257 = vclz %v1256
        %v1258 = vsub.s32 %v1257, 2
        %vm1259 = vcmp.gt.s32.totalorder 0, %v1258
        %v1260 = vsel %vm1259, 0, %v1258
        %v1261 = vsub.s32 32, %v1260
        %v1262 = vshll.u32 %v1253, %v1260
        %v1263 = vshrl.u32 %v1245, %v1261
        %v1264 = vor.u32 %v1262, %v1263
        %v1265 = vsub.s32 4294967266, %v1260
        %v1266 = vadd.s32 %v1265, 127
        %v1267 = vshll.u32 %v1266, 23
        %v1268 = vor.u32 4788187, %v1267
        %v1269 = vand.u32 2147483647, %v1268
        %v1271 = vcvt.s32.f32 %v1264
        %v1272 = vmul.f32 %v1271, %v1269
        %v1273 = vxor.u32 %v1272, 2147483648
        %v1274 = vsel %vm1191, %v1273, %v1272
        %v1275 = vsub.s32 4, %v1251
        %v1276 = vsel %vm1191, %v1275, %v1251
        %v1277 = vsel %vm1190, %v1082, %v1274
        %v1278 = vsel %vm1190, 0, %v1276
        %v1279 = vcosq.f32.pop %v1277
        %v1280 = vsinq.f32.pop %v1277
        %vm1281 = vweird.f32 %v1082
        %v1282 = vadd.s32 %v1278, 3
        %v1283 = vand.u32 %v1282, 3
        %vm1284 = vcmp.lt.s32.totalorder %v1283, 2
        %vm1285 = vcmp.eq.s32.totalorder %v1283, 0
        %v1286 = vxor.u32 %v1280, 2147483648
        %v1287 = vsel %vm1285, %v1279, %v1286
        %vm1288 = vcmp.eq.s32.totalorder %v1283, 2
        %v1289 = vxor.u32 %v1279, 2147483648
        %v1290 = vsel %vm1288, %v1289, %v1280
        %v1291 = vsel %vm1284, %v1287, %v1290
        %v1292 = vsel %vm1281, nan, %v1291
        %v1293 = vand.u32 2147483647, %v1083
        %vm1294 = vcmp.le.f32.partialorder %v1293, 0.7853982
        %vm1295 = vcmp.lt.s32.totalorder %v1083, 0
        %v1296 = vand.u32 %v1083, 2139095040
        %v1297 = vshrl.u32 %v1296, 23
        %v1298 = vsub.s32 %v1297, 127
        %v1299 = vand.u32 2147483647, %v1083
        %v1300 = vand.u32 %v1299, 8388607
        %v1301 = vor.u32 %v1300, 8388608
        %v1302 = vsub.s32 0, %v1301
        %v1303 = vadd.s32 %v1298, 1
        %vm1304 = vcmp.gt.s32.totalorder %v1303, 0
        %v1305 = vsel %vm1304, %v1303, 0
        %v1306 = vshrl.u32 %v1305, 5
        %v1307 = vand.u32 %v1305, 31
        %v1308 = vsub.s32 32, %v1307
        %v1309 = vshrl.u32 683565275, %v1308
        %v1310 = vshll.u32 683565275, %v1307
        %v1311 = vshrl.u32 2475754826, %v1308
        %v1312 = vor.u32 %v1310, %v1311
        %v1313 = vshll.u32 2475754826, %v1307
        %v1314 = vshrl.u32 2131351028, %v1308
        %v1315 = vor.u32 %v1313, %v1314
        %v1316 = vshll.u32 2131351028, %v1307
        %v1317 = vshrl.u32 2102212464, %v1308
        %v1318 = vor.u32 %v1316, %v1317
        %v1319 = vshll.u32 2102212464, %v1307
        %v1320 = vshrl.u32 920167782, %v1308
        %v1321 = vor.u32 %v1319, %v1320
        %v1322 = vshll.u32 920167782, %v1307
        %v1323 = vshrl.u32 1326507024, %v1308
        %v1324 = vor.u32 %v1322, %v1323
        %vm1325 = vcmp.lt.s32.totalorder %v1306, 1
        %vm1326 = vcmp.lt.s32.totalorder %v1306, 2
        %vm1327 = vcmp.lt.s32.totalorder %v1306, 3
        %vm1328 = vcmp.lt.s32.totalorder %v1306, 4
        %v1329 = vsel %vm1325, %v1309, %v1312
        %v1330 = vsel %vm1328, %v1318, 2102212464
        %v1331 = vsel %vm1327, %v1315, %v1330
        %v1332 = vsel %vm1326, %v1329, %v1331
        %v1333 = vsel %vm1325, %v1312, %v1315
        %v1334 = vsel %vm1328, %v1321, 920167782
        %v1335 = vsel %vm1327, %v1318, %v1334
        %v1336 = vsel %vm1326, %v1333, %v1335
        %v1337 = vsel %vm1325, %v1315, %v1318
        %v1338 = vsel %vm1328, %v1324, 1326507024
        %v1339 = vsel %vm1327, %v1321, %v1338
        %v1340 = vsel %vm1326, %v1337, %v1339
        %v1341 = vshll.u32 %v1301, 8
        %v1342 = vmul.u32.u64.compose %v1341, %v1340
        %v1343 = vextract.low.u32 %v1342
        %v1344 = vextract.high.u32 %v1342
        %v1345 = vmul.u32.u64.compose %v1341, %v1336
        %v1346 = vextract.low.u32 %v1345
        %v1347 = vextract.high.u32 %v1345
        %v1348 = vmul.u32 %v1341, %v1332
        %v1349 = vadd.s32 %v1344, %v1346
        %vm1350 = vc.u32 %v1344, %v1346
        %v1351 = vadd.s32 %v1347, 1
        %v1352 = vsel %vm1350, %v1351, %v1347
        %v1353 = vadd.s32 %v1348, %v1352
        %v1354 = vadd.s32 %v1353, 536870912
        %v1355 = vshrl.u32 %v1354, 30
        %v1356 = vshll.u32 %v1355, 30
        %v1357 = vsub.s32 %v1353, %v1356
        %vm1358 = vcmp.lt.s32.totalorder %v1357, 0
        %v1359 = vsub.s32 0, %v1357
        %v1360 = vsel %vm1358, %v1359, %v1357
        %v1361 = vclz %v1360
        %v1362 = vsub.s32 %v1361, 2
        %vm1363 = vcmp.gt.s32.totalorder 0, %v1362
        %v1364 = vsel %vm1363, 0, %v1362
        %v1365 = vsub.s32 32, %v1364
        %v1366 = vshll.u32 %v1357, %v1364
        %v1367 = vshrl.u32 %v1349, %v1365
        %v1368 = vor.u32 %v1366, %v1367
        %v1369 = vsub.s32 4294967266, %v1364
        %v1370 = vadd.s32 %v1369, 127
        %v1371 = vshll.u32 %v1370, 23
        %v1372 = vor.u32 4788187, %v1371
        %v1373 = vand.u32 2147483647, %v1372
        %v1375 = vcvt.s32.f32 %v1368
        %v1376 = vmul.f32 %v1375, %v1373
        %v1377 = vxor.u32 %v1376, 2147483648
        %v1378 = vsel %vm1295, %v1377, %v1376
        %v1379 = vsub.s32 4, %v1355
        %v1380 = vsel %vm1295, %v1379, %v1355
        %v1381 = vsel %vm1294, %v1083, %v1378
        %v1382 = vsel %vm1294, 0, %v1380
        %v1383 = vcosq.f32.pop %v1381
        %v1384 = vsinq.f32.pop %v1381
        %vm1385 = vweird.f32 %v1083
        %v1386 = vadd.s32 %v1382, 3
        %v1387 = vand.u32 %v1386, 3
        %vm1388 = vcmp.lt.s32.totalorder %v1387, 2
        %vm1389 = vcmp.eq.s32.totalorder %v1387, 0
        %v1390 = vxor.u32 %v1384, 2147483648
        %v1391 = vsel %vm1389, %v1383, %v1390
        %vm1392 = vcmp.eq.s32.totalorder %v1387, 2
        %v1393 = vxor.u32 %v1383, 2147483648
        %v1394 = vsel %vm1392, %v1393, %v1384
        %v1395 = vsel %vm1388, %v1391, %v1394
        %v1396 = vsel %vm1385, nan, %v1395
        %v1397 = vand.u32 2147483647, %v1084
        %vm1398 = vcmp.le.f32.partialorder %v1397, 0.7853982
        %vm1399 = vcmp.lt.s32.totalorder %v1084, 0
        %v1400 = vand.u32 %v1084, 2139095040
        %v1401 = vshrl.u32 %v1400, 23
        %v1402 = vsub.s32 %v1401, 127
        %v1403 = vand.u32 2147483647, %v1084
        %v1404 = vand.u32 %v1403, 8388607
        %v1405 = vor.u32 %v1404, 8388608
        %v1406 = vsub.s32 0, %v1405
        %v1407 = vadd.s32 %v1402, 1
        %vm1408 = vcmp.gt.s32.totalorder %v1407, 0
        %v1409 = vsel %vm1408, %v1407, 0
        %v1410 = vshrl.u32 %v1409, 5
        %v1411 = vand.u32 %v1409, 31
        %v1412 = vsub.s32 32, %v1411
        %v1413 = vshrl.u32 683565275, %v1412
        %v1414 = vshll.u32 683565275, %v1411
        %v1415 = vshrl.u32 2475754826, %v1412
        %v1416 = vor.u32 %v1414, %v1415
        %v1417 = vshll.u32 2475754826, %v1411
        %v1418 = vshrl.u32 2131351028, %v1412
        %v1419 = vor.u32 %v1417, %v1418
        %v1420 = vshll.u32 2131351028, %v1411
        %v1421 = vshrl.u32 2102212464, %v1412
        %v1422 = vor.u32 %v1420, %v1421
        %v1423 = vshll.u32 2102212464, %v1411
        %v1424 = vshrl.u32 920167782, %v1412
        %v1425 = vor.u32 %v1423, %v1424
        %v1426 = vshll.u32 920167782, %v1411
        %v1427 = vshrl.u32 1326507024, %v1412
        %v1428 = vor.u32 %v1426, %v1427
        %vm1429 = vcmp.lt.s32.totalorder %v1410, 1
        %vm1430 = vcmp.lt.s32.totalorder %v1410, 2
        %vm1431 = vcmp.lt.s32.totalorder %v1410, 3
        %vm1432 = vcmp.lt.s32.totalorder %v1410, 4
        %v1433 = vsel %vm1429, %v1413, %v1416
        %v1434 = vsel %vm1432, %v1422, 2102212464
        %v1435 = vsel %vm1431, %v1419, %v1434
        %v1436 = vsel %vm1430, %v1433, %v1435
        %v1437 = vsel %vm1429, %v1416, %v1419
        %v1438 = vsel %vm1432, %v1425, 920167782
        %v1439 = vsel %vm1431, %v1422, %v1438
        %v1440 = vsel %vm1430, %v1437, %v1439
        %v1441 = vsel %vm1429, %v1419, %v1422
        %v1442 = vsel %vm1432, %v1428, 1326507024
        %v1443 = vsel %vm1431, %v1425, %v1442
        %v1444 = vsel %vm1430, %v1441, %v1443
        %v1445 = vshll.u32 %v1405, 8
        %v1446 = vmul.u32.u64.compose %v1445, %v1444
        %v1447 = vextract.low.u32 %v1446
        %v1448 = vextract.high.u32 %v1446
        %v1449 = vmul.u32.u64.compose %v1445, %v1440
        %v1450 = vextract.low.u32 %v1449
        %v1451 = vextract.high.u32 %v1449
        %v1452 = vmul.u32 %v1445, %v1436
        %v1453 = vadd.s32 %v1448, %v1450
        %vm1454 = vc.u32 %v1448, %v1450
        %v1455 = vadd.s32 %v1451, 1
        %v1456 = vsel %vm1454, %v1455, %v1451
        %v1457 = vadd.s32 %v1452, %v1456
        %v1458 = vadd.s32 %v1457, 536870912
        %v1459 = vshrl.u32 %v1458, 30
        %v1460 = vshll.u32 %v1459, 30
        %v1461 = vsub.s32 %v1457, %v1460
        %vm1462 = vcmp.lt.s32.totalorder %v1461, 0
        %v1463 = vsub.s32 0, %v1461
        %v1464 = vsel %vm1462, %v1463, %v1461
        %v1465 = vclz %v1464
        %v1466 = vsub.s32 %v1465, 2
        %vm1467 = vcmp.gt.s32.totalorder 0, %v1466
        %v1468 = vsel %vm1467, 0, %v1466
        %v1469 = vsub.s32 32, %v1468
        %v1470 = vshll.u32 %v1461, %v1468
        %v1471 = vshrl.u32 %v1453, %v1469
        %v1472 = vor.u32 %v1470, %v1471
        %v1473 = vsub.s32 4294967266, %v1468
        %v1474 = vadd.s32 %v1473, 127
        %v1475 = vshll.u32 %v1474, 23
        %v1476 = vor.u32 4788187, %v1475
        %v1477 = vand.u32 2147483647, %v1476
        %v1479 = vcvt.s32.f32 %v1472
        %v1480 = vmul.f32 %v1479, %v1477
        %v1481 = vxor.u32 %v1480, 2147483648
        %v1482 = vsel %vm1399, %v1481, %v1480
        %v1483 = vsub.s32 4, %v1459
        %v1484 = vsel %vm1399, %v1483, %v1459
        %v1485 = vsel %vm1398, %v1084, %v1482
        %v1486 = vsel %vm1398, 0, %v1484
        %v1487 = vcosq.f32.pop %v1485
        %v1488 = vsinq.f32.pop %v1485
        %vm1489 = vweird.f32 %v1084
        %v1490 = vadd.s32 %v1486, 3
        %v1491 = vand.u32 %v1490, 3
        %vm1492 = vcmp.lt.s32.totalorder %v1491, 2
        %vm1493 = vcmp.eq.s32.totalorder %v1491, 0
        %v1494 = vxor.u32 %v1488, 2147483648
        %v1495 = vsel %vm1493, %v1487, %v1494
        %vm1496 = vcmp.eq.s32.totalorder %v1491, 2
        %v1497 = vxor.u32 %v1487, 2147483648
        %v1498 = vsel %vm1496, %v1497, %v1488
        %v1499 = vsel %vm1492, %v1495, %v1498
        %v1500 = vsel %vm1489, nan, %v1499
        %v1501 = vmul.f32 %v1188, %v1188
        %v1502 = vmul.f32 %v1292, %v1292
        %v1503 = vmul.f32 %v1396, %v1396
        %v1504 = vmul.f32 %v1500, %v1500
        %1506 = vset.pattern.permute.xlu0 0
        %1507 = vperm.xlu0 %1506, %v1057
        %v1508 = vpop.permute.xlu0 %1507
        %1511 = vset.pattern.permute.xlu0 0
        %1512 = vperm.xlu0 %1511, %v1058
        %v1513 = vpop.permute.xlu0 %1512
        %1516 = vset.pattern.permute.xlu0 0
        %1517 = vperm.xlu0 %1516, %v1059
        %v1518 = vpop.permute.xlu0 %1517
        %1521 = vset.pattern.permute.xlu0 0
        %1522 = vperm.xlu0 %1521, %v1060
        %v1523 = vpop.permute.xlu0 %1522
        %v1525 = vmul.f32 %v1508, %v1501
        %v1526 = vmul.f32 %v1513, %v1502
        %v1527 = vmul.f32 %v1518, %v1503
        %v1528 = vmul.f32 %v1523, %v1504
        %v1529 = vadd.f32 %v1035, %v1525
        %v1530 = vadd.f32 %v1040, %v1526
        %v1531 = vadd.f32 %v1045, %v1527
        %v1532 = vadd.f32 %v1050, %v1528
        %v1533 = vld [vmem:[%s13] sm:$0xff]
        %v1534 = vld [vmem:[%s13 + $0x8] sm:$0xff]
        %v1535 = vld [vmem:[%s11] sm:$0xff]
        %v1536 = vld [vmem:[%s11 + $0x8] sm:$0xff]
        %vm1537 = vcmask 261120
        %v1539 = vsel %vm1537, %v1535, 0
        %v1542 = vsel %vm1537, %v1536, 0
        %1544 = vmatprep.subr.mxu0 0.0
        %1545 = vmatpush1.msra.mxu0 %v1529
        %1546 = vmatprep.subr.mxu0 0.0
        %1547 = vmatpush1.msra.mxu0 %v1530
        %1548 = vmatprep.subr.mxu0 0.0
        %1549 = vmatpush1.msra.mxu0 %v1531
        %1550 = vmatprep.subr.mxu0 0.0
        %1551 = vmatpush1.msra.mxu0 %v1532
        %1552 = vmatprep.subr.mxu0 0.0
        %1553 = vmatpush1.msra.mxu0 0.0
        %1554 = vmatprep.subr.mxu0 0.0
        %1555 = vmatpush1.msra.mxu0 0.0
        %1556 = vmatprep.subr.mxu0 0.0
        %1557 = vmatpush1.msra.mxu0 0.0
        %1558 = vmatprep.subr.mxu0 0.0
        %1559 = vmatpush1.msra.mxu0 0.0
        %1560 = vmatprep.subr.mxu0 0.0
        %1561 = vmatpush1.msra.mxu0 0.0
        %1562 = vmatprep.subr.mxu0 0.0
        %1563 = vmatpush1.msra.mxu0 0.0
        %1564 = vmatprep.subr.mxu0 0.0
        %1565 = vmatpush1.msra.mxu0 0.0
        %1566 = vmatprep.subr.mxu0 0.0
        %1567 = vmatpush1.msra.mxu0 0.0
        %1568 = vmatprep.subr.mxu0 0.0
        %1569 = vmatpush1.msra.mxu0 0.0
        %1570 = vmatprep.subr.mxu0 0.0
        %1571 = vmatpush1.msra.mxu0 0.0
        %1572 = vmatprep.subr.mxu0 0.0
        %1573 = vmatpush1.msra.mxu0 0.0
        %1574 = vmatprep.subr.mxu0 0.0
        %1575 = vmatpush1.msra.mxu0 0.0
        %1576 = vmatprep.subr.mxu0 0.0
        %1577 = vmatpush1.msra.mxu0 0.0
        %1578 = vmatprep.subr.mxu0 0.0
        %1579 = vmatpush1.msra.mxu0 0.0
        %1580 = vmatprep.subr.mxu0 0.0
        %1581 = vmatpush1.msra.mxu0 0.0
        %1582 = vmatprep.subr.mxu0 0.0
        %1583 = vmatpush1.msra.mxu0 0.0
        %1584 = vmatprep.subr.mxu0 0.0
        %1585 = vmatpush1.msra.mxu0 0.0
        %1586 = vmatprep.subr.mxu0 0.0
        %1587 = vmatpush1.msra.mxu0 0.0
        %1588 = vmatprep.subr.mxu0 0.0
        %1589 = vmatpush1.msra.mxu0 0.0
        %1590 = vmatprep.subr.mxu0 0.0
        %1591 = vmatpush1.msra.mxu0 0.0
        %1592 = vmatprep.subr.mxu0 0.0
        %1593 = vmatpush1.msra.mxu0 0.0
        %1594 = vmatprep.subr.mxu0 0.0
        %1595 = vmatpush1.msra.mxu0 0.0
        %1596 = vmatprep.subr.mxu0 0.0
        %1597 = vmatpush1.msra.mxu0 0.0
        %1598 = vmatprep.subr.mxu0 0.0
        %1599 = vmatpush1.msra.mxu0 0.0
        %1600 = vmatprep.subr.mxu0 0.0
        %1601 = vmatpush1.msra.mxu0 0.0
        %1602 = vmatprep.subr.mxu0 0.0
        %1603 = vmatpush1.msra.mxu0 0.0
        %1604 = vmatprep.subr.mxu0 0.0
        %1605 = vmatpush1.msra.mxu0 0.0
        %1606 = vmatprep.subr.mxu0 0.0
        %1607 = vmatpush1.msra.mxu0 0.0
        %1608 = vmatprep.mubr.f32.mxu0 0.0
        %1609 = vmatmul.mubr.f32.gmra.mrb[0].mxu0 %v1539
        %v1610 = vpop.f32.mrb[0].mxu0
        %v1611 = vadd.f32 0.0, %v1610
        %v1612 = vpop.f32.mrb[0].mxu0
        %1613 = vmatprep.mubr.f32.mxu0 0.0
        %1614 = vmatmul.mubr.f32.gmra.mrb[0].mxu0 %v1542
        %v1615 = vpop.f32.mrb[0].mxu0
        %v1616 = vadd.f32 0.0, %v1615
        %v1617 = vpop.f32.mrb[0].mxu0
        %1618 = vdwg.mxu0
        %v1619 = vld [vmem:[%s15] sm:$0xff]
        %v1620 = vld [vmem:[%s15 + $0x8] sm:$0xff]
        %s1621 = scalar_lea.vmem %s11, 16
        %v1622 = vld [vmem:[%s1621] sm:$0xff]
        %v1623 = vld [vmem:[%s1621 + $0x8] sm:$0xff]
        %v1625 = vsel %vm1537, %v1622, 0
        %v1628 = vsel %vm1537, %v1623, 0
        %1630 = vmatprep.subr.mxu0 0.0
        %1631 = vmatpush1.msra.mxu0 %v1529
        %1632 = vmatprep.subr.mxu0 0.0
        %1633 = vmatpush1.msra.mxu0 %v1530
        %1634 = vmatprep.subr.mxu0 0.0
        %1635 = vmatpush1.msra.mxu0 %v1531
        %1636 = vmatprep.subr.mxu0 0.0
        %1637 = vmatpush1.msra.mxu0 %v1532
        %1638 = vmatprep.subr.mxu0 0.0
        %1639 = vmatpush1.msra.mxu0 0.0
        %1640 = vmatprep.subr.mxu0 0.0
        %1641 = vmatpush1.msra.mxu0 0.0
        %1642 = vmatprep.subr.mxu0 0.0
        %1643 = vmatpush1.msra.mxu0 0.0
        %1644 = vmatprep.subr.mxu0 0.0
        %1645 = vmatpush1.msra.mxu0 0.0
        %1646 = vmatprep.subr.mxu0 0.0
        %1647 = vmatpush1.msra.mxu0 0.0
        %1648 = vmatprep.subr.mxu0 0.0
        %1649 = vmatpush1.msra.mxu0 0.0
        %1650 = vmatprep.subr.mxu0 0.0
        %1651 = vmatpush1.msra.mxu0 0.0
        %1652 = vmatprep.subr.mxu0 0.0
        %1653 = vmatpush1.msra.mxu0 0.0
        %1654 = vmatprep.subr.mxu0 0.0
        %1655 = vmatpush1.msra.mxu0 0.0
        %1656 = vmatprep.subr.mxu0 0.0
        %1657 = vmatpush1.msra.mxu0 0.0
        %1658 = vmatprep.subr.mxu0 0.0
        %1659 = vmatpush1.msra.mxu0 0.0
        %1660 = vmatprep.subr.mxu0 0.0
        %1661 = vmatpush1.msra.mxu0 0.0
        %1662 = vmatprep.subr.mxu0 0.0
        %1663 = vmatpush1.msra.mxu0 0.0
        %1664 = vmatprep.subr.mxu0 0.0
        %1665 = vmatpush1.msra.mxu0 0.0
        %1666 = vmatprep.subr.mxu0 0.0
        %1667 = vmatpush1.msra.mxu0 0.0
        %1668 = vmatprep.subr.mxu0 0.0
        %1669 = vmatpush1.msra.mxu0 0.0
        %1670 = vmatprep.subr.mxu0 0.0
        %1671 = vmatpush1.msra.mxu0 0.0
        %1672 = vmatprep.subr.mxu0 0.0
        %1673 = vmatpush1.msra.mxu0 0.0
        %1674 = vmatprep.subr.mxu0 0.0
        %1675 = vmatpush1.msra.mxu0 0.0
        %1676 = vmatprep.subr.mxu0 0.0
        %1677 = vmatpush1.msra.mxu0 0.0
        %1678 = vmatprep.subr.mxu0 0.0
        %1679 = vmatpush1.msra.mxu0 0.0
        %1680 = vmatprep.subr.mxu0 0.0
        %1681 = vmatpush1.msra.mxu0 0.0
        %1682 = vmatprep.subr.mxu0 0.0
        %1683 = vmatpush1.msra.mxu0 0.0
        %1684 = vmatprep.subr.mxu0 0.0
        %1685 = vmatpush1.msra.mxu0 0.0
        %1686 = vmatprep.subr.mxu0 0.0
        %1687 = vmatpush1.msra.mxu0 0.0
        %1688 = vmatprep.subr.mxu0 0.0
        %1689 = vmatpush1.msra.mxu0 0.0
        %1690 = vmatprep.subr.mxu0 0.0
        %1691 = vmatpush1.msra.mxu0 0.0
        %1692 = vmatprep.subr.mxu0 0.0
        %1693 = vmatpush1.msra.mxu0 0.0
        %1694 = vmatprep.mubr.f32.mxu0 0.0
        %1695 = vmatmul.mubr.f32.gmra.mrb[0].mxu0 %v1625
        %v1696 = vpop.f32.mrb[0].mxu0
        %v1697 = vadd.f32 0.0, %v1696
        %v1698 = vpop.f32.mrb[0].mxu0
        %1699 = vmatprep.mubr.f32.mxu0 0.0
        %1700 = vmatmul.mubr.f32.gmra.mrb[0].mxu0 %v1628
        %v1701 = vpop.f32.mrb[0].mxu0
        %v1702 = vadd.f32 0.0, %v1701
        %v1703 = vpop.f32.mrb[0].mxu0
        %1704 = vdwg.mxu0
        %s1705 = scalar_lea.vmem %s15, 16
        %v1706 = vld [vmem:[%s1705] sm:$0xff]
        %v1707 = vld [vmem:[%s1705 + $0x8] sm:$0xff]
        %vm1708 = vcmask 130048
        %v1710 = vsel %vm1708, %v1697, 0
        %v1713 = vsel %vm1708, %v1702, 0
        %1715 = vmatprep.subr.mxu0 0.0
        %1716 = vmatpush1.msra.mxu0 %v1706
        %1717 = vmatprep.subr.mxu0 0.0
        %1718 = vmatpush1.msra.mxu0 %v1707
        %1719 = vmatprep.subr.mxu0 0.0
        %1720 = vmatpush1.msra.mxu0 0.0
        %1721 = vmatprep.subr.mxu0 0.0
        %1722 = vmatpush1.msra.mxu0 0.0
        %1723 = vmatprep.subr.mxu0 0.0
        %1724 = vmatpush1.msra.mxu0 0.0
        %1725 = vmatprep.subr.mxu0 0.0
        %1726 = vmatpush1.msra.mxu0 0.0
        %1727 = vmatprep.subr.mxu0 0.0
        %1728 = vmatpush1.msra.mxu0 0.0
        %1729 = vmatprep.subr.mxu0 0.0
        %1730 = vmatpush1.msra.mxu0 0.0
        %1731 = vmatprep.subr.mxu0 0.0
        %1732 = vmatpush1.msra.mxu0 0.0
        %1733 = vmatprep.subr.mxu0 0.0
        %1734 = vmatpush1.msra.mxu0 0.0
        %1735 = vmatprep.subr.mxu0 0.0
        %1736 = vmatpush1.msra.mxu0 0.0
        %1737 = vmatprep.subr.mxu0 0.0
        %1738 = vmatpush1.msra.mxu0 0.0
        %1739 = vmatprep.subr.mxu0 0.0
        %1740 = vmatpush1.msra.mxu0 0.0
        %1741 = vmatprep.subr.mxu0 0.0
        %1742 = vmatpush1.msra.mxu0 0.0
        %1743 = vmatprep.subr.mxu0 0.0
        %1744 = vmatpush1.msra.mxu0 0.0
        %1745 = vmatprep.subr.mxu0 0.0
        %1746 = vmatpush1.msra.mxu0 0.0
        %1747 = vmatprep.subr.mxu0 0.0
        %1748 = vmatpush1.msra.mxu0 0.0
        %1749 = vmatprep.subr.mxu0 0.0
        %1750 = vmatpush1.msra.mxu0 0.0
        %1751 = vmatprep.subr.mxu0 0.0
        %1752 = vmatpush1.msra.mxu0 0.0
        %1753 = vmatprep.subr.mxu0 0.0
        %1754 = vmatpush1.msra.mxu0 0.0
        %1755 = vmatprep.subr.mxu0 0.0
        %1756 = vmatpush1.msra.mxu0 0.0
        %1757 = vmatprep.subr.mxu0 0.0
        %1758 = vmatpush1.msra.mxu0 0.0
        %1759 = vmatprep.subr.mxu0 0.0
        %1760 = vmatpush1.msra.mxu0 0.0
        %1761 = vmatprep.subr.mxu0 0.0
        %1762 = vmatpush1.msra.mxu0 0.0
        %1763 = vmatprep.subr.mxu0 0.0
        %1764 = vmatpush1.msra.mxu0 0.0
        %1765 = vmatprep.subr.mxu0 0.0
        %1766 = vmatpush1.msra.mxu0 0.0
        %1767 = vmatprep.subr.mxu0 0.0
        %1768 = vmatpush1.msra.mxu0 0.0
        %1769 = vmatprep.subr.mxu0 0.0
        %1770 = vmatpush1.msra.mxu0 0.0
        %1771 = vmatprep.subr.mxu0 0.0
        %1772 = vmatpush1.msra.mxu0 0.0
        %1773 = vmatprep.subr.mxu0 0.0
        %1774 = vmatpush1.msra.mxu0 0.0
        %1775 = vmatprep.subr.mxu0 0.0
        %1776 = vmatpush1.msra.mxu0 0.0
        %1777 = vmatprep.subr.mxu0 0.0
        %1778 = vmatpush1.msra.mxu0 0.0
        %1779 = vmatprep.mubr.f32.mxu0 0.0
        %1780 = vmatmul.mubr.f32.gmra.mrb[0].mxu0 %v1710
        %v1781 = vpop.f32.mrb[0].mxu0
        %v1782 = vadd.f32 0.0, %v1781
        %v1783 = vpop.f32.mrb[0].mxu0
        %1784 = vmatprep.mubr.f32.mxu0 0.0
        %1785 = vmatmul.mubr.f32.gmra.mrb[0].mxu0 %v1713
        %v1786 = vpop.f32.mrb[0].mxu0
        %v1787 = vadd.f32 0.0, %v1786
        %v1788 = vpop.f32.mrb[0].mxu0
        %1789 = vdwg.mxu0
        %v1791 = vsel %vm1708, %v1611, 0
        %v1794 = vsel %vm1708, %v1616, 0
        %1796 = vmatprep.subr.mxu0 0.0
        %1797 = vmatpush1.msra.mxu0 %v1619
        %1798 = vmatprep.subr.mxu0 0.0
        %1799 = vmatpush1.msra.mxu0 %v1620
        %1800 = vmatprep.subr.mxu0 0.0
        %1801 = vmatpush1.msra.mxu0 0.0
        %1802 = vmatprep.subr.mxu0 0.0
        %1803 = vmatpush1.msra.mxu0 0.0
        %1804 = vmatprep.subr.mxu0 0.0
        %1805 = vmatpush1.msra.mxu0 0.0
        %1806 = vmatprep.subr.mxu0 0.0
        %1807 = vmatpush1.msra.mxu0 0.0
        %1808 = vmatprep.subr.mxu0 0.0
        %1809 = vmatpush1.msra.mxu0 0.0
        %1810 = vmatprep.subr.mxu0 0.0
        %1811 = vmatpush1.msra.mxu0 0.0
        %1812 = vmatprep.subr.mxu0 0.0
        %1813 = vmatpush1.msra.mxu0 0.0
        %1814 = vmatprep.subr.mxu0 0.0
        %1815 = vmatpush1.msra.mxu0 0.0
        %1816 = vmatprep.subr.mxu0 0.0
        %1817 = vmatpush1.msra.mxu0 0.0
        %1818 = vmatprep.subr.mxu0 0.0
        %1819 = vmatpush1.msra.mxu0 0.0
        %1820 = vmatprep.subr.mxu0 0.0
        %1821 = vmatpush1.msra.mxu0 0.0
        %1822 = vmatprep.subr.mxu0 0.0
        %1823 = vmatpush1.msra.mxu0 0.0
        %1824 = vmatprep.subr.mxu0 0.0
        %1825 = vmatpush1.msra.mxu0 0.0
        %1826 = vmatprep.subr.mxu0 0.0
        %1827 = vmatpush1.msra.mxu0 0.0
        %1828 = vmatprep.subr.mxu0 0.0
        %1829 = vmatpush1.msra.mxu0 0.0
        %1830 = vmatprep.subr.mxu0 0.0
        %1831 = vmatpush1.msra.mxu0 0.0
        %1832 = vmatprep.subr.mxu0 0.0
        %1833 = vmatpush1.msra.mxu0 0.0
        %1834 = vmatprep.subr.mxu0 0.0
        %1835 = vmatpush1.msra.mxu0 0.0
        %1836 = vmatprep.subr.mxu0 0.0
        %1837 = vmatpush1.msra.mxu0 0.0
        %1838 = vmatprep.subr.mxu0 0.0
        %1839 = vmatpush1.msra.mxu0 0.0
        %1840 = vmatprep.subr.mxu0 0.0
        %1841 = vmatpush1.msra.mxu0 0.0
        %1842 = vmatprep.subr.mxu0 0.0
        %1843 = vmatpush1.msra.mxu0 0.0
        %1844 = vmatprep.subr.mxu0 0.0
        %1845 = vmatpush1.msra.mxu0 0.0
        %1846 = vmatprep.subr.mxu0 0.0
        %1847 = vmatpush1.msra.mxu0 0.0
        %1848 = vmatprep.subr.mxu0 0.0
        %1849 = vmatpush1.msra.mxu0 0.0
        %1850 = vmatprep.subr.mxu0 0.0
        %1851 = vmatpush1.msra.mxu0 0.0
        %1852 = vmatprep.subr.mxu0 0.0
        %1853 = vmatpush1.msra.mxu0 0.0
        %1854 = vmatprep.subr.mxu0 0.0
        %1855 = vmatpush1.msra.mxu0 0.0
        %1856 = vmatprep.subr.mxu0 0.0
        %1857 = vmatpush1.msra.mxu0 0.0
        %1858 = vmatprep.subr.mxu0 0.0
        %1859 = vmatpush1.msra.mxu0 0.0
        %1860 = vmatprep.mubr.f32.mxu0 0.0
        %1861 = vmatmul.mubr.f32.gmra.mrb[0].mxu0 %v1791
        %v1862 = vpop.f32.mrb[0].mxu0
        %v1863 = vadd.f32 %v1782, %v1862
        %v1864 = vpop.f32.mrb[0].mxu0
        %1865 = vmatprep.mubr.f32.mxu0 0.0
        %1866 = vmatmul.mubr.f32.gmra.mrb[0].mxu0 %v1794
        %v1867 = vpop.f32.mrb[0].mxu0
        %v1868 = vadd.f32 %v1787, %v1867
        %v1869 = vpop.f32.mrb[0].mxu0
        %1870 = vdwg.mxu0
        %s1871 = scalar_lea.vmem %s11, 32
        %v1872 = vld [vmem:[%s1871] sm:$0xff]
        %v1873 = vld [vmem:[%s1871 + $0x8] sm:$0xff]
        %v1875 = vsel %vm1537, %v1872, 0
        %v1878 = vsel %vm1537, %v1873, 0
        %1880 = vmatprep.subr.mxu0 0.0
        %1881 = vmatpush1.msra.mxu0 %v1529
        %1882 = vmatprep.subr.mxu0 0.0
        %1883 = vmatpush1.msra.mxu0 %v1530
        %1884 = vmatprep.subr.mxu0 0.0
        %1885 = vmatpush1.msra.mxu0 %v1531
        %1886 = vmatprep.subr.mxu0 0.0
        %1887 = vmatpush1.msra.mxu0 %v1532
        %1888 = vmatprep.subr.mxu0 0.0
        %1889 = vmatpush1.msra.mxu0 0.0
        %1890 = vmatprep.subr.mxu0 0.0
        %1891 = vmatpush1.msra.mxu0 0.0
        %1892 = vmatprep.subr.mxu0 0.0
        %1893 = vmatpush1.msra.mxu0 0.0
        %1894 = vmatprep.subr.mxu0 0.0
        %1895 = vmatpush1.msra.mxu0 0.0
        %1896 = vmatprep.subr.mxu0 0.0
        %1897 = vmatpush1.msra.mxu0 0.0
        %1898 = vmatprep.subr.mxu0 0.0
        %1899 = vmatpush1.msra.mxu0 0.0
        %1900 = vmatprep.subr.mxu0 0.0
        %1901 = vmatpush1.msra.mxu0 0.0
        %1902 = vmatprep.subr.mxu0 0.0
        %1903 = vmatpush1.msra.mxu0 0.0
        %1904 = vmatprep.subr.mxu0 0.0
        %1905 = vmatpush1.msra.mxu0 0.0
        %1906 = vmatprep.subr.mxu0 0.0
        %1907 = vmatpush1.msra.mxu0 0.0
        %1908 = vmatprep.subr.mxu0 0.0
        %1909 = vmatpush1.msra.mxu0 0.0
        %1910 = vmatprep.subr.mxu0 0.0
        %1911 = vmatpush1.msra.mxu0 0.0
        %1912 = vmatprep.subr.mxu0 0.0
        %1913 = vmatpush1.msra.mxu0 0.0
        %1914 = vmatprep.subr.mxu0 0.0
        %1915 = vmatpush1.msra.mxu0 0.0
        %1916 = vmatprep.subr.mxu0 0.0
        %1917 = vmatpush1.msra.mxu0 0.0
        %1918 = vmatprep.subr.mxu0 0.0
        %1919 = vmatpush1.msra.mxu0 0.0
        %1920 = vmatprep.subr.mxu0 0.0
        %1921 = vmatpush1.msra.mxu0 0.0
        %1922 = vmatprep.subr.mxu0 0.0
        %1923 = vmatpush1.msra.mxu0 0.0
        %1924 = vmatprep.subr.mxu0 0.0
        %1925 = vmatpush1.msra.mxu0 0.0
        %1926 = vmatprep.subr.mxu0 0.0
        %1927 = vmatpush1.msra.mxu0 0.0
        %1928 = vmatprep.subr.mxu0 0.0
        %1929 = vmatpush1.msra.mxu0 0.0
        %1930 = vmatprep.subr.mxu0 0.0
        %1931 = vmatpush1.msra.mxu0 0.0
        %1932 = vmatprep.subr.mxu0 0.0
        %1933 = vmatpush1.msra.mxu0 0.0
        %1934 = vmatprep.subr.mxu0 0.0
        %1935 = vmatpush1.msra.mxu0 0.0
        %1936 = vmatprep.subr.mxu0 0.0
        %1937 = vmatpush1.msra.mxu0 0.0
        %1938 = vmatprep.subr.mxu0 0.0
        %1939 = vmatpush1.msra.mxu0 0.0
        %1940 = vmatprep.subr.mxu0 0.0
        %1941 = vmatpush1.msra.mxu0 0.0
        %1942 = vmatprep.subr.mxu0 0.0
        %1943 = vmatpush1.msra.mxu0 0.0
        %1944 = vmatprep.mubr.f32.mxu0 0.0
        %1945 = vmatmul.mubr.f32.gmra.mrb[0].mxu0 %v1875
        %v1946 = vpop.f32.mrb[0].mxu0
        %v1947 = vadd.f32 0.0, %v1946
        %v1948 = vpop.f32.mrb[0].mxu0
        %1949 = vmatprep.mubr.f32.mxu0 0.0
        %1950 = vmatmul.mubr.f32.gmra.mrb[0].mxu0 %v1878
        %v1951 = vpop.f32.mrb[0].mxu0
        %v1952 = vadd.f32 0.0, %v1951
        %v1953 = vpop.f32.mrb[0].mxu0
        %1954 = vdwg.mxu0
        %s1955 = scalar_lea.vmem %s15, 32
        %v1956 = vld [vmem:[%s1955] sm:$0xff]
        %v1957 = vld [vmem:[%s1955 + $0x8] sm:$0xff]
        %v1959 = vsel %vm1708, %v1947, 0
        %v1962 = vsel %vm1708, %v1952, 0
        %1964 = vmatprep.subr.mxu0 0.0
        %1965 = vmatpush1.msra.mxu0 %v1956
        %1966 = vmatprep.subr.mxu0 0.0
        %1967 = vmatpush1.msra.mxu0 %v1957
        %1968 = vmatprep.subr.mxu0 0.0
        %1969 = vmatpush1.msra.mxu0 0.0
        %1970 = vmatprep.subr.mxu0 0.0
        %1971 = vmatpush1.msra.mxu0 0.0
        %1972 = vmatprep.subr.mxu0 0.0
        %1973 = vmatpush1.msra.mxu0 0.0
        %1974 = vmatprep.subr.mxu0 0.0
        %1975 = vmatpush1.msra.mxu0 0.0
        %1976 = vmatprep.subr.mxu0 0.0
        %1977 = vmatpush1.msra.mxu0 0.0
        %1978 = vmatprep.subr.mxu0 0.0
        %1979 = vmatpush1.msra.mxu0 0.0
        %1980 = vmatprep.subr.mxu0 0.0
        %1981 = vmatpush1.msra.mxu0 0.0
        %1982 = vmatprep.subr.mxu0 0.0
        %1983 = vmatpush1.msra.mxu0 0.0
        %1984 = vmatprep.subr.mxu0 0.0
        %1985 = vmatpush1.msra.mxu0 0.0
        %1986 = vmatprep.subr.mxu0 0.0
        %1987 = vmatpush1.msra.mxu0 0.0
        %1988 = vmatprep.subr.mxu0 0.0
        %1989 = vmatpush1.msra.mxu0 0.0
        %1990 = vmatprep.subr.mxu0 0.0
        %1991 = vmatpush1.msra.mxu0 0.0
        %1992 = vmatprep.subr.mxu0 0.0
        %1993 = vmatpush1.msra.mxu0 0.0
        %1994 = vmatprep.subr.mxu0 0.0
        %1995 = vmatpush1.msra.mxu0 0.0
        %1996 = vmatprep.subr.mxu0 0.0
        %1997 = vmatpush1.msra.mxu0 0.0
        %1998 = vmatprep.subr.mxu0 0.0
        %1999 = vmatpush1.msra.mxu0 0.0
        %2000 = vmatprep.subr.mxu0 0.0
        %2001 = vmatpush1.msra.mxu0 0.0
        %2002 = vmatprep.subr.mxu0 0.0
        %2003 = vmatpush1.msra.mxu0 0.0
        %2004 = vmatprep.subr.mxu0 0.0
        %2005 = vmatpush1.msra.mxu0 0.0
        %2006 = vmatprep.subr.mxu0 0.0
        %2007 = vmatpush1.msra.mxu0 0.0
        %2008 = vmatprep.subr.mxu0 0.0
        %2009 = vmatpush1.msra.mxu0 0.0
        %2010 = vmatprep.subr.mxu0 0.0
        %2011 = vmatpush1.msra.mxu0 0.0
        %2012 = vmatprep.subr.mxu0 0.0
        %2013 = vmatpush1.msra.mxu0 0.0
        %2014 = vmatprep.subr.mxu0 0.0
        %2015 = vmatpush1.msra.mxu0 0.0
        %2016 = vmatprep.subr.mxu0 0.0
        %2017 = vmatpush1.msra.mxu0 0.0
        %2018 = vmatprep.subr.mxu0 0.0
        %2019 = vmatpush1.msra.mxu0 0.0
        %2020 = vmatprep.subr.mxu0 0.0
        %2021 = vmatpush1.msra.mxu0 0.0
        %2022 = vmatprep.subr.mxu0 0.0
        %2023 = vmatpush1.msra.mxu0 0.0
        %2024 = vmatprep.subr.mxu0 0.0
        %2025 = vmatpush1.msra.mxu0 0.0
        %2026 = vmatprep.subr.mxu0 0.0
        %2027 = vmatpush1.msra.mxu0 0.0
        %2028 = vmatprep.mubr.f32.mxu0 0.0
        %2029 = vmatmul.mubr.f32.gmra.mrb[0].mxu0 %v1959
        %v2030 = vpop.f32.mrb[0].mxu0
        %v2031 = vadd.f32 0.0, %v2030
        %v2032 = vpop.f32.mrb[0].mxu0
        %2033 = vmatprep.mubr.f32.mxu0 0.0
        %2034 = vmatmul.mubr.f32.gmra.mrb[0].mxu0 %v1962
        %v2035 = vpop.f32.mrb[0].mxu0
        %v2036 = vadd.f32 0.0, %v2035
        %v2037 = vpop.f32.mrb[0].mxu0
        %2038 = vdwg.mxu0
        %v2039 = vadd.f32 %v1863, %v2031
        %v2040 = vadd.f32 %v1868, %v2036
        %s2041 = scalar_lea.vmem %s11, 48
        %v2042 = vld [vmem:[%s2041] sm:$0xff]
        %v2043 = vld [vmem:[%s2041 + $0x8] sm:$0xff]
        %v2045 = vsel %vm1537, %v2042, 0
        %v2048 = vsel %vm1537, %v2043, 0
        %2050 = vmatprep.subr.mxu0 0.0
        %2051 = vmatpush1.msra.mxu0 %v1529
        %2052 = vmatprep.subr.mxu0 0.0
        %2053 = vmatpush1.msra.mxu0 %v1530
        %2054 = vmatprep.subr.mxu0 0.0
        %2055 = vmatpush1.msra.mxu0 %v1531
        %2056 = vmatprep.subr.mxu0 0.0
        %2057 = vmatpush1.msra.mxu0 %v1532
        %2058 = vmatprep.subr.mxu0 0.0
        %2059 = vmatpush1.msra.mxu0 0.0
        %2060 = vmatprep.subr.mxu0 0.0
        %2061 = vmatpush1.msra.mxu0 0.0
        %2062 = vmatprep.subr.mxu0 0.0
        %2063 = vmatpush1.msra.mxu0 0.0
        %2064 = vmatprep.subr.mxu0 0.0
        %2065 = vmatpush1.msra.mxu0 0.0
        %2066 = vmatprep.subr.mxu0 0.0
        %2067 = vmatpush1.msra.mxu0 0.0
        %2068 = vmatprep.subr.mxu0 0.0
        %2069 = vmatpush1.msra.mxu0 0.0
        %2070 = vmatprep.subr.mxu0 0.0
        %2071 = vmatpush1.msra.mxu0 0.0
        %2072 = vmatprep.subr.mxu0 0.0
        %2073 = vmatpush1.msra.mxu0 0.0
        %2074 = vmatprep.subr.mxu0 0.0
        %2075 = vmatpush1.msra.mxu0 0.0
        %2076 = vmatprep.subr.mxu0 0.0
        %2077 = vmatpush1.msra.mxu0 0.0
        %2078 = vmatprep.subr.mxu0 0.0
        %2079 = vmatpush1.msra.mxu0 0.0
        %2080 = vmatprep.subr.mxu0 0.0
        %2081 = vmatpush1.msra.mxu0 0.0
        %2082 = vmatprep.subr.mxu0 0.0
        %2083 = vmatpush1.msra.mxu0 0.0
        %2084 = vmatprep.subr.mxu0 0.0
        %2085 = vmatpush1.msra.mxu0 0.0
        %2086 = vmatprep.subr.mxu0 0.0
        %2087 = vmatpush1.msra.mxu0 0.0
        %2088 = vmatprep.subr.mxu0 0.0
        %2089 = vmatpush1.msra.mxu0 0.0
        %2090 = vmatprep.subr.mxu0 0.0
        %2091 = vmatpush1.msra.mxu0 0.0
        %2092 = vmatprep.subr.mxu0 0.0
        %2093 = vmatpush1.msra.mxu0 0.0
        %2094 = vmatprep.subr.mxu0 0.0
        %2095 = vmatpush1.msra.mxu0 0.0
        %2096 = vmatprep.subr.mxu0 0.0
        %2097 = vmatpush1.msra.mxu0 0.0
        %2098 = vmatprep.subr.mxu0 0.0
        %2099 = vmatpush1.msra.mxu0 0.0
        %2100 = vmatprep.subr.mxu0 0.0
        %2101 = vmatpush1.msra.mxu0 0.0
        %2102 = vmatprep.subr.mxu0 0.0
        %2103 = vmatpush1.msra.mxu0 0.0
        %2104 = vmatprep.subr.mxu0 0.0
        %2105 = vmatpush1.msra.mxu0 0.0
        %2106 = vmatprep.subr.mxu0 0.0
        %2107 = vmatpush1.msra.mxu0 0.0
        %2108 = vmatprep.subr.mxu0 0.0
        %2109 = vmatpush1.msra.mxu0 0.0
        %2110 = vmatprep.subr.mxu0 0.0
        %2111 = vmatpush1.msra.mxu0 0.0
        %2112 = vmatprep.subr.mxu0 0.0
        %2113 = vmatpush1.msra.mxu0 0.0
        %2114 = vmatprep.mubr.f32.mxu0 0.0
        %2115 = vmatmul.mubr.f32.gmra.mrb[0].mxu0 %v2045
        %v2116 = vpop.f32.mrb[0].mxu0
        %v2117 = vadd.f32 0.0, %v2116
        %v2118 = vpop.f32.mrb[0].mxu0
        %2119 = vmatprep.mubr.f32.mxu0 0.0
        %2120 = vmatmul.mubr.f32.gmra.mrb[0].mxu0 %v2048
        %v2121 = vpop.f32.mrb[0].mxu0
        %v2122 = vadd.f32 0.0, %v2121
        %v2123 = vpop.f32.mrb[0].mxu0
        %2124 = vdwg.mxu0
        %s2125 = scalar_lea.vmem %s15, 48
        %v2126 = vld [vmem:[%s2125] sm:$0xff]
        %v2127 = vld [vmem:[%s2125 + $0x8] sm:$0xff]
        %v2129 = vsel %vm1708, %v2117, 0
        %v2132 = vsel %vm1708, %v2122, 0
        %2134 = vmatprep.subr.mxu0 0.0
        %2135 = vmatpush1.msra.mxu0 %v2126
        %2136 = vmatprep.subr.mxu0 0.0
        %2137 = vmatpush1.msra.mxu0 %v2127
        %2138 = vmatprep.subr.mxu0 0.0
        %2139 = vmatpush1.msra.mxu0 0.0
        %2140 = vmatprep.subr.mxu0 0.0
        %2141 = vmatpush1.msra.mxu0 0.0
        %2142 = vmatprep.subr.mxu0 0.0
        %2143 = vmatpush1.msra.mxu0 0.0
        %2144 = vmatprep.subr.mxu0 0.0
        %2145 = vmatpush1.msra.mxu0 0.0
        %2146 = vmatprep.subr.mxu0 0.0
        %2147 = vmatpush1.msra.mxu0 0.0
        %2148 = vmatprep.subr.mxu0 0.0
        %2149 = vmatpush1.msra.mxu0 0.0
        %2150 = vmatprep.subr.mxu0 0.0
        %2151 = vmatpush1.msra.mxu0 0.0
        %2152 = vmatprep.subr.mxu0 0.0
        %2153 = vmatpush1.msra.mxu0 0.0
        %2154 = vmatprep.subr.mxu0 0.0
        %2155 = vmatpush1.msra.mxu0 0.0
        %2156 = vmatprep.subr.mxu0 0.0
        %2157 = vmatpush1.msra.mxu0 0.0
        %2158 = vmatprep.subr.mxu0 0.0
        %2159 = vmatpush1.msra.mxu0 0.0
        %2160 = vmatprep.subr.mxu0 0.0
        %2161 = vmatpush1.msra.mxu0 0.0
        %2162 = vmatprep.subr.mxu0 0.0
        %2163 = vmatpush1.msra.mxu0 0.0
        %2164 = vmatprep.subr.mxu0 0.0
        %2165 = vmatpush1.msra.mxu0 0.0
        %2166 = vmatprep.subr.mxu0 0.0
        %2167 = vmatpush1.msra.mxu0 0.0
        %2168 = vmatprep.subr.mxu0 0.0
        %2169 = vmatpush1.msra.mxu0 0.0
        %2170 = vmatprep.subr.mxu0 0.0
        %2171 = vmatpush1.msra.mxu0 0.0
        %2172 = vmatprep.subr.mxu0 0.0
        %2173 = vmatpush1.msra.mxu0 0.0
        %2174 = vmatprep.subr.mxu0 0.0
        %2175 = vmatpush1.msra.mxu0 0.0
        %2176 = vmatprep.subr.mxu0 0.0
        %2177 = vmatpush1.msra.mxu0 0.0
        %2178 = vmatprep.subr.mxu0 0.0
        %2179 = vmatpush1.msra.mxu0 0.0
        %2180 = vmatprep.subr.mxu0 0.0
        %2181 = vmatpush1.msra.mxu0 0.0
        %2182 = vmatprep.subr.mxu0 0.0
        %2183 = vmatpush1.msra.mxu0 0.0
        %2184 = vmatprep.subr.mxu0 0.0
        %2185 = vmatpush1.msra.mxu0 0.0
        %2186 = vmatprep.subr.mxu0 0.0
        %2187 = vmatpush1.msra.mxu0 0.0
        %2188 = vmatprep.subr.mxu0 0.0
        %2189 = vmatpush1.msra.mxu0 0.0
        %2190 = vmatprep.subr.mxu0 0.0
        %2191 = vmatpush1.msra.mxu0 0.0
        %2192 = vmatprep.subr.mxu0 0.0
        %2193 = vmatpush1.msra.mxu0 0.0
        %2194 = vmatprep.subr.mxu0 0.0
        %2195 = vmatpush1.msra.mxu0 0.0
        %2196 = vmatprep.subr.mxu0 0.0
        %2197 = vmatpush1.msra.mxu0 0.0
        %2198 = vmatprep.mubr.f32.mxu0 0.0
        %2199 = vmatmul.mubr.f32.gmra.mrb[0].mxu0 %v2129
        %v2200 = vpop.f32.mrb[0].mxu0
        %v2201 = vadd.f32 0.0, %v2200
        %v2202 = vpop.f32.mrb[0].mxu0
        %2203 = vmatprep.mubr.f32.mxu0 0.0
        %2204 = vmatmul.mubr.f32.gmra.mrb[0].mxu0 %v2132
        %v2205 = vpop.f32.mrb[0].mxu0
        %v2206 = vadd.f32 0.0, %v2205
        %v2207 = vpop.f32.mrb[0].mxu0
        %2208 = vdwg.mxu0
        %v2209 = vadd.f32 %v2039, %v2201
        %v2210 = vadd.f32 %v2040, %v2206
        %2212 = vset.pattern.permute.xlu0 0
        %2213 = vperm.xlu0 %2212, %v1533
        %v2214 = vpop.permute.xlu0 %2213
        %2217 = vset.pattern.permute.xlu0 0
        %2218 = vperm.xlu0 %2217, %v1534
        %v2219 = vpop.permute.xlu0 %2218
        %v2221 = vadd.f32 %v2209, %v2214
        %v2222 = vadd.f32 %v2210, %v2219
        %v2223 = vld [vmem:[%s17] sm:$0xff]
        %v2224 = vld [vmem:[%s17 + $0x8] sm:$0xff]
        %v2225 = vld [vmem:[%s19] sm:$0xff]
        %v2226 = vld [vmem:[%s19 + $0x8] sm:$0xff]
        %2228 = vset.pattern.permute.xlu0 0
        %2229 = vperm.xlu0 %2228, %v2223
        %v2230 = vpop.permute.xlu0 %2229
        %2233 = vset.pattern.permute.xlu0 0
        %2234 = vperm.xlu0 %2233, %v2224
        %v2235 = vpop.permute.xlu0 %2234
        %v2237 = vmul.f32 %v2230, %v2221
        %v2238 = vmul.f32 %v2235, %v2222
        %v2239 = vand.u32 2147483647, %v2237
        %vm2240 = vcmp.le.f32.partialorder %v2239, 0.7853982
        %vm2241 = vcmp.lt.s32.totalorder %v2237, 0
        %v2242 = vand.u32 %v2237, 2139095040
        %v2243 = vshrl.u32 %v2242, 23
        %v2244 = vsub.s32 %v2243, 127
        %v2245 = vand.u32 2147483647, %v2237
        %v2246 = vand.u32 %v2245, 8388607
        %v2247 = vor.u32 %v2246, 8388608
        %v2248 = vsub.s32 0, %v2247
        %v2249 = vadd.s32 %v2244, 1
        %vm2250 = vcmp.gt.s32.totalorder %v2249, 0
        %v2251 = vsel %vm2250, %v2249, 0
        %v2252 = vshrl.u32 %v2251, 5
        %v2253 = vand.u32 %v2251, 31
        %v2254 = vsub.s32 32, %v2253
        %v2255 = vshrl.u32 683565275, %v2254
        %v2256 = vshll.u32 683565275, %v2253
        %v2257 = vshrl.u32 2475754826, %v2254
        %v2258 = vor.u32 %v2256, %v2257
        %v2259 = vshll.u32 2475754826, %v2253
        %v2260 = vshrl.u32 2131351028, %v2254
        %v2261 = vor.u32 %v2259, %v2260
        %v2262 = vshll.u32 2131351028, %v2253
        %v2263 = vshrl.u32 2102212464, %v2254
        %v2264 = vor.u32 %v2262, %v2263
        %v2265 = vshll.u32 2102212464, %v2253
        %v2266 = vshrl.u32 920167782, %v2254
        %v2267 = vor.u32 %v2265, %v2266
        %v2268 = vshll.u32 920167782, %v2253
        %v2269 = vshrl.u32 1326507024, %v2254
        %v2270 = vor.u32 %v2268, %v2269
        %vm2271 = vcmp.lt.s32.totalorder %v2252, 1
        %vm2272 = vcmp.lt.s32.totalorder %v2252, 2
        %vm2273 = vcmp.lt.s32.totalorder %v2252, 3
        %vm2274 = vcmp.lt.s32.totalorder %v2252, 4
        %v2275 = vsel %vm2271, %v2255, %v2258
        %v2276 = vsel %vm2274, %v2264, 2102212464
        %v2277 = vsel %vm2273, %v2261, %v2276
        %v2278 = vsel %vm2272, %v2275, %v2277
        %v2279 = vsel %vm2271, %v2258, %v2261
        %v2280 = vsel %vm2274, %v2267, 920167782
        %v2281 = vsel %vm2273, %v2264, %v2280
        %v2282 = vsel %vm2272, %v2279, %v2281
        %v2283 = vsel %vm2271, %v2261, %v2264
        %v2284 = vsel %vm2274, %v2270, 1326507024
        %v2285 = vsel %vm2273, %v2267, %v2284
        %v2286 = vsel %vm2272, %v2283, %v2285
        %v2287 = vshll.u32 %v2247, 8
        %v2288 = vmul.u32.u64.compose %v2287, %v2286
        %v2289 = vextract.low.u32 %v2288
        %v2290 = vextract.high.u32 %v2288
        %v2291 = vmul.u32.u64.compose %v2287, %v2282
        %v2292 = vextract.low.u32 %v2291
        %v2293 = vextract.high.u32 %v2291
        %v2294 = vmul.u32 %v2287, %v2278
        %v2295 = vadd.s32 %v2290, %v2292
        %vm2296 = vc.u32 %v2290, %v2292
        %v2297 = vadd.s32 %v2293, 1
        %v2298 = vsel %vm2296, %v2297, %v2293
        %v2299 = vadd.s32 %v2294, %v2298
        %v2300 = vadd.s32 %v2299, 536870912
        %v2301 = vshrl.u32 %v2300, 30
        %v2302 = vshll.u32 %v2301, 30
        %v2303 = vsub.s32 %v2299, %v2302
        %vm2304 = vcmp.lt.s32.totalorder %v2303, 0
        %v2305 = vsub.s32 0, %v2303
        %v2306 = vsel %vm2304, %v2305, %v2303
        %v2307 = vclz %v2306
        %v2308 = vsub.s32 %v2307, 2
        %vm2309 = vcmp.gt.s32.totalorder 0, %v2308
        %v2310 = vsel %vm2309, 0, %v2308
        %v2311 = vsub.s32 32, %v2310
        %v2312 = vshll.u32 %v2303, %v2310
        %v2313 = vshrl.u32 %v2295, %v2311
        %v2314 = vor.u32 %v2312, %v2313
        %v2315 = vsub.s32 4294967266, %v2310
        %v2316 = vadd.s32 %v2315, 127
        %v2317 = vshll.u32 %v2316, 23
        %v2318 = vor.u32 4788187, %v2317
        %v2319 = vand.u32 2147483647, %v2318
        %v2321 = vcvt.s32.f32 %v2314
        %v2322 = vmul.f32 %v2321, %v2319
        %v2323 = vxor.u32 %v2322, 2147483648
        %v2324 = vsel %vm2241, %v2323, %v2322
        %v2325 = vsub.s32 4, %v2301
        %v2326 = vsel %vm2241, %v2325, %v2301
        %v2327 = vsel %vm2240, %v2237, %v2324
        %v2328 = vsel %vm2240, 0, %v2326
        %v2329 = vcosq.f32.pop %v2327
        %v2330 = vsinq.f32.pop %v2327
        %vm2331 = vweird.f32 %v2237
        %v2332 = vadd.s32 %v2328, 3
        %v2333 = vand.u32 %v2332, 3
        %vm2334 = vcmp.lt.s32.totalorder %v2333, 2
        %vm2335 = vcmp.eq.s32.totalorder %v2333, 0
        %v2336 = vxor.u32 %v2330, 2147483648
        %v2337 = vsel %vm2335, %v2329, %v2336
        %vm2338 = vcmp.eq.s32.totalorder %v2333, 2
        %v2339 = vxor.u32 %v2329, 2147483648
        %v2340 = vsel %vm2338, %v2339, %v2330
        %v2341 = vsel %vm2334, %v2337, %v2340
        %v2342 = vsel %vm2331, nan, %v2341
        %v2343 = vand.u32 2147483647, %v2238
        %vm2344 = vcmp.le.f32.partialorder %v2343, 0.7853982
        %vm2345 = vcmp.lt.s32.totalorder %v2238, 0
        %v2346 = vand.u32 %v2238, 2139095040
        %v2347 = vshrl.u32 %v2346, 23
        %v2348 = vsub.s32 %v2347, 127
        %v2349 = vand.u32 2147483647, %v2238
        %v2350 = vand.u32 %v2349, 8388607
        %v2351 = vor.u32 %v2350, 8388608
        %v2352 = vsub.s32 0, %v2351
        %v2353 = vadd.s32 %v2348, 1
        %vm2354 = vcmp.gt.s32.totalorder %v2353, 0
        %v2355 = vsel %vm2354, %v2353, 0
        %v2356 = vshrl.u32 %v2355, 5
        %v2357 = vand.u32 %v2355, 31
        %v2358 = vsub.s32 32, %v2357
        %v2359 = vshrl.u32 683565275, %v2358
        %v2360 = vshll.u32 683565275, %v2357
        %v2361 = vshrl.u32 2475754826, %v2358
        %v2362 = vor.u32 %v2360, %v2361
        %v2363 = vshll.u32 2475754826, %v2357
        %v2364 = vshrl.u32 2131351028, %v2358
        %v2365 = vor.u32 %v2363, %v2364
        %v2366 = vshll.u32 2131351028, %v2357
        %v2367 = vshrl.u32 2102212464, %v2358
        %v2368 = vor.u32 %v2366, %v2367
        %v2369 = vshll.u32 2102212464, %v2357
        %v2370 = vshrl.u32 920167782, %v2358
        %v2371 = vor.u32 %v2369, %v2370
        %v2372 = vshll.u32 920167782, %v2357
        %v2373 = vshrl.u32 1326507024, %v2358
        %v2374 = vor.u32 %v2372, %v2373
        %vm2375 = vcmp.lt.s32.totalorder %v2356, 1
        %vm2376 = vcmp.lt.s32.totalorder %v2356, 2
        %vm2377 = vcmp.lt.s32.totalorder %v2356, 3
        %vm2378 = vcmp.lt.s32.totalorder %v2356, 4
        %v2379 = vsel %vm2375, %v2359, %v2362
        %v2380 = vsel %vm2378, %v2368, 2102212464
        %v2381 = vsel %vm2377, %v2365, %v2380
        %v2382 = vsel %vm2376, %v2379, %v2381
        %v2383 = vsel %vm2375, %v2362, %v2365
        %v2384 = vsel %vm2378, %v2371, 920167782
        %v2385 = vsel %vm2377, %v2368, %v2384
        %v2386 = vsel %vm2376, %v2383, %v2385
        %v2387 = vsel %vm2375, %v2365, %v2368
        %v2388 = vsel %vm2378, %v2374, 1326507024
        %v2389 = vsel %vm2377, %v2371, %v2388
        %v2390 = vsel %vm2376, %v2387, %v2389
        %v2391 = vshll.u32 %v2351, 8
        %v2392 = vmul.u32.u64.compose %v2391, %v2390
        %v2393 = vextract.low.u32 %v2392
        %v2394 = vextract.high.u32 %v2392
        %v2395 = vmul.u32.u64.compose %v2391, %v2386
        %v2396 = vextract.low.u32 %v2395
        %v2397 = vextract.high.u32 %v2395
        %v2398 = vmul.u32 %v2391, %v2382
        %v2399 = vadd.s32 %v2394, %v2396
        %vm2400 = vc.u32 %v2394, %v2396
        %v2401 = vadd.s32 %v2397, 1
        %v2402 = vsel %vm2400, %v2401, %v2397
        %v2403 = vadd.s32 %v2398, %v2402
        %v2404 = vadd.s32 %v2403, 536870912
        %v2405 = vshrl.u32 %v2404, 30
        %v2406 = vshll.u32 %v2405, 30
        %v2407 = vsub.s32 %v2403, %v2406
        %vm2408 = vcmp.lt.s32.totalorder %v2407, 0
        %v2409 = vsub.s32 0, %v2407
        %v2410 = vsel %vm2408, %v2409, %v2407
        %v2411 = vclz %v2410
        %v2412 = vsub.s32 %v2411, 2
        %vm2413 = vcmp.gt.s32.totalorder 0, %v2412
        %v2414 = vsel %vm2413, 0, %v2412
        %v2415 = vsub.s32 32, %v2414
        %v2416 = vshll.u32 %v2407, %v2414
        %v2417 = vshrl.u32 %v2399, %v2415
        %v2418 = vor.u32 %v2416, %v2417
        %v2419 = vsub.s32 4294967266, %v2414
        %v2420 = vadd.s32 %v2419, 127
        %v2421 = vshll.u32 %v2420, 23
        %v2422 = vor.u32 4788187, %v2421
        %v2423 = vand.u32 2147483647, %v2422
        %v2425 = vcvt.s32.f32 %v2418
        %v2426 = vmul.f32 %v2425, %v2423
        %v2427 = vxor.u32 %v2426, 2147483648
        %v2428 = vsel %vm2345, %v2427, %v2426
        %v2429 = vsub.s32 4, %v2405
        %v2430 = vsel %vm2345, %v2429, %v2405
        %v2431 = vsel %vm2344, %v2238, %v2428
        %v2432 = vsel %vm2344, 0, %v2430
        %v2433 = vcosq.f32.pop %v2431
        %v2434 = vsinq.f32.pop %v2431
        %vm2435 = vweird.f32 %v2238
        %v2436 = vadd.s32 %v2432, 3
        %v2437 = vand.u32 %v2436, 3
        %vm2438 = vcmp.lt.s32.totalorder %v2437, 2
        %vm2439 = vcmp.eq.s32.totalorder %v2437, 0
        %v2440 = vxor.u32 %v2434, 2147483648
        %v2441 = vsel %vm2439, %v2433, %v2440
        %vm2442 = vcmp.eq.s32.totalorder %v2437, 2
        %v2443 = vxor.u32 %v2433, 2147483648
        %v2444 = vsel %vm2442, %v2443, %v2434
        %v2445 = vsel %vm2438, %v2441, %v2444
        %v2446 = vsel %vm2435, nan, %v2445
        %v2447 = vmul.f32 %v2342, %v2342
        %v2448 = vmul.f32 %v2446, %v2446
        %2450 = vset.pattern.permute.xlu0 0
        %2451 = vperm.xlu0 %2450, %v2225
        %v2452 = vpop.permute.xlu0 %2451
        %2455 = vset.pattern.permute.xlu0 0
        %2456 = vperm.xlu0 %2455, %v2226
        %v2457 = vpop.permute.xlu0 %2456
        %v2459 = vmul.f32 %v2452, %v2447
        %v2460 = vmul.f32 %v2457, %v2448
        %v2461 = vadd.f32 %v2221, %v2459
        %v2462 = vadd.f32 %v2222, %v2460
        %v2463 = vld [vmem:[%s21] sm:$0xff]
        %v2464 = vld [vmem:[%s21 + $0x8] sm:$0xff]
        %v2465 = vld [vmem:[%s23] sm:$0xff]
        %v2466 = vld [vmem:[%s23 + $0x8] sm:$0xff]
        %2469 = vrot.lane.b32.xlu0 %v2461, 3
        %v2470 = vpop.permute.xlu0 %2469
        %2471 = vrot.lane.b32.xlu0 %v2462, 3
        %v2472 = vpop.permute.xlu0 %2471
        %v2475 = vsel %vm912, 0.0, %v2470
        %v2476 = vsel %vm912, 0.0, %v2472
        %vm2477 = vcmask 285696
        %v2478 = vsel %vm2477, %v2475, 0.0
        %v2479 = vsel %vm2477, %v2476, 0.0
        %2482 = vrot.lane.b32.xlu0 %v2478, 127
        %v2483 = vpop.permute.xlu0 %2482
        %2484 = vrot.lane.b32.xlu0 %v2479, 127
        %v2485 = vpop.permute.xlu0 %2484
        %2488 = vrot.lane.b32.xlu0 %v2478, 126
        %v2489 = vpop.permute.xlu0 %2488
        %2490 = vrot.lane.b32.xlu0 %v2479, 126
        %v2491 = vpop.permute.xlu0 %2490
        %2494 = vrot.lane.b32.xlu0 %v2478, 125
        %v2495 = vpop.permute.xlu0 %2494
        %2496 = vrot.lane.b32.xlu0 %v2479, 125
        %v2497 = vpop.permute.xlu0 %2496
        %2500 = vrot.lane.b32.xlu0 %v2478, 124
        %v2501 = vpop.permute.xlu0 %2500
        %2502 = vrot.lane.b32.xlu0 %v2479, 124
        %v2503 = vpop.permute.xlu0 %2502
        %2506 = vrot.lane.b32.xlu0 %v2478, 123
        %v2507 = vpop.permute.xlu0 %2506
        %2508 = vrot.lane.b32.xlu0 %v2479, 123
        %v2509 = vpop.permute.xlu0 %2508
        %2512 = vrot.lane.b32.xlu0 %v2478, 122
        %v2513 = vpop.permute.xlu0 %2512
        %2514 = vrot.lane.b32.xlu0 %v2479, 122
        %v2515 = vpop.permute.xlu0 %2514
        %2519 = vset.pattern.permute.xlu0 0
        %2520 = vperm.xlu0 %2519, %v2465
        %v2521 = vpop.permute.xlu0 %2520
        %2524 = vset.pattern.permute.xlu0 0
        %2525 = vperm.xlu0 %2524, %v2466
        %v2526 = vpop.permute.xlu0 %2525
        %vm2528 = vcmask 916480
        %v2530 = vsel %vm2528, %v2463, 0
        %v2533 = vsel %vm2528, %v2464, 0
        %2535 = vmatprep.subr.mxu0 0.0
        %2536 = vmatpush1.msra.mxu0 %v2478
        %2537 = vmatprep.subr.mxu0 0.0
        %2538 = vmatpush1.msra.mxu0 %v2479
        %2539 = vmatprep.subr.mxu0 0.0
        %2540 = vmatpush1.msra.mxu0 %v2483
        %2541 = vmatprep.subr.mxu0 0.0
        %2542 = vmatpush1.msra.mxu0 %v2485
        %2543 = vmatprep.subr.mxu0 0.0
        %2544 = vmatpush1.msra.mxu0 %v2489
        %2545 = vmatprep.subr.mxu0 0.0
        %2546 = vmatpush1.msra.mxu0 %v2491
        %2547 = vmatprep.subr.mxu0 0.0
        %2548 = vmatpush1.msra.mxu0 %v2495
        %2549 = vmatprep.subr.mxu0 0.0
        %2550 = vmatpush1.msra.mxu0 %v2497
        %2551 = vmatprep.subr.mxu0 0.0
        %2552 = vmatpush1.msra.mxu0 %v2501
        %2553 = vmatprep.subr.mxu0 0.0
        %2554 = vmatpush1.msra.mxu0 %v2503
        %2555 = vmatprep.subr.mxu0 0.0
        %2556 = vmatpush1.msra.mxu0 %v2507
        %2557 = vmatprep.subr.mxu0 0.0
        %2558 = vmatpush1.msra.mxu0 %v2509
        %2559 = vmatprep.subr.mxu0 0.0
        %2560 = vmatpush1.msra.mxu0 %v2513
        %2561 = vmatprep.subr.mxu0 0.0
        %2562 = vmatpush1.msra.mxu0 %v2515
        %2563 = vmatprep.subr.mxu0 0.0
        %2564 = vmatpush1.msra.mxu0 0.0
        %2565 = vmatprep.subr.mxu0 0.0
        %2566 = vmatpush1.msra.mxu0 0.0
        %2567 = vmatprep.subr.mxu0 0.0
        %2568 = vmatpush1.msra.mxu0 0.0
        %2569 = vmatprep.subr.mxu0 0.0
        %2570 = vmatpush1.msra.mxu0 0.0
        %2571 = vmatprep.subr.mxu0 0.0
        %2572 = vmatpush1.msra.mxu0 0.0
        %2573 = vmatprep.subr.mxu0 0.0
        %2574 = vmatpush1.msra.mxu0 0.0
        %2575 = vmatprep.subr.mxu0 0.0
        %2576 = vmatpush1.msra.mxu0 0.0
        %2577 = vmatprep.subr.mxu0 0.0
        %2578 = vmatpush1.msra.mxu0 0.0
        %2579 = vmatprep.subr.mxu0 0.0
        %2580 = vmatpush1.msra.mxu0 0.0
        %2581 = vmatprep.subr.mxu0 0.0
        %2582 = vmatpush1.msra.mxu0 0.0
        %2583 = vmatprep.subr.mxu0 0.0
        %2584 = vmatpush1.msra.mxu0 0.0
        %2585 = vmatprep.subr.mxu0 0.0
        %2586 = vmatpush1.msra.mxu0 0.0
        %2587 = vmatprep.subr.mxu0 0.0
        %2588 = vmatpush1.msra.mxu0 0.0
        %2589 = vmatprep.subr.mxu0 0.0
        %2590 = vmatpush1.msra.mxu0 0.0
        %2591 = vmatprep.subr.mxu0 0.0
        %2592 = vmatpush1.msra.mxu0 0.0
        %2593 = vmatprep.subr.mxu0 0.0
        %2594 = vmatpush1.msra.mxu0 0.0
        %2595 = vmatprep.subr.mxu0 0.0
        %2596 = vmatpush1.msra.mxu0 0.0
        %2597 = vmatprep.subr.mxu0 0.0
        %2598 = vmatpush1.msra.mxu0 0.0
        %2599 = vmatprep.mubr.f32.mxu0 0.0
        %2600 = vmatmul.mubr.f32.gmra.mrb[0].mxu0 %v2530
        %v2601 = vpop.f32.mrb[0].mxu0
        %v2602 = vadd.f32 %v2521, %v2601
        %v2603 = vpop.f32.mrb[0].mxu0
        %2604 = vmatprep.mubr.f32.mxu0 0.0
        %2605 = vmatmul.mubr.f32.gmra.mrb[0].mxu0 %v2533
        %v2606 = vpop.f32.mrb[0].mxu0
        %v2607 = vadd.f32 %v2526, %v2606
        %v2608 = vpop.f32.mrb[0].mxu0
        %2609 = vdwg.mxu0
        %s2610 = scalar_lea.vmem %s17, 16
        %v2611 = vld [vmem:[%s2610] sm:$0xff]
        %v2612 = vld [vmem:[%s2610 + $0x8] sm:$0xff]
        %s2613 = scalar_lea.vmem %s19, 16
        %v2614 = vld [vmem:[%s2613] sm:$0xff]
        %v2615 = vld [vmem:[%s2613 + $0x8] sm:$0xff]
        %2617 = vset.pattern.permute.xlu0 0
        %2618 = vperm.xlu0 %2617, %v2611
        %v2619 = vpop.permute.xlu0 %2618
        %2622 = vset.pattern.permute.xlu0 0
        %2623 = vperm.xlu0 %2622, %v2612
        %v2624 = vpop.permute.xlu0 %2623
        %v2626 = vmul.f32 %v2619, %v2602
        %v2627 = vmul.f32 %v2624, %v2607
        %v2628 = vand.u32 2147483647, %v2626
        %vm2629 = vcmp.le.f32.partialorder %v2628, 0.7853982
        %vm2630 = vcmp.lt.s32.totalorder %v2626, 0
        %v2631 = vand.u32 %v2626, 2139095040
        %v2632 = vshrl.u32 %v2631, 23
        %v2633 = vsub.s32 %v2632, 127
        %v2634 = vand.u32 2147483647, %v2626
        %v2635 = vand.u32 %v2634, 8388607
        %v2636 = vor.u32 %v2635, 8388608
        %v2637 = vsub.s32 0, %v2636
        %v2638 = vadd.s32 %v2633, 1
        %vm2639 = vcmp.gt.s32.totalorder %v2638, 0
        %v2640 = vsel %vm2639, %v2638, 0
        %v2641 = vshrl.u32 %v2640, 5
        %v2642 = vand.u32 %v2640, 31
        %v2643 = vsub.s32 32, %v2642
        %v2644 = vshrl.u32 683565275, %v2643
        %v2645 = vshll.u32 683565275, %v2642
        %v2646 = vshrl.u32 2475754826, %v2643
        %v2647 = vor.u32 %v2645, %v2646
        %v2648 = vshll.u32 2475754826, %v2642
        %v2649 = vshrl.u32 2131351028, %v2643
        %v2650 = vor.u32 %v2648, %v2649
        %v2651 = vshll.u32 2131351028, %v2642
        %v2652 = vshrl.u32 2102212464, %v2643
        %v2653 = vor.u32 %v2651, %v2652
        %v2654 = vshll.u32 2102212464, %v2642
        %v2655 = vshrl.u32 920167782, %v2643
        %v2656 = vor.u32 %v2654, %v2655
        %v2657 = vshll.u32 920167782, %v2642
        %v2658 = vshrl.u32 1326507024, %v2643
        %v2659 = vor.u32 %v2657, %v2658
        %vm2660 = vcmp.lt.s32.totalorder %v2641, 1
        %vm2661 = vcmp.lt.s32.totalorder %v2641, 2
        %vm2662 = vcmp.lt.s32.totalorder %v2641, 3
        %vm2663 = vcmp.lt.s32.totalorder %v2641, 4
        %v2664 = vsel %vm2660, %v2644, %v2647
        %v2665 = vsel %vm2663, %v2653, 2102212464
        %v2666 = vsel %vm2662, %v2650, %v2665
        %v2667 = vsel %vm2661, %v2664, %v2666
        %v2668 = vsel %vm2660, %v2647, %v2650
        %v2669 = vsel %vm2663, %v2656, 920167782
        %v2670 = vsel %vm2662, %v2653, %v2669
        %v2671 = vsel %vm2661, %v2668, %v2670
        %v2672 = vsel %vm2660, %v2650, %v2653
        %v2673 = vsel %vm2663, %v2659, 1326507024
        %v2674 = vsel %vm2662, %v2656, %v2673
        %v2675 = vsel %vm2661, %v2672, %v2674
        %v2676 = vshll.u32 %v2636, 8
        %v2677 = vmul.u32.u64.compose %v2676, %v2675
        %v2678 = vextract.low.u32 %v2677
        %v2679 = vextract.high.u32 %v2677
        %v2680 = vmul.u32.u64.compose %v2676, %v2671
        %v2681 = vextract.low.u32 %v2680
        %v2682 = vextract.high.u32 %v2680
        %v2683 = vmul.u32 %v2676, %v2667
        %v2684 = vadd.s32 %v2679, %v2681
        %vm2685 = vc.u32 %v2679, %v2681
        %v2686 = vadd.s32 %v2682, 1
        %v2687 = vsel %vm2685, %v2686, %v2682
        %v2688 = vadd.s32 %v2683, %v2687
        %v2689 = vadd.s32 %v2688, 536870912
        %v2690 = vshrl.u32 %v2689, 30
        %v2691 = vshll.u32 %v2690, 30
        %v2692 = vsub.s32 %v2688, %v2691
        %vm2693 = vcmp.lt.s32.totalorder %v2692, 0
        %v2694 = vsub.s32 0, %v2692
        %v2695 = vsel %vm2693, %v2694, %v2692
        %v2696 = vclz %v2695
        %v2697 = vsub.s32 %v2696, 2
        %vm2698 = vcmp.gt.s32.totalorder 0, %v2697
        %v2699 = vsel %vm2698, 0, %v2697
        %v2700 = vsub.s32 32, %v2699
        %v2701 = vshll.u32 %v2692, %v2699
        %v2702 = vshrl.u32 %v2684, %v2700
        %v2703 = vor.u32 %v2701, %v2702
        %v2704 = vsub.s32 4294967266, %v2699
        %v2705 = vadd.s32 %v2704, 127
        %v2706 = vshll.u32 %v2705, 23
        %v2707 = vor.u32 4788187, %v2706
        %v2708 = vand.u32 2147483647, %v2707
        %v2710 = vcvt.s32.f32 %v2703
        %v2711 = vmul.f32 %v2710, %v2708
        %v2712 = vxor.u32 %v2711, 2147483648
        %v2713 = vsel %vm2630, %v2712, %v2711
        %v2714 = vsub.s32 4, %v2690
        %v2715 = vsel %vm2630, %v2714, %v2690
        %v2716 = vsel %vm2629, %v2626, %v2713
        %v2717 = vsel %vm2629, 0, %v2715
        %v2718 = vcosq.f32.pop %v2716
        %v2719 = vsinq.f32.pop %v2716
        %vm2720 = vweird.f32 %v2626
        %v2721 = vadd.s32 %v2717, 3
        %v2722 = vand.u32 %v2721, 3
        %vm2723 = vcmp.lt.s32.totalorder %v2722, 2
        %vm2724 = vcmp.eq.s32.totalorder %v2722, 0
        %v2725 = vxor.u32 %v2719, 2147483648
        %v2726 = vsel %vm2724, %v2718, %v2725
        %vm2727 = vcmp.eq.s32.totalorder %v2722, 2
        %v2728 = vxor.u32 %v2718, 2147483648
        %v2729 = vsel %vm2727, %v2728, %v2719
        %v2730 = vsel %vm2723, %v2726, %v2729
        %v2731 = vsel %vm2720, nan, %v2730
        %v2732 = vand.u32 2147483647, %v2627
        %vm2733 = vcmp.le.f32.partialorder %v2732, 0.7853982
        %vm2734 = vcmp.lt.s32.totalorder %v2627, 0
        %v2735 = vand.u32 %v2627, 2139095040
        %v2736 = vshrl.u32 %v2735, 23
        %v2737 = vsub.s32 %v2736, 127
        %v2738 = vand.u32 2147483647, %v2627
        %v2739 = vand.u32 %v2738, 8388607
        %v2740 = vor.u32 %v2739, 8388608
        %v2741 = vsub.s32 0, %v2740
        %v2742 = vadd.s32 %v2737, 1
        %vm2743 = vcmp.gt.s32.totalorder %v2742, 0
        %v2744 = vsel %vm2743, %v2742, 0
        %v2745 = vshrl.u32 %v2744, 5
        %v2746 = vand.u32 %v2744, 31
        %v2747 = vsub.s32 32, %v2746
        %v2748 = vshrl.u32 683565275, %v2747
        %v2749 = vshll.u32 683565275, %v2746
        %v2750 = vshrl.u32 2475754826, %v2747
        %v2751 = vor.u32 %v2749, %v2750
        %v2752 = vshll.u32 2475754826, %v2746
        %v2753 = vshrl.u32 2131351028, %v2747
        %v2754 = vor.u32 %v2752, %v2753
        %v2755 = vshll.u32 2131351028, %v2746
        %v2756 = vshrl.u32 2102212464, %v2747
        %v2757 = vor.u32 %v2755, %v2756
        %v2758 = vshll.u32 2102212464, %v2746
        %v2759 = vshrl.u32 920167782, %v2747
        %v2760 = vor.u32 %v2758, %v2759
        %v2761 = vshll.u32 920167782, %v2746
        %v2762 = vshrl.u32 1326507024, %v2747
        %v2763 = vor.u32 %v2761, %v2762
        %vm2764 = vcmp.lt.s32.totalorder %v2745, 1
        %vm2765 = vcmp.lt.s32.totalorder %v2745, 2
        %vm2766 = vcmp.lt.s32.totalorder %v2745, 3
        %vm2767 = vcmp.lt.s32.totalorder %v2745, 4
        %v2768 = vsel %vm2764, %v2748, %v2751
        %v2769 = vsel %vm2767, %v2757, 2102212464
        %v2770 = vsel %vm2766, %v2754, %v2769
        %v2771 = vsel %vm2765, %v2768, %v2770
        %v2772 = vsel %vm2764, %v2751, %v2754
        %v2773 = vsel %vm2767, %v2760, 920167782
        %v2774 = vsel %vm2766, %v2757, %v2773
        %v2775 = vsel %vm2765, %v2772, %v2774
        %v2776 = vsel %vm2764, %v2754, %v2757
        %v2777 = vsel %vm2767, %v2763, 1326507024
        %v2778 = vsel %vm2766, %v2760, %v2777
        %v2779 = vsel %vm2765, %v2776, %v2778
        %v2780 = vshll.u32 %v2740, 8
        %v2781 = vmul.u32.u64.compose %v2780, %v2779
        %v2782 = vextract.low.u32 %v2781
        %v2783 = vextract.high.u32 %v2781
        %v2784 = vmul.u32.u64.compose %v2780, %v2775
        %v2785 = vextract.low.u32 %v2784
        %v2786 = vextract.high.u32 %v2784
        %v2787 = vmul.u32 %v2780, %v2771
        %v2788 = vadd.s32 %v2783, %v2785
        %vm2789 = vc.u32 %v2783, %v2785
        %v2790 = vadd.s32 %v2786, 1
        %v2791 = vsel %vm2789, %v2790, %v2786
        %v2792 = vadd.s32 %v2787, %v2791
        %v2793 = vadd.s32 %v2792, 536870912
        %v2794 = vshrl.u32 %v2793, 30
        %v2795 = vshll.u32 %v2794, 30
        %v2796 = vsub.s32 %v2792, %v2795
        %vm2797 = vcmp.lt.s32.totalorder %v2796, 0
        %v2798 = vsub.s32 0, %v2796
        %v2799 = vsel %vm2797, %v2798, %v2796
        %v2800 = vclz %v2799
        %v2801 = vsub.s32 %v2800, 2
        %vm2802 = vcmp.gt.s32.totalorder 0, %v2801
        %v2803 = vsel %vm2802, 0, %v2801
        %v2804 = vsub.s32 32, %v2803
        %v2805 = vshll.u32 %v2796, %v2803
        %v2806 = vshrl.u32 %v2788, %v2804
        %v2807 = vor.u32 %v2805, %v2806
        %v2808 = vsub.s32 4294967266, %v2803
        %v2809 = vadd.s32 %v2808, 127
        %v2810 = vshll.u32 %v2809, 23
        %v2811 = vor.u32 4788187, %v2810
        %v2812 = vand.u32 2147483647, %v2811
        %v2814 = vcvt.s32.f32 %v2807
        %v2815 = vmul.f32 %v2814, %v2812
        %v2816 = vxor.u32 %v2815, 2147483648
        %v2817 = vsel %vm2734, %v2816, %v2815
        %v2818 = vsub.s32 4, %v2794
        %v2819 = vsel %vm2734, %v2818, %v2794
        %v2820 = vsel %vm2733, %v2627, %v2817
        %v2821 = vsel %vm2733, 0, %v2819
        %v2822 = vcosq.f32.pop %v2820
        %v2823 = vsinq.f32.pop %v2820
        %vm2824 = vweird.f32 %v2627
        %v2825 = vadd.s32 %v2821, 3
        %v2826 = vand.u32 %v2825, 3
        %vm2827 = vcmp.lt.s32.totalorder %v2826, 2
        %vm2828 = vcmp.eq.s32.totalorder %v2826, 0
        %v2829 = vxor.u32 %v2823, 2147483648
        %v2830 = vsel %vm2828, %v2822, %v2829
        %vm2831 = vcmp.eq.s32.totalorder %v2826, 2
        %v2832 = vxor.u32 %v2822, 2147483648
        %v2833 = vsel %vm2831, %v2832, %v2823
        %v2834 = vsel %vm2827, %v2830, %v2833
        %v2835 = vsel %vm2824, nan, %v2834
        %v2836 = vmul.f32 %v2731, %v2731
        %v2837 = vmul.f32 %v2835, %v2835
        %2839 = vset.pattern.permute.xlu0 0
        %2840 = vperm.xlu0 %2839, %v2614
        %v2841 = vpop.permute.xlu0 %2840
        %2844 = vset.pattern.permute.xlu0 0
        %2845 = vperm.xlu0 %2844, %v2615
        %v2846 = vpop.permute.xlu0 %2845
        %v2848 = vmul.f32 %v2841, %v2836
        %v2849 = vmul.f32 %v2846, %v2837
        %v2850 = vadd.f32 %v2602, %v2848
        %v2851 = vadd.f32 %v2607, %v2849
        %v2852 = vld [vmem:[%s25] sm:$0xff]
        %v2853 = vld [vmem:[%s25 + $0x8] sm:$0xff]
        %v2854 = vld [vmem:[%s27] sm:$0xff]
        %v2855 = vld [vmem:[%s27 + $0x8] sm:$0xff]
        %2857 = vset.pattern.permute.xlu0 0
        %2858 = vperm.xlu0 %2857, %v2854
        %v2859 = vpop.permute.xlu0 %2858
        %2862 = vset.pattern.permute.xlu0 0
        %2863 = vperm.xlu0 %2862, %v2855
        %v2864 = vpop.permute.xlu0 %2863
        %v2867 = vsel %vm1708, %v2852, 0
        %v2870 = vsel %vm1708, %v2853, 0
        %2872 = vmatprep.subr.mxu0 0.0
        %2873 = vmatpush1.msra.mxu0 %v2850
        %2874 = vmatprep.subr.mxu0 0.0
        %2875 = vmatpush1.msra.mxu0 %v2851
        %2876 = vmatprep.subr.mxu0 0.0
        %2877 = vmatpush1.msra.mxu0 0.0
        %2878 = vmatprep.subr.mxu0 0.0
        %2879 = vmatpush1.msra.mxu0 0.0
        %2880 = vmatprep.subr.mxu0 0.0
        %2881 = vmatpush1.msra.mxu0 0.0
        %2882 = vmatprep.subr.mxu0 0.0
        %2883 = vmatpush1.msra.mxu0 0.0
        %2884 = vmatprep.subr.mxu0 0.0
        %2885 = vmatpush1.msra.mxu0 0.0
        %2886 = vmatprep.subr.mxu0 0.0
        %2887 = vmatpush1.msra.mxu0 0.0
        %2888 = vmatprep.subr.mxu0 0.0
        %2889 = vmatpush1.msra.mxu0 0.0
        %2890 = vmatprep.subr.mxu0 0.0
        %2891 = vmatpush1.msra.mxu0 0.0
        %2892 = vmatprep.subr.mxu0 0.0
        %2893 = vmatpush1.msra.mxu0 0.0
        %2894 = vmatprep.subr.mxu0 0.0
        %2895 = vmatpush1.msra.mxu0 0.0
        %2896 = vmatprep.subr.mxu0 0.0
        %2897 = vmatpush1.msra.mxu0 0.0
        %2898 = vmatprep.subr.mxu0 0.0
        %2899 = vmatpush1.msra.mxu0 0.0
        %2900 = vmatprep.subr.mxu0 0.0
        %2901 = vmatpush1.msra.mxu0 0.0
        %2902 = vmatprep.subr.mxu0 0.0
        %2903 = vmatpush1.msra.mxu0 0.0
        %2904 = vmatprep.subr.mxu0 0.0
        %2905 = vmatpush1.msra.mxu0 0.0
        %2906 = vmatprep.subr.mxu0 0.0
        %2907 = vmatpush1.msra.mxu0 0.0
        %2908 = vmatprep.subr.mxu0 0.0
        %2909 = vmatpush1.msra.mxu0 0.0
        %2910 = vmatprep.subr.mxu0 0.0
        %2911 = vmatpush1.msra.mxu0 0.0
        %2912 = vmatprep.subr.mxu0 0.0
        %2913 = vmatpush1.msra.mxu0 0.0
        %2914 = vmatprep.subr.mxu0 0.0
        %2915 = vmatpush1.msra.mxu0 0.0
        %2916 = vmatprep.subr.mxu0 0.0
        %2917 = vmatpush1.msra.mxu0 0.0
        %2918 = vmatprep.subr.mxu0 0.0
        %2919 = vmatpush1.msra.mxu0 0.0
        %2920 = vmatprep.subr.mxu0 0.0
        %2921 = vmatpush1.msra.mxu0 0.0
        %2922 = vmatprep.subr.mxu0 0.0
        %2923 = vmatpush1.msra.mxu0 0.0
        %2924 = vmatprep.subr.mxu0 0.0
        %2925 = vmatpush1.msra.mxu0 0.0
        %2926 = vmatprep.subr.mxu0 0.0
        %2927 = vmatpush1.msra.mxu0 0.0
        %2928 = vmatprep.subr.mxu0 0.0
        %2929 = vmatpush1.msra.mxu0 0.0
        %2930 = vmatprep.subr.mxu0 0.0
        %2931 = vmatpush1.msra.mxu0 0.0
        %2932 = vmatprep.subr.mxu0 0.0
        %2933 = vmatpush1.msra.mxu0 0.0
        %2934 = vmatprep.subr.mxu0 0.0
        %2935 = vmatpush1.msra.mxu0 0.0
        %2936 = vmatprep.mubr.f32.mxu0 0.0
        %2937 = vmatmul.mubr.f32.gmra.mrb[0].mxu0 %v2867
        %v2938 = vpop.f32.mrb[0].mxu0
        %v2939 = vadd.f32 %v2859, %v2938
        %v2940 = vpop.f32.mrb[0].mxu0
        %2941 = vmatprep.mubr.f32.mxu0 0.0
        %2942 = vmatmul.mubr.f32.gmra.mrb[0].mxu0 %v2870
        %v2943 = vpop.f32.mrb[0].mxu0
        %v2944 = vadd.f32 %v2864, %v2943
        %v2945 = vpop.f32.mrb[0].mxu0
        %2946 = vdwg.mxu0
        %v2947 = vadd.f32 %v2221, %v2939
        %v2948 = vadd.f32 %v2222, %v2944
        %s2949 = scalar_lea.vmem %s17, 32
        %v2950 = vld [vmem:[%s2949] sm:$0xff]
        %v2951 = vld [vmem:[%s2949 + $0x8] sm:$0xff]
        %s2952 = scalar_lea.vmem %s19, 32
        %v2953 = vld [vmem:[%s2952] sm:$0xff]
        %v2954 = vld [vmem:[%s2952 + $0x8] sm:$0xff]
        %2956 = vset.pattern.permute.xlu0 0
        %2957 = vperm.xlu0 %2956, %v2950
        %v2958 = vpop.permute.xlu0 %2957
        %2961 = vset.pattern.permute.xlu0 0
        %2962 = vperm.xlu0 %2961, %v2951
        %v2963 = vpop.permute.xlu0 %2962
        %v2965 = vmul.f32 %v2958, %v2947
        %v2966 = vmul.f32 %v2963, %v2948
        %v2967 = vand.u32 2147483647, %v2965
        %vm2968 = vcmp.le.f32.partialorder %v2967, 0.7853982
        %vm2969 = vcmp.lt.s32.totalorder %v2965, 0
        %v2970 = vand.u32 %v2965, 2139095040
        %v2971 = vshrl.u32 %v2970, 23
        %v2972 = vsub.s32 %v2971, 127
        %v2973 = vand.u32 2147483647, %v2965
        %v2974 = vand.u32 %v2973, 8388607
        %v2975 = vor.u32 %v2974, 8388608
        %v2976 = vsub.s32 0, %v2975
        %v2977 = vadd.s32 %v2972, 1
        %vm2978 = vcmp.gt.s32.totalorder %v2977, 0
        %v2979 = vsel %vm2978, %v2977, 0
        %v2980 = vshrl.u32 %v2979, 5
        %v2981 = vand.u32 %v2979, 31
        %v2982 = vsub.s32 32, %v2981
        %v2983 = vshrl.u32 683565275, %v2982
        %v2984 = vshll.u32 683565275, %v2981
        %v2985 = vshrl.u32 2475754826, %v2982
        %v2986 = vor.u32 %v2984, %v2985
        %v2987 = vshll.u32 2475754826, %v2981
        %v2988 = vshrl.u32 2131351028, %v2982
        %v2989 = vor.u32 %v2987, %v2988
        %v2990 = vshll.u32 2131351028, %v2981
        %v2991 = vshrl.u32 2102212464, %v2982
        %v2992 = vor.u32 %v2990, %v2991
        %v2993 = vshll.u32 2102212464, %v2981
        %v2994 = vshrl.u32 920167782, %v2982
        %v2995 = vor.u32 %v2993, %v2994
        %v2996 = vshll.u32 920167782, %v2981
        %v2997 = vshrl.u32 1326507024, %v2982
        %v2998 = vor.u32 %v2996, %v2997
        %vm2999 = vcmp.lt.s32.totalorder %v2980, 1
        %vm3000 = vcmp.lt.s32.totalorder %v2980, 2
        %vm3001 = vcmp.lt.s32.totalorder %v2980, 3
        %vm3002 = vcmp.lt.s32.totalorder %v2980, 4
        %v3003 = vsel %vm2999, %v2983, %v2986
        %v3004 = vsel %vm3002, %v2992, 2102212464
        %v3005 = vsel %vm3001, %v2989, %v3004
        %v3006 = vsel %vm3000, %v3003, %v3005
        %v3007 = vsel %vm2999, %v2986, %v2989
        %v3008 = vsel %vm3002, %v2995, 920167782
        %v3009 = vsel %vm3001, %v2992, %v3008
        %v3010 = vsel %vm3000, %v3007, %v3009
        %v3011 = vsel %vm2999, %v2989, %v2992
        %v3012 = vsel %vm3002, %v2998, 1326507024
        %v3013 = vsel %vm3001, %v2995, %v3012
        %v3014 = vsel %vm3000, %v3011, %v3013
        %v3015 = vshll.u32 %v2975, 8
        %v3016 = vmul.u32.u64.compose %v3015, %v3014
        %v3017 = vextract.low.u32 %v3016
        %v3018 = vextract.high.u32 %v3016
        %v3019 = vmul.u32.u64.compose %v3015, %v3010
        %v3020 = vextract.low.u32 %v3019
        %v3021 = vextract.high.u32 %v3019
        %v3022 = vmul.u32 %v3015, %v3006
        %v3023 = vadd.s32 %v3018, %v3020
        %vm3024 = vc.u32 %v3018, %v3020
        %v3025 = vadd.s32 %v3021, 1
        %v3026 = vsel %vm3024, %v3025, %v3021
        %v3027 = vadd.s32 %v3022, %v3026
        %v3028 = vadd.s32 %v3027, 536870912
        %v3029 = vshrl.u32 %v3028, 30
        %v3030 = vshll.u32 %v3029, 30
        %v3031 = vsub.s32 %v3027, %v3030
        %vm3032 = vcmp.lt.s32.totalorder %v3031, 0
        %v3033 = vsub.s32 0, %v3031
        %v3034 = vsel %vm3032, %v3033, %v3031
        %v3035 = vclz %v3034
        %v3036 = vsub.s32 %v3035, 2
        %vm3037 = vcmp.gt.s32.totalorder 0, %v3036
        %v3038 = vsel %vm3037, 0, %v3036
        %v3039 = vsub.s32 32, %v3038
        %v3040 = vshll.u32 %v3031, %v3038
        %v3041 = vshrl.u32 %v3023, %v3039
        %v3042 = vor.u32 %v3040, %v3041
        %v3043 = vsub.s32 4294967266, %v3038
        %v3044 = vadd.s32 %v3043, 127
        %v3045 = vshll.u32 %v3044, 23
        %v3046 = vor.u32 4788187, %v3045
        %v3047 = vand.u32 2147483647, %v3046
        %v3049 = vcvt.s32.f32 %v3042
        %v3050 = vmul.f32 %v3049, %v3047
        %v3051 = vxor.u32 %v3050, 2147483648
        %v3052 = vsel %vm2969, %v3051, %v3050
        %v3053 = vsub.s32 4, %v3029
        %v3054 = vsel %vm2969, %v3053, %v3029
        %v3055 = vsel %vm2968, %v2965, %v3052
        %v3056 = vsel %vm2968, 0, %v3054
        %v3057 = vcosq.f32.pop %v3055
        %v3058 = vsinq.f32.pop %v3055
        %vm3059 = vweird.f32 %v2965
        %v3060 = vadd.s32 %v3056, 3
        %v3061 = vand.u32 %v3060, 3
        %vm3062 = vcmp.lt.s32.totalorder %v3061, 2
        %vm3063 = vcmp.eq.s32.totalorder %v3061, 0
        %v3064 = vxor.u32 %v3058, 2147483648
        %v3065 = vsel %vm3063, %v3057, %v3064
        %vm3066 = vcmp.eq.s32.totalorder %v3061, 2
        %v3067 = vxor.u32 %v3057, 2147483648
        %v3068 = vsel %vm3066, %v3067, %v3058
        %v3069 = vsel %vm3062, %v3065, %v3068
        %v3070 = vsel %vm3059, nan, %v3069
        %v3071 = vand.u32 2147483647, %v2966
        %vm3072 = vcmp.le.f32.partialorder %v3071, 0.7853982
        %vm3073 = vcmp.lt.s32.totalorder %v2966, 0
        %v3074 = vand.u32 %v2966, 2139095040
        %v3075 = vshrl.u32 %v3074, 23
        %v3076 = vsub.s32 %v3075, 127
        %v3077 = vand.u32 2147483647, %v2966
        %v3078 = vand.u32 %v3077, 8388607
        %v3079 = vor.u32 %v3078, 8388608
        %v3080 = vsub.s32 0, %v3079
        %v3081 = vadd.s32 %v3076, 1
        %vm3082 = vcmp.gt.s32.totalorder %v3081, 0
        %v3083 = vsel %vm3082, %v3081, 0
        %v3084 = vshrl.u32 %v3083, 5
        %v3085 = vand.u32 %v3083, 31
        %v3086 = vsub.s32 32, %v3085
        %v3087 = vshrl.u32 683565275, %v3086
        %v3088 = vshll.u32 683565275, %v3085
        %v3089 = vshrl.u32 2475754826, %v3086
        %v3090 = vor.u32 %v3088, %v3089
        %v3091 = vshll.u32 2475754826, %v3085
        %v3092 = vshrl.u32 2131351028, %v3086
        %v3093 = vor.u32 %v3091, %v3092
        %v3094 = vshll.u32 2131351028, %v3085
        %v3095 = vshrl.u32 2102212464, %v3086
        %v3096 = vor.u32 %v3094, %v3095
        %v3097 = vshll.u32 2102212464, %v3085
        %v3098 = vshrl.u32 920167782, %v3086
        %v3099 = vor.u32 %v3097, %v3098
        %v3100 = vshll.u32 920167782, %v3085
        %v3101 = vshrl.u32 1326507024, %v3086
        %v3102 = vor.u32 %v3100, %v3101
        %vm3103 = vcmp.lt.s32.totalorder %v3084, 1
        %vm3104 = vcmp.lt.s32.totalorder %v3084, 2
        %vm3105 = vcmp.lt.s32.totalorder %v3084, 3
        %vm3106 = vcmp.lt.s32.totalorder %v3084, 4
        %v3107 = vsel %vm3103, %v3087, %v3090
        %v3108 = vsel %vm3106, %v3096, 2102212464
        %v3109 = vsel %vm3105, %v3093, %v3108
        %v3110 = vsel %vm3104, %v3107, %v3109
        %v3111 = vsel %vm3103, %v3090, %v3093
        %v3112 = vsel %vm3106, %v3099, 920167782
        %v3113 = vsel %vm3105, %v3096, %v3112
        %v3114 = vsel %vm3104, %v3111, %v3113
        %v3115 = vsel %vm3103, %v3093, %v3096
        %v3116 = vsel %vm3106, %v3102, 1326507024
        %v3117 = vsel %vm3105, %v3099, %v3116
        %v3118 = vsel %vm3104, %v3115, %v3117
        %v3119 = vshll.u32 %v3079, 8
        %v3120 = vmul.u32.u64.compose %v3119, %v3118
        %v3121 = vextract.low.u32 %v3120
        %v3122 = vextract.high.u32 %v3120
        %v3123 = vmul.u32.u64.compose %v3119, %v3114
        %v3124 = vextract.low.u32 %v3123
        %v3125 = vextract.high.u32 %v3123
        %v3126 = vmul.u32 %v3119, %v3110
        %v3127 = vadd.s32 %v3122, %v3124
        %vm3128 = vc.u32 %v3122, %v3124
        %v3129 = vadd.s32 %v3125, 1
        %v3130 = vsel %vm3128, %v3129, %v3125
        %v3131 = vadd.s32 %v3126, %v3130
        %v3132 = vadd.s32 %v3131, 536870912
        %v3133 = vshrl.u32 %v3132, 30
        %v3134 = vshll.u32 %v3133, 30
        %v3135 = vsub.s32 %v3131, %v3134
        %vm3136 = vcmp.lt.s32.totalorder %v3135, 0
        %v3137 = vsub.s32 0, %v3135
        %v3138 = vsel %vm3136, %v3137, %v3135
        %v3139 = vclz %v3138
        %v3140 = vsub.s32 %v3139, 2
        %vm3141 = vcmp.gt.s32.totalorder 0, %v3140
        %v3142 = vsel %vm3141, 0, %v3140
        %v3143 = vsub.s32 32, %v3142
        %v3144 = vshll.u32 %v3135, %v3142
        %v3145 = vshrl.u32 %v3127, %v3143
        %v3146 = vor.u32 %v3144, %v3145
        %v3147 = vsub.s32 4294967266, %v3142
        %v3148 = vadd.s32 %v3147, 127
        %v3149 = vshll.u32 %v3148, 23
        %v3150 = vor.u32 4788187, %v3149
        %v3151 = vand.u32 2147483647, %v3150
        %v3153 = vcvt.s32.f32 %v3146
        %v3154 = vmul.f32 %v3153, %v3151
        %v3155 = vxor.u32 %v3154, 2147483648
        %v3156 = vsel %vm3073, %v3155, %v3154
        %v3157 = vsub.s32 4, %v3133
        %v3158 = vsel %vm3073, %v3157, %v3133
        %v3159 = vsel %vm3072, %v2966, %v3156
        %v3160 = vsel %vm3072, 0, %v3158
        %v3161 = vcosq.f32.pop %v3159
        %v3162 = vsinq.f32.pop %v3159
        %vm3163 = vweird.f32 %v2966
        %v3164 = vadd.s32 %v3160, 3
        %v3165 = vand.u32 %v3164, 3
        %vm3166 = vcmp.lt.s32.totalorder %v3165, 2
        %vm3167 = vcmp.eq.s32.totalorder %v3165, 0
        %v3168 = vxor.u32 %v3162, 2147483648
        %v3169 = vsel %vm3167, %v3161, %v3168
        %vm3170 = vcmp.eq.s32.totalorder %v3165, 2
        %v3171 = vxor.u32 %v3161, 2147483648
        %v3172 = vsel %vm3170, %v3171, %v3162
        %v3173 = vsel %vm3166, %v3169, %v3172
        %v3174 = vsel %vm3163, nan, %v3173
        %v3175 = vmul.f32 %v3070, %v3070
        %v3176 = vmul.f32 %v3174, %v3174
        %3178 = vset.pattern.permute.xlu0 0
        %3179 = vperm.xlu0 %3178, %v2953
        %v3180 = vpop.permute.xlu0 %3179
        %3183 = vset.pattern.permute.xlu0 0
        %3184 = vperm.xlu0 %3183, %v2954
        %v3185 = vpop.permute.xlu0 %3184
        %v3187 = vmul.f32 %v3180, %v3175
        %v3188 = vmul.f32 %v3185, %v3176
        %v3189 = vadd.f32 %v2947, %v3187
        %v3190 = vadd.f32 %v2948, %v3188
        %s3191 = scalar_lea.vmem %s21, 16
        %v3192 = vld [vmem:[%s3191] sm:$0xff]
        %v3193 = vld [vmem:[%s3191 + $0x8] sm:$0xff]
        %s3194 = scalar_lea.vmem %s23, 16
        %v3195 = vld [vmem:[%s3194] sm:$0xff]
        %v3196 = vld [vmem:[%s3194 + $0x8] sm:$0xff]
        %3199 = vrot.lane.b32.xlu0 %v3189, 9
        %v3200 = vpop.permute.xlu0 %3199
        %3201 = vrot.lane.b32.xlu0 %v3190, 9
        %v3202 = vpop.permute.xlu0 %3201
        %vm3205 = vcmask 72704
        %v3206 = vsel %vm3205, 0.0, %v3200
        %v3207 = vsel %vm3205, 0.0, %v3202
        %vm3208 = vcmask 334848
        %v3209 = vsel %vm3208, %v3206, 0.0
        %v3210 = vsel %vm3208, %v3207, 0.0
        %3213 = vrot.lane.b32.xlu0 %v3209, 125
        %v3214 = vpop.permute.xlu0 %3213
        %3215 = vrot.lane.b32.xlu0 %v3210, 125
        %v3216 = vpop.permute.xlu0 %3215
        %3219 = vrot.lane.b32.xlu0 %v3209, 122
        %v3220 = vpop.permute.xlu0 %3219
        %3221 = vrot.lane.b32.xlu0 %v3210, 122
        %v3222 = vpop.permute.xlu0 %3221
        %3225 = vrot.lane.b32.xlu0 %v3209, 119
        %v3226 = vpop.permute.xlu0 %3225
        %3227 = vrot.lane.b32.xlu0 %v3210, 119
        %v3228 = vpop.permute.xlu0 %3227
        %3231 = vrot.lane.b32.xlu0 %v3209, 116
        %v3232 = vpop.permute.xlu0 %3231
        %3233 = vrot.lane.b32.xlu0 %v3210, 116
        %v3234 = vpop.permute.xlu0 %3233
        %3237 = vrot.lane.b32.xlu0 %v3209, 113
        %v3238 = vpop.permute.xlu0 %3237
        %3239 = vrot.lane.b32.xlu0 %v3210, 113
        %v3240 = vpop.permute.xlu0 %3239
        %3243 = vrot.lane.b32.xlu0 %v3209, 110
        %v3244 = vpop.permute.xlu0 %3243
        %3245 = vrot.lane.b32.xlu0 %v3210, 110
        %v3246 = vpop.permute.xlu0 %3245
        %3250 = vset.pattern.permute.xlu0 0
        %3251 = vperm.xlu0 %3250, %v3195
        %v3252 = vpop.permute.xlu0 %3251
        %3255 = vset.pattern.permute.xlu0 0
        %3256 = vperm.xlu0 %3255, %v3196
        %v3257 = vpop.permute.xlu0 %3256
        %v3260 = vsel %vm2528, %v3192, 0
        %v3263 = vsel %vm2528, %v3193, 0
        %3265 = vmatprep.subr.mxu0 0.0
        %3266 = vmatpush1.msra.mxu0 %v3209
        %3267 = vmatprep.subr.mxu0 0.0
        %3268 = vmatpush1.msra.mxu0 %v3210
        %3269 = vmatprep.subr.mxu0 0.0
        %3270 = vmatpush1.msra.mxu0 %v3214
        %3271 = vmatprep.subr.mxu0 0.0
        %3272 = vmatpush1.msra.mxu0 %v3216
        %3273 = vmatprep.subr.mxu0 0.0
        %3274 = vmatpush1.msra.mxu0 %v3220
        %3275 = vmatprep.subr.mxu0 0.0
        %3276 = vmatpush1.msra.mxu0 %v3222
        %3277 = vmatprep.subr.mxu0 0.0
        %3278 = vmatpush1.msra.mxu0 %v3226
        %3279 = vmatprep.subr.mxu0 0.0
        %3280 = vmatpush1.msra.mxu0 %v3228
        %3281 = vmatprep.subr.mxu0 0.0
        %3282 = vmatpush1.msra.mxu0 %v3232
        %3283 = vmatprep.subr.mxu0 0.0
        %3284 = vmatpush1.msra.mxu0 %v3234
        %3285 = vmatprep.subr.mxu0 0.0
        %3286 = vmatpush1.msra.mxu0 %v3238
        %3287 = vmatprep.subr.mxu0 0.0
        %3288 = vmatpush1.msra.mxu0 %v3240
        %3289 = vmatprep.subr.mxu0 0.0
        %3290 = vmatpush1.msra.mxu0 %v3244
        %3291 = vmatprep.subr.mxu0 0.0
        %3292 = vmatpush1.msra.mxu0 %v3246
        %3293 = vmatprep.subr.mxu0 0.0
        %3294 = vmatpush1.msra.mxu0 0.0
        %3295 = vmatprep.subr.mxu0 0.0
        %3296 = vmatpush1.msra.mxu0 0.0
        %3297 = vmatprep.subr.mxu0 0.0
        %3298 = vmatpush1.msra.mxu0 0.0
        %3299 = vmatprep.subr.mxu0 0.0
        %3300 = vmatpush1.msra.mxu0 0.0
        %3301 = vmatprep.subr.mxu0 0.0
        %3302 = vmatpush1.msra.mxu0 0.0
        %3303 = vmatprep.subr.mxu0 0.0
        %3304 = vmatpush1.msra.mxu0 0.0
        %3305 = vmatprep.subr.mxu0 0.0
        %3306 = vmatpush1.msra.mxu0 0.0
        %3307 = vmatprep.subr.mxu0 0.0
        %3308 = vmatpush1.msra.mxu0 0.0
        %3309 = vmatprep.subr.mxu0 0.0
        %3310 = vmatpush1.msra.mxu0 0.0
        %3311 = vmatprep.subr.mxu0 0.0
        %3312 = vmatpush1.msra.mxu0 0.0
        %3313 = vmatprep.subr.mxu0 0.0
        %3314 = vmatpush1.msra.mxu0 0.0
        %3315 = vmatprep.subr.mxu0 0.0
        %3316 = vmatpush1.msra.mxu0 0.0
        %3317 = vmatprep.subr.mxu0 0.0
        %3318 = vmatpush1.msra.mxu0 0.0
        %3319 = vmatprep.subr.mxu0 0.0
        %3320 = vmatpush1.msra.mxu0 0.0
        %3321 = vmatprep.subr.mxu0 0.0
        %3322 = vmatpush1.msra.mxu0 0.0
        %3323 = vmatprep.subr.mxu0 0.0
        %3324 = vmatpush1.msra.mxu0 0.0
        %3325 = vmatprep.subr.mxu0 0.0
        %3326 = vmatpush1.msra.mxu0 0.0
        %3327 = vmatprep.subr.mxu0 0.0
        %3328 = vmatpush1.msra.mxu0 0.0
        %3329 = vmatprep.mubr.f32.mxu0 0.0
        %3330 = vmatmul.mubr.f32.gmra.mrb[0].mxu0 %v3260
        %v3331 = vpop.f32.mrb[0].mxu0
        %v3332 = vadd.f32 %v3252, %v3331
        %v3333 = vpop.f32.mrb[0].mxu0
        %3334 = vmatprep.mubr.f32.mxu0 0.0
        %3335 = vmatmul.mubr.f32.gmra.mrb[0].mxu0 %v3263
        %v3336 = vpop.f32.mrb[0].mxu0
        %v3337 = vadd.f32 %v3257, %v3336
        %v3338 = vpop.f32.mrb[0].mxu0
        %3339 = vdwg.mxu0
        %s3340 = scalar_lea.vmem %s17, 48
        %v3341 = vld [vmem:[%s3340] sm:$0xff]
        %v3342 = vld [vmem:[%s3340 + $0x8] sm:$0xff]
        %s3343 = scalar_lea.vmem %s19, 48
        %v3344 = vld [vmem:[%s3343] sm:$0xff]
        %v3345 = vld [vmem:[%s3343 + $0x8] sm:$0xff]
        %3347 = vset.pattern.permute.xlu0 0
        %3348 = vperm.xlu0 %3347, %v3341
        %v3349 = vpop.permute.xlu0 %3348
        %3352 = vset.pattern.permute.xlu0 0
        %3353 = vperm.xlu0 %3352, %v3342
        %v3354 = vpop.permute.xlu0 %3353
        %v3356 = vmul.f32 %v3349, %v3332
        %v3357 = vmul.f32 %v3354, %v3337
        %v3358 = vand.u32 2147483647, %v3356
        %vm3359 = vcmp.le.f32.partialorder %v3358, 0.7853982
        %vm3360 = vcmp.lt.s32.totalorder %v3356, 0
        %v3361 = vand.u32 %v3356, 2139095040
        %v3362 = vshrl.u32 %v3361, 23
        %v3363 = vsub.s32 %v3362, 127
        %v3364 = vand.u32 2147483647, %v3356
        %v3365 = vand.u32 %v3364, 8388607
        %v3366 = vor.u32 %v3365, 8388608
        %v3367 = vsub.s32 0, %v3366
        %v3368 = vadd.s32 %v3363, 1
        %vm3369 = vcmp.gt.s32.totalorder %v3368, 0
        %v3370 = vsel %vm3369, %v3368, 0
        %v3371 = vshrl.u32 %v3370, 5
        %v3372 = vand.u32 %v3370, 31
        %v3373 = vsub.s32 32, %v3372
        %v3374 = vshrl.u32 683565275, %v3373
        %v3375 = vshll.u32 683565275, %v3372
        %v3376 = vshrl.u32 2475754826, %v3373
        %v3377 = vor.u32 %v3375, %v3376
        %v3378 = vshll.u32 2475754826, %v3372
        %v3379 = vshrl.u32 2131351028, %v3373
        %v3380 = vor.u32 %v3378, %v3379
        %v3381 = vshll.u32 2131351028, %v3372
        %v3382 = vshrl.u32 2102212464, %v3373
        %v3383 = vor.u32 %v3381, %v3382
        %v3384 = vshll.u32 2102212464, %v3372
        %v3385 = vshrl.u32 920167782, %v3373
        %v3386 = vor.u32 %v3384, %v3385
        %v3387 = vshll.u32 920167782, %v3372
        %v3388 = vshrl.u32 1326507024, %v3373
        %v3389 = vor.u32 %v3387, %v3388
        %vm3390 = vcmp.lt.s32.totalorder %v3371, 1
        %vm3391 = vcmp.lt.s32.totalorder %v3371, 2
        %vm3392 = vcmp.lt.s32.totalorder %v3371, 3
        %vm3393 = vcmp.lt.s32.totalorder %v3371, 4
        %v3394 = vsel %vm3390, %v3374, %v3377
        %v3395 = vsel %vm3393, %v3383, 2102212464
        %v3396 = vsel %vm3392, %v3380, %v3395
        %v3397 = vsel %vm3391, %v3394, %v3396
        %v3398 = vsel %vm3390, %v3377, %v3380
        %v3399 = vsel %vm3393, %v3386, 920167782
        %v3400 = vsel %vm3392, %v3383, %v3399
        %v3401 = vsel %vm3391, %v3398, %v3400
        %v3402 = vsel %vm3390, %v3380, %v3383
        %v3403 = vsel %vm3393, %v3389, 1326507024
        %v3404 = vsel %vm3392, %v3386, %v3403
        %v3405 = vsel %vm3391, %v3402, %v3404
        %v3406 = vshll.u32 %v3366, 8
        %v3407 = vmul.u32.u64.compose %v3406, %v3405
        %v3408 = vextract.low.u32 %v3407
        %v3409 = vextract.high.u32 %v3407
        %v3410 = vmul.u32.u64.compose %v3406, %v3401
        %v3411 = vextract.low.u32 %v3410
        %v3412 = vextract.high.u32 %v3410
        %v3413 = vmul.u32 %v3406, %v3397
        %v3414 = vadd.s32 %v3409, %v3411
        %vm3415 = vc.u32 %v3409, %v3411
        %v3416 = vadd.s32 %v3412, 1
        %v3417 = vsel %vm3415, %v3416, %v3412
        %v3418 = vadd.s32 %v3413, %v3417
        %v3419 = vadd.s32 %v3418, 536870912
        %v3420 = vshrl.u32 %v3419, 30
        %v3421 = vshll.u32 %v3420, 30
        %v3422 = vsub.s32 %v3418, %v3421
        %vm3423 = vcmp.lt.s32.totalorder %v3422, 0
        %v3424 = vsub.s32 0, %v3422
        %v3425 = vsel %vm3423, %v3424, %v3422
        %v3426 = vclz %v3425
        %v3427 = vsub.s32 %v3426, 2
        %vm3428 = vcmp.gt.s32.totalorder 0, %v3427
        %v3429 = vsel %vm3428, 0, %v3427
        %v3430 = vsub.s32 32, %v3429
        %v3431 = vshll.u32 %v3422, %v3429
        %v3432 = vshrl.u32 %v3414, %v3430
        %v3433 = vor.u32 %v3431, %v3432
        %v3434 = vsub.s32 4294967266, %v3429
        %v3435 = vadd.s32 %v3434, 127
        %v3436 = vshll.u32 %v3435, 23
        %v3437 = vor.u32 4788187, %v3436
        %v3438 = vand.u32 2147483647, %v3437
        %v3440 = vcvt.s32.f32 %v3433
        %v3441 = vmul.f32 %v3440, %v3438
        %v3442 = vxor.u32 %v3441, 2147483648
        %v3443 = vsel %vm3360, %v3442, %v3441
        %v3444 = vsub.s32 4, %v3420
        %v3445 = vsel %vm3360, %v3444, %v3420
        %v3446 = vsel %vm3359, %v3356, %v3443
        %v3447 = vsel %vm3359, 0, %v3445
        %v3448 = vcosq.f32.pop %v3446
        %v3449 = vsinq.f32.pop %v3446
        %vm3450 = vweird.f32 %v3356
        %v3451 = vadd.s32 %v3447, 3
        %v3452 = vand.u32 %v3451, 3
        %vm3453 = vcmp.lt.s32.totalorder %v3452, 2
        %vm3454 = vcmp.eq.s32.totalorder %v3452, 0
        %v3455 = vxor.u32 %v3449, 2147483648
        %v3456 = vsel %vm3454, %v3448, %v3455
        %vm3457 = vcmp.eq.s32.totalorder %v3452, 2
        %v3458 = vxor.u32 %v3448, 2147483648
        %v3459 = vsel %vm3457, %v3458, %v3449
        %v3460 = vsel %vm3453, %v3456, %v3459
        %v3461 = vsel %vm3450, nan, %v3460
        %v3462 = vand.u32 2147483647, %v3357
        %vm3463 = vcmp.le.f32.partialorder %v3462, 0.7853982
        %vm3464 = vcmp.lt.s32.totalorder %v3357, 0
        %v3465 = vand.u32 %v3357, 2139095040
        %v3466 = vshrl.u32 %v3465, 23
        %v3467 = vsub.s32 %v3466, 127
        %v3468 = vand.u32 2147483647, %v3357
        %v3469 = vand.u32 %v3468, 8388607
        %v3470 = vor.u32 %v3469, 8388608
        %v3471 = vsub.s32 0, %v3470
        %v3472 = vadd.s32 %v3467, 1
        %vm3473 = vcmp.gt.s32.totalorder %v3472, 0
        %v3474 = vsel %vm3473, %v3472, 0
        %v3475 = vshrl.u32 %v3474, 5
        %v3476 = vand.u32 %v3474, 31
        %v3477 = vsub.s32 32, %v3476
        %v3478 = vshrl.u32 683565275, %v3477
        %v3479 = vshll.u32 683565275, %v3476
        %v3480 = vshrl.u32 2475754826, %v3477
        %v3481 = vor.u32 %v3479, %v3480
        %v3482 = vshll.u32 2475754826, %v3476
        %v3483 = vshrl.u32 2131351028, %v3477
        %v3484 = vor.u32 %v3482, %v3483
        %v3485 = vshll.u32 2131351028, %v3476
        %v3486 = vshrl.u32 2102212464, %v3477
        %v3487 = vor.u32 %v3485, %v3486
        %v3488 = vshll.u32 2102212464, %v3476
        %v3489 = vshrl.u32 920167782, %v3477
        %v3490 = vor.u32 %v3488, %v3489
        %v3491 = vshll.u32 920167782, %v3476
        %v3492 = vshrl.u32 1326507024, %v3477
        %v3493 = vor.u32 %v3491, %v3492
        %vm3494 = vcmp.lt.s32.totalorder %v3475, 1
        %vm3495 = vcmp.lt.s32.totalorder %v3475, 2
        %vm3496 = vcmp.lt.s32.totalorder %v3475, 3
        %vm3497 = vcmp.lt.s32.totalorder %v3475, 4
        %v3498 = vsel %vm3494, %v3478, %v3481
        %v3499 = vsel %vm3497, %v3487, 2102212464
        %v3500 = vsel %vm3496, %v3484, %v3499
        %v3501 = vsel %vm3495, %v3498, %v3500
        %v3502 = vsel %vm3494, %v3481, %v3484
        %v3503 = vsel %vm3497, %v3490, 920167782
        %v3504 = vsel %vm3496, %v3487, %v3503
        %v3505 = vsel %vm3495, %v3502, %v3504
        %v3506 = vsel %vm3494, %v3484, %v3487
        %v3507 = vsel %vm3497, %v3493, 1326507024
        %v3508 = vsel %vm3496, %v3490, %v3507
        %v3509 = vsel %vm3495, %v3506, %v3508
        %v3510 = vshll.u32 %v3470, 8
        %v3511 = vmul.u32.u64.compose %v3510, %v3509
        %v3512 = vextract.low.u32 %v3511
        %v3513 = vextract.high.u32 %v3511
        %v3514 = vmul.u32.u64.compose %v3510, %v3505
        %v3515 = vextract.low.u32 %v3514
        %v3516 = vextract.high.u32 %v3514
        %v3517 = vmul.u32 %v3510, %v3501
        %v3518 = vadd.s32 %v3513, %v3515
        %vm3519 = vc.u32 %v3513, %v3515
        %v3520 = vadd.s32 %v3516, 1
        %v3521 = vsel %vm3519, %v3520, %v3516
        %v3522 = vadd.s32 %v3517, %v3521
        %v3523 = vadd.s32 %v3522, 536870912
        %v3524 = vshrl.u32 %v3523, 30
        %v3525 = vshll.u32 %v3524, 30
        %v3526 = vsub.s32 %v3522, %v3525
        %vm3527 = vcmp.lt.s32.totalorder %v3526, 0
        %v3528 = vsub.s32 0, %v3526
        %v3529 = vsel %vm3527, %v3528, %v3526
        %v3530 = vclz %v3529
        %v3531 = vsub.s32 %v3530, 2
        %vm3532 = vcmp.gt.s32.totalorder 0, %v3531
        %v3533 = vsel %vm3532, 0, %v3531
        %v3534 = vsub.s32 32, %v3533
        %v3535 = vshll.u32 %v3526, %v3533
        %v3536 = vshrl.u32 %v3518, %v3534
        %v3537 = vor.u32 %v3535, %v3536
        %v3538 = vsub.s32 4294967266, %v3533
        %v3539 = vadd.s32 %v3538, 127
        %v3540 = vshll.u32 %v3539, 23
        %v3541 = vor.u32 4788187, %v3540
        %v3542 = vand.u32 2147483647, %v3541
        %v3544 = vcvt.s32.f32 %v3537
        %v3545 = vmul.f32 %v3544, %v3542
        %v3546 = vxor.u32 %v3545, 2147483648
        %v3547 = vsel %vm3464, %v3546, %v3545
        %v3548 = vsub.s32 4, %v3524
        %v3549 = vsel %vm3464, %v3548, %v3524
        %v3550 = vsel %vm3463, %v3357, %v3547
        %v3551 = vsel %vm3463, 0, %v3549
        %v3552 = vcosq.f32.pop %v3550
        %v3553 = vsinq.f32.pop %v3550
        %vm3554 = vweird.f32 %v3357
        %v3555 = vadd.s32 %v3551, 3
        %v3556 = vand.u32 %v3555, 3
        %vm3557 = vcmp.lt.s32.totalorder %v3556, 2
        %vm3558 = vcmp.eq.s32.totalorder %v3556, 0
        %v3559 = vxor.u32 %v3553, 2147483648
        %v3560 = vsel %vm3558, %v3552, %v3559
        %vm3561 = vcmp.eq.s32.totalorder %v3556, 2
        %v3562 = vxor.u32 %v3552, 2147483648
        %v3563 = vsel %vm3561, %v3562, %v3553
        %v3564 = vsel %vm3557, %v3560, %v3563
        %v3565 = vsel %vm3554, nan, %v3564
        %v3566 = vmul.f32 %v3461, %v3461
        %v3567 = vmul.f32 %v3565, %v3565
        %3569 = vset.pattern.permute.xlu0 0
        %3570 = vperm.xlu0 %3569, %v3344
        %v3571 = vpop.permute.xlu0 %3570
        %3574 = vset.pattern.permute.xlu0 0
        %3575 = vperm.xlu0 %3574, %v3345
        %v3576 = vpop.permute.xlu0 %3575
        %v3578 = vmul.f32 %v3571, %v3566
        %v3579 = vmul.f32 %v3576, %v3567
        %v3580 = vadd.f32 %v3332, %v3578
        %v3581 = vadd.f32 %v3337, %v3579
        %s3582 = scalar_lea.vmem %s25, 16
        %v3583 = vld [vmem:[%s3582] sm:$0xff]
        %v3584 = vld [vmem:[%s3582 + $0x8] sm:$0xff]
        %s3585 = scalar_lea.vmem %s27, 16
        %v3586 = vld [vmem:[%s3585] sm:$0xff]
        %v3587 = vld [vmem:[%s3585 + $0x8] sm:$0xff]
        %3589 = vset.pattern.permute.xlu0 0
        %3590 = vperm.xlu0 %3589, %v3586
        %v3591 = vpop.permute.xlu0 %3590
        %3594 = vset.pattern.permute.xlu0 0
        %3595 = vperm.xlu0 %3594, %v3587
        %v3596 = vpop.permute.xlu0 %3595
        %v3599 = vsel %vm1708, %v3583, 0
        %v3602 = vsel %vm1708, %v3584, 0
        %3604 = vmatprep.subr.mxu0 0.0
        %3605 = vmatpush1.msra.mxu0 %v3580
        %3606 = vmatprep.subr.mxu0 0.0
        %3607 = vmatpush1.msra.mxu0 %v3581
        %3608 = vmatprep.subr.mxu0 0.0
        %3609 = vmatpush1.msra.mxu0 0.0
        %3610 = vmatprep.subr.mxu0 0.0
        %3611 = vmatpush1.msra.mxu0 0.0
        %3612 = vmatprep.subr.mxu0 0.0
        %3613 = vmatpush1.msra.mxu0 0.0
        %3614 = vmatprep.subr.mxu0 0.0
        %3615 = vmatpush1.msra.mxu0 0.0
        %3616 = vmatprep.subr.mxu0 0.0
        %3617 = vmatpush1.msra.mxu0 0.0
        %3618 = vmatprep.subr.mxu0 0.0
        %3619 = vmatpush1.msra.mxu0 0.0
        %3620 = vmatprep.subr.mxu0 0.0
        %3621 = vmatpush1.msra.mxu0 0.0
        %3622 = vmatprep.subr.mxu0 0.0
        %3623 = vmatpush1.msra.mxu0 0.0
        %3624 = vmatprep.subr.mxu0 0.0
        %3625 = vmatpush1.msra.mxu0 0.0
        %3626 = vmatprep.subr.mxu0 0.0
        %3627 = vmatpush1.msra.mxu0 0.0
        %3628 = vmatprep.subr.mxu0 0.0
        %3629 = vmatpush1.msra.mxu0 0.0
        %3630 = vmatprep.subr.mxu0 0.0
        %3631 = vmatpush1.msra.mxu0 0.0
        %3632 = vmatprep.subr.mxu0 0.0
        %3633 = vmatpush1.msra.mxu0 0.0
        %3634 = vmatprep.subr.mxu0 0.0
        %3635 = vmatpush1.msra.mxu0 0.0
        %3636 = vmatprep.subr.mxu0 0.0
        %3637 = vmatpush1.msra.mxu0 0.0
        %3638 = vmatprep.subr.mxu0 0.0
        %3639 = vmatpush1.msra.mxu0 0.0
        %3640 = vmatprep.subr.mxu0 0.0
        %3641 = vmatpush1.msra.mxu0 0.0
        %3642 = vmatprep.subr.mxu0 0.0
        %3643 = vmatpush1.msra.mxu0 0.0
        %3644 = vmatprep.subr.mxu0 0.0
        %3645 = vmatpush1.msra.mxu0 0.0
        %3646 = vmatprep.subr.mxu0 0.0
        %3647 = vmatpush1.msra.mxu0 0.0
        %3648 = vmatprep.subr.mxu0 0.0
        %3649 = vmatpush1.msra.mxu0 0.0
        %3650 = vmatprep.subr.mxu0 0.0
        %3651 = vmatpush1.msra.mxu0 0.0
        %3652 = vmatprep.subr.mxu0 0.0
        %3653 = vmatpush1.msra.mxu0 0.0
        %3654 = vmatprep.subr.mxu0 0.0
        %3655 = vmatpush1.msra.mxu0 0.0
        %3656 = vmatprep.subr.mxu0 0.0
        %3657 = vmatpush1.msra.mxu0 0.0
        %3658 = vmatprep.subr.mxu0 0.0
        %3659 = vmatpush1.msra.mxu0 0.0
        %3660 = vmatprep.subr.mxu0 0.0
        %3661 = vmatpush1.msra.mxu0 0.0
        %3662 = vmatprep.subr.mxu0 0.0
        %3663 = vmatpush1.msra.mxu0 0.0
        %3664 = vmatprep.subr.mxu0 0.0
        %3665 = vmatpush1.msra.mxu0 0.0
        %3666 = vmatprep.subr.mxu0 0.0
        %3667 = vmatpush1.msra.mxu0 0.0
        %3668 = vmatprep.mubr.f32.mxu0 0.0
        %3669 = vmatmul.mubr.f32.gmra.mrb[0].mxu0 %v3599
        %v3670 = vpop.f32.mrb[0].mxu0
        %v3671 = vadd.f32 %v3591, %v3670
        %v3672 = vpop.f32.mrb[0].mxu0
        %3673 = vmatprep.mubr.f32.mxu0 0.0
        %3674 = vmatmul.mubr.f32.gmra.mrb[0].mxu0 %v3602
        %v3675 = vpop.f32.mrb[0].mxu0
        %v3676 = vadd.f32 %v3596, %v3675
        %v3677 = vpop.f32.mrb[0].mxu0
        %3678 = vdwg.mxu0
        %v3679 = vadd.f32 %v2947, %v3671
        %v3680 = vadd.f32 %v2948, %v3676
        %s3681 = scalar_lea.vmem %s17, 64
        %v3682 = vld [vmem:[%s3681] sm:$0xff]
        %v3683 = vld [vmem:[%s3681 + $0x8] sm:$0xff]
        %s3684 = scalar_lea.vmem %s19, 64
        %v3685 = vld [vmem:[%s3684] sm:$0xff]
        %v3686 = vld [vmem:[%s3684 + $0x8] sm:$0xff]
        %3688 = vset.pattern.permute.xlu0 0
        %3689 = vperm.xlu0 %3688, %v3682
        %v3690 = vpop.permute.xlu0 %3689
        %3693 = vset.pattern.permute.xlu0 0
        %3694 = vperm.xlu0 %3693, %v3683
        %v3695 = vpop.permute.xlu0 %3694
        %v3697 = vmul.f32 %v3690, %v3679
        %v3698 = vmul.f32 %v3695, %v3680
        %v3699 = vand.u32 2147483647, %v3697
        %vm3700 = vcmp.le.f32.partialorder %v3699, 0.7853982
        %vm3701 = vcmp.lt.s32.totalorder %v3697, 0
        %v3702 = vand.u32 %v3697, 2139095040
        %v3703 = vshrl.u32 %v3702, 23
        %v3704 = vsub.s32 %v3703, 127
        %v3705 = vand.u32 2147483647, %v3697
        %v3706 = vand.u32 %v3705, 8388607
        %v3707 = vor.u32 %v3706, 8388608
        %v3708 = vsub.s32 0, %v3707
        %v3709 = vadd.s32 %v3704, 1
        %vm3710 = vcmp.gt.s32.totalorder %v3709, 0
        %v3711 = vsel %vm3710, %v3709, 0
        %v3712 = vshrl.u32 %v3711, 5
        %v3713 = vand.u32 %v3711, 31
        %v3714 = vsub.s32 32, %v3713
        %v3715 = vshrl.u32 683565275, %v3714
        %v3716 = vshll.u32 683565275, %v3713
        %v3717 = vshrl.u32 2475754826, %v3714
        %v3718 = vor.u32 %v3716, %v3717
        %v3719 = vshll.u32 2475754826, %v3713
        %v3720 = vshrl.u32 2131351028, %v3714
        %v3721 = vor.u32 %v3719, %v3720
        %v3722 = vshll.u32 2131351028, %v3713
        %v3723 = vshrl.u32 2102212464, %v3714
        %v3724 = vor.u32 %v3722, %v3723
        %v3725 = vshll.u32 2102212464, %v3713
        %v3726 = vshrl.u32 920167782, %v3714
        %v3727 = vor.u32 %v3725, %v3726
        %v3728 = vshll.u32 920167782, %v3713
        %v3729 = vshrl.u32 1326507024, %v3714
        %v3730 = vor.u32 %v3728, %v3729
        %vm3731 = vcmp.lt.s32.totalorder %v3712, 1
        %vm3732 = vcmp.lt.s32.totalorder %v3712, 2
        %vm3733 = vcmp.lt.s32.totalorder %v3712, 3
        %vm3734 = vcmp.lt.s32.totalorder %v3712, 4
        %v3735 = vsel %vm3731, %v3715, %v3718
        %v3736 = vsel %vm3734, %v3724, 2102212464
        %v3737 = vsel %vm3733, %v3721, %v3736
        %v3738 = vsel %vm3732, %v3735, %v3737
        %v3739 = vsel %vm3731, %v3718, %v3721
        %v3740 = vsel %vm3734, %v3727, 920167782
        %v3741 = vsel %vm3733, %v3724, %v3740
        %v3742 = vsel %vm3732, %v3739, %v3741
        %v3743 = vsel %vm3731, %v3721, %v3724
        %v3744 = vsel %vm3734, %v3730, 1326507024
        %v3745 = vsel %vm3733, %v3727, %v3744
        %v3746 = vsel %vm3732, %v3743, %v3745
        %v3747 = vshll.u32 %v3707, 8
        %v3748 = vmul.u32.u64.compose %v3747, %v3746
        %v3749 = vextract.low.u32 %v3748
        %v3750 = vextract.high.u32 %v3748
        %v3751 = vmul.u32.u64.compose %v3747, %v3742
        %v3752 = vextract.low.u32 %v3751
        %v3753 = vextract.high.u32 %v3751
        %v3754 = vmul.u32 %v3747, %v3738
        %v3755 = vadd.s32 %v3750, %v3752
        %vm3756 = vc.u32 %v3750, %v3752
        %v3757 = vadd.s32 %v3753, 1
        %v3758 = vsel %vm3756, %v3757, %v3753
        %v3759 = vadd.s32 %v3754, %v3758
        %v3760 = vadd.s32 %v3759, 536870912
        %v3761 = vshrl.u32 %v3760, 30
        %v3762 = vshll.u32 %v3761, 30
        %v3763 = vsub.s32 %v3759, %v3762
        %vm3764 = vcmp.lt.s32.totalorder %v3763, 0
        %v3765 = vsub.s32 0, %v3763
        %v3766 = vsel %vm3764, %v3765, %v3763
        %v3767 = vclz %v3766
        %v3768 = vsub.s32 %v3767, 2
        %vm3769 = vcmp.gt.s32.totalorder 0, %v3768
        %v3770 = vsel %vm3769, 0, %v3768
        %v3771 = vsub.s32 32, %v3770
        %v3772 = vshll.u32 %v3763, %v3770
        %v3773 = vshrl.u32 %v3755, %v3771
        %v3774 = vor.u32 %v3772, %v3773
        %v3775 = vsub.s32 4294967266, %v3770
        %v3776 = vadd.s32 %v3775, 127
        %v3777 = vshll.u32 %v3776, 23
        %v3778 = vor.u32 4788187, %v3777
        %v3779 = vand.u32 2147483647, %v3778
        %v3781 = vcvt.s32.f32 %v3774
        %v3782 = vmul.f32 %v3781, %v3779
        %v3783 = vxor.u32 %v3782, 2147483648
        %v3784 = vsel %vm3701, %v3783, %v3782
        %v3785 = vsub.s32 4, %v3761
        %v3786 = vsel %vm3701, %v3785, %v3761
        %v3787 = vsel %vm3700, %v3697, %v3784
        %v3788 = vsel %vm3700, 0, %v3786
        %v3789 = vcosq.f32.pop %v3787
        %v3790 = vsinq.f32.pop %v3787
        %vm3791 = vweird.f32 %v3697
        %v3792 = vadd.s32 %v3788, 3
        %v3793 = vand.u32 %v3792, 3
        %vm3794 = vcmp.lt.s32.totalorder %v3793, 2
        %vm3795 = vcmp.eq.s32.totalorder %v3793, 0
        %v3796 = vxor.u32 %v3790, 2147483648
        %v3797 = vsel %vm3795, %v3789, %v3796
        %vm3798 = vcmp.eq.s32.totalorder %v3793, 2
        %v3799 = vxor.u32 %v3789, 2147483648
        %v3800 = vsel %vm3798, %v3799, %v3790
        %v3801 = vsel %vm3794, %v3797, %v3800
        %v3802 = vsel %vm3791, nan, %v3801
        %v3803 = vand.u32 2147483647, %v3698
        %vm3804 = vcmp.le.f32.partialorder %v3803, 0.7853982
        %vm3805 = vcmp.lt.s32.totalorder %v3698, 0
        %v3806 = vand.u32 %v3698, 2139095040
        %v3807 = vshrl.u32 %v3806, 23
        %v3808 = vsub.s32 %v3807, 127
        %v3809 = vand.u32 2147483647, %v3698
        %v3810 = vand.u32 %v3809, 8388607
        %v3811 = vor.u32 %v3810, 8388608
        %v3812 = vsub.s32 0, %v3811
        %v3813 = vadd.s32 %v3808, 1
        %vm3814 = vcmp.gt.s32.totalorder %v3813, 0
        %v3815 = vsel %vm3814, %v3813, 0
        %v3816 = vshrl.u32 %v3815, 5
        %v3817 = vand.u32 %v3815, 31
        %v3818 = vsub.s32 32, %v3817
        %v3819 = vshrl.u32 683565275, %v3818
        %v3820 = vshll.u32 683565275, %v3817
        %v3821 = vshrl.u32 2475754826, %v3818
        %v3822 = vor.u32 %v3820, %v3821
        %v3823 = vshll.u32 2475754826, %v3817
        %v3824 = vshrl.u32 2131351028, %v3818
        %v3825 = vor.u32 %v3823, %v3824
        %v3826 = vshll.u32 2131351028, %v3817
        %v3827 = vshrl.u32 2102212464, %v3818
        %v3828 = vor.u32 %v3826, %v3827
        %v3829 = vshll.u32 2102212464, %v3817
        %v3830 = vshrl.u32 920167782, %v3818
        %v3831 = vor.u32 %v3829, %v3830
        %v3832 = vshll.u32 920167782, %v3817
        %v3833 = vshrl.u32 1326507024, %v3818
        %v3834 = vor.u32 %v3832, %v3833
        %vm3835 = vcmp.lt.s32.totalorder %v3816, 1
        %vm3836 = vcmp.lt.s32.totalorder %v3816, 2
        %vm3837 = vcmp.lt.s32.totalorder %v3816, 3
        %vm3838 = vcmp.lt.s32.totalorder %v3816, 4
        %v3839 = vsel %vm3835, %v3819, %v3822
        %v3840 = vsel %vm3838, %v3828, 2102212464
        %v3841 = vsel %vm3837, %v3825, %v3840
        %v3842 = vsel %vm3836, %v3839, %v3841
        %v3843 = vsel %vm3835, %v3822, %v3825
        %v3844 = vsel %vm3838, %v3831, 920167782
        %v3845 = vsel %vm3837, %v3828, %v3844
        %v3846 = vsel %vm3836, %v3843, %v3845
        %v3847 = vsel %vm3835, %v3825, %v3828
        %v3848 = vsel %vm3838, %v3834, 1326507024
        %v3849 = vsel %vm3837, %v3831, %v3848
        %v3850 = vsel %vm3836, %v3847, %v3849
        %v3851 = vshll.u32 %v3811, 8
        %v3852 = vmul.u32.u64.compose %v3851, %v3850
        %v3853 = vextract.low.u32 %v3852
        %v3854 = vextract.high.u32 %v3852
        %v3855 = vmul.u32.u64.compose %v3851, %v3846
        %v3856 = vextract.low.u32 %v3855
        %v3857 = vextract.high.u32 %v3855
        %v3858 = vmul.u32 %v3851, %v3842
        %v3859 = vadd.s32 %v3854, %v3856
        %vm3860 = vc.u32 %v3854, %v3856
        %v3861 = vadd.s32 %v3857, 1
        %v3862 = vsel %vm3860, %v3861, %v3857
        %v3863 = vadd.s32 %v3858, %v3862
        %v3864 = vadd.s32 %v3863, 536870912
        %v3865 = vshrl.u32 %v3864, 30
        %v3866 = vshll.u32 %v3865, 30
        %v3867 = vsub.s32 %v3863, %v3866
        %vm3868 = vcmp.lt.s32.totalorder %v3867, 0
        %v3869 = vsub.s32 0, %v3867
        %v3870 = vsel %vm3868, %v3869, %v3867
        %v3871 = vclz %v3870
        %v3872 = vsub.s32 %v3871, 2
        %vm3873 = vcmp.gt.s32.totalorder 0, %v3872
        %v3874 = vsel %vm3873, 0, %v3872
        %v3875 = vsub.s32 32, %v3874
        %v3876 = vshll.u32 %v3867, %v3874
        %v3877 = vshrl.u32 %v3859, %v3875
        %v3878 = vor.u32 %v3876, %v3877
        %v3879 = vsub.s32 4294967266, %v3874
        %v3880 = vadd.s32 %v3879, 127
        %v3881 = vshll.u32 %v3880, 23
        %v3882 = vor.u32 4788187, %v3881
        %v3883 = vand.u32 2147483647, %v3882
        %v3885 = vcvt.s32.f32 %v3878
        %v3886 = vmul.f32 %v3885, %v3883
        %v3887 = vxor.u32 %v3886, 2147483648
        %v3888 = vsel %vm3805, %v3887, %v3886
        %v3889 = vsub.s32 4, %v3865
        %v3890 = vsel %vm3805, %v3889, %v3865
        %v3891 = vsel %vm3804, %v3698, %v3888
        %v3892 = vsel %vm3804, 0, %v3890
        %v3893 = vcosq.f32.pop %v3891
        %v3894 = vsinq.f32.pop %v3891
        %vm3895 = vweird.f32 %v3698
        %v3896 = vadd.s32 %v3892, 3
        %v3897 = vand.u32 %v3896, 3
        %vm3898 = vcmp.lt.s32.totalorder %v3897, 2
        %vm3899 = vcmp.eq.s32.totalorder %v3897, 0
        %v3900 = vxor.u32 %v3894, 2147483648
        %v3901 = vsel %vm3899, %v3893, %v3900
        %vm3902 = vcmp.eq.s32.totalorder %v3897, 2
        %v3903 = vxor.u32 %v3893, 2147483648
        %v3904 = vsel %vm3902, %v3903, %v3894
        %v3905 = vsel %vm3898, %v3901, %v3904
        %v3906 = vsel %vm3895, nan, %v3905
        %v3907 = vmul.f32 %v3802, %v3802
        %v3908 = vmul.f32 %v3906, %v3906
        %3910 = vset.pattern.permute.xlu0 0
        %3911 = vperm.xlu0 %3910, %v3685
        %v3912 = vpop.permute.xlu0 %3911
        %3915 = vset.pattern.permute.xlu0 0
        %3916 = vperm.xlu0 %3915, %v3686
        %v3917 = vpop.permute.xlu0 %3916
        %v3919 = vmul.f32 %v3912, %v3907
        %v3920 = vmul.f32 %v3917, %v3908
        %v3921 = vadd.f32 %v3679, %v3919
        %v3922 = vadd.f32 %v3680, %v3920
        %s3923 = scalar_lea.vmem %s21, 32
        %v3924 = vld [vmem:[%s3923] sm:$0xff]
        %v3925 = vld [vmem:[%s3923 + $0x8] sm:$0xff]
        %s3926 = scalar_lea.vmem %s23, 32
        %v3927 = vld [vmem:[%s3926] sm:$0xff]
        %v3928 = vld [vmem:[%s3926 + $0x8] sm:$0xff]
        %3931 = vrot.lane.b32.xlu0 %v3921, 27
        %v3932 = vpop.permute.xlu0 %3931
        %3933 = vrot.lane.b32.xlu0 %v3922, 27
        %v3934 = vpop.permute.xlu0 %3933
        %vm3937 = vcmask 220160
        %v3938 = vsel %vm3937, 0.0, %v3932
        %v3939 = vsel %vm3937, 0.0, %v3934
        %vm3940 = vcmask 482304
        %v3941 = vsel %vm3940, %v3938, 0.0
        %v3942 = vsel %vm3940, %v3939, 0.0
        %3945 = vrot.lane.b32.xlu0 %v3941, 119
        %v3946 = vpop.permute.xlu0 %3945
        %3947 = vrot.lane.b32.xlu0 %v3942, 119
        %v3948 = vpop.permute.xlu0 %3947
        %3951 = vrot.lane.b32.xlu0 %v3941, 110
        %v3952 = vpop.permute.xlu0 %3951
        %3953 = vrot.lane.b32.xlu0 %v3942, 110
        %v3954 = vpop.permute.xlu0 %3953
        %3957 = vrot.lane.b32.xlu0 %v3941, 101
        %v3958 = vpop.permute.xlu0 %3957
        %3959 = vrot.lane.b32.xlu0 %v3942, 101
        %v3960 = vpop.permute.xlu0 %3959
        %3963 = vrot.lane.b32.xlu0 %v3941, 92
        %v3964 = vpop.permute.xlu0 %3963
        %3965 = vrot.lane.b32.xlu0 %v3942, 92
        %v3966 = vpop.permute.xlu0 %3965
        %3969 = vrot.lane.b32.xlu0 %v3941, 83
        %v3970 = vpop.permute.xlu0 %3969
        %3971 = vrot.lane.b32.xlu0 %v3942, 83
        %v3972 = vpop.permute.xlu0 %3971
        %3975 = vrot.lane.b32.xlu0 %v3941, 74
        %v3976 = vpop.permute.xlu0 %3975
        %3977 = vrot.lane.b32.xlu0 %v3942, 74
        %v3978 = vpop.permute.xlu0 %3977
        %3982 = vset.pattern.permute.xlu0 0
        %3983 = vperm.xlu0 %3982, %v3927
        %v3984 = vpop.permute.xlu0 %3983
        %3987 = vset.pattern.permute.xlu0 0
        %3988 = vperm.xlu0 %3987, %v3928
        %v3989 = vpop.permute.xlu0 %3988
        %v3992 = vsel %vm2528, %v3924, 0
        %v3995 = vsel %vm2528, %v3925, 0
        %3997 = vmatprep.subr.mxu0 0.0
        %3998 = vmatpush1.msra.mxu0 %v3941
        %3999 = vmatprep.subr.mxu0 0.0
        %4000 = vmatpush1.msra.mxu0 %v3942
        %4001 = vmatprep.subr.mxu0 0.0
        %4002 = vmatpush1.msra.mxu0 %v3946
        %4003 = vmatprep.subr.mxu0 0.0
        %4004 = vmatpush1.msra.mxu0 %v3948
        %4005 = vmatprep.subr.mxu0 0.0
        %4006 = vmatpush1.msra.mxu0 %v3952
        %4007 = vmatprep.subr.mxu0 0.0
        %4008 = vmatpush1.msra.mxu0 %v3954
        %4009 = vmatprep.subr.mxu0 0.0
        %4010 = vmatpush1.msra.mxu0 %v3958
        %4011 = vmatprep.subr.mxu0 0.0
        %4012 = vmatpush1.msra.mxu0 %v3960
        %4013 = vmatprep.subr.mxu0 0.0
        %4014 = vmatpush1.msra.mxu0 %v3964
        %4015 = vmatprep.subr.mxu0 0.0
        %4016 = vmatpush1.msra.mxu0 %v3966
        %4017 = vmatprep.subr.mxu0 0.0
        %4018 = vmatpush1.msra.mxu0 %v3970
        %4019 = vmatprep.subr.mxu0 0.0
        %4020 = vmatpush1.msra.mxu0 %v3972
        %4021 = vmatprep.subr.mxu0 0.0
        %4022 = vmatpush1.msra.mxu0 %v3976
        %4023 = vmatprep.subr.mxu0 0.0
        %4024 = vmatpush1.msra.mxu0 %v3978
        %4025 = vmatprep.subr.mxu0 0.0
        %4026 = vmatpush1.msra.mxu0 0.0
        %4027 = vmatprep.subr.mxu0 0.0
        %4028 = vmatpush1.msra.mxu0 0.0
        %4029 = vmatprep.subr.mxu0 0.0
        %4030 = vmatpush1.msra.mxu0 0.0
        %4031 = vmatprep.subr.mxu0 0.0
        %4032 = vmatpush1.msra.mxu0 0.0
        %4033 = vmatprep.subr.mxu0 0.0
        %4034 = vmatpush1.msra.mxu0 0.0
        %4035 = vmatprep.subr.mxu0 0.0
        %4036 = vmatpush1.msra.mxu0 0.0
        %4037 = vmatprep.subr.mxu0 0.0
        %4038 = vmatpush1.msra.mxu0 0.0
        %4039 = vmatprep.subr.mxu0 0.0
        %4040 = vmatpush1.msra.mxu0 0.0
        %4041 = vmatprep.subr.mxu0 0.0
        %4042 = vmatpush1.msra.mxu0 0.0
        %4043 = vmatprep.subr.mxu0 0.0
        %4044 = vmatpush1.msra.mxu0 0.0
        %4045 = vmatprep.subr.mxu0 0.0
        %4046 = vmatpush1.msra.mxu0 0.0
        %4047 = vmatprep.subr.mxu0 0.0
        %4048 = vmatpush1.msra.mxu0 0.0
        %4049 = vmatprep.subr.mxu0 0.0
        %4050 = vmatpush1.msra.mxu0 0.0
        %4051 = vmatprep.subr.mxu0 0.0
        %4052 = vmatpush1.msra.mxu0 0.0
        %4053 = vmatprep.subr.mxu0 0.0
        %4054 = vmatpush1.msra.mxu0 0.0
        %4055 = vmatprep.subr.mxu0 0.0
        %4056 = vmatpush1.msra.mxu0 0.0
        %4057 = vmatprep.subr.mxu0 0.0
        %4058 = vmatpush1.msra.mxu0 0.0
        %4059 = vmatprep.subr.mxu0 0.0
        %4060 = vmatpush1.msra.mxu0 0.0
        %4061 = vmatprep.mubr.f32.mxu0 0.0
        %4062 = vmatmul.mubr.f32.gmra.mrb[0].mxu0 %v3992
        %v4063 = vpop.f32.mrb[0].mxu0
        %v4064 = vadd.f32 %v3984, %v4063
        %v4065 = vpop.f32.mrb[0].mxu0
        %4066 = vmatprep.mubr.f32.mxu0 0.0
        %4067 = vmatmul.mubr.f32.gmra.mrb[0].mxu0 %v3995
        %v4068 = vpop.f32.mrb[0].mxu0
        %v4069 = vadd.f32 %v3989, %v4068
        %v4070 = vpop.f32.mrb[0].mxu0
        %4071 = vdwg.mxu0
        %s4072 = scalar_lea.vmem %s17, 80
        %v4073 = vld [vmem:[%s4072] sm:$0xff]
        %v4074 = vld [vmem:[%s4072 + $0x8] sm:$0xff]
        %s4075 = scalar_lea.vmem %s19, 80
        %v4076 = vld [vmem:[%s4075] sm:$0xff]
        %v4077 = vld [vmem:[%s4075 + $0x8] sm:$0xff]
        %4079 = vset.pattern.permute.xlu0 0
        %4080 = vperm.xlu0 %4079, %v4073
        %v4081 = vpop.permute.xlu0 %4080
        %4084 = vset.pattern.permute.xlu0 0
        %4085 = vperm.xlu0 %4084, %v4074
        %v4086 = vpop.permute.xlu0 %4085
        %v4088 = vmul.f32 %v4081, %v4064
        %v4089 = vmul.f32 %v4086, %v4069
        %v4090 = vand.u32 2147483647, %v4088
        %vm4091 = vcmp.le.f32.partialorder %v4090, 0.7853982
        %vm4092 = vcmp.lt.s32.totalorder %v4088, 0
        %v4093 = vand.u32 %v4088, 2139095040
        %v4094 = vshrl.u32 %v4093, 23
        %v4095 = vsub.s32 %v4094, 127
        %v4096 = vand.u32 2147483647, %v4088
        %v4097 = vand.u32 %v4096, 8388607
        %v4098 = vor.u32 %v4097, 8388608
        %v4099 = vsub.s32 0, %v4098
        %v4100 = vadd.s32 %v4095, 1
        %vm4101 = vcmp.gt.s32.totalorder %v4100, 0
        %v4102 = vsel %vm4101, %v4100, 0
        %v4103 = vshrl.u32 %v4102, 5
        %v4104 = vand.u32 %v4102, 31
        %v4105 = vsub.s32 32, %v4104
        %v4106 = vshrl.u32 683565275, %v4105
        %v4107 = vshll.u32 683565275, %v4104
        %v4108 = vshrl.u32 2475754826, %v4105
        %v4109 = vor.u32 %v4107, %v4108
        %v4110 = vshll.u32 2475754826, %v4104
        %v4111 = vshrl.u32 2131351028, %v4105
        %v4112 = vor.u32 %v4110, %v4111
        %v4113 = vshll.u32 2131351028, %v4104
        %v4114 = vshrl.u32 2102212464, %v4105
        %v4115 = vor.u32 %v4113, %v4114
        %v4116 = vshll.u32 2102212464, %v4104
        %v4117 = vshrl.u32 920167782, %v4105
        %v4118 = vor.u32 %v4116, %v4117
        %v4119 = vshll.u32 920167782, %v4104
        %v4120 = vshrl.u32 1326507024, %v4105
        %v4121 = vor.u32 %v4119, %v4120
        %vm4122 = vcmp.lt.s32.totalorder %v4103, 1
        %vm4123 = vcmp.lt.s32.totalorder %v4103, 2
        %vm4124 = vcmp.lt.s32.totalorder %v4103, 3
        %vm4125 = vcmp.lt.s32.totalorder %v4103, 4
        %v4126 = vsel %vm4122, %v4106, %v4109
        %v4127 = vsel %vm4125, %v4115, 2102212464
        %v4128 = vsel %vm4124, %v4112, %v4127
        %v4129 = vsel %vm4123, %v4126, %v4128
        %v4130 = vsel %vm4122, %v4109, %v4112
        %v4131 = vsel %vm4125, %v4118, 920167782
        %v4132 = vsel %vm4124, %v4115, %v4131
        %v4133 = vsel %vm4123, %v4130, %v4132
        %v4134 = vsel %vm4122, %v4112, %v4115
        %v4135 = vsel %vm4125, %v4121, 1326507024
        %v4136 = vsel %vm4124, %v4118, %v4135
        %v4137 = vsel %vm4123, %v4134, %v4136
        %v4138 = vshll.u32 %v4098, 8
        %v4139 = vmul.u32.u64.compose %v4138, %v4137
        %v4140 = vextract.low.u32 %v4139
        %v4141 = vextract.high.u32 %v4139
        %v4142 = vmul.u32.u64.compose %v4138, %v4133
        %v4143 = vextract.low.u32 %v4142
        %v4144 = vextract.high.u32 %v4142
        %v4145 = vmul.u32 %v4138, %v4129
        %v4146 = vadd.s32 %v4141, %v4143
        %vm4147 = vc.u32 %v4141, %v4143
        %v4148 = vadd.s32 %v4144, 1
        %v4149 = vsel %vm4147, %v4148, %v4144
        %v4150 = vadd.s32 %v4145, %v4149
        %v4151 = vadd.s32 %v4150, 536870912
        %v4152 = vshrl.u32 %v4151, 30
        %v4153 = vshll.u32 %v4152, 30
        %v4154 = vsub.s32 %v4150, %v4153
        %vm4155 = vcmp.lt.s32.totalorder %v4154, 0
        %v4156 = vsub.s32 0, %v4154
        %v4157 = vsel %vm4155, %v4156, %v4154
        %v4158 = vclz %v4157
        %v4159 = vsub.s32 %v4158, 2
        %vm4160 = vcmp.gt.s32.totalorder 0, %v4159
        %v4161 = vsel %vm4160, 0, %v4159
        %v4162 = vsub.s32 32, %v4161
        %v4163 = vshll.u32 %v4154, %v4161
        %v4164 = vshrl.u32 %v4146, %v4162
        %v4165 = vor.u32 %v4163, %v4164
        %v4166 = vsub.s32 4294967266, %v4161
        %v4167 = vadd.s32 %v4166, 127
        %v4168 = vshll.u32 %v4167, 23
        %v4169 = vor.u32 4788187, %v4168
        %v4170 = vand.u32 2147483647, %v4169
        %v4172 = vcvt.s32.f32 %v4165
        %v4173 = vmul.f32 %v4172, %v4170
        %v4174 = vxor.u32 %v4173, 2147483648
        %v4175 = vsel %vm4092, %v4174, %v4173
        %v4176 = vsub.s32 4, %v4152
        %v4177 = vsel %vm4092, %v4176, %v4152
        %v4178 = vsel %vm4091, %v4088, %v4175
        %v4179 = vsel %vm4091, 0, %v4177
        %v4180 = vcosq.f32.pop %v4178
        %v4181 = vsinq.f32.pop %v4178
        %vm4182 = vweird.f32 %v4088
        %v4183 = vadd.s32 %v4179, 3
        %v4184 = vand.u32 %v4183, 3
        %vm4185 = vcmp.lt.s32.totalorder %v4184, 2
        %vm4186 = vcmp.eq.s32.totalorder %v4184, 0
        %v4187 = vxor.u32 %v4181, 2147483648
        %v4188 = vsel %vm4186, %v4180, %v4187
        %vm4189 = vcmp.eq.s32.totalorder %v4184, 2
        %v4190 = vxor.u32 %v4180, 2147483648
        %v4191 = vsel %vm4189, %v4190, %v4181
        %v4192 = vsel %vm4185, %v4188, %v4191
        %v4193 = vsel %vm4182, nan, %v4192
        %v4194 = vand.u32 2147483647, %v4089
        %vm4195 = vcmp.le.f32.partialorder %v4194, 0.7853982
        %vm4196 = vcmp.lt.s32.totalorder %v4089, 0
        %v4197 = vand.u32 %v4089, 2139095040
        %v4198 = vshrl.u32 %v4197, 23
        %v4199 = vsub.s32 %v4198, 127
        %v4200 = vand.u32 2147483647, %v4089
        %v4201 = vand.u32 %v4200, 8388607
        %v4202 = vor.u32 %v4201, 8388608
        %v4203 = vsub.s32 0, %v4202
        %v4204 = vadd.s32 %v4199, 1
        %vm4205 = vcmp.gt.s32.totalorder %v4204, 0
        %v4206 = vsel %vm4205, %v4204, 0
        %v4207 = vshrl.u32 %v4206, 5
        %v4208 = vand.u32 %v4206, 31
        %v4209 = vsub.s32 32, %v4208
        %v4210 = vshrl.u32 683565275, %v4209
        %v4211 = vshll.u32 683565275, %v4208
        %v4212 = vshrl.u32 2475754826, %v4209
        %v4213 = vor.u32 %v4211, %v4212
        %v4214 = vshll.u32 2475754826, %v4208
        %v4215 = vshrl.u32 2131351028, %v4209
        %v4216 = vor.u32 %v4214, %v4215
        %v4217 = vshll.u32 2131351028, %v4208
        %v4218 = vshrl.u32 2102212464, %v4209
        %v4219 = vor.u32 %v4217, %v4218
        %v4220 = vshll.u32 2102212464, %v4208
        %v4221 = vshrl.u32 920167782, %v4209
        %v4222 = vor.u32 %v4220, %v4221
        %v4223 = vshll.u32 920167782, %v4208
        %v4224 = vshrl.u32 1326507024, %v4209
        %v4225 = vor.u32 %v4223, %v4224
        %vm4226 = vcmp.lt.s32.totalorder %v4207, 1
        %vm4227 = vcmp.lt.s32.totalorder %v4207, 2
        %vm4228 = vcmp.lt.s32.totalorder %v4207, 3
        %vm4229 = vcmp.lt.s32.totalorder %v4207, 4
        %v4230 = vsel %vm4226, %v4210, %v4213
        %v4231 = vsel %vm4229, %v4219, 2102212464
        %v4232 = vsel %vm4228, %v4216, %v4231
        %v4233 = vsel %vm4227, %v4230, %v4232
        %v4234 = vsel %vm4226, %v4213, %v4216
        %v4235 = vsel %vm4229, %v4222, 920167782
        %v4236 = vsel %vm4228, %v4219, %v4235
        %v4237 = vsel %vm4227, %v4234, %v4236
        %v4238 = vsel %vm4226, %v4216, %v4219
        %v4239 = vsel %vm4229, %v4225, 1326507024
        %v4240 = vsel %vm4228, %v4222, %v4239
        %v4241 = vsel %vm4227, %v4238, %v4240
        %v4242 = vshll.u32 %v4202, 8
        %v4243 = vmul.u32.u64.compose %v4242, %v4241
        %v4244 = vextract.low.u32 %v4243
        %v4245 = vextract.high.u32 %v4243
        %v4246 = vmul.u32.u64.compose %v4242, %v4237
        %v4247 = vextract.low.u32 %v4246
        %v4248 = vextract.high.u32 %v4246
        %v4249 = vmul.u32 %v4242, %v4233
        %v4250 = vadd.s32 %v4245, %v4247
        %vm4251 = vc.u32 %v4245, %v4247
        %v4252 = vadd.s32 %v4248, 1
        %v4253 = vsel %vm4251, %v4252, %v4248
        %v4254 = vadd.s32 %v4249, %v4253
        %v4255 = vadd.s32 %v4254, 536870912
        %v4256 = vshrl.u32 %v4255, 30
        %v4257 = vshll.u32 %v4256, 30
        %v4258 = vsub.s32 %v4254, %v4257
        %vm4259 = vcmp.lt.s32.totalorder %v4258, 0
        %v4260 = vsub.s32 0, %v4258
        %v4261 = vsel %vm4259, %v4260, %v4258
        %v4262 = vclz %v4261
        %v4263 = vsub.s32 %v4262, 2
        %vm4264 = vcmp.gt.s32.totalorder 0, %v4263
        %v4265 = vsel %vm4264, 0, %v4263
        %v4266 = vsub.s32 32, %v4265
        %v4267 = vshll.u32 %v4258, %v4265
        %v4268 = vshrl.u32 %v4250, %v4266
        %v4269 = vor.u32 %v4267, %v4268
        %v4270 = vsub.s32 4294967266, %v4265
        %v4271 = vadd.s32 %v4270, 127
        %v4272 = vshll.u32 %v4271, 23
        %v4273 = vor.u32 4788187, %v4272
        %v4274 = vand.u32 2147483647, %v4273
        %v4276 = vcvt.s32.f32 %v4269
        %v4277 = vmul.f32 %v4276, %v4274
        %v4278 = vxor.u32 %v4277, 2147483648
        %v4279 = vsel %vm4196, %v4278, %v4277
        %v4280 = vsub.s32 4, %v4256
        %v4281 = vsel %vm4196, %v4280, %v4256
        %v4282 = vsel %vm4195, %v4089, %v4279
        %v4283 = vsel %vm4195, 0, %v4281
        %v4284 = vcosq.f32.pop %v4282
        %v4285 = vsinq.f32.pop %v4282
        %vm4286 = vweird.f32 %v4089
        %v4287 = vadd.s32 %v4283, 3
        %v4288 = vand.u32 %v4287, 3
        %vm4289 = vcmp.lt.s32.totalorder %v4288, 2
        %vm4290 = vcmp.eq.s32.totalorder %v4288, 0
        %v4291 = vxor.u32 %v4285, 2147483648
        %v4292 = vsel %vm4290, %v4284, %v4291
        %vm4293 = vcmp.eq.s32.totalorder %v4288, 2
        %v4294 = vxor.u32 %v4284, 2147483648
        %v4295 = vsel %vm4293, %v4294, %v4285
        %v4296 = vsel %vm4289, %v4292, %v4295
        %v4297 = vsel %vm4286, nan, %v4296
        %v4298 = vmul.f32 %v4193, %v4193
        %v4299 = vmul.f32 %v4297, %v4297
        %4301 = vset.pattern.permute.xlu0 0
        %4302 = vperm.xlu0 %4301, %v4076
        %v4303 = vpop.permute.xlu0 %4302
        %4306 = vset.pattern.permute.xlu0 0
        %4307 = vperm.xlu0 %4306, %v4077
        %v4308 = vpop.permute.xlu0 %4307
        %v4310 = vmul.f32 %v4303, %v4298
        %v4311 = vmul.f32 %v4308, %v4299
        %v4312 = vadd.f32 %v4064, %v4310
        %v4313 = vadd.f32 %v4069, %v4311
        %s4314 = scalar_lea.vmem %s25, 32
        %v4315 = vld [vmem:[%s4314] sm:$0xff]
        %v4316 = vld [vmem:[%s4314 + $0x8] sm:$0xff]
        %s4317 = scalar_lea.vmem %s27, 32
        %v4318 = vld [vmem:[%s4317] sm:$0xff]
        %v4319 = vld [vmem:[%s4317 + $0x8] sm:$0xff]
        %4321 = vset.pattern.permute.xlu0 0
        %4322 = vperm.xlu0 %4321, %v4318
        %v4323 = vpop.permute.xlu0 %4322
        %4326 = vset.pattern.permute.xlu0 0
        %4327 = vperm.xlu0 %4326, %v4319
        %v4328 = vpop.permute.xlu0 %4327
        %v4331 = vsel %vm1708, %v4315, 0
        %v4334 = vsel %vm1708, %v4316, 0
        %4336 = vmatprep.subr.mxu0 0.0
        %4337 = vmatpush1.msra.mxu0 %v4312
        %4338 = vmatprep.subr.mxu0 0.0
        %4339 = vmatpush1.msra.mxu0 %v4313
        %4340 = vmatprep.subr.mxu0 0.0
        %4341 = vmatpush1.msra.mxu0 0.0
        %4342 = vmatprep.subr.mxu0 0.0
        %4343 = vmatpush1.msra.mxu0 0.0
        %4344 = vmatprep.subr.mxu0 0.0
        %4345 = vmatpush1.msra.mxu0 0.0
        %4346 = vmatprep.subr.mxu0 0.0
        %4347 = vmatpush1.msra.mxu0 0.0
        %4348 = vmatprep.subr.mxu0 0.0
        %4349 = vmatpush1.msra.mxu0 0.0
        %4350 = vmatprep.subr.mxu0 0.0
        %4351 = vmatpush1.msra.mxu0 0.0
        %4352 = vmatprep.subr.mxu0 0.0
        %4353 = vmatpush1.msra.mxu0 0.0
        %4354 = vmatprep.subr.mxu0 0.0
        %4355 = vmatpush1.msra.mxu0 0.0
        %4356 = vmatprep.subr.mxu0 0.0
        %4357 = vmatpush1.msra.mxu0 0.0
        %4358 = vmatprep.subr.mxu0 0.0
        %4359 = vmatpush1.msra.mxu0 0.0
        %4360 = vmatprep.subr.mxu0 0.0
        %4361 = vmatpush1.msra.mxu0 0.0
        %4362 = vmatprep.subr.mxu0 0.0
        %4363 = vmatpush1.msra.mxu0 0.0
        %4364 = vmatprep.subr.mxu0 0.0
        %4365 = vmatpush1.msra.mxu0 0.0
        %4366 = vmatprep.subr.mxu0 0.0
        %4367 = vmatpush1.msra.mxu0 0.0
        %4368 = vmatprep.subr.mxu0 0.0
        %4369 = vmatpush1.msra.mxu0 0.0
        %4370 = vmatprep.subr.mxu0 0.0
        %4371 = vmatpush1.msra.mxu0 0.0
        %4372 = vmatprep.subr.mxu0 0.0
        %4373 = vmatpush1.msra.mxu0 0.0
        %4374 = vmatprep.subr.mxu0 0.0
        %4375 = vmatpush1.msra.mxu0 0.0
        %4376 = vmatprep.subr.mxu0 0.0
        %4377 = vmatpush1.msra.mxu0 0.0
        %4378 = vmatprep.subr.mxu0 0.0
        %4379 = vmatpush1.msra.mxu0 0.0
        %4380 = vmatprep.subr.mxu0 0.0
        %4381 = vmatpush1.msra.mxu0 0.0
        %4382 = vmatprep.subr.mxu0 0.0
        %4383 = vmatpush1.msra.mxu0 0.0
        %4384 = vmatprep.subr.mxu0 0.0
        %4385 = vmatpush1.msra.mxu0 0.0
        %4386 = vmatprep.subr.mxu0 0.0
        %4387 = vmatpush1.msra.mxu0 0.0
        %4388 = vmatprep.subr.mxu0 0.0
        %4389 = vmatpush1.msra.mxu0 0.0
        %4390 = vmatprep.subr.mxu0 0.0
        %4391 = vmatpush1.msra.mxu0 0.0
        %4392 = vmatprep.subr.mxu0 0.0
        %4393 = vmatpush1.msra.mxu0 0.0
        %4394 = vmatprep.subr.mxu0 0.0
        %4395 = vmatpush1.msra.mxu0 0.0
        %4396 = vmatprep.subr.mxu0 0.0
        %4397 = vmatpush1.msra.mxu0 0.0
        %4398 = vmatprep.subr.mxu0 0.0
        %4399 = vmatpush1.msra.mxu0 0.0
        %4400 = vmatprep.mubr.f32.mxu0 0.0
        %4401 = vmatmul.mubr.f32.gmra.mrb[0].mxu0 %v4331
        %v4402 = vpop.f32.mrb[0].mxu0
        %v4403 = vadd.f32 %v4323, %v4402
        %v4404 = vpop.f32.mrb[0].mxu0
        %4405 = vmatprep.mubr.f32.mxu0 0.0
        %4406 = vmatmul.mubr.f32.gmra.mrb[0].mxu0 %v4334
        %v4407 = vpop.f32.mrb[0].mxu0
        %v4408 = vadd.f32 %v4328, %v4407
        %v4409 = vpop.f32.mrb[0].mxu0
        %4410 = vdwg.mxu0
        %v4411 = vadd.f32 %v3679, %v4403
        %v4412 = vadd.f32 %v3680, %v4408
        %v4413 = vld [vmem:[%s29] sm:$0xff]
        %v4414 = vld [vmem:[%s29 + $0x8] sm:$0xff]
        %v4415 = vld [vmem:[%s31] sm:$0xff]
        %v4416 = vld [vmem:[%s31 + $0x8] sm:$0xff]
        %4418 = vset.pattern.permute.xlu0 0
        %4419 = vperm.xlu0 %4418, %v4413
        %v4420 = vpop.permute.xlu0 %4419
        %4423 = vset.pattern.permute.xlu0 0
        %4424 = vperm.xlu0 %4423, %v4414
        %v4425 = vpop.permute.xlu0 %4424
        %v4427 = vmul.f32 %v4420, %v4411
        %v4428 = vmul.f32 %v4425, %v4412
        %v4429 = vand.u32 2147483647, %v4427
        %vm4430 = vcmp.le.f32.partialorder %v4429, 0.7853982
        %vm4431 = vcmp.lt.s32.totalorder %v4427, 0
        %v4432 = vand.u32 %v4427, 2139095040
        %v4433 = vshrl.u32 %v4432, 23
        %v4434 = vsub.s32 %v4433, 127
        %v4435 = vand.u32 2147483647, %v4427
        %v4436 = vand.u32 %v4435, 8388607
        %v4437 = vor.u32 %v4436, 8388608
        %v4438 = vsub.s32 0, %v4437
        %v4439 = vadd.s32 %v4434, 1
        %vm4440 = vcmp.gt.s32.totalorder %v4439, 0
        %v4441 = vsel %vm4440, %v4439, 0
        %v4442 = vshrl.u32 %v4441, 5
        %v4443 = vand.u32 %v4441, 31
        %v4444 = vsub.s32 32, %v4443
        %v4445 = vshrl.u32 683565275, %v4444
        %v4446 = vshll.u32 683565275, %v4443
        %v4447 = vshrl.u32 2475754826, %v4444
        %v4448 = vor.u32 %v4446, %v4447
        %v4449 = vshll.u32 2475754826, %v4443
        %v4450 = vshrl.u32 2131351028, %v4444
        %v4451 = vor.u32 %v4449, %v4450
        %v4452 = vshll.u32 2131351028, %v4443
        %v4453 = vshrl.u32 2102212464, %v4444
        %v4454 = vor.u32 %v4452, %v4453
        %v4455 = vshll.u32 2102212464, %v4443
        %v4456 = vshrl.u32 920167782, %v4444
        %v4457 = vor.u32 %v4455, %v4456
        %v4458 = vshll.u32 920167782, %v4443
        %v4459 = vshrl.u32 1326507024, %v4444
        %v4460 = vor.u32 %v4458, %v4459
        %vm4461 = vcmp.lt.s32.totalorder %v4442, 1
        %vm4462 = vcmp.lt.s32.totalorder %v4442, 2
        %vm4463 = vcmp.lt.s32.totalorder %v4442, 3
        %vm4464 = vcmp.lt.s32.totalorder %v4442, 4
        %v4465 = vsel %vm4461, %v4445, %v4448
        %v4466 = vsel %vm4464, %v4454, 2102212464
        %v4467 = vsel %vm4463, %v4451, %v4466
        %v4468 = vsel %vm4462, %v4465, %v4467
        %v4469 = vsel %vm4461, %v4448, %v4451
        %v4470 = vsel %vm4464, %v4457, 920167782
        %v4471 = vsel %vm4463, %v4454, %v4470
        %v4472 = vsel %vm4462, %v4469, %v4471
        %v4473 = vsel %vm4461, %v4451, %v4454
        %v4474 = vsel %vm4464, %v4460, 1326507024
        %v4475 = vsel %vm4463, %v4457, %v4474
        %v4476 = vsel %vm4462, %v4473, %v4475
        %v4477 = vshll.u32 %v4437, 8
        %v4478 = vmul.u32.u64.compose %v4477, %v4476
        %v4479 = vextract.low.u32 %v4478
        %v4480 = vextract.high.u32 %v4478
        %v4481 = vmul.u32.u64.compose %v4477, %v4472
        %v4482 = vextract.low.u32 %v4481
        %v4483 = vextract.high.u32 %v4481
        %v4484 = vmul.u32 %v4477, %v4468
        %v4485 = vadd.s32 %v4480, %v4482
        %vm4486 = vc.u32 %v4480, %v4482
        %v4487 = vadd.s32 %v4483, 1
        %v4488 = vsel %vm4486, %v4487, %v4483
        %v4489 = vadd.s32 %v4484, %v4488
        %v4490 = vadd.s32 %v4489, 536870912
        %v4491 = vshrl.u32 %v4490, 30
        %v4492 = vshll.u32 %v4491, 30
        %v4493 = vsub.s32 %v4489, %v4492
        %vm4494 = vcmp.lt.s32.totalorder %v4493, 0
        %v4495 = vsub.s32 0, %v4493
        %v4496 = vsel %vm4494, %v4495, %v4493
        %v4497 = vclz %v4496
        %v4498 = vsub.s32 %v4497, 2
        %vm4499 = vcmp.gt.s32.totalorder 0, %v4498
        %v4500 = vsel %vm4499, 0, %v4498
        %v4501 = vsub.s32 32, %v4500
        %v4502 = vshll.u32 %v4493, %v4500
        %v4503 = vshrl.u32 %v4485, %v4501
        %v4504 = vor.u32 %v4502, %v4503
        %v4505 = vsub.s32 4294967266, %v4500
        %v4506 = vadd.s32 %v4505, 127
        %v4507 = vshll.u32 %v4506, 23
        %v4508 = vor.u32 4788187, %v4507
        %v4509 = vand.u32 2147483647, %v4508
        %v4511 = vcvt.s32.f32 %v4504
        %v4512 = vmul.f32 %v4511, %v4509
        %v4513 = vxor.u32 %v4512, 2147483648
        %v4514 = vsel %vm4431, %v4513, %v4512
        %v4515 = vsub.s32 4, %v4491
        %v4516 = vsel %vm4431, %v4515, %v4491
        %v4517 = vsel %vm4430, %v4427, %v4514
        %v4518 = vsel %vm4430, 0, %v4516
        %v4519 = vcosq.f32.pop %v4517
        %v4520 = vsinq.f32.pop %v4517
        %vm4521 = vweird.f32 %v4427
        %v4522 = vadd.s32 %v4518, 3
        %v4523 = vand.u32 %v4522, 3
        %vm4524 = vcmp.lt.s32.totalorder %v4523, 2
        %vm4525 = vcmp.eq.s32.totalorder %v4523, 0
        %v4526 = vxor.u32 %v4520, 2147483648
        %v4527 = vsel %vm4525, %v4519, %v4526
        %vm4528 = vcmp.eq.s32.totalorder %v4523, 2
        %v4529 = vxor.u32 %v4519, 2147483648
        %v4530 = vsel %vm4528, %v4529, %v4520
        %v4531 = vsel %vm4524, %v4527, %v4530
        %v4532 = vsel %vm4521, nan, %v4531
        %v4533 = vand.u32 2147483647, %v4428
        %vm4534 = vcmp.le.f32.partialorder %v4533, 0.7853982
        %vm4535 = vcmp.lt.s32.totalorder %v4428, 0
        %v4536 = vand.u32 %v4428, 2139095040
        %v4537 = vshrl.u32 %v4536, 23
        %v4538 = vsub.s32 %v4537, 127
        %v4539 = vand.u32 2147483647, %v4428
        %v4540 = vand.u32 %v4539, 8388607
        %v4541 = vor.u32 %v4540, 8388608
        %v4542 = vsub.s32 0, %v4541
        %v4543 = vadd.s32 %v4538, 1
        %vm4544 = vcmp.gt.s32.totalorder %v4543, 0
        %v4545 = vsel %vm4544, %v4543, 0
        %v4546 = vshrl.u32 %v4545, 5
        %v4547 = vand.u32 %v4545, 31
        %v4548 = vsub.s32 32, %v4547
        %v4549 = vshrl.u32 683565275, %v4548
        %v4550 = vshll.u32 683565275, %v4547
        %v4551 = vshrl.u32 2475754826, %v4548
        %v4552 = vor.u32 %v4550, %v4551
        %v4553 = vshll.u32 2475754826, %v4547
        %v4554 = vshrl.u32 2131351028, %v4548
        %v4555 = vor.u32 %v4553, %v4554
        %v4556 = vshll.u32 2131351028, %v4547
        %v4557 = vshrl.u32 2102212464, %v4548
        %v4558 = vor.u32 %v4556, %v4557
        %v4559 = vshll.u32 2102212464, %v4547
        %v4560 = vshrl.u32 920167782, %v4548
        %v4561 = vor.u32 %v4559, %v4560
        %v4562 = vshll.u32 920167782, %v4547
        %v4563 = vshrl.u32 1326507024, %v4548
        %v4564 = vor.u32 %v4562, %v4563
        %vm4565 = vcmp.lt.s32.totalorder %v4546, 1
        %vm4566 = vcmp.lt.s32.totalorder %v4546, 2
        %vm4567 = vcmp.lt.s32.totalorder %v4546, 3
        %vm4568 = vcmp.lt.s32.totalorder %v4546, 4
        %v4569 = vsel %vm4565, %v4549, %v4552
        %v4570 = vsel %vm4568, %v4558, 2102212464
        %v4571 = vsel %vm4567, %v4555, %v4570
        %v4572 = vsel %vm4566, %v4569, %v4571
        %v4573 = vsel %vm4565, %v4552, %v4555
        %v4574 = vsel %vm4568, %v4561, 920167782
        %v4575 = vsel %vm4567, %v4558, %v4574
        %v4576 = vsel %vm4566, %v4573, %v4575
        %v4577 = vsel %vm4565, %v4555, %v4558
        %v4578 = vsel %vm4568, %v4564, 1326507024
        %v4579 = vsel %vm4567, %v4561, %v4578
        %v4580 = vsel %vm4566, %v4577, %v4579
        %v4581 = vshll.u32 %v4541, 8
        %v4582 = vmul.u32.u64.compose %v4581, %v4580
        %v4583 = vextract.low.u32 %v4582
        %v4584 = vextract.high.u32 %v4582
        %v4585 = vmul.u32.u64.compose %v4581, %v4576
        %v4586 = vextract.low.u32 %v4585
        %v4587 = vextract.high.u32 %v4585
        %v4588 = vmul.u32 %v4581, %v4572
        %v4589 = vadd.s32 %v4584, %v4586
        %vm4590 = vc.u32 %v4584, %v4586
        %v4591 = vadd.s32 %v4587, 1
        %v4592 = vsel %vm4590, %v4591, %v4587
        %v4593 = vadd.s32 %v4588, %v4592
        %v4594 = vadd.s32 %v4593, 536870912
        %v4595 = vshrl.u32 %v4594, 30
        %v4596 = vshll.u32 %v4595, 30
        %v4597 = vsub.s32 %v4593, %v4596
        %vm4598 = vcmp.lt.s32.totalorder %v4597, 0
        %v4599 = vsub.s32 0, %v4597
        %v4600 = vsel %vm4598, %v4599, %v4597
        %v4601 = vclz %v4600
        %v4602 = vsub.s32 %v4601, 2
        %vm4603 = vcmp.gt.s32.totalorder 0, %v4602
        %v4604 = vsel %vm4603, 0, %v4602
        %v4605 = vsub.s32 32, %v4604
        %v4606 = vshll.u32 %v4597, %v4604
        %v4607 = vshrl.u32 %v4589, %v4605
        %v4608 = vor.u32 %v4606, %v4607
        %v4609 = vsub.s32 4294967266, %v4604
        %v4610 = vadd.s32 %v4609, 127
        %v4611 = vshll.u32 %v4610, 23
        %v4612 = vor.u32 4788187, %v4611
        %v4613 = vand.u32 2147483647, %v4612
        %v4615 = vcvt.s32.f32 %v4608
        %v4616 = vmul.f32 %v4615, %v4613
        %v4617 = vxor.u32 %v4616, 2147483648
        %v4618 = vsel %vm4535, %v4617, %v4616
        %v4619 = vsub.s32 4, %v4595
        %v4620 = vsel %vm4535, %v4619, %v4595
        %v4621 = vsel %vm4534, %v4428, %v4618
        %v4622 = vsel %vm4534, 0, %v4620
        %v4623 = vcosq.f32.pop %v4621
        %v4624 = vsinq.f32.pop %v4621
        %vm4625 = vweird.f32 %v4428
        %v4626 = vadd.s32 %v4622, 3
        %v4627 = vand.u32 %v4626, 3
        %vm4628 = vcmp.lt.s32.totalorder %v4627, 2
        %vm4629 = vcmp.eq.s32.totalorder %v4627, 0
        %v4630 = vxor.u32 %v4624, 2147483648
        %v4631 = vsel %vm4629, %v4623, %v4630
        %vm4632 = vcmp.eq.s32.totalorder %v4627, 2
        %v4633 = vxor.u32 %v4623, 2147483648
        %v4634 = vsel %vm4632, %v4633, %v4624
        %v4635 = vsel %vm4628, %v4631, %v4634
        %v4636 = vsel %vm4625, nan, %v4635
        %v4637 = vmul.f32 %v4532, %v4532
        %v4638 = vmul.f32 %v4636, %v4636
        %4640 = vset.pattern.permute.xlu0 0
        %4641 = vperm.xlu0 %4640, %v4415
        %v4642 = vpop.permute.xlu0 %4641
        %4645 = vset.pattern.permute.xlu0 0
        %4646 = vperm.xlu0 %4645, %v4416
        %v4647 = vpop.permute.xlu0 %4646
        %v4649 = vmul.f32 %v4642, %v4637
        %v4650 = vmul.f32 %v4647, %v4638
        %v4651 = vadd.f32 %v4411, %v4649
        %v4652 = vadd.f32 %v4412, %v4650
        %v4653 = vld [vmem:[%s35] sm:$0xff]
        %v4654 = vld [vmem:[%s33] sm:$0xff]
        %v4656 = vsel %vm1708, %v4654, 0
        %4658 = vmatprep.subr.mxu0 0.0
        %4659 = vmatpush1.msra.mxu0 %v4651
        %4660 = vmatprep.subr.mxu0 0.0
        %4661 = vmatpush1.msra.mxu0 %v4652
        %4662 = vmatprep.subr.mxu0 0.0
        %4663 = vmatpush1.msra.mxu0 0.0
        %4664 = vmatprep.subr.mxu0 0.0
        %4665 = vmatpush1.msra.mxu0 0.0
        %4666 = vmatprep.subr.mxu0 0.0
        %4667 = vmatpush1.msra.mxu0 0.0
        %4668 = vmatprep.subr.mxu0 0.0
        %4669 = vmatpush1.msra.mxu0 0.0
        %4670 = vmatprep.subr.mxu0 0.0
        %4671 = vmatpush1.msra.mxu0 0.0
        %4672 = vmatprep.subr.mxu0 0.0
        %4673 = vmatpush1.msra.mxu0 0.0
        %4674 = vmatprep.subr.mxu0 0.0
        %4675 = vmatpush1.msra.mxu0 0.0
        %4676 = vmatprep.subr.mxu0 0.0
        %4677 = vmatpush1.msra.mxu0 0.0
        %4678 = vmatprep.subr.mxu0 0.0
        %4679 = vmatpush1.msra.mxu0 0.0
        %4680 = vmatprep.subr.mxu0 0.0
        %4681 = vmatpush1.msra.mxu0 0.0
        %4682 = vmatprep.subr.mxu0 0.0
        %4683 = vmatpush1.msra.mxu0 0.0
        %4684 = vmatprep.subr.mxu0 0.0
        %4685 = vmatpush1.msra.mxu0 0.0
        %4686 = vmatprep.subr.mxu0 0.0
        %4687 = vmatpush1.msra.mxu0 0.0
        %4688 = vmatprep.subr.mxu0 0.0
        %4689 = vmatpush1.msra.mxu0 0.0
        %4690 = vmatprep.subr.mxu0 0.0
        %4691 = vmatpush1.msra.mxu0 0.0
        %4692 = vmatprep.subr.mxu0 0.0
        %4693 = vmatpush1.msra.mxu0 0.0
        %4694 = vmatprep.subr.mxu0 0.0
        %4695 = vmatpush1.msra.mxu0 0.0
        %4696 = vmatprep.subr.mxu0 0.0
        %4697 = vmatpush1.msra.mxu0 0.0
        %4698 = vmatprep.subr.mxu0 0.0
        %4699 = vmatpush1.msra.mxu0 0.0
        %4700 = vmatprep.subr.mxu0 0.0
        %4701 = vmatpush1.msra.mxu0 0.0
        %4702 = vmatprep.subr.mxu0 0.0
        %4703 = vmatpush1.msra.mxu0 0.0
        %4704 = vmatprep.subr.mxu0 0.0
        %4705 = vmatpush1.msra.mxu0 0.0
        %4706 = vmatprep.subr.mxu0 0.0
        %4707 = vmatpush1.msra.mxu0 0.0
        %4708 = vmatprep.subr.mxu0 0.0
        %4709 = vmatpush1.msra.mxu0 0.0
        %4710 = vmatprep.subr.mxu0 0.0
        %4711 = vmatpush1.msra.mxu0 0.0
        %4712 = vmatprep.subr.mxu0 0.0
        %4713 = vmatpush1.msra.mxu0 0.0
        %4714 = vmatprep.subr.mxu0 0.0
        %4715 = vmatpush1.msra.mxu0 0.0
        %4716 = vmatprep.subr.mxu0 0.0
        %4717 = vmatpush1.msra.mxu0 0.0
        %4718 = vmatprep.subr.mxu0 0.0
        %4719 = vmatpush1.msra.mxu0 0.0
        %4720 = vmatprep.subr.mxu0 0.0
        %4721 = vmatpush1.msra.mxu0 0.0
        %4722 = vmatprep.mubr.f32.mxu0 0.0
        %4723 = vmatmul.mubr.f32.gmra.mrb[0].mxu0 %v4656
        %v4724 = vpop.f32.mrb[0].mxu0
        %v4725 = vadd.f32 0.0, %v4724
        %v4726 = vpop.f32.mrb[0].mxu0
        %4727 = vdwg.mxu0
        %v4728 = vld [vmem:[%s37] sm:$0xff]
        %v4729 = vld [vmem:[%s37 + $0x8] sm:$0xff]
        %v4730 = vld [vmem:[%s37 + $0x10] sm:$0xff]
        %v4731 = vld [vmem:[%s37 + $0x18] sm:$0xff]
        %s4732 = scalar_lea.vmem %s33, 8
        %v4733 = vld [vmem:[%s4732] sm:$0xff]
        %v4735 = vsel %vm1708, %v4733, 0
        %4737 = vmatprep.subr.mxu0 0.0
        %4738 = vmatpush1.msra.mxu0 %v4651
        %4739 = vmatprep.subr.mxu0 0.0
        %4740 = vmatpush1.msra.mxu0 %v4652
        %4741 = vmatprep.subr.mxu0 0.0
        %4742 = vmatpush1.msra.mxu0 0.0
        %4743 = vmatprep.subr.mxu0 0.0
        %4744 = vmatpush1.msra.mxu0 0.0
        %4745 = vmatprep.subr.mxu0 0.0
        %4746 = vmatpush1.msra.mxu0 0.0
        %4747 = vmatprep.subr.mxu0 0.0
        %4748 = vmatpush1.msra.mxu0 0.0
        %4749 = vmatprep.subr.mxu0 0.0
        %4750 = vmatpush1.msra.mxu0 0.0
        %4751 = vmatprep.subr.mxu0 0.0
        %4752 = vmatpush1.msra.mxu0 0.0
        %4753 = vmatprep.subr.mxu0 0.0
        %4754 = vmatpush1.msra.mxu0 0.0
        %4755 = vmatprep.subr.mxu0 0.0
        %4756 = vmatpush1.msra.mxu0 0.0
        %4757 = vmatprep.subr.mxu0 0.0
        %4758 = vmatpush1.msra.mxu0 0.0
        %4759 = vmatprep.subr.mxu0 0.0
        %4760 = vmatpush1.msra.mxu0 0.0
        %4761 = vmatprep.subr.mxu0 0.0
        %4762 = vmatpush1.msra.mxu0 0.0
        %4763 = vmatprep.subr.mxu0 0.0
        %4764 = vmatpush1.msra.mxu0 0.0
        %4765 = vmatprep.subr.mxu0 0.0
        %4766 = vmatpush1.msra.mxu0 0.0
        %4767 = vmatprep.subr.mxu0 0.0
        %4768 = vmatpush1.msra.mxu0 0.0
        %4769 = vmatprep.subr.mxu0 0.0
        %4770 = vmatpush1.msra.mxu0 0.0
        %4771 = vmatprep.subr.mxu0 0.0
        %4772 = vmatpush1.msra.mxu0 0.0
        %4773 = vmatprep.subr.mxu0 0.0
        %4774 = vmatpush1.msra.mxu0 0.0
        %4775 = vmatprep.subr.mxu0 0.0
        %4776 = vmatpush1.msra.mxu0 0.0
        %4777 = vmatprep.subr.mxu0 0.0
        %4778 = vmatpush1.msra.mxu0 0.0
        %4779 = vmatprep.subr.mxu0 0.0
        %4780 = vmatpush1.msra.mxu0 0.0
        %4781 = vmatprep.subr.mxu0 0.0
        %4782 = vmatpush1.msra.mxu0 0.0
        %4783 = vmatprep.subr.mxu0 0.0
        %4784 = vmatpush1.msra.mxu0 0.0
        %4785 = vmatprep.subr.mxu0 0.0
        %4786 = vmatpush1.msra.mxu0 0.0
        %4787 = vmatprep.subr.mxu0 0.0
        %4788 = vmatpush1.msra.mxu0 0.0
        %4789 = vmatprep.subr.mxu0 0.0
        %4790 = vmatpush1.msra.mxu0 0.0
        %4791 = vmatprep.subr.mxu0 0.0
        %4792 = vmatpush1.msra.mxu0 0.0
        %4793 = vmatprep.subr.mxu0 0.0
        %4794 = vmatpush1.msra.mxu0 0.0
        %4795 = vmatprep.subr.mxu0 0.0
        %4796 = vmatpush1.msra.mxu0 0.0
        %4797 = vmatprep.subr.mxu0 0.0
        %4798 = vmatpush1.msra.mxu0 0.0
        %4799 = vmatprep.subr.mxu0 0.0
        %4800 = vmatpush1.msra.mxu0 0.0
        %4801 = vmatprep.mubr.f32.mxu0 0.0
        %4802 = vmatmul.mubr.f32.gmra.mrb[0].mxu0 %v4735
        %v4803 = vpop.f32.mrb[0].mxu0
        %v4804 = vadd.f32 0.0, %v4803
        %v4805 = vpop.f32.mrb[0].mxu0
        %4806 = vdwg.mxu0
        %s4807 = scalar_lea.vmem %s37, 32
        %v4808 = vld [vmem:[%s4807] sm:$0xff]
        %v4809 = vld [vmem:[%s4807 + $0x8] sm:$0xff]
        %v4810 = vld [vmem:[%s4807 + $0x10] sm:$0xff]
        %v4811 = vld [vmem:[%s4807 + $0x18] sm:$0xff]
        %v4813 = vsel %vm1537, %v4804, 0
        %4815 = vmatprep.subr.mxu0 0.0
        %4816 = vmatpush1.msra.mxu0 %v4808
        %4817 = vmatprep.subr.mxu0 0.0
        %4818 = vmatpush1.msra.mxu0 %v4809
        %4819 = vmatprep.subr.mxu0 0.0
        %4820 = vmatpush1.msra.mxu0 %v4810
        %4821 = vmatprep.subr.mxu0 0.0
        %4822 = vmatpush1.msra.mxu0 %v4811
        %4823 = vmatprep.subr.mxu0 0.0
        %4824 = vmatpush1.msra.mxu0 0.0
        %4825 = vmatprep.subr.mxu0 0.0
        %4826 = vmatpush1.msra.mxu0 0.0
        %4827 = vmatprep.subr.mxu0 0.0
        %4828 = vmatpush1.msra.mxu0 0.0
        %4829 = vmatprep.subr.mxu0 0.0
        %4830 = vmatpush1.msra.mxu0 0.0
        %4831 = vmatprep.subr.mxu0 0.0
        %4832 = vmatpush1.msra.mxu0 0.0
        %4833 = vmatprep.subr.mxu0 0.0
        %4834 = vmatpush1.msra.mxu0 0.0
        %4835 = vmatprep.subr.mxu0 0.0
        %4836 = vmatpush1.msra.mxu0 0.0
        %4837 = vmatprep.subr.mxu0 0.0
        %4838 = vmatpush1.msra.mxu0 0.0
        %4839 = vmatprep.subr.mxu0 0.0
        %4840 = vmatpush1.msra.mxu0 0.0
        %4841 = vmatprep.subr.mxu0 0.0
        %4842 = vmatpush1.msra.mxu0 0.0
        %4843 = vmatprep.subr.mxu0 0.0
        %4844 = vmatpush1.msra.mxu0 0.0
        %4845 = vmatprep.subr.mxu0 0.0
        %4846 = vmatpush1.msra.mxu0 0.0
        %4847 = vmatprep.subr.mxu0 0.0
        %4848 = vmatpush1.msra.mxu0 0.0
        %4849 = vmatprep.subr.mxu0 0.0
        %4850 = vmatpush1.msra.mxu0 0.0
        %4851 = vmatprep.subr.mxu0 0.0
        %4852 = vmatpush1.msra.mxu0 0.0
        %4853 = vmatprep.subr.mxu0 0.0
        %4854 = vmatpush1.msra.mxu0 0.0
        %4855 = vmatprep.subr.mxu0 0.0
        %4856 = vmatpush1.msra.mxu0 0.0
        %4857 = vmatprep.subr.mxu0 0.0
        %4858 = vmatpush1.msra.mxu0 0.0
        %4859 = vmatprep.subr.mxu0 0.0
        %4860 = vmatpush1.msra.mxu0 0.0
        %4861 = vmatprep.subr.mxu0 0.0
        %4862 = vmatpush1.msra.mxu0 0.0
        %4863 = vmatprep.subr.mxu0 0.0
        %4864 = vmatpush1.msra.mxu0 0.0
        %4865 = vmatprep.subr.mxu0 0.0
        %4866 = vmatpush1.msra.mxu0 0.0
        %4867 = vmatprep.subr.mxu0 0.0
        %4868 = vmatpush1.msra.mxu0 0.0
        %4869 = vmatprep.subr.mxu0 0.0
        %4870 = vmatpush1.msra.mxu0 0.0
        %4871 = vmatprep.subr.mxu0 0.0
        %4872 = vmatpush1.msra.mxu0 0.0
        %4873 = vmatprep.subr.mxu0 0.0
        %4874 = vmatpush1.msra.mxu0 0.0
        %4875 = vmatprep.subr.mxu0 0.0
        %4876 = vmatpush1.msra.mxu0 0.0
        %4877 = vmatprep.subr.mxu0 0.0
        %4878 = vmatpush1.msra.mxu0 0.0
        %4879 = vmatprep.mubr.f32.mxu0 0.0
        %4880 = vmatmul.mubr.f32.gmra.mrb[0].mxu0 %v4813
        %v4881 = vpop.f32.mrb[0].mxu0
        %v4882 = vadd.f32 0.0, %v4881
        %v4883 = vpop.f32.mrb[0].mxu0
        %4884 = vdwg.mxu0
        %v4886 = vsel %vm1537, %v4725, 0
        %4888 = vmatprep.subr.mxu0 0.0
        %4889 = vmatpush1.msra.mxu0 %v4728
        %4890 = vmatprep.subr.mxu0 0.0
        %4891 = vmatpush1.msra.mxu0 %v4729
        %4892 = vmatprep.subr.mxu0 0.0
        %4893 = vmatpush1.msra.mxu0 %v4730
        %4894 = vmatprep.subr.mxu0 0.0
        %4895 = vmatpush1.msra.mxu0 %v4731
        %4896 = vmatprep.subr.mxu0 0.0
        %4897 = vmatpush1.msra.mxu0 0.0
        %4898 = vmatprep.subr.mxu0 0.0
        %4899 = vmatpush1.msra.mxu0 0.0
        %4900 = vmatprep.subr.mxu0 0.0
        %4901 = vmatpush1.msra.mxu0 0.0
        %4902 = vmatprep.subr.mxu0 0.0
        %4903 = vmatpush1.msra.mxu0 0.0
        %4904 = vmatprep.subr.mxu0 0.0
        %4905 = vmatpush1.msra.mxu0 0.0
        %4906 = vmatprep.subr.mxu0 0.0
        %4907 = vmatpush1.msra.mxu0 0.0
        %4908 = vmatprep.subr.mxu0 0.0
        %4909 = vmatpush1.msra.mxu0 0.0
        %4910 = vmatprep.subr.mxu0 0.0
        %4911 = vmatpush1.msra.mxu0 0.0
        %4912 = vmatprep.subr.mxu0 0.0
        %4913 = vmatpush1.msra.mxu0 0.0
        %4914 = vmatprep.subr.mxu0 0.0
        %4915 = vmatpush1.msra.mxu0 0.0
        %4916 = vmatprep.subr.mxu0 0.0
        %4917 = vmatpush1.msra.mxu0 0.0
        %4918 = vmatprep.subr.mxu0 0.0
        %4919 = vmatpush1.msra.mxu0 0.0
        %4920 = vmatprep.subr.mxu0 0.0
        %4921 = vmatpush1.msra.mxu0 0.0
        %4922 = vmatprep.subr.mxu0 0.0
        %4923 = vmatpush1.msra.mxu0 0.0
        %4924 = vmatprep.subr.mxu0 0.0
        %4925 = vmatpush1.msra.mxu0 0.0
        %4926 = vmatprep.subr.mxu0 0.0
        %4927 = vmatpush1.msra.mxu0 0.0
        %4928 = vmatprep.subr.mxu0 0.0
        %4929 = vmatpush1.msra.mxu0 0.0
        %4930 = vmatprep.subr.mxu0 0.0
        %4931 = vmatpush1.msra.mxu0 0.0
        %4932 = vmatprep.subr.mxu0 0.0
        %4933 = vmatpush1.msra.mxu0 0.0
        %4934 = vmatprep.subr.mxu0 0.0
        %4935 = vmatpush1.msra.mxu0 0.0
        %4936 = vmatprep.subr.mxu0 0.0
        %4937 = vmatpush1.msra.mxu0 0.0
        %4938 = vmatprep.subr.mxu0 0.0
        %4939 = vmatpush1.msra.mxu0 0.0
        %4940 = vmatprep.subr.mxu0 0.0
        %4941 = vmatpush1.msra.mxu0 0.0
        %4942 = vmatprep.subr.mxu0 0.0
        %4943 = vmatpush1.msra.mxu0 0.0
        %4944 = vmatprep.subr.mxu0 0.0
        %4945 = vmatpush1.msra.mxu0 0.0
        %4946 = vmatprep.subr.mxu0 0.0
        %4947 = vmatpush1.msra.mxu0 0.0
        %4948 = vmatprep.subr.mxu0 0.0
        %4949 = vmatpush1.msra.mxu0 0.0
        %4950 = vmatprep.subr.mxu0 0.0
        %4951 = vmatpush1.msra.mxu0 0.0
        %4952 = vmatprep.mubr.f32.mxu0 0.0
        %4953 = vmatmul.mubr.f32.gmra.mrb[0].mxu0 %v4886
        %v4954 = vpop.f32.mrb[0].mxu0
        %v4955 = vadd.f32 %v4882, %v4954
        %v4956 = vpop.f32.mrb[0].mxu0
        %4957 = vdwg.mxu0
        %s4958 = scalar_lea.vmem %s33, 16
        %v4959 = vld [vmem:[%s4958] sm:$0xff]
        %v4961 = vsel %vm1708, %v4959, 0
        %4963 = vmatprep.subr.mxu0 0.0
        %4964 = vmatpush1.msra.mxu0 %v4651
        %4965 = vmatprep.subr.mxu0 0.0
        %4966 = vmatpush1.msra.mxu0 %v4652
        %4967 = vmatprep.subr.mxu0 0.0
        %4968 = vmatpush1.msra.mxu0 0.0
        %4969 = vmatprep.subr.mxu0 0.0
        %4970 = vmatpush1.msra.mxu0 0.0
        %4971 = vmatprep.subr.mxu0 0.0
        %4972 = vmatpush1.msra.mxu0 0.0
        %4973 = vmatprep.subr.mxu0 0.0
        %4974 = vmatpush1.msra.mxu0 0.0
        %4975 = vmatprep.subr.mxu0 0.0
        %4976 = vmatpush1.msra.mxu0 0.0
        %4977 = vmatprep.subr.mxu0 0.0
        %4978 = vmatpush1.msra.mxu0 0.0
        %4979 = vmatprep.subr.mxu0 0.0
        %4980 = vmatpush1.msra.mxu0 0.0
        %4981 = vmatprep.subr.mxu0 0.0
        %4982 = vmatpush1.msra.mxu0 0.0
        %4983 = vmatprep.subr.mxu0 0.0
        %4984 = vmatpush1.msra.mxu0 0.0
        %4985 = vmatprep.subr.mxu0 0.0
        %4986 = vmatpush1.msra.mxu0 0.0
        %4987 = vmatprep.subr.mxu0 0.0
        %4988 = vmatpush1.msra.mxu0 0.0
        %4989 = vmatprep.subr.mxu0 0.0
        %4990 = vmatpush1.msra.mxu0 0.0
        %4991 = vmatprep.subr.mxu0 0.0
        %4992 = vmatpush1.msra.mxu0 0.0
        %4993 = vmatprep.subr.mxu0 0.0
        %4994 = vmatpush1.msra.mxu0 0.0
        %4995 = vmatprep.subr.mxu0 0.0
        %4996 = vmatpush1.msra.mxu0 0.0
        %4997 = vmatprep.subr.mxu0 0.0
        %4998 = vmatpush1.msra.mxu0 0.0
        %4999 = vmatprep.subr.mxu0 0.0
        %5000 = vmatpush1.msra.mxu0 0.0
        %5001 = vmatprep.subr.mxu0 0.0
        %5002 = vmatpush1.msra.mxu0 0.0
        %5003 = vmatprep.subr.mxu0 0.0
        %5004 = vmatpush1.msra.mxu0 0.0
        %5005 = vmatprep.subr.mxu0 0.0
        %5006 = vmatpush1.msra.mxu0 0.0
        %5007 = vmatprep.subr.mxu0 0.0
        %5008 = vmatpush1.msra.mxu0 0.0
        %5009 = vmatprep.subr.mxu0 0.0
        %5010 = vmatpush1.msra.mxu0 0.0
        %5011 = vmatprep.subr.mxu0 0.0
        %5012 = vmatpush1.msra.mxu0 0.0
        %5013 = vmatprep.subr.mxu0 0.0
        %5014 = vmatpush1.msra.mxu0 0.0
        %5015 = vmatprep.subr.mxu0 0.0
        %5016 = vmatpush1.msra.mxu0 0.0
        %5017 = vmatprep.subr.mxu0 0.0
        %5018 = vmatpush1.msra.mxu0 0.0
        %5019 = vmatprep.subr.mxu0 0.0
        %5020 = vmatpush1.msra.mxu0 0.0
        %5021 = vmatprep.subr.mxu0 0.0
        %5022 = vmatpush1.msra.mxu0 0.0
        %5023 = vmatprep.subr.mxu0 0.0
        %5024 = vmatpush1.msra.mxu0 0.0
        %5025 = vmatprep.subr.mxu0 0.0
        %5026 = vmatpush1.msra.mxu0 0.0
        %5027 = vmatprep.mubr.f32.mxu0 0.0
        %5028 = vmatmul.mubr.f32.gmra.mrb[0].mxu0 %v4961
        %v5029 = vpop.f32.mrb[0].mxu0
        %v5030 = vadd.f32 0.0, %v5029
        %v5031 = vpop.f32.mrb[0].mxu0
        %5032 = vdwg.mxu0
        %s5033 = scalar_lea.vmem %s37, 64
        %v5034 = vld [vmem:[%s5033] sm:$0xff]
        %v5035 = vld [vmem:[%s5033 + $0x8] sm:$0xff]
        %v5036 = vld [vmem:[%s5033 + $0x10] sm:$0xff]
        %v5037 = vld [vmem:[%s5033 + $0x18] sm:$0xff]
        %v5039 = vsel %vm1537, %v5030, 0
        %5041 = vmatprep.subr.mxu0 0.0
        %5042 = vmatpush1.msra.mxu0 %v5034
        %5043 = vmatprep.subr.mxu0 0.0
        %5044 = vmatpush1.msra.mxu0 %v5035
        %5045 = vmatprep.subr.mxu0 0.0
        %5046 = vmatpush1.msra.mxu0 %v5036
        %5047 = vmatprep.subr.mxu0 0.0
        %5048 = vmatpush1.msra.mxu0 %v5037
        %5049 = vmatprep.subr.mxu0 0.0
        %5050 = vmatpush1.msra.mxu0 0.0
        %5051 = vmatprep.subr.mxu0 0.0
        %5052 = vmatpush1.msra.mxu0 0.0
        %5053 = vmatprep.subr.mxu0 0.0
        %5054 = vmatpush1.msra.mxu0 0.0
        %5055 = vmatprep.subr.mxu0 0.0
        %5056 = vmatpush1.msra.mxu0 0.0
        %5057 = vmatprep.subr.mxu0 0.0
        %5058 = vmatpush1.msra.mxu0 0.0
        %5059 = vmatprep.subr.mxu0 0.0
        %5060 = vmatpush1.msra.mxu0 0.0
        %5061 = vmatprep.subr.mxu0 0.0
        %5062 = vmatpush1.msra.mxu0 0.0
        %5063 = vmatprep.subr.mxu0 0.0
        %5064 = vmatpush1.msra.mxu0 0.0
        %5065 = vmatprep.subr.mxu0 0.0
        %5066 = vmatpush1.msra.mxu0 0.0
        %5067 = vmatprep.subr.mxu0 0.0
        %5068 = vmatpush1.msra.mxu0 0.0
        %5069 = vmatprep.subr.mxu0 0.0
        %5070 = vmatpush1.msra.mxu0 0.0
        %5071 = vmatprep.subr.mxu0 0.0
        %5072 = vmatpush1.msra.mxu0 0.0
        %5073 = vmatprep.subr.mxu0 0.0
        %5074 = vmatpush1.msra.mxu0 0.0
        %5075 = vmatprep.subr.mxu0 0.0
        %5076 = vmatpush1.msra.mxu0 0.0
        %5077 = vmatprep.subr.mxu0 0.0
        %5078 = vmatpush1.msra.mxu0 0.0
        %5079 = vmatprep.subr.mxu0 0.0
        %5080 = vmatpush1.msra.mxu0 0.0
        %5081 = vmatprep.subr.mxu0 0.0
        %5082 = vmatpush1.msra.mxu0 0.0
        %5083 = vmatprep.subr.mxu0 0.0
        %5084 = vmatpush1.msra.mxu0 0.0
        %5085 = vmatprep.subr.mxu0 0.0
        %5086 = vmatpush1.msra.mxu0 0.0
        %5087 = vmatprep.subr.mxu0 0.0
        %5088 = vmatpush1.msra.mxu0 0.0
        %5089 = vmatprep.subr.mxu0 0.0
        %5090 = vmatpush1.msra.mxu0 0.0
        %5091 = vmatprep.subr.mxu0 0.0
        %5092 = vmatpush1.msra.mxu0 0.0
        %5093 = vmatprep.subr.mxu0 0.0
        %5094 = vmatpush1.msra.mxu0 0.0
        %5095 = vmatprep.subr.mxu0 0.0
        %5096 = vmatpush1.msra.mxu0 0.0
        %5097 = vmatprep.subr.mxu0 0.0
        %5098 = vmatpush1.msra.mxu0 0.0
        %5099 = vmatprep.subr.mxu0 0.0
        %5100 = vmatpush1.msra.mxu0 0.0
        %5101 = vmatprep.subr.mxu0 0.0
        %5102 = vmatpush1.msra.mxu0 0.0
        %5103 = vmatprep.subr.mxu0 0.0
        %5104 = vmatpush1.msra.mxu0 0.0
        %5105 = vmatprep.mubr.f32.mxu0 0.0
        %5106 = vmatmul.mubr.f32.gmra.mrb[0].mxu0 %v5039
        %v5107 = vpop.f32.mrb[0].mxu0
        %v5108 = vadd.f32 0.0, %v5107
        %v5109 = vpop.f32.mrb[0].mxu0
        %5110 = vdwg.mxu0
        %v5111 = vadd.f32 %v4955, %v5108
        %s5112 = scalar_lea.vmem %s33, 24
        %v5113 = vld [vmem:[%s5112] sm:$0xff]
        %v5115 = vsel %vm1708, %v5113, 0
        %5117 = vmatprep.subr.mxu0 0.0
        %5118 = vmatpush1.msra.mxu0 %v4651
        %5119 = vmatprep.subr.mxu0 0.0
        %5120 = vmatpush1.msra.mxu0 %v4652
        %5121 = vmatprep.subr.mxu0 0.0
        %5122 = vmatpush1.msra.mxu0 0.0
        %5123 = vmatprep.subr.mxu0 0.0
        %5124 = vmatpush1.msra.mxu0 0.0
        %5125 = vmatprep.subr.mxu0 0.0
        %5126 = vmatpush1.msra.mxu0 0.0
        %5127 = vmatprep.subr.mxu0 0.0
        %5128 = vmatpush1.msra.mxu0 0.0
        %5129 = vmatprep.subr.mxu0 0.0
        %5130 = vmatpush1.msra.mxu0 0.0
        %5131 = vmatprep.subr.mxu0 0.0
        %5132 = vmatpush1.msra.mxu0 0.0
        %5133 = vmatprep.subr.mxu0 0.0
        %5134 = vmatpush1.msra.mxu0 0.0
        %5135 = vmatprep.subr.mxu0 0.0
        %5136 = vmatpush1.msra.mxu0 0.0
        %5137 = vmatprep.subr.mxu0 0.0
        %5138 = vmatpush1.msra.mxu0 0.0
        %5139 = vmatprep.subr.mxu0 0.0
        %5140 = vmatpush1.msra.mxu0 0.0
        %5141 = vmatprep.subr.mxu0 0.0
        %5142 = vmatpush1.msra.mxu0 0.0
        %5143 = vmatprep.subr.mxu0 0.0
        %5144 = vmatpush1.msra.mxu0 0.0
        %5145 = vmatprep.subr.mxu0 0.0
        %5146 = vmatpush1.msra.mxu0 0.0
        %5147 = vmatprep.subr.mxu0 0.0
        %5148 = vmatpush1.msra.mxu0 0.0
        %5149 = vmatprep.subr.mxu0 0.0
        %5150 = vmatpush1.msra.mxu0 0.0
        %5151 = vmatprep.subr.mxu0 0.0
        %5152 = vmatpush1.msra.mxu0 0.0
        %5153 = vmatprep.subr.mxu0 0.0
        %5154 = vmatpush1.msra.mxu0 0.0
        %5155 = vmatprep.subr.mxu0 0.0
        %5156 = vmatpush1.msra.mxu0 0.0
        %5157 = vmatprep.subr.mxu0 0.0
        %5158 = vmatpush1.msra.mxu0 0.0
        %5159 = vmatprep.subr.mxu0 0.0
        %5160 = vmatpush1.msra.mxu0 0.0
        %5161 = vmatprep.subr.mxu0 0.0
        %5162 = vmatpush1.msra.mxu0 0.0
        %5163 = vmatprep.subr.mxu0 0.0
        %5164 = vmatpush1.msra.mxu0 0.0
        %5165 = vmatprep.subr.mxu0 0.0
        %5166 = vmatpush1.msra.mxu0 0.0
        %5167 = vmatprep.subr.mxu0 0.0
        %5168 = vmatpush1.msra.mxu0 0.0
        %5169 = vmatprep.subr.mxu0 0.0
        %5170 = vmatpush1.msra.mxu0 0.0
        %5171 = vmatprep.subr.mxu0 0.0
        %5172 = vmatpush1.msra.mxu0 0.0
        %5173 = vmatprep.subr.mxu0 0.0
        %5174 = vmatpush1.msra.mxu0 0.0
        %5175 = vmatprep.subr.mxu0 0.0
        %5176 = vmatpush1.msra.mxu0 0.0
        %5177 = vmatprep.subr.mxu0 0.0
        %5178 = vmatpush1.msra.mxu0 0.0
        %5179 = vmatprep.subr.mxu0 0.0
        %5180 = vmatpush1.msra.mxu0 0.0
        %5181 = vmatprep.mubr.f32.mxu0 0.0
        %5182 = vmatmul.mubr.f32.gmra.mrb[0].mxu0 %v5115
        %v5183 = vpop.f32.mrb[0].mxu0
        %v5184 = vadd.f32 0.0, %v5183
        %v5185 = vpop.f32.mrb[0].mxu0
        %5186 = vdwg.mxu0
        %s5187 = scalar_lea.vmem %s37, 96
        %v5188 = vld [vmem:[%s5187] sm:$0xff]
        %v5189 = vld [vmem:[%s5187 + $0x8] sm:$0xff]
        %v5190 = vld [vmem:[%s5187 + $0x10] sm:$0xff]
        %v5191 = vld [vmem:[%s5187 + $0x18] sm:$0xff]
        %v5193 = vsel %vm1537, %v5184, 0
        %5195 = vmatprep.subr.mxu0 0.0
        %5196 = vmatpush1.msra.mxu0 %v5188
        %5197 = vmatprep.subr.mxu0 0.0
        %5198 = vmatpush1.msra.mxu0 %v5189
        %5199 = vmatprep.subr.mxu0 0.0
        %5200 = vmatpush1.msra.mxu0 %v5190
        %5201 = vmatprep.subr.mxu0 0.0
        %5202 = vmatpush1.msra.mxu0 %v5191
        %5203 = vmatprep.subr.mxu0 0.0
        %5204 = vmatpush1.msra.mxu0 0.0
        %5205 = vmatprep.subr.mxu0 0.0
        %5206 = vmatpush1.msra.mxu0 0.0
        %5207 = vmatprep.subr.mxu0 0.0
        %5208 = vmatpush1.msra.mxu0 0.0
        %5209 = vmatprep.subr.mxu0 0.0
        %5210 = vmatpush1.msra.mxu0 0.0
        %5211 = vmatprep.subr.mxu0 0.0
        %5212 = vmatpush1.msra.mxu0 0.0
        %5213 = vmatprep.subr.mxu0 0.0
        %5214 = vmatpush1.msra.mxu0 0.0
        %5215 = vmatprep.subr.mxu0 0.0
        %5216 = vmatpush1.msra.mxu0 0.0
        %5217 = vmatprep.subr.mxu0 0.0
        %5218 = vmatpush1.msra.mxu0 0.0
        %5219 = vmatprep.subr.mxu0 0.0
        %5220 = vmatpush1.msra.mxu0 0.0
        %5221 = vmatprep.subr.mxu0 0.0
        %5222 = vmatpush1.msra.mxu0 0.0
        %5223 = vmatprep.subr.mxu0 0.0
        %5224 = vmatpush1.msra.mxu0 0.0
        %5225 = vmatprep.subr.mxu0 0.0
        %5226 = vmatpush1.msra.mxu0 0.0
        %5227 = vmatprep.subr.mxu0 0.0
        %5228 = vmatpush1.msra.mxu0 0.0
        %5229 = vmatprep.subr.mxu0 0.0
        %5230 = vmatpush1.msra.mxu0 0.0
        %5231 = vmatprep.subr.mxu0 0.0
        %5232 = vmatpush1.msra.mxu0 0.0
        %5233 = vmatprep.subr.mxu0 0.0
        %5234 = vmatpush1.msra.mxu0 0.0
        %5235 = vmatprep.subr.mxu0 0.0
        %5236 = vmatpush1.msra.mxu0 0.0
        %5237 = vmatprep.subr.mxu0 0.0
        %5238 = vmatpush1.msra.mxu0 0.0
        %5239 = vmatprep.subr.mxu0 0.0
        %5240 = vmatpush1.msra.mxu0 0.0
        %5241 = vmatprep.subr.mxu0 0.0
        %5242 = vmatpush1.msra.mxu0 0.0
        %5243 = vmatprep.subr.mxu0 0.0
        %5244 = vmatpush1.msra.mxu0 0.0
        %5245 = vmatprep.subr.mxu0 0.0
        %5246 = vmatpush1.msra.mxu0 0.0
        %5247 = vmatprep.subr.mxu0 0.0
        %5248 = vmatpush1.msra.mxu0 0.0
        %5249 = vmatprep.subr.mxu0 0.0
        %5250 = vmatpush1.msra.mxu0 0.0
        %5251 = vmatprep.subr.mxu0 0.0
        %5252 = vmatpush1.msra.mxu0 0.0
        %5253 = vmatprep.subr.mxu0 0.0
        %5254 = vmatpush1.msra.mxu0 0.0
        %5255 = vmatprep.subr.mxu0 0.0
        %5256 = vmatpush1.msra.mxu0 0.0
        %5257 = vmatprep.subr.mxu0 0.0
        %5258 = vmatpush1.msra.mxu0 0.0
        %5259 = vmatprep.mubr.f32.mxu0 0.0
        %5260 = vmatmul.mubr.f32.gmra.mrb[0].mxu0 %v5193
        %v5261 = vpop.f32.mrb[0].mxu0
        %v5262 = vadd.f32 0.0, %v5261
        %v5263 = vpop.f32.mrb[0].mxu0
        %5264 = vdwg.mxu0
        %v5265 = vadd.f32 %v5111, %v5262
        %5267 = vset.pattern.permute.xlu0 0
        %5268 = vperm.xlu0 %5267, %v4653
        %v5269 = vpop.permute.xlu0 %5268
        %v5271 = vadd.f32 %v5265, %v5269
        %v5272 = vld [vmem:[%s39] sm:$0xff]
        %v5273 = vld [vmem:[%s41] sm:$0xff]
        %5275 = vset.pattern.permute.xlu0 0
        %5276 = vperm.xlu0 %5275, %v5272
        %v5277 = vpop.permute.xlu0 %5276
        %v5279 = vmul.f32 %v5277, %v5271
        %v5280 = vand.u32 2147483647, %v5279
        %vm5281 = vcmp.le.f32.partialorder %v5280, 0.7853982
        %vm5282 = vcmp.lt.s32.totalorder %v5279, 0
        %v5283 = vand.u32 %v5279, 2139095040
        %v5284 = vshrl.u32 %v5283, 23
        %v5285 = vsub.s32 %v5284, 127
        %v5286 = vand.u32 2147483647, %v5279
        %v5287 = vand.u32 %v5286, 8388607
        %v5288 = vor.u32 %v5287, 8388608
        %v5289 = vsub.s32 0, %v5288
        %v5290 = vadd.s32 %v5285, 1
        %vm5291 = vcmp.gt.s32.totalorder %v5290, 0
        %v5292 = vsel %vm5291, %v5290, 0
        %v5293 = vshrl.u32 %v5292, 5
        %v5294 = vand.u32 %v5292, 31
        %v5295 = vsub.s32 32, %v5294
        %v5296 = vshrl.u32 683565275, %v5295
        %v5297 = vshll.u32 683565275, %v5294
        %v5298 = vshrl.u32 2475754826, %v5295
        %v5299 = vor.u32 %v5297, %v5298
        %v5300 = vshll.u32 2475754826, %v5294
        %v5301 = vshrl.u32 2131351028, %v5295
        %v5302 = vor.u32 %v5300, %v5301
        %v5303 = vshll.u32 2131351028, %v5294
        %v5304 = vshrl.u32 2102212464, %v5295
        %v5305 = vor.u32 %v5303, %v5304
        %v5306 = vshll.u32 2102212464, %v5294
        %v5307 = vshrl.u32 920167782, %v5295
        %v5308 = vor.u32 %v5306, %v5307
        %v5309 = vshll.u32 920167782, %v5294
        %v5310 = vshrl.u32 1326507024, %v5295
        %v5311 = vor.u32 %v5309, %v5310
        %vm5312 = vcmp.lt.s32.totalorder %v5293, 1
        %vm5313 = vcmp.lt.s32.totalorder %v5293, 2
        %vm5314 = vcmp.lt.s32.totalorder %v5293, 3
        %vm5315 = vcmp.lt.s32.totalorder %v5293, 4
        %v5316 = vsel %vm5312, %v5296, %v5299
        %v5317 = vsel %vm5315, %v5305, 2102212464
        %v5318 = vsel %vm5314, %v5302, %v5317
        %v5319 = vsel %vm5313, %v5316, %v5318
        %v5320 = vsel %vm5312, %v5299, %v5302
        %v5321 = vsel %vm5315, %v5308, 920167782
        %v5322 = vsel %vm5314, %v5305, %v5321
        %v5323 = vsel %vm5313, %v5320, %v5322
        %v5324 = vsel %vm5312, %v5302, %v5305
        %v5325 = vsel %vm5315, %v5311, 1326507024
        %v5326 = vsel %vm5314, %v5308, %v5325
        %v5327 = vsel %vm5313, %v5324, %v5326
        %v5328 = vshll.u32 %v5288, 8
        %v5329 = vmul.u32.u64.compose %v5328, %v5327
        %v5330 = vextract.low.u32 %v5329
        %v5331 = vextract.high.u32 %v5329
        %v5332 = vmul.u32.u64.compose %v5328, %v5323
        %v5333 = vextract.low.u32 %v5332
        %v5334 = vextract.high.u32 %v5332
        %v5335 = vmul.u32 %v5328, %v5319
        %v5336 = vadd.s32 %v5331, %v5333
        %vm5337 = vc.u32 %v5331, %v5333
        %v5338 = vadd.s32 %v5334, 1
        %v5339 = vsel %vm5337, %v5338, %v5334
        %v5340 = vadd.s32 %v5335, %v5339
        %v5341 = vadd.s32 %v5340, 536870912
        %v5342 = vshrl.u32 %v5341, 30
        %v5343 = vshll.u32 %v5342, 30
        %v5344 = vsub.s32 %v5340, %v5343
        %vm5345 = vcmp.lt.s32.totalorder %v5344, 0
        %v5346 = vsub.s32 0, %v5344
        %v5347 = vsel %vm5345, %v5346, %v5344
        %v5348 = vclz %v5347
        %v5349 = vsub.s32 %v5348, 2
        %vm5350 = vcmp.gt.s32.totalorder 0, %v5349
        %v5351 = vsel %vm5350, 0, %v5349
        %v5352 = vsub.s32 32, %v5351
        %v5353 = vshll.u32 %v5344, %v5351
        %v5354 = vshrl.u32 %v5336, %v5352
        %v5355 = vor.u32 %v5353, %v5354
        %v5356 = vsub.s32 4294967266, %v5351
        %v5357 = vadd.s32 %v5356, 127
        %v5358 = vshll.u32 %v5357, 23
        %v5359 = vor.u32 4788187, %v5358
        %v5360 = vand.u32 2147483647, %v5359
        %v5362 = vcvt.s32.f32 %v5355
        %v5363 = vmul.f32 %v5362, %v5360
        %v5364 = vxor.u32 %v5363, 2147483648
        %v5365 = vsel %vm5282, %v5364, %v5363
        %v5366 = vsub.s32 4, %v5342
        %v5367 = vsel %vm5282, %v5366, %v5342
        %v5368 = vsel %vm5281, %v5279, %v5365
        %v5369 = vsel %vm5281, 0, %v5367
        %v5370 = vcosq.f32.pop %v5368
        %v5371 = vsinq.f32.pop %v5368
        %vm5372 = vweird.f32 %v5279
        %v5373 = vadd.s32 %v5369, 3
        %v5374 = vand.u32 %v5373, 3
        %vm5375 = vcmp.lt.s32.totalorder %v5374, 2
        %vm5376 = vcmp.eq.s32.totalorder %v5374, 0
        %v5377 = vxor.u32 %v5371, 2147483648
        %v5378 = vsel %vm5376, %v5370, %v5377
        %vm5379 = vcmp.eq.s32.totalorder %v5374, 2
        %v5380 = vxor.u32 %v5370, 2147483648
        %v5381 = vsel %vm5379, %v5380, %v5371
        %v5382 = vsel %vm5375, %v5378, %v5381
        %v5383 = vsel %vm5372, nan, %v5382
        %v5384 = vmul.f32 %v5383, %v5383
        %5386 = vset.pattern.permute.xlu0 0
        %5387 = vperm.xlu0 %5386, %v5273
        %v5388 = vpop.permute.xlu0 %5387
        %v5390 = vmul.f32 %v5388, %v5384
        %v5391 = vadd.f32 %v5271, %v5390
        %v5392 = vld [vmem:[%s43] sm:$0xff]
        %v5393 = vld [vmem:[%s45] sm:$0xff]
        %5395 = vrot.lane.b32.xlu0 %v5391, 3
        %v5396 = vpop.permute.xlu0 %5395
        %v5398 = vsel %vm912, 0.0, %v5396
        %vm5399 = vcmask 547840
        %v5400 = vsel %vm5399, %v5398, 0.0
        %5402 = vrot.lane.b32.xlu0 %v5400, 127
        %v5403 = vpop.permute.xlu0 %5402
        %5405 = vrot.lane.b32.xlu0 %v5400, 126
        %v5406 = vpop.permute.xlu0 %5405
        %5408 = vrot.lane.b32.xlu0 %v5400, 125
        %v5409 = vpop.permute.xlu0 %5408
        %5411 = vrot.lane.b32.xlu0 %v5400, 124
        %v5412 = vpop.permute.xlu0 %5411
        %5414 = vrot.lane.b32.xlu0 %v5400, 123
        %v5415 = vpop.permute.xlu0 %5414
        %5417 = vrot.lane.b32.xlu0 %v5400, 122
        %v5418 = vpop.permute.xlu0 %5417
        %5421 = vset.pattern.permute.xlu0 0
        %5422 = vperm.xlu0 %5421, %v5393
        %v5423 = vpop.permute.xlu0 %5422
        %v5426 = vsel %vm955, %v5392, 0
        %5428 = vmatprep.subr.mxu0 0.0
        %5429 = vmatpush1.msra.mxu0 %v5400
        %5430 = vmatprep.subr.mxu0 0.0
        %5431 = vmatpush1.msra.mxu0 %v5403
        %5432 = vmatprep.subr.mxu0 0.0
        %5433 = vmatpush1.msra.mxu0 %v5406
        %5434 = vmatprep.subr.mxu0 0.0
        %5435 = vmatpush1.msra.mxu0 %v5409
        %5436 = vmatprep.subr.mxu0 0.0
        %5437 = vmatpush1.msra.mxu0 %v5412
        %5438 = vmatprep.subr.mxu0 0.0
        %5439 = vmatpush1.msra.mxu0 %v5415
        %5440 = vmatprep.subr.mxu0 0.0
        %5441 = vmatpush1.msra.mxu0 %v5418
        %5442 = vmatprep.subr.mxu0 0.0
        %5443 = vmatpush1.msra.mxu0 0.0
        %5444 = vmatprep.subr.mxu0 0.0
        %5445 = vmatpush1.msra.mxu0 0.0
        %5446 = vmatprep.subr.mxu0 0.0
        %5447 = vmatpush1.msra.mxu0 0.0
        %5448 = vmatprep.subr.mxu0 0.0
        %5449 = vmatpush1.msra.mxu0 0.0
        %5450 = vmatprep.subr.mxu0 0.0
        %5451 = vmatpush1.msra.mxu0 0.0
        %5452 = vmatprep.subr.mxu0 0.0
        %5453 = vmatpush1.msra.mxu0 0.0
        %5454 = vmatprep.subr.mxu0 0.0
        %5455 = vmatpush1.msra.mxu0 0.0
        %5456 = vmatprep.subr.mxu0 0.0
        %5457 = vmatpush1.msra.mxu0 0.0
        %5458 = vmatprep.subr.mxu0 0.0
        %5459 = vmatpush1.msra.mxu0 0.0
        %5460 = vmatprep.subr.mxu0 0.0
        %5461 = vmatpush1.msra.mxu0 0.0
        %5462 = vmatprep.subr.mxu0 0.0
        %5463 = vmatpush1.msra.mxu0 0.0
        %5464 = vmatprep.subr.mxu0 0.0
        %5465 = vmatpush1.msra.mxu0 0.0
        %5466 = vmatprep.subr.mxu0 0.0
        %5467 = vmatpush1.msra.mxu0 0.0
        %5468 = vmatprep.subr.mxu0 0.0
        %5469 = vmatpush1.msra.mxu0 0.0
        %5470 = vmatprep.subr.mxu0 0.0
        %5471 = vmatpush1.msra.mxu0 0.0
        %5472 = vmatprep.subr.mxu0 0.0
        %5473 = vmatpush1.msra.mxu0 0.0
        %5474 = vmatprep.subr.mxu0 0.0
        %5475 = vmatpush1.msra.mxu0 0.0
        %5476 = vmatprep.subr.mxu0 0.0
        %5477 = vmatpush1.msra.mxu0 0.0
        %5478 = vmatprep.subr.mxu0 0.0
        %5479 = vmatpush1.msra.mxu0 0.0
        %5480 = vmatprep.subr.mxu0 0.0
        %5481 = vmatpush1.msra.mxu0 0.0
        %5482 = vmatprep.subr.mxu0 0.0
        %5483 = vmatpush1.msra.mxu0 0.0
        %5484 = vmatprep.subr.mxu0 0.0
        %5485 = vmatpush1.msra.mxu0 0.0
        %5486 = vmatprep.subr.mxu0 0.0
        %5487 = vmatpush1.msra.mxu0 0.0
        %5488 = vmatprep.subr.mxu0 0.0
        %5489 = vmatpush1.msra.mxu0 0.0
        %5490 = vmatprep.subr.mxu0 0.0
        %5491 = vmatpush1.msra.mxu0 0.0
        %5492 = vmatprep.mubr.f32.mxu0 0.0
        %5493 = vmatmul.mubr.f32.gmra.mrb[0].mxu0 %v5426
        %v5494 = vpop.f32.mrb[0].mxu0
        %v5495 = vadd.f32 %v5423, %v5494
        %v5496 = vpop.f32.mrb[0].mxu0
        %5497 = vdwg.mxu0
        %s5498 = scalar_lea.vmem %s39, 8
        %v5499 = vld [vmem:[%s5498] sm:$0xff]
        %s5500 = scalar_lea.vmem %s41, 8
        %v5501 = vld [vmem:[%s5500] sm:$0xff]
        %5503 = vset.pattern.permute.xlu0 0
        %5504 = vperm.xlu0 %5503, %v5499
        %v5505 = vpop.permute.xlu0 %5504
        %v5507 = vmul.f32 %v5505, %v5495
        %v5508 = vand.u32 2147483647, %v5507
        %vm5509 = vcmp.le.f32.partialorder %v5508, 0.7853982
        %vm5510 = vcmp.lt.s32.totalorder %v5507, 0
        %v5511 = vand.u32 %v5507, 2139095040
        %v5512 = vshrl.u32 %v5511, 23
        %v5513 = vsub.s32 %v5512, 127
        %v5514 = vand.u32 2147483647, %v5507
        %v5515 = vand.u32 %v5514, 8388607
        %v5516 = vor.u32 %v5515, 8388608
        %v5517 = vsub.s32 0, %v5516
        %v5518 = vadd.s32 %v5513, 1
        %vm5519 = vcmp.gt.s32.totalorder %v5518, 0
        %v5520 = vsel %vm5519, %v5518, 0
        %v5521 = vshrl.u32 %v5520, 5
        %v5522 = vand.u32 %v5520, 31
        %v5523 = vsub.s32 32, %v5522
        %v5524 = vshrl.u32 683565275, %v5523
        %v5525 = vshll.u32 683565275, %v5522
        %v5526 = vshrl.u32 2475754826, %v5523
        %v5527 = vor.u32 %v5525, %v5526
        %v5528 = vshll.u32 2475754826, %v5522
        %v5529 = vshrl.u32 2131351028, %v5523
        %v5530 = vor.u32 %v5528, %v5529
        %v5531 = vshll.u32 2131351028, %v5522
        %v5532 = vshrl.u32 2102212464, %v5523
        %v5533 = vor.u32 %v5531, %v5532
        %v5534 = vshll.u32 2102212464, %v5522
        %v5535 = vshrl.u32 920167782, %v5523
        %v5536 = vor.u32 %v5534, %v5535
        %v5537 = vshll.u32 920167782, %v5522
        %v5538 = vshrl.u32 1326507024, %v5523
        %v5539 = vor.u32 %v5537, %v5538
        %vm5540 = vcmp.lt.s32.totalorder %v5521, 1
        %vm5541 = vcmp.lt.s32.totalorder %v5521, 2
        %vm5542 = vcmp.lt.s32.totalorder %v5521, 3
        %vm5543 = vcmp.lt.s32.totalorder %v5521, 4
        %v5544 = vsel %vm5540, %v5524, %v5527
        %v5545 = vsel %vm5543, %v5533, 2102212464
        %v5546 = vsel %vm5542, %v5530, %v5545
        %v5547 = vsel %vm5541, %v5544, %v5546
        %v5548 = vsel %vm5540, %v5527, %v5530
        %v5549 = vsel %vm5543, %v5536, 920167782
        %v5550 = vsel %vm5542, %v5533, %v5549
        %v5551 = vsel %vm5541, %v5548, %v5550
        %v5552 = vsel %vm5540, %v5530, %v5533
        %v5553 = vsel %vm5543, %v5539, 1326507024
        %v5554 = vsel %vm5542, %v5536, %v5553
        %v5555 = vsel %vm5541, %v5552, %v5554
        %v5556 = vshll.u32 %v5516, 8
        %v5557 = vmul.u32.u64.compose %v5556, %v5555
        %v5558 = vextract.low.u32 %v5557
        %v5559 = vextract.high.u32 %v5557
        %v5560 = vmul.u32.u64.compose %v5556, %v5551
        %v5561 = vextract.low.u32 %v5560
        %v5562 = vextract.high.u32 %v5560
        %v5563 = vmul.u32 %v5556, %v5547
        %v5564 = vadd.s32 %v5559, %v5561
        %vm5565 = vc.u32 %v5559, %v5561
        %v5566 = vadd.s32 %v5562, 1
        %v5567 = vsel %vm5565, %v5566, %v5562
        %v5568 = vadd.s32 %v5563, %v5567
        %v5569 = vadd.s32 %v5568, 536870912
        %v5570 = vshrl.u32 %v5569, 30
        %v5571 = vshll.u32 %v5570, 30
        %v5572 = vsub.s32 %v5568, %v5571
        %vm5573 = vcmp.lt.s32.totalorder %v5572, 0
        %v5574 = vsub.s32 0, %v5572
        %v5575 = vsel %vm5573, %v5574, %v5572
        %v5576 = vclz %v5575
        %v5577 = vsub.s32 %v5576, 2
        %vm5578 = vcmp.gt.s32.totalorder 0, %v5577
        %v5579 = vsel %vm5578, 0, %v5577
        %v5580 = vsub.s32 32, %v5579
        %v5581 = vshll.u32 %v5572, %v5579
        %v5582 = vshrl.u32 %v5564, %v5580
        %v5583 = vor.u32 %v5581, %v5582
        %v5584 = vsub.s32 4294967266, %v5579
        %v5585 = vadd.s32 %v5584, 127
        %v5586 = vshll.u32 %v5585, 23
        %v5587 = vor.u32 4788187, %v5586
        %v5588 = vand.u32 2147483647, %v5587
        %v5590 = vcvt.s32.f32 %v5583
        %v5591 = vmul.f32 %v5590, %v5588
        %v5592 = vxor.u32 %v5591, 2147483648
        %v5593 = vsel %vm5510, %v5592, %v5591
        %v5594 = vsub.s32 4, %v5570
        %v5595 = vsel %vm5510, %v5594, %v5570
        %v5596 = vsel %vm5509, %v5507, %v5593
        %v5597 = vsel %vm5509, 0, %v5595
        %v5598 = vcosq.f32.pop %v5596
        %v5599 = vsinq.f32.pop %v5596
        %vm5600 = vweird.f32 %v5507
        %v5601 = vadd.s32 %v5597, 3
        %v5602 = vand.u32 %v5601, 3
        %vm5603 = vcmp.lt.s32.totalorder %v5602, 2
        %vm5604 = vcmp.eq.s32.totalorder %v5602, 0
        %v5605 = vxor.u32 %v5599, 2147483648
        %v5606 = vsel %vm5604, %v5598, %v5605
        %vm5607 = vcmp.eq.s32.totalorder %v5602, 2
        %v5608 = vxor.u32 %v5598, 2147483648
        %v5609 = vsel %vm5607, %v5608, %v5599
        %v5610 = vsel %vm5603, %v5606, %v5609
        %v5611 = vsel %vm5600, nan, %v5610
        %v5612 = vmul.f32 %v5611, %v5611
        %5614 = vset.pattern.permute.xlu0 0
        %5615 = vperm.xlu0 %5614, %v5501
        %v5616 = vpop.permute.xlu0 %5615
        %v5618 = vmul.f32 %v5616, %v5612
        %v5619 = vadd.f32 %v5495, %v5618
        %v5620 = vld [vmem:[%s47] sm:$0xff]
        %v5621 = vld [vmem:[%s49] sm:$0xff]
        %5623 = vset.pattern.permute.xlu0 0
        %5624 = vperm.xlu0 %5623, %v5621
        %v5625 = vpop.permute.xlu0 %5624
        %vm5627 = vcmask 64512
        %v5629 = vsel %vm5627, %v5620, 0
        %5631 = vmatprep.subr.mxu0 0.0
        %5632 = vmatpush1.msra.mxu0 %v5619
        %5633 = vmatprep.subr.mxu0 0.0
        %5634 = vmatpush1.msra.mxu0 0.0
        %5635 = vmatprep.subr.mxu0 0.0
        %5636 = vmatpush1.msra.mxu0 0.0
        %5637 = vmatprep.subr.mxu0 0.0
        %5638 = vmatpush1.msra.mxu0 0.0
        %5639 = vmatprep.subr.mxu0 0.0
        %5640 = vmatpush1.msra.mxu0 0.0
        %5641 = vmatprep.subr.mxu0 0.0
        %5642 = vmatpush1.msra.mxu0 0.0
        %5643 = vmatprep.subr.mxu0 0.0
        %5644 = vmatpush1.msra.mxu0 0.0
        %5645 = vmatprep.subr.mxu0 0.0
        %5646 = vmatpush1.msra.mxu0 0.0
        %5647 = vmatprep.subr.mxu0 0.0
        %5648 = vmatpush1.msra.mxu0 0.0
        %5649 = vmatprep.subr.mxu0 0.0
        %5650 = vmatpush1.msra.mxu0 0.0
        %5651 = vmatprep.subr.mxu0 0.0
        %5652 = vmatpush1.msra.mxu0 0.0
        %5653 = vmatprep.subr.mxu0 0.0
        %5654 = vmatpush1.msra.mxu0 0.0
        %5655 = vmatprep.subr.mxu0 0.0
        %5656 = vmatpush1.msra.mxu0 0.0
        %5657 = vmatprep.subr.mxu0 0.0
        %5658 = vmatpush1.msra.mxu0 0.0
        %5659 = vmatprep.subr.mxu0 0.0
        %5660 = vmatpush1.msra.mxu0 0.0
        %5661 = vmatprep.subr.mxu0 0.0
        %5662 = vmatpush1.msra.mxu0 0.0
        %5663 = vmatprep.subr.mxu0 0.0
        %5664 = vmatpush1.msra.mxu0 0.0
        %5665 = vmatprep.subr.mxu0 0.0
        %5666 = vmatpush1.msra.mxu0 0.0
        %5667 = vmatprep.subr.mxu0 0.0
        %5668 = vmatpush1.msra.mxu0 0.0
        %5669 = vmatprep.subr.mxu0 0.0
        %5670 = vmatpush1.msra.mxu0 0.0
        %5671 = vmatprep.subr.mxu0 0.0
        %5672 = vmatpush1.msra.mxu0 0.0
        %5673 = vmatprep.subr.mxu0 0.0
        %5674 = vmatpush1.msra.mxu0 0.0
        %5675 = vmatprep.subr.mxu0 0.0
        %5676 = vmatpush1.msra.mxu0 0.0
        %5677 = vmatprep.subr.mxu0 0.0
        %5678 = vmatpush1.msra.mxu0 0.0
        %5679 = vmatprep.subr.mxu0 0.0
        %5680 = vmatpush1.msra.mxu0 0.0
        %5681 = vmatprep.subr.mxu0 0.0
        %5682 = vmatpush1.msra.mxu0 0.0
        %5683 = vmatprep.subr.mxu0 0.0
        %5684 = vmatpush1.msra.mxu0 0.0
        %5685 = vmatprep.subr.mxu0 0.0
        %5686 = vmatpush1.msra.mxu0 0.0
        %5687 = vmatprep.subr.mxu0 0.0
        %5688 = vmatpush1.msra.mxu0 0.0
        %5689 = vmatprep.subr.mxu0 0.0
        %5690 = vmatpush1.msra.mxu0 0.0
        %5691 = vmatprep.subr.mxu0 0.0
        %5692 = vmatpush1.msra.mxu0 0.0
        %5693 = vmatprep.subr.mxu0 0.0
        %5694 = vmatpush1.msra.mxu0 0.0
        %5695 = vmatprep.mubr.f32.mxu0 0.0
        %5696 = vmatmul.mubr.f32.gmra.mrb[0].mxu0 %v5629
        %v5697 = vpop.f32.mrb[0].mxu0
        %v5698 = vadd.f32 %v5625, %v5697
        %v5699 = vpop.f32.mrb[0].mxu0
        %5700 = vdwg.mxu0
        %v5701 = vadd.f32 %v5271, %v5698
        %s5702 = scalar_lea.vmem %s39, 16
        %v5703 = vld [vmem:[%s5702] sm:$0xff]
        %s5704 = scalar_lea.vmem %s41, 16
        %v5705 = vld [vmem:[%s5704] sm:$0xff]
        %5707 = vset.pattern.permute.xlu0 0
        %5708 = vperm.xlu0 %5707, %v5703
        %v5709 = vpop.permute.xlu0 %5708
        %v5711 = vmul.f32 %v5709, %v5701
        %v5712 = vand.u32 2147483647, %v5711
        %vm5713 = vcmp.le.f32.partialorder %v5712, 0.7853982
        %vm5714 = vcmp.lt.s32.totalorder %v5711, 0
        %v5715 = vand.u32 %v5711, 2139095040
        %v5716 = vshrl.u32 %v5715, 23
        %v5717 = vsub.s32 %v5716, 127
        %v5718 = vand.u32 2147483647, %v5711
        %v5719 = vand.u32 %v5718, 8388607
        %v5720 = vor.u32 %v5719, 8388608
        %v5721 = vsub.s32 0, %v5720
        %v5722 = vadd.s32 %v5717, 1
        %vm5723 = vcmp.gt.s32.totalorder %v5722, 0
        %v5724 = vsel %vm5723, %v5722, 0
        %v5725 = vshrl.u32 %v5724, 5
        %v5726 = vand.u32 %v5724, 31
        %v5727 = vsub.s32 32, %v5726
        %v5728 = vshrl.u32 683565275, %v5727
        %v5729 = vshll.u32 683565275, %v5726
        %v5730 = vshrl.u32 2475754826, %v5727
        %v5731 = vor.u32 %v5729, %v5730
        %v5732 = vshll.u32 2475754826, %v5726
        %v5733 = vshrl.u32 2131351028, %v5727
        %v5734 = vor.u32 %v5732, %v5733
        %v5735 = vshll.u32 2131351028, %v5726
        %v5736 = vshrl.u32 2102212464, %v5727
        %v5737 = vor.u32 %v5735, %v5736
        %v5738 = vshll.u32 2102212464, %v5726
        %v5739 = vshrl.u32 920167782, %v5727
        %v5740 = vor.u32 %v5738, %v5739
        %v5741 = vshll.u32 920167782, %v5726
        %v5742 = vshrl.u32 1326507024, %v5727
        %v5743 = vor.u32 %v5741, %v5742
        %vm5744 = vcmp.lt.s32.totalorder %v5725, 1
        %vm5745 = vcmp.lt.s32.totalorder %v5725, 2
        %vm5746 = vcmp.lt.s32.totalorder %v5725, 3
        %vm5747 = vcmp.lt.s32.totalorder %v5725, 4
        %v5748 = vsel %vm5744, %v5728, %v5731
        %v5749 = vsel %vm5747, %v5737, 2102212464
        %v5750 = vsel %vm5746, %v5734, %v5749
        %v5751 = vsel %vm5745, %v5748, %v5750
        %v5752 = vsel %vm5744, %v5731, %v5734
        %v5753 = vsel %vm5747, %v5740, 920167782
        %v5754 = vsel %vm5746, %v5737, %v5753
        %v5755 = vsel %vm5745, %v5752, %v5754
        %v5756 = vsel %vm5744, %v5734, %v5737
        %v5757 = vsel %vm5747, %v5743, 1326507024
        %v5758 = vsel %vm5746, %v5740, %v5757
        %v5759 = vsel %vm5745, %v5756, %v5758
        %v5760 = vshll.u32 %v5720, 8
        %v5761 = vmul.u32.u64.compose %v5760, %v5759
        %v5762 = vextract.low.u32 %v5761
        %v5763 = vextract.high.u32 %v5761
        %v5764 = vmul.u32.u64.compose %v5760, %v5755
        %v5765 = vextract.low.u32 %v5764
        %v5766 = vextract.high.u32 %v5764
        %v5767 = vmul.u32 %v5760, %v5751
        %v5768 = vadd.s32 %v5763, %v5765
        %vm5769 = vc.u32 %v5763, %v5765
        %v5770 = vadd.s32 %v5766, 1
        %v5771 = vsel %vm5769, %v5770, %v5766
        %v5772 = vadd.s32 %v5767, %v5771
        %v5773 = vadd.s32 %v5772, 536870912
        %v5774 = vshrl.u32 %v5773, 30
        %v5775 = vshll.u32 %v5774, 30
        %v5776 = vsub.s32 %v5772, %v5775
        %vm5777 = vcmp.lt.s32.totalorder %v5776, 0
        %v5778 = vsub.s32 0, %v5776
        %v5779 = vsel %vm5777, %v5778, %v5776
        %v5780 = vclz %v5779
        %v5781 = vsub.s32 %v5780, 2
        %vm5782 = vcmp.gt.s32.totalorder 0, %v5781
        %v5783 = vsel %vm5782, 0, %v5781
        %v5784 = vsub.s32 32, %v5783
        %v5785 = vshll.u32 %v5776, %v5783
        %v5786 = vshrl.u32 %v5768, %v5784
        %v5787 = vor.u32 %v5785, %v5786
        %v5788 = vsub.s32 4294967266, %v5783
        %v5789 = vadd.s32 %v5788, 127
        %v5790 = vshll.u32 %v5789, 23
        %v5791 = vor.u32 4788187, %v5790
        %v5792 = vand.u32 2147483647, %v5791
        %v5794 = vcvt.s32.f32 %v5787
        %v5795 = vmul.f32 %v5794, %v5792
        %v5796 = vxor.u32 %v5795, 2147483648
        %v5797 = vsel %vm5714, %v5796, %v5795
        %v5798 = vsub.s32 4, %v5774
        %v5799 = vsel %vm5714, %v5798, %v5774
        %v5800 = vsel %vm5713, %v5711, %v5797
        %v5801 = vsel %vm5713, 0, %v5799
        %v5802 = vcosq.f32.pop %v5800
        %v5803 = vsinq.f32.pop %v5800
        %vm5804 = vweird.f32 %v5711
        %v5805 = vadd.s32 %v5801, 3
        %v5806 = vand.u32 %v5805, 3
        %vm5807 = vcmp.lt.s32.totalorder %v5806, 2
        %vm5808 = vcmp.eq.s32.totalorder %v5806, 0
        %v5809 = vxor.u32 %v5803, 2147483648
        %v5810 = vsel %vm5808, %v5802, %v5809
        %vm5811 = vcmp.eq.s32.totalorder %v5806, 2
        %v5812 = vxor.u32 %v5802, 2147483648
        %v5813 = vsel %vm5811, %v5812, %v5803
        %v5814 = vsel %vm5807, %v5810, %v5813
        %v5815 = vsel %vm5804, nan, %v5814
        %v5816 = vmul.f32 %v5815, %v5815
        %5818 = vset.pattern.permute.xlu0 0
        %5819 = vperm.xlu0 %5818, %v5705
        %v5820 = vpop.permute.xlu0 %5819
        %v5822 = vmul.f32 %v5820, %v5816
        %v5823 = vadd.f32 %v5701, %v5822
        %s5824 = scalar_lea.vmem %s43, 8
        %v5825 = vld [vmem:[%s5824] sm:$0xff]
        %s5826 = scalar_lea.vmem %s45, 8
        %v5827 = vld [vmem:[%s5826] sm:$0xff]
        %5829 = vrot.lane.b32.xlu0 %v5823, 9
        %v5830 = vpop.permute.xlu0 %5829
        %v5832 = vsel %vm3205, 0.0, %v5830
        %vm5833 = vcmask 596992
        %v5834 = vsel %vm5833, %v5832, 0.0
        %5836 = vrot.lane.b32.xlu0 %v5834, 125
        %v5837 = vpop.permute.xlu0 %5836
        %5839 = vrot.lane.b32.xlu0 %v5834, 122
        %v5840 = vpop.permute.xlu0 %5839
        %5842 = vrot.lane.b32.xlu0 %v5834, 119
        %v5843 = vpop.permute.xlu0 %5842
        %5845 = vrot.lane.b32.xlu0 %v5834, 116
        %v5846 = vpop.permute.xlu0 %5845
        %5848 = vrot.lane.b32.xlu0 %v5834, 113
        %v5849 = vpop.permute.xlu0 %5848
        %5851 = vrot.lane.b32.xlu0 %v5834, 110
        %v5852 = vpop.permute.xlu0 %5851
        %5855 = vset.pattern.permute.xlu0 0
        %5856 = vperm.xlu0 %5855, %v5827
        %v5857 = vpop.permute.xlu0 %5856
        %v5860 = vsel %vm955, %v5825, 0
        %5862 = vmatprep.subr.mxu0 0.0
        %5863 = vmatpush1.msra.mxu0 %v5834
        %5864 = vmatprep.subr.mxu0 0.0
        %5865 = vmatpush1.msra.mxu0 %v5837
        %5866 = vmatprep.subr.mxu0 0.0
        %5867 = vmatpush1.msra.mxu0 %v5840
        %5868 = vmatprep.subr.mxu0 0.0
        %5869 = vmatpush1.msra.mxu0 %v5843
        %5870 = vmatprep.subr.mxu0 0.0
        %5871 = vmatpush1.msra.mxu0 %v5846
        %5872 = vmatprep.subr.mxu0 0.0
        %5873 = vmatpush1.msra.mxu0 %v5849
        %5874 = vmatprep.subr.mxu0 0.0
        %5875 = vmatpush1.msra.mxu0 %v5852
        %5876 = vmatprep.subr.mxu0 0.0
        %5877 = vmatpush1.msra.mxu0 0.0
        %5878 = vmatprep.subr.mxu0 0.0
        %5879 = vmatpush1.msra.mxu0 0.0
        %5880 = vmatprep.subr.mxu0 0.0
        %5881 = vmatpush1.msra.mxu0 0.0
        %5882 = vmatprep.subr.mxu0 0.0
        %5883 = vmatpush1.msra.mxu0 0.0
        %5884 = vmatprep.subr.mxu0 0.0
        %5885 = vmatpush1.msra.mxu0 0.0
        %5886 = vmatprep.subr.mxu0 0.0
        %5887 = vmatpush1.msra.mxu0 0.0
        %5888 = vmatprep.subr.mxu0 0.0
        %5889 = vmatpush1.msra.mxu0 0.0
        %5890 = vmatprep.subr.mxu0 0.0
        %5891 = vmatpush1.msra.mxu0 0.0
        %5892 = vmatprep.subr.mxu0 0.0
        %5893 = vmatpush1.msra.mxu0 0.0
        %5894 = vmatprep.subr.mxu0 0.0
        %5895 = vmatpush1.msra.mxu0 0.0
        %5896 = vmatprep.subr.mxu0 0.0
        %5897 = vmatpush1.msra.mxu0 0.0
        %5898 = vmatprep.subr.mxu0 0.0
        %5899 = vmatpush1.msra.mxu0 0.0
        %5900 = vmatprep.subr.mxu0 0.0
        %5901 = vmatpush1.msra.mxu0 0.0
        %5902 = vmatprep.subr.mxu0 0.0
        %5903 = vmatpush1.msra.mxu0 0.0
        %5904 = vmatprep.subr.mxu0 0.0
        %5905 = vmatpush1.msra.mxu0 0.0
        %5906 = vmatprep.subr.mxu0 0.0
        %5907 = vmatpush1.msra.mxu0 0.0
        %5908 = vmatprep.subr.mxu0 0.0
        %5909 = vmatpush1.msra.mxu0 0.0
        %5910 = vmatprep.subr.mxu0 0.0
        %5911 = vmatpush1.msra.mxu0 0.0
        %5912 = vmatprep.subr.mxu0 0.0
        %5913 = vmatpush1.msra.mxu0 0.0
        %5914 = vmatprep.subr.mxu0 0.0
        %5915 = vmatpush1.msra.mxu0 0.0
        %5916 = vmatprep.subr.mxu0 0.0
        %5917 = vmatpush1.msra.mxu0 0.0
        %5918 = vmatprep.subr.mxu0 0.0
        %5919 = vmatpush1.msra.mxu0 0.0
        %5920 = vmatprep.subr.mxu0 0.0
        %5921 = vmatpush1.msra.mxu0 0.0
        %5922 = vmatprep.subr.mxu0 0.0
        %5923 = vmatpush1.msra.mxu0 0.0
        %5924 = vmatprep.subr.mxu0 0.0
        %5925 = vmatpush1.msra.mxu0 0.0
        %5926 = vmatprep.mubr.f32.mxu0 0.0
        %5927 = vmatmul.mubr.f32.gmra.mrb[0].mxu0 %v5860
        %v5928 = vpop.f32.mrb[0].mxu0
        %v5929 = vadd.f32 %v5857, %v5928
        %v5930 = vpop.f32.mrb[0].mxu0
        %5931 = vdwg.mxu0
        %s5932 = scalar_lea.vmem %s39, 24
        %v5933 = vld [vmem:[%s5932] sm:$0xff]
        %s5934 = scalar_lea.vmem %s41, 24
        %v5935 = vld [vmem:[%s5934] sm:$0xff]
        %5937 = vset.pattern.permute.xlu0 0
        %5938 = vperm.xlu0 %5937, %v5933
        %v5939 = vpop.permute.xlu0 %5938
        %v5941 = vmul.f32 %v5939, %v5929
        %v5942 = vand.u32 2147483647, %v5941
        %vm5943 = vcmp.le.f32.partialorder %v5942, 0.7853982
        %vm5944 = vcmp.lt.s32.totalorder %v5941, 0
        %v5945 = vand.u32 %v5941, 2139095040
        %v5946 = vshrl.u32 %v5945, 23
        %v5947 = vsub.s32 %v5946, 127
        %v5948 = vand.u32 2147483647, %v5941
        %v5949 = vand.u32 %v5948, 8388607
        %v5950 = vor.u32 %v5949, 8388608
        %v5951 = vsub.s32 0, %v5950
        %v5952 = vadd.s32 %v5947, 1
        %vm5953 = vcmp.gt.s32.totalorder %v5952, 0
        %v5954 = vsel %vm5953, %v5952, 0
        %v5955 = vshrl.u32 %v5954, 5
        %v5956 = vand.u32 %v5954, 31
        %v5957 = vsub.s32 32, %v5956
        %v5958 = vshrl.u32 683565275, %v5957
        %v5959 = vshll.u32 683565275, %v5956
        %v5960 = vshrl.u32 2475754826, %v5957
        %v5961 = vor.u32 %v5959, %v5960
        %v5962 = vshll.u32 2475754826, %v5956
        %v5963 = vshrl.u32 2131351028, %v5957
        %v5964 = vor.u32 %v5962, %v5963
        %v5965 = vshll.u32 2131351028, %v5956
        %v5966 = vshrl.u32 2102212464, %v5957
        %v5967 = vor.u32 %v5965, %v5966
        %v5968 = vshll.u32 2102212464, %v5956
        %v5969 = vshrl.u32 920167782, %v5957
        %v5970 = vor.u32 %v5968, %v5969
        %v5971 = vshll.u32 920167782, %v5956
        %v5972 = vshrl.u32 1326507024, %v5957
        %v5973 = vor.u32 %v5971, %v5972
        %vm5974 = vcmp.lt.s32.totalorder %v5955, 1
        %vm5975 = vcmp.lt.s32.totalorder %v5955, 2
        %vm5976 = vcmp.lt.s32.totalorder %v5955, 3
        %vm5977 = vcmp.lt.s32.totalorder %v5955, 4
        %v5978 = vsel %vm5974, %v5958, %v5961
        %v5979 = vsel %vm5977, %v5967, 2102212464
        %v5980 = vsel %vm5976, %v5964, %v5979
        %v5981 = vsel %vm5975, %v5978, %v5980
        %v5982 = vsel %vm5974, %v5961, %v5964
        %v5983 = vsel %vm5977, %v5970, 920167782
        %v5984 = vsel %vm5976, %v5967, %v5983
        %v5985 = vsel %vm5975, %v5982, %v5984
        %v5986 = vsel %vm5974, %v5964, %v5967
        %v5987 = vsel %vm5977, %v5973, 1326507024
        %v5988 = vsel %vm5976, %v5970, %v5987
        %v5989 = vsel %vm5975, %v5986, %v5988
        %v5990 = vshll.u32 %v5950, 8
        %v5991 = vmul.u32.u64.compose %v5990, %v5989
        %v5992 = vextract.low.u32 %v5991
        %v5993 = vextract.high.u32 %v5991
        %v5994 = vmul.u32.u64.compose %v5990, %v5985
        %v5995 = vextract.low.u32 %v5994
        %v5996 = vextract.high.u32 %v5994
        %v5997 = vmul.u32 %v5990, %v5981
        %v5998 = vadd.s32 %v5993, %v5995
        %vm5999 = vc.u32 %v5993, %v5995
        %v6000 = vadd.s32 %v5996, 1
        %v6001 = vsel %vm5999, %v6000, %v5996
        %v6002 = vadd.s32 %v5997, %v6001
        %v6003 = vadd.s32 %v6002, 536870912
        %v6004 = vshrl.u32 %v6003, 30
        %v6005 = vshll.u32 %v6004, 30
        %v6006 = vsub.s32 %v6002, %v6005
        %vm6007 = vcmp.lt.s32.totalorder %v6006, 0
        %v6008 = vsub.s32 0, %v6006
        %v6009 = vsel %vm6007, %v6008, %v6006
        %v6010 = vclz %v6009
        %v6011 = vsub.s32 %v6010, 2
        %vm6012 = vcmp.gt.s32.totalorder 0, %v6011
        %v6013 = vsel %vm6012, 0, %v6011
        %v6014 = vsub.s32 32, %v6013
        %v6015 = vshll.u32 %v6006, %v6013
        %v6016 = vshrl.u32 %v5998, %v6014
        %v6017 = vor.u32 %v6015, %v6016
        %v6018 = vsub.s32 4294967266, %v6013
        %v6019 = vadd.s32 %v6018, 127
        %v6020 = vshll.u32 %v6019, 23
        %v6021 = vor.u32 4788187, %v6020
        %v6022 = vand.u32 2147483647, %v6021
        %v6024 = vcvt.s32.f32 %v6017
        %v6025 = vmul.f32 %v6024, %v6022
        %v6026 = vxor.u32 %v6025, 2147483648
        %v6027 = vsel %vm5944, %v6026, %v6025
        %v6028 = vsub.s32 4, %v6004
        %v6029 = vsel %vm5944, %v6028, %v6004
        %v6030 = vsel %vm5943, %v5941, %v6027
        %v6031 = vsel %vm5943, 0, %v6029
        %v6032 = vcosq.f32.pop %v6030
        %v6033 = vsinq.f32.pop %v6030
        %vm6034 = vweird.f32 %v5941
        %v6035 = vadd.s32 %v6031, 3
        %v6036 = vand.u32 %v6035, 3
        %vm6037 = vcmp.lt.s32.totalorder %v6036, 2
        %vm6038 = vcmp.eq.s32.totalorder %v6036, 0
        %v6039 = vxor.u32 %v6033, 2147483648
        %v6040 = vsel %vm6038, %v6032, %v6039
        %vm6041 = vcmp.eq.s32.totalorder %v6036, 2
        %v6042 = vxor.u32 %v6032, 2147483648
        %v6043 = vsel %vm6041, %v6042, %v6033
        %v6044 = vsel %vm6037, %v6040, %v6043
        %v6045 = vsel %vm6034, nan, %v6044
        %v6046 = vmul.f32 %v6045, %v6045
        %6048 = vset.pattern.permute.xlu0 0
        %6049 = vperm.xlu0 %6048, %v5935
        %v6050 = vpop.permute.xlu0 %6049
        %v6052 = vmul.f32 %v6050, %v6046
        %v6053 = vadd.f32 %v5929, %v6052
        %s6054 = scalar_lea.vmem %s47, 8
        %v6055 = vld [vmem:[%s6054] sm:$0xff]
        %s6056 = scalar_lea.vmem %s49, 8
        %v6057 = vld [vmem:[%s6056] sm:$0xff]
        %6059 = vset.pattern.permute.xlu0 0
        %6060 = vperm.xlu0 %6059, %v6057
        %v6061 = vpop.permute.xlu0 %6060
        %v6064 = vsel %vm5627, %v6055, 0
        %6066 = vmatprep.subr.mxu0 0.0
        %6067 = vmatpush1.msra.mxu0 %v6053
        %6068 = vmatprep.subr.mxu0 0.0
        %6069 = vmatpush1.msra.mxu0 0.0
        %6070 = vmatprep.subr.mxu0 0.0
        %6071 = vmatpush1.msra.mxu0 0.0
        %6072 = vmatprep.subr.mxu0 0.0
        %6073 = vmatpush1.msra.mxu0 0.0
        %6074 = vmatprep.subr.mxu0 0.0
        %6075 = vmatpush1.msra.mxu0 0.0
        %6076 = vmatprep.subr.mxu0 0.0
        %6077 = vmatpush1.msra.mxu0 0.0
        %6078 = vmatprep.subr.mxu0 0.0
        %6079 = vmatpush1.msra.mxu0 0.0
        %6080 = vmatprep.subr.mxu0 0.0
        %6081 = vmatpush1.msra.mxu0 0.0
        %6082 = vmatprep.subr.mxu0 0.0
        %6083 = vmatpush1.msra.mxu0 0.0
        %6084 = vmatprep.subr.mxu0 0.0
        %6085 = vmatpush1.msra.mxu0 0.0
        %6086 = vmatprep.subr.mxu0 0.0
        %6087 = vmatpush1.msra.mxu0 0.0
        %6088 = vmatprep.subr.mxu0 0.0
        %6089 = vmatpush1.msra.mxu0 0.0
        %6090 = vmatprep.subr.mxu0 0.0
        %6091 = vmatpush1.msra.mxu0 0.0
        %6092 = vmatprep.subr.mxu0 0.0
        %6093 = vmatpush1.msra.mxu0 0.0
        %6094 = vmatprep.subr.mxu0 0.0
        %6095 = vmatpush1.msra.mxu0 0.0
        %6096 = vmatprep.subr.mxu0 0.0
        %6097 = vmatpush1.msra.mxu0 0.0
        %6098 = vmatprep.subr.mxu0 0.0
        %6099 = vmatpush1.msra.mxu0 0.0
        %6100 = vmatprep.subr.mxu0 0.0
        %6101 = vmatpush1.msra.mxu0 0.0
        %6102 = vmatprep.subr.mxu0 0.0
        %6103 = vmatpush1.msra.mxu0 0.0
        %6104 = vmatprep.subr.mxu0 0.0
        %6105 = vmatpush1.msra.mxu0 0.0
        %6106 = vmatprep.subr.mxu0 0.0
        %6107 = vmatpush1.msra.mxu0 0.0
        %6108 = vmatprep.subr.mxu0 0.0
        %6109 = vmatpush1.msra.mxu0 0.0
        %6110 = vmatprep.subr.mxu0 0.0
        %6111 = vmatpush1.msra.mxu0 0.0
        %6112 = vmatprep.subr.mxu0 0.0
        %6113 = vmatpush1.msra.mxu0 0.0
        %6114 = vmatprep.subr.mxu0 0.0
        %6115 = vmatpush1.msra.mxu0 0.0
        %6116 = vmatprep.subr.mxu0 0.0
        %6117 = vmatpush1.msra.mxu0 0.0
        %6118 = vmatprep.subr.mxu0 0.0
        %6119 = vmatpush1.msra.mxu0 0.0
        %6120 = vmatprep.subr.mxu0 0.0
        %6121 = vmatpush1.msra.mxu0 0.0
        %6122 = vmatprep.subr.mxu0 0.0
        %6123 = vmatpush1.msra.mxu0 0.0
        %6124 = vmatprep.subr.mxu0 0.0
        %6125 = vmatpush1.msra.mxu0 0.0
        %6126 = vmatprep.subr.mxu0 0.0
        %6127 = vmatpush1.msra.mxu0 0.0
        %6128 = vmatprep.subr.mxu0 0.0
        %6129 = vmatpush1.msra.mxu0 0.0
        %6130 = vmatprep.mubr.f32.mxu0 0.0
        %6131 = vmatmul.mubr.f32.gmra.mrb[0].mxu0 %v6064
        %v6132 = vpop.f32.mrb[0].mxu0
        %v6133 = vadd.f32 %v6061, %v6132
        %v6134 = vpop.f32.mrb[0].mxu0
        %6135 = vdwg.mxu0
        %v6136 = vadd.f32 %v5701, %v6133
        %s6137 = scalar_lea.vmem %s39, 32
        %v6138 = vld [vmem:[%s6137] sm:$0xff]
        %s6139 = scalar_lea.vmem %s41, 32
        %v6140 = vld [vmem:[%s6139] sm:$0xff]
        %6142 = vset.pattern.permute.xlu0 0
        %6143 = vperm.xlu0 %6142, %v6138
        %v6144 = vpop.permute.xlu0 %6143
        %v6146 = vmul.f32 %v6144, %v6136
        %v6147 = vand.u32 2147483647, %v6146
        %vm6148 = vcmp.le.f32.partialorder %v6147, 0.7853982
        %vm6149 = vcmp.lt.s32.totalorder %v6146, 0
        %v6150 = vand.u32 %v6146, 2139095040
        %v6151 = vshrl.u32 %v6150, 23
        %v6152 = vsub.s32 %v6151, 127
        %v6153 = vand.u32 2147483647, %v6146
        %v6154 = vand.u32 %v6153, 8388607
        %v6155 = vor.u32 %v6154, 8388608
        %v6156 = vsub.s32 0, %v6155
        %v6157 = vadd.s32 %v6152, 1
        %vm6158 = vcmp.gt.s32.totalorder %v6157, 0
        %v6159 = vsel %vm6158, %v6157, 0
        %v6160 = vshrl.u32 %v6159, 5
        %v6161 = vand.u32 %v6159, 31
        %v6162 = vsub.s32 32, %v6161
        %v6163 = vshrl.u32 683565275, %v6162
        %v6164 = vshll.u32 683565275, %v6161
        %v6165 = vshrl.u32 2475754826, %v6162
        %v6166 = vor.u32 %v6164, %v6165
        %v6167 = vshll.u32 2475754826, %v6161
        %v6168 = vshrl.u32 2131351028, %v6162
        %v6169 = vor.u32 %v6167, %v6168
        %v6170 = vshll.u32 2131351028, %v6161
        %v6171 = vshrl.u32 2102212464, %v6162
        %v6172 = vor.u32 %v6170, %v6171
        %v6173 = vshll.u32 2102212464, %v6161
        %v6174 = vshrl.u32 920167782, %v6162
        %v6175 = vor.u32 %v6173, %v6174
        %v6176 = vshll.u32 920167782, %v6161
        %v6177 = vshrl.u32 1326507024, %v6162
        %v6178 = vor.u32 %v6176, %v6177
        %vm6179 = vcmp.lt.s32.totalorder %v6160, 1
        %vm6180 = vcmp.lt.s32.totalorder %v6160, 2
        %vm6181 = vcmp.lt.s32.totalorder %v6160, 3
        %vm6182 = vcmp.lt.s32.totalorder %v6160, 4
        %v6183 = vsel %vm6179, %v6163, %v6166
        %v6184 = vsel %vm6182, %v6172, 2102212464
        %v6185 = vsel %vm6181, %v6169, %v6184
        %v6186 = vsel %vm6180, %v6183, %v6185
        %v6187 = vsel %vm6179, %v6166, %v6169
        %v6188 = vsel %vm6182, %v6175, 920167782
        %v6189 = vsel %vm6181, %v6172, %v6188
        %v6190 = vsel %vm6180, %v6187, %v6189
        %v6191 = vsel %vm6179, %v6169, %v6172
        %v6192 = vsel %vm6182, %v6178, 1326507024
        %v6193 = vsel %vm6181, %v6175, %v6192
        %v6194 = vsel %vm6180, %v6191, %v6193
        %v6195 = vshll.u32 %v6155, 8
        %v6196 = vmul.u32.u64.compose %v6195, %v6194
        %v6197 = vextract.low.u32 %v6196
        %v6198 = vextract.high.u32 %v6196
        %v6199 = vmul.u32.u64.compose %v6195, %v6190
        %v6200 = vextract.low.u32 %v6199
        %v6201 = vextract.high.u32 %v6199
        %v6202 = vmul.u32 %v6195, %v6186
        %v6203 = vadd.s32 %v6198, %v6200
        %vm6204 = vc.u32 %v6198, %v6200
        %v6205 = vadd.s32 %v6201, 1
        %v6206 = vsel %vm6204, %v6205, %v6201
        %v6207 = vadd.s32 %v6202, %v6206
        %v6208 = vadd.s32 %v6207, 536870912
        %v6209 = vshrl.u32 %v6208, 30
        %v6210 = vshll.u32 %v6209, 30
        %v6211 = vsub.s32 %v6207, %v6210
        %vm6212 = vcmp.lt.s32.totalorder %v6211, 0
        %v6213 = vsub.s32 0, %v6211
        %v6214 = vsel %vm6212, %v6213, %v6211
        %v6215 = vclz %v6214
        %v6216 = vsub.s32 %v6215, 2
        %vm6217 = vcmp.gt.s32.totalorder 0, %v6216
        %v6218 = vsel %vm6217, 0, %v6216
        %v6219 = vsub.s32 32, %v6218
        %v6220 = vshll.u32 %v6211, %v6218
        %v6221 = vshrl.u32 %v6203, %v6219
        %v6222 = vor.u32 %v6220, %v6221
        %v6223 = vsub.s32 4294967266, %v6218
        %v6224 = vadd.s32 %v6223, 127
        %v6225 = vshll.u32 %v6224, 23
        %v6226 = vor.u32 4788187, %v6225
        %v6227 = vand.u32 2147483647, %v6226
        %v6229 = vcvt.s32.f32 %v6222
        %v6230 = vmul.f32 %v6229, %v6227
        %v6231 = vxor.u32 %v6230, 2147483648
        %v6232 = vsel %vm6149, %v6231, %v6230
        %v6233 = vsub.s32 4, %v6209
        %v6234 = vsel %vm6149, %v6233, %v6209
        %v6235 = vsel %vm6148, %v6146, %v6232
        %v6236 = vsel %vm6148, 0, %v6234
        %v6237 = vcosq.f32.pop %v6235
        %v6238 = vsinq.f32.pop %v6235
        %vm6239 = vweird.f32 %v6146
        %v6240 = vadd.s32 %v6236, 3
        %v6241 = vand.u32 %v6240, 3
        %vm6242 = vcmp.lt.s32.totalorder %v6241, 2
        %vm6243 = vcmp.eq.s32.totalorder %v6241, 0
        %v6244 = vxor.u32 %v6238, 2147483648
        %v6245 = vsel %vm6243, %v6237, %v6244
        %vm6246 = vcmp.eq.s32.totalorder %v6241, 2
        %v6247 = vxor.u32 %v6237, 2147483648
        %v6248 = vsel %vm6246, %v6247, %v6238
        %v6249 = vsel %vm6242, %v6245, %v6248
        %v6250 = vsel %vm6239, nan, %v6249
        %v6251 = vmul.f32 %v6250, %v6250
        %6253 = vset.pattern.permute.xlu0 0
        %6254 = vperm.xlu0 %6253, %v6140
        %v6255 = vpop.permute.xlu0 %6254
        %v6257 = vmul.f32 %v6255, %v6251
        %v6258 = vadd.f32 %v6136, %v6257
        %s6259 = scalar_lea.vmem %s43, 16
        %v6260 = vld [vmem:[%s6259] sm:$0xff]
        %s6261 = scalar_lea.vmem %s45, 16
        %v6262 = vld [vmem:[%s6261] sm:$0xff]
        %6264 = vrot.lane.b32.xlu0 %v6258, 27
        %v6265 = vpop.permute.xlu0 %6264
        %v6267 = vsel %vm3937, 0.0, %v6265
        %vm6268 = vcmask 744448
        %v6269 = vsel %vm6268, %v6267, 0.0
        %6271 = vrot.lane.b32.xlu0 %v6269, 119
        %v6272 = vpop.permute.xlu0 %6271
        %6274 = vrot.lane.b32.xlu0 %v6269, 110
        %v6275 = vpop.permute.xlu0 %6274
        %6277 = vrot.lane.b32.xlu0 %v6269, 101
        %v6278 = vpop.permute.xlu0 %6277
        %6280 = vrot.lane.b32.xlu0 %v6269, 92
        %v6281 = vpop.permute.xlu0 %6280
        %6283 = vrot.lane.b32.xlu0 %v6269, 83
        %v6284 = vpop.permute.xlu0 %6283
        %6286 = vrot.lane.b32.xlu0 %v6269, 74
        %v6287 = vpop.permute.xlu0 %6286
        %6290 = vset.pattern.permute.xlu0 0
        %6291 = vperm.xlu0 %6290, %v6262
        %v6292 = vpop.permute.xlu0 %6291
        %v6295 = vsel %vm955, %v6260, 0
        %6297 = vmatprep.subr.mxu0 0.0
        %6298 = vmatpush1.msra.mxu0 %v6269
        %6299 = vmatprep.subr.mxu0 0.0
        %6300 = vmatpush1.msra.mxu0 %v6272
        %6301 = vmatprep.subr.mxu0 0.0
        %6302 = vmatpush1.msra.mxu0 %v6275
        %6303 = vmatprep.subr.mxu0 0.0
        %6304 = vmatpush1.msra.mxu0 %v6278
        %6305 = vmatprep.subr.mxu0 0.0
        %6306 = vmatpush1.msra.mxu0 %v6281
        %6307 = vmatprep.subr.mxu0 0.0
        %6308 = vmatpush1.msra.mxu0 %v6284
        %6309 = vmatprep.subr.mxu0 0.0
        %6310 = vmatpush1.msra.mxu0 %v6287
        %6311 = vmatprep.subr.mxu0 0.0
        %6312 = vmatpush1.msra.mxu0 0.0
        %6313 = vmatprep.subr.mxu0 0.0
        %6314 = vmatpush1.msra.mxu0 0.0
        %6315 = vmatprep.subr.mxu0 0.0
        %6316 = vmatpush1.msra.mxu0 0.0
        %6317 = vmatprep.subr.mxu0 0.0
        %6318 = vmatpush1.msra.mxu0 0.0
        %6319 = vmatprep.subr.mxu0 0.0
        %6320 = vmatpush1.msra.mxu0 0.0
        %6321 = vmatprep.subr.mxu0 0.0
        %6322 = vmatpush1.msra.mxu0 0.0
        %6323 = vmatprep.subr.mxu0 0.0
        %6324 = vmatpush1.msra.mxu0 0.0
        %6325 = vmatprep.subr.mxu0 0.0
        %6326 = vmatpush1.msra.mxu0 0.0
        %6327 = vmatprep.subr.mxu0 0.0
        %6328 = vmatpush1.msra.mxu0 0.0
        %6329 = vmatprep.subr.mxu0 0.0
        %6330 = vmatpush1.msra.mxu0 0.0
        %6331 = vmatprep.subr.mxu0 0.0
        %6332 = vmatpush1.msra.mxu0 0.0
        %6333 = vmatprep.subr.mxu0 0.0
        %6334 = vmatpush1.msra.mxu0 0.0
        %6335 = vmatprep.subr.mxu0 0.0
        %6336 = vmatpush1.msra.mxu0 0.0
        %6337 = vmatprep.subr.mxu0 0.0
        %6338 = vmatpush1.msra.mxu0 0.0
        %6339 = vmatprep.subr.mxu0 0.0
        %6340 = vmatpush1.msra.mxu0 0.0
        %6341 = vmatprep.subr.mxu0 0.0
        %6342 = vmatpush1.msra.mxu0 0.0
        %6343 = vmatprep.subr.mxu0 0.0
        %6344 = vmatpush1.msra.mxu0 0.0
        %6345 = vmatprep.subr.mxu0 0.0
        %6346 = vmatpush1.msra.mxu0 0.0
        %6347 = vmatprep.subr.mxu0 0.0
        %6348 = vmatpush1.msra.mxu0 0.0
        %6349 = vmatprep.subr.mxu0 0.0
        %6350 = vmatpush1.msra.mxu0 0.0
        %6351 = vmatprep.subr.mxu0 0.0
        %6352 = vmatpush1.msra.mxu0 0.0
        %6353 = vmatprep.subr.mxu0 0.0
        %6354 = vmatpush1.msra.mxu0 0.0
        %6355 = vmatprep.subr.mxu0 0.0
        %6356 = vmatpush1.msra.mxu0 0.0
        %6357 = vmatprep.subr.mxu0 0.0
        %6358 = vmatpush1.msra.mxu0 0.0
        %6359 = vmatprep.subr.mxu0 0.0
        %6360 = vmatpush1.msra.mxu0 0.0
        %6361 = vmatprep.mubr.f32.mxu0 0.0
        %6362 = vmatmul.mubr.f32.gmra.mrb[0].mxu0 %v6295
        %v6363 = vpop.f32.mrb[0].mxu0
        %v6364 = vadd.f32 %v6292, %v6363
        %v6365 = vpop.f32.mrb[0].mxu0
        %6366 = vdwg.mxu0
        %s6367 = scalar_lea.vmem %s39, 40
        %v6368 = vld [vmem:[%s6367] sm:$0xff]
        %s6369 = scalar_lea.vmem %s41, 40
        %v6370 = vld [vmem:[%s6369] sm:$0xff]
        %6372 = vset.pattern.permute.xlu0 0
        %6373 = vperm.xlu0 %6372, %v6368
        %v6374 = vpop.permute.xlu0 %6373
        %v6376 = vmul.f32 %v6374, %v6364
        %v6377 = vand.u32 2147483647, %v6376
        %vm6378 = vcmp.le.f32.partialorder %v6377, 0.7853982
        %vm6379 = vcmp.lt.s32.totalorder %v6376, 0
        %v6380 = vand.u32 %v6376, 2139095040
        %v6381 = vshrl.u32 %v6380, 23
        %v6382 = vsub.s32 %v6381, 127
        %v6383 = vand.u32 2147483647, %v6376
        %v6384 = vand.u32 %v6383, 8388607
        %v6385 = vor.u32 %v6384, 8388608
        %v6386 = vsub.s32 0, %v6385
        %v6387 = vadd.s32 %v6382, 1
        %vm6388 = vcmp.gt.s32.totalorder %v6387, 0
        %v6389 = vsel %vm6388, %v6387, 0
        %v6390 = vshrl.u32 %v6389, 5
        %v6391 = vand.u32 %v6389, 31
        %v6392 = vsub.s32 32, %v6391
        %v6393 = vshrl.u32 683565275, %v6392
        %v6394 = vshll.u32 683565275, %v6391
        %v6395 = vshrl.u32 2475754826, %v6392
        %v6396 = vor.u32 %v6394, %v6395
        %v6397 = vshll.u32 2475754826, %v6391
        %v6398 = vshrl.u32 2131351028, %v6392
        %v6399 = vor.u32 %v6397, %v6398
        %v6400 = vshll.u32 2131351028, %v6391
        %v6401 = vshrl.u32 2102212464, %v6392
        %v6402 = vor.u32 %v6400, %v6401
        %v6403 = vshll.u32 2102212464, %v6391
        %v6404 = vshrl.u32 920167782, %v6392
        %v6405 = vor.u32 %v6403, %v6404
        %v6406 = vshll.u32 920167782, %v6391
        %v6407 = vshrl.u32 1326507024, %v6392
        %v6408 = vor.u32 %v6406, %v6407
        %vm6409 = vcmp.lt.s32.totalorder %v6390, 1
        %vm6410 = vcmp.lt.s32.totalorder %v6390, 2
        %vm6411 = vcmp.lt.s32.totalorder %v6390, 3
        %vm6412 = vcmp.lt.s32.totalorder %v6390, 4
        %v6413 = vsel %vm6409, %v6393, %v6396
        %v6414 = vsel %vm6412, %v6402, 2102212464
        %v6415 = vsel %vm6411, %v6399, %v6414
        %v6416 = vsel %vm6410, %v6413, %v6415
        %v6417 = vsel %vm6409, %v6396, %v6399
        %v6418 = vsel %vm6412, %v6405, 920167782
        %v6419 = vsel %vm6411, %v6402, %v6418
        %v6420 = vsel %vm6410, %v6417, %v6419
        %v6421 = vsel %vm6409, %v6399, %v6402
        %v6422 = vsel %vm6412, %v6408, 1326507024
        %v6423 = vsel %vm6411, %v6405, %v6422
        %v6424 = vsel %vm6410, %v6421, %v6423
        %v6425 = vshll.u32 %v6385, 8
        %v6426 = vmul.u32.u64.compose %v6425, %v6424
        %v6427 = vextract.low.u32 %v6426
        %v6428 = vextract.high.u32 %v6426
        %v6429 = vmul.u32.u64.compose %v6425, %v6420
        %v6430 = vextract.low.u32 %v6429
        %v6431 = vextract.high.u32 %v6429
        %v6432 = vmul.u32 %v6425, %v6416
        %v6433 = vadd.s32 %v6428, %v6430
        %vm6434 = vc.u32 %v6428, %v6430
        %v6435 = vadd.s32 %v6431, 1
        %v6436 = vsel %vm6434, %v6435, %v6431
        %v6437 = vadd.s32 %v6432, %v6436
        %v6438 = vadd.s32 %v6437, 536870912
        %v6439 = vshrl.u32 %v6438, 30
        %v6440 = vshll.u32 %v6439, 30
        %v6441 = vsub.s32 %v6437, %v6440
        %vm6442 = vcmp.lt.s32.totalorder %v6441, 0
        %v6443 = vsub.s32 0, %v6441
        %v6444 = vsel %vm6442, %v6443, %v6441
        %v6445 = vclz %v6444
        %v6446 = vsub.s32 %v6445, 2
        %vm6447 = vcmp.gt.s32.totalorder 0, %v6446
        %v6448 = vsel %vm6447, 0, %v6446
        %v6449 = vsub.s32 32, %v6448
        %v6450 = vshll.u32 %v6441, %v6448
        %v6451 = vshrl.u32 %v6433, %v6449
        %v6452 = vor.u32 %v6450, %v6451
        %v6453 = vsub.s32 4294967266, %v6448
        %v6454 = vadd.s32 %v6453, 127
        %v6455 = vshll.u32 %v6454, 23
        %v6456 = vor.u32 4788187, %v6455
        %v6457 = vand.u32 2147483647, %v6456
        %v6459 = vcvt.s32.f32 %v6452
        %v6460 = vmul.f32 %v6459, %v6457
        %v6461 = vxor.u32 %v6460, 2147483648
        %v6462 = vsel %vm6379, %v6461, %v6460
        %v6463 = vsub.s32 4, %v6439
        %v6464 = vsel %vm6379, %v6463, %v6439
        %v6465 = vsel %vm6378, %v6376, %v6462
        %v6466 = vsel %vm6378, 0, %v6464
        %v6467 = vcosq.f32.pop %v6465
        %v6468 = vsinq.f32.pop %v6465
        %vm6469 = vweird.f32 %v6376
        %v6470 = vadd.s32 %v6466, 3
        %v6471 = vand.u32 %v6470, 3
        %vm6472 = vcmp.lt.s32.totalorder %v6471, 2
        %vm6473 = vcmp.eq.s32.totalorder %v6471, 0
        %v6474 = vxor.u32 %v6468, 2147483648
        %v6475 = vsel %vm6473, %v6467, %v6474
        %vm6476 = vcmp.eq.s32.totalorder %v6471, 2
        %v6477 = vxor.u32 %v6467, 2147483648
        %v6478 = vsel %vm6476, %v6477, %v6468
        %v6479 = vsel %vm6472, %v6475, %v6478
        %v6480 = vsel %vm6469, nan, %v6479
        %v6481 = vmul.f32 %v6480, %v6480
        %6483 = vset.pattern.permute.xlu0 0
        %6484 = vperm.xlu0 %6483, %v6370
        %v6485 = vpop.permute.xlu0 %6484
        %v6487 = vmul.f32 %v6485, %v6481
        %v6488 = vadd.f32 %v6364, %v6487
        %s6489 = scalar_lea.vmem %s47, 16
        %v6490 = vld [vmem:[%s6489] sm:$0xff]
        %s6491 = scalar_lea.vmem %s49, 16
        %v6492 = vld [vmem:[%s6491] sm:$0xff]
        %6494 = vset.pattern.permute.xlu0 0
        %6495 = vperm.xlu0 %6494, %v6492
        %v6496 = vpop.permute.xlu0 %6495
        %v6499 = vsel %vm5627, %v6490, 0
        %6501 = vmatprep.subr.mxu0 0.0
        %6502 = vmatpush1.msra.mxu0 %v6488
        %6503 = vmatprep.subr.mxu0 0.0
        %6504 = vmatpush1.msra.mxu0 0.0
        %6505 = vmatprep.subr.mxu0 0.0
        %6506 = vmatpush1.msra.mxu0 0.0
        %6507 = vmatprep.subr.mxu0 0.0
        %6508 = vmatpush1.msra.mxu0 0.0
        %6509 = vmatprep.subr.mxu0 0.0
        %6510 = vmatpush1.msra.mxu0 0.0
        %6511 = vmatprep.subr.mxu0 0.0
        %6512 = vmatpush1.msra.mxu0 0.0
        %6513 = vmatprep.subr.mxu0 0.0
        %6514 = vmatpush1.msra.mxu0 0.0
        %6515 = vmatprep.subr.mxu0 0.0
        %6516 = vmatpush1.msra.mxu0 0.0
        %6517 = vmatprep.subr.mxu0 0.0
        %6518 = vmatpush1.msra.mxu0 0.0
        %6519 = vmatprep.subr.mxu0 0.0
        %6520 = vmatpush1.msra.mxu0 0.0
        %6521 = vmatprep.subr.mxu0 0.0
        %6522 = vmatpush1.msra.mxu0 0.0
        %6523 = vmatprep.subr.mxu0 0.0
        %6524 = vmatpush1.msra.mxu0 0.0
        %6525 = vmatprep.subr.mxu0 0.0
        %6526 = vmatpush1.msra.mxu0 0.0
        %6527 = vmatprep.subr.mxu0 0.0
        %6528 = vmatpush1.msra.mxu0 0.0
        %6529 = vmatprep.subr.mxu0 0.0
        %6530 = vmatpush1.msra.mxu0 0.0
        %6531 = vmatprep.subr.mxu0 0.0
        %6532 = vmatpush1.msra.mxu0 0.0
        %6533 = vmatprep.subr.mxu0 0.0
        %6534 = vmatpush1.msra.mxu0 0.0
        %6535 = vmatprep.subr.mxu0 0.0
        %6536 = vmatpush1.msra.mxu0 0.0
        %6537 = vmatprep.subr.mxu0 0.0
        %6538 = vmatpush1.msra.mxu0 0.0
        %6539 = vmatprep.subr.mxu0 0.0
        %6540 = vmatpush1.msra.mxu0 0.0
        %6541 = vmatprep.subr.mxu0 0.0
        %6542 = vmatpush1.msra.mxu0 0.0
        %6543 = vmatprep.subr.mxu0 0.0
        %6544 = vmatpush1.msra.mxu0 0.0
        %6545 = vmatprep.subr.mxu0 0.0
        %6546 = vmatpush1.msra.mxu0 0.0
        %6547 = vmatprep.subr.mxu0 0.0
        %6548 = vmatpush1.msra.mxu0 0.0
        %6549 = vmatprep.subr.mxu0 0.0
        %6550 = vmatpush1.msra.mxu0 0.0
        %6551 = vmatprep.subr.mxu0 0.0
        %6552 = vmatpush1.msra.mxu0 0.0
        %6553 = vmatprep.subr.mxu0 0.0
        %6554 = vmatpush1.msra.mxu0 0.0
        %6555 = vmatprep.subr.mxu0 0.0
        %6556 = vmatpush1.msra.mxu0 0.0
        %6557 = vmatprep.subr.mxu0 0.0
        %6558 = vmatpush1.msra.mxu0 0.0
        %6559 = vmatprep.subr.mxu0 0.0
        %6560 = vmatpush1.msra.mxu0 0.0
        %6561 = vmatprep.subr.mxu0 0.0
        %6562 = vmatpush1.msra.mxu0 0.0
        %6563 = vmatprep.subr.mxu0 0.0
        %6564 = vmatpush1.msra.mxu0 0.0
        %6565 = vmatprep.mubr.f32.mxu0 0.0
        %6566 = vmatmul.mubr.f32.gmra.mrb[0].mxu0 %v6499
        %v6567 = vpop.f32.mrb[0].mxu0
        %v6568 = vadd.f32 %v6496, %v6567
        %v6569 = vpop.f32.mrb[0].mxu0
        %6570 = vdwg.mxu0
        %v6571 = vadd.f32 %v6136, %v6568
        %v6572 = vld [vmem:[%s51] sm:$0xff]
        %v6573 = vld [vmem:[%s53] sm:$0xff]
        %6575 = vset.pattern.permute.xlu0 0
        %6576 = vperm.xlu0 %6575, %v6572
        %v6577 = vpop.permute.xlu0 %6576
        %v6579 = vmul.f32 %v6577, %v6571
        %v6580 = vand.u32 2147483647, %v6579
        %vm6581 = vcmp.le.f32.partialorder %v6580, 0.7853982
        %vm6582 = vcmp.lt.s32.totalorder %v6579, 0
        %v6583 = vand.u32 %v6579, 2139095040
        %v6584 = vshrl.u32 %v6583, 23
        %v6585 = vsub.s32 %v6584, 127
        %v6586 = vand.u32 2147483647, %v6579
        %v6587 = vand.u32 %v6586, 8388607
        %v6588 = vor.u32 %v6587, 8388608
        %v6589 = vsub.s32 0, %v6588
        %v6590 = vadd.s32 %v6585, 1
        %vm6591 = vcmp.gt.s32.totalorder %v6590, 0
        %v6592 = vsel %vm6591, %v6590, 0
        %v6593 = vshrl.u32 %v6592, 5
        %v6594 = vand.u32 %v6592, 31
        %v6595 = vsub.s32 32, %v6594
        %v6596 = vshrl.u32 683565275, %v6595
        %v6597 = vshll.u32 683565275, %v6594
        %v6598 = vshrl.u32 2475754826, %v6595
        %v6599 = vor.u32 %v6597, %v6598
        %v6600 = vshll.u32 2475754826, %v6594
        %v6601 = vshrl.u32 2131351028, %v6595
        %v6602 = vor.u32 %v6600, %v6601
        %v6603 = vshll.u32 2131351028, %v6594
        %v6604 = vshrl.u32 2102212464, %v6595
        %v6605 = vor.u32 %v6603, %v6604
        %v6606 = vshll.u32 2102212464, %v6594
        %v6607 = vshrl.u32 920167782, %v6595
        %v6608 = vor.u32 %v6606, %v6607
        %v6609 = vshll.u32 920167782, %v6594
        %v6610 = vshrl.u32 1326507024, %v6595
        %v6611 = vor.u32 %v6609, %v6610
        %vm6612 = vcmp.lt.s32.totalorder %v6593, 1
        %vm6613 = vcmp.lt.s32.totalorder %v6593, 2
        %vm6614 = vcmp.lt.s32.totalorder %v6593, 3
        %vm6615 = vcmp.lt.s32.totalorder %v6593, 4
        %v6616 = vsel %vm6612, %v6596, %v6599
        %v6617 = vsel %vm6615, %v6605, 2102212464
        %v6618 = vsel %vm6614, %v6602, %v6617
        %v6619 = vsel %vm6613, %v6616, %v6618
        %v6620 = vsel %vm6612, %v6599, %v6602
        %v6621 = vsel %vm6615, %v6608, 920167782
        %v6622 = vsel %vm6614, %v6605, %v6621
        %v6623 = vsel %vm6613, %v6620, %v6622
        %v6624 = vsel %vm6612, %v6602, %v6605
        %v6625 = vsel %vm6615, %v6611, 1326507024
        %v6626 = vsel %vm6614, %v6608, %v6625
        %v6627 = vsel %vm6613, %v6624, %v6626
        %v6628 = vshll.u32 %v6588, 8
        %v6629 = vmul.u32.u64.compose %v6628, %v6627
        %v6630 = vextract.low.u32 %v6629
        %v6631 = vextract.high.u32 %v6629
        %v6632 = vmul.u32.u64.compose %v6628, %v6623
        %v6633 = vextract.low.u32 %v6632
        %v6634 = vextract.high.u32 %v6632
        %v6635 = vmul.u32 %v6628, %v6619
        %v6636 = vadd.s32 %v6631, %v6633
        %vm6637 = vc.u32 %v6631, %v6633
        %v6638 = vadd.s32 %v6634, 1
        %v6639 = vsel %vm6637, %v6638, %v6634
        %v6640 = vadd.s32 %v6635, %v6639
        %v6641 = vadd.s32 %v6640, 536870912
        %v6642 = vshrl.u32 %v6641, 30
        %v6643 = vshll.u32 %v6642, 30
        %v6644 = vsub.s32 %v6640, %v6643
        %vm6645 = vcmp.lt.s32.totalorder %v6644, 0
        %v6646 = vsub.s32 0, %v6644
        %v6647 = vsel %vm6645, %v6646, %v6644
        %v6648 = vclz %v6647
        %v6649 = vsub.s32 %v6648, 2
        %vm6650 = vcmp.gt.s32.totalorder 0, %v6649
        %v6651 = vsel %vm6650, 0, %v6649
        %v6652 = vsub.s32 32, %v6651
        %v6653 = vshll.u32 %v6644, %v6651
        %v6654 = vshrl.u32 %v6636, %v6652
        %v6655 = vor.u32 %v6653, %v6654
        %v6656 = vsub.s32 4294967266, %v6651
        %v6657 = vadd.s32 %v6656, 127
        %v6658 = vshll.u32 %v6657, 23
        %v6659 = vor.u32 4788187, %v6658
        %v6660 = vand.u32 2147483647, %v6659
        %v6662 = vcvt.s32.f32 %v6655
        %v6663 = vmul.f32 %v6662, %v6660
        %v6664 = vxor.u32 %v6663, 2147483648
        %v6665 = vsel %vm6582, %v6664, %v6663
        %v6666 = vsub.s32 4, %v6642
        %v6667 = vsel %vm6582, %v6666, %v6642
        %v6668 = vsel %vm6581, %v6579, %v6665
        %v6669 = vsel %vm6581, 0, %v6667
        %v6670 = vcosq.f32.pop %v6668
        %v6671 = vsinq.f32.pop %v6668
        %vm6672 = vweird.f32 %v6579
        %v6673 = vadd.s32 %v6669, 3
        %v6674 = vand.u32 %v6673, 3
        %vm6675 = vcmp.lt.s32.totalorder %v6674, 2
        %vm6676 = vcmp.eq.s32.totalorder %v6674, 0
        %v6677 = vxor.u32 %v6671, 2147483648
        %v6678 = vsel %vm6676, %v6670, %v6677
        %vm6679 = vcmp.eq.s32.totalorder %v6674, 2
        %v6680 = vxor.u32 %v6670, 2147483648
        %v6681 = vsel %vm6679, %v6680, %v6671
        %v6682 = vsel %vm6675, %v6678, %v6681
        %v6683 = vsel %vm6672, nan, %v6682
        %v6684 = vmul.f32 %v6683, %v6683
        %6686 = vset.pattern.permute.xlu0 0
        %6687 = vperm.xlu0 %6686, %v6573
        %v6688 = vpop.permute.xlu0 %6687
        %v6690 = vmul.f32 %v6688, %v6684
        %v6691 = vadd.f32 %v6571, %v6690
        %v6692 = vld [vmem:[%s55] sm:$0x1]
        %v6693 = vld [vmem:[#allocation2] sm:$0x1]
        %6695 = vrot.lane.b32.xlu0 %v6691, 3
        %v6696 = vpop.permute.xlu0 %6695
        %v6698 = vsel %vm912, 0.0, %v6696
        %v6699 = vsel %vm5399, %v6698, 0.0
        %6701 = vrot.lane.b32.xlu0 %v6699, 127
        %v6702 = vpop.permute.xlu0 %6701
        %6704 = vrot.lane.b32.xlu0 %v6699, 126
        %v6705 = vpop.permute.xlu0 %6704
        %6707 = vrot.lane.b32.xlu0 %v6699, 125
        %v6708 = vpop.permute.xlu0 %6707
        %6710 = vrot.lane.b32.xlu0 %v6699, 124
        %v6711 = vpop.permute.xlu0 %6710
        %6713 = vrot.lane.b32.xlu0 %v6699, 123
        %v6714 = vpop.permute.xlu0 %6713
        %6716 = vrot.lane.b32.xlu0 %v6699, 122
        %v6717 = vpop.permute.xlu0 %6716
        %6720 = vset.pattern.permute.xlu0 0
        %6721 = vperm.xlu0 %6720, %v6693
        %v6722 = vpop.permute.xlu0 %6721
        %v6724 = vlaneseq
        %v6725 = vshrl.u32 %v6724, 7
        %v6726 = vsub.s32 0, %v6725
        %v6727 = vrot.slane %v6722, %v6726
        %v6729 = vsel %vm955, %v6692, 0
        %6731 = vmatprep.subr.mxu0 0.0
        %6732 = vmatpush1.msra.mxu0 %v6699
        %6733 = vmatprep.subr.mxu0 0.0
        %6734 = vmatpush1.msra.mxu0 %v6702
        %6735 = vmatprep.subr.mxu0 0.0
        %6736 = vmatpush1.msra.mxu0 %v6705
        %6737 = vmatprep.subr.mxu0 0.0
        %6738 = vmatpush1.msra.mxu0 %v6708
        %6739 = vmatprep.subr.mxu0 0.0
        %6740 = vmatpush1.msra.mxu0 %v6711
        %6741 = vmatprep.subr.mxu0 0.0
        %6742 = vmatpush1.msra.mxu0 %v6714
        %6743 = vmatprep.subr.mxu0 0.0
        %6744 = vmatpush1.msra.mxu0 %v6717
        %6745 = vmatprep.subr.mxu0 0.0
        %6746 = vmatpush1.msra.mxu0 0.0
        %6747 = vmatprep.subr.mxu0 0.0
        %6748 = vmatpush1.msra.mxu0 0.0
        %6749 = vmatprep.subr.mxu0 0.0
        %6750 = vmatpush1.msra.mxu0 0.0
        %6751 = vmatprep.subr.mxu0 0.0
        %6752 = vmatpush1.msra.mxu0 0.0
        %6753 = vmatprep.subr.mxu0 0.0
        %6754 = vmatpush1.msra.mxu0 0.0
        %6755 = vmatprep.subr.mxu0 0.0
        %6756 = vmatpush1.msra.mxu0 0.0
        %6757 = vmatprep.subr.mxu0 0.0
        %6758 = vmatpush1.msra.mxu0 0.0
        %6759 = vmatprep.subr.mxu0 0.0
        %6760 = vmatpush1.msra.mxu0 0.0
        %6761 = vmatprep.subr.mxu0 0.0
        %6762 = vmatpush1.msra.mxu0 0.0
        %6763 = vmatprep.subr.mxu0 0.0
        %6764 = vmatpush1.msra.mxu0 0.0
        %6765 = vmatprep.subr.mxu0 0.0
        %6766 = vmatpush1.msra.mxu0 0.0
        %6767 = vmatprep.subr.mxu0 0.0
        %6768 = vmatpush1.msra.mxu0 0.0
        %6769 = vmatprep.subr.mxu0 0.0
        %6770 = vmatpush1.msra.mxu0 0.0
        %6771 = vmatprep.subr.mxu0 0.0
        %6772 = vmatpush1.msra.mxu0 0.0
        %6773 = vmatprep.subr.mxu0 0.0
        %6774 = vmatpush1.msra.mxu0 0.0
        %6775 = vmatprep.subr.mxu0 0.0
        %6776 = vmatpush1.msra.mxu0 0.0
        %6777 = vmatprep.subr.mxu0 0.0
        %6778 = vmatpush1.msra.mxu0 0.0
        %6779 = vmatprep.subr.mxu0 0.0
        %6780 = vmatpush1.msra.mxu0 0.0
        %6781 = vmatprep.subr.mxu0 0.0
        %6782 = vmatpush1.msra.mxu0 0.0
        %6783 = vmatprep.subr.mxu0 0.0
        %6784 = vmatpush1.msra.mxu0 0.0
        %6785 = vmatprep.subr.mxu0 0.0
        %6786 = vmatpush1.msra.mxu0 0.0
        %6787 = vmatprep.subr.mxu0 0.0
        %6788 = vmatpush1.msra.mxu0 0.0
        %6789 = vmatprep.subr.mxu0 0.0
        %6790 = vmatpush1.msra.mxu0 0.0
        %6791 = vmatprep.subr.mxu0 0.0
        %6792 = vmatpush1.msra.mxu0 0.0
        %6793 = vmatprep.subr.mxu0 0.0
        %6794 = vmatpush1.msra.mxu0 0.0
        %6795 = vmatprep.mubr.f32.mxu0 0.0
        %6796 = vmatmul.mubr.f32.gmra.mrb[0].mxu0 %v6729
        %v6797 = vpop.f32.mrb[0].mxu0
        %v6798 = vadd.f32 %v6727, %v6797
        %v6799 = vpop.f32.mrb[0].mxu0
        %6800 = vdwg.mxu0
        %v6801 = vtanh.pop %v6798
        %vm6802 = vcmask 523264
        %v6803 = vsel %vm6802, %v6801, 0.0
        %6804 = vst [vmem:[%s894] sm:$0x1] %v6803
        %s6805 = sand.u32 %s697, 1
        %s6806 = scalar_lea.sflag [#allocation4], %s6805
        %s6807 = sand.u32 %s697, 1
        %s6808 = scalar_lea.vmem [#allocation3], %s6807
        // Predicated region
        $region137: #{tpu_custom_call.1} parent=135 // pred_check
          %p6809 = pneg %p707
        $region138: #{tpu_custom_call.1} parent=135 // pred_check_branch
          %6811 = sbr.rel (%p6809) target = $region140
        $region139: #{tpu_custom_call.1} parent=135 // pred_region
          %s6813 = ssub.s32 16, 16
          %6814 = vsyncadd %s6806, %s6813
          %s6815 = smul.addr %s75, 16
          %s6816 = scalar_lea.hbm %s59, %s6815
          %s6818 = sshll.u32 %s6808, 4
          %s6819 = int_to_ptr.vmem [resolvable:$true] %s6818
          %6821 = dma.vmem_to_hbm [thread:$0]  %s6819, 16, %s6816, %s6806
        $region140: #{tpu_custom_call.1} parent=135 // pred_fallthru
          _
      $region136: #{tpu_custom_call.1} parent=5 // pred_fallthru
        _
      %p6822 = scmp.le.s32.totalorder 2, %s70
      // Predicated region
      $region141: #{tpu_custom_call.1} parent=5 // pred_check
        %p6823 = pneg %p6822
      $region142: #{tpu_custom_call.1} parent=5 // pred_check_branch
        %6825 = sbr.rel (%p6823) target = $region144
      $region143: #{tpu_custom_call.1} parent=5 // pred_region
        %s6826 = ssub.s32 %s70, 2
        // Predicated region
        $region145: #{tpu_custom_call.1} parent=143 // pred_check
          %p6827 = pneg %p713
        $region146: #{tpu_custom_call.1} parent=143 // pred_check_branch
          %6829 = sbr.rel (%p6827) target = $region148
        $region147: #{tpu_custom_call.1} parent=143 // pred_region
          %s6830 = sand.u32 %s698, 1
          %s6831 = scalar_lea.sflag [#allocation4], %s6830
          %s6832 = sand.u32 %s698, 1
          %s6833 = scalar_lea.vmem [#allocation3], %s6832
          %6834 = dma.done %s6831, 16
        $region148: #{tpu_custom_call.1} parent=143 // pred_fallthru
          _
      $region144: #{tpu_custom_call.1} parent=5 // pred_fallthru
        _
    $region6: #{tpu_custom_call.1} parent=1 // loop_footer
      %s74 = sadd.s32 1, %s70
    $region7: #{tpu_custom_call.1} parent=1 // loop_footer_branch
      %69 = sbr.rel target = $region3
    $region8: #{tpu_custom_call.1} parent=1 // loop_exit
      _
    %6835 = vsyncpa [#allocation4], 1
    %s6836 = scalar_lea.sflag [#allocation4], 1
    %6837 = vsyncpa %s6836, 1

</llo_original>
